<compile_context>
chip_gen: v6e
topology: v6e:2x2x1
jax: 0.10.0
libtpu: 0.0.40
codegen_flags: <defaults>
</compile_context>

<pallas_src>
import functools

import jax
import jax.numpy as jnp
from jax.experimental import pallas as pl
from jax.experimental.pallas import tpu as pltpu


def _round_up(x, m):
    return (x + m - 1) // m * m


def _pick_tile(n, prefs):
    for t in prefs:
        if n % t == 0:
            return t
    raise ValueError(f"no tile in {prefs} divides {n}")


# ---------------------------------------------------------------------------
# Pallas kernels
# ---------------------------------------------------------------------------

def _mm_stats_kernel(x_ref, w_ref, y_ref, s_ref, acc_ref):
    """Phase-stacked matmul (bf16 in, f32 accumulate) with fused BN statistics."""
    k = pl.program_id(2)

    @pl.when(k == 0)
    def _():
        acc_ref[...] = jnp.zeros_like(acc_ref)

    acc_ref[...] += jnp.dot(x_ref[0], w_ref[0],
                            preferred_element_type=jnp.float32)

    @pl.when(k == pl.num_programs(2) - 1)
    def _():
        acc = acc_ref[...]
        y_ref[0] = acc.astype(y_ref.dtype)
        colsum = jnp.sum(acc, axis=0, keepdims=True)            # (1, N)
        colsq = jnp.sum(acc * acc, axis=0, keepdims=True)       # (1, N)
        pad = jnp.zeros((6, acc.shape[1]), jnp.float32)
        s_ref[0] = jnp.concatenate([colsum, colsq, pad], axis=0)


def matmul_bn_stats(x, w):
    """y = x @ w per phase.  x:(P,M,K) bf16, w:(P,K,N) bf16.

    Returns y (P,M,N) bf16 plus per-column sum and sum-of-squares (each (N,),
    f32, summed over phases and M tiles), computed from the f32 accumulator.
    """
    P, M, K = x.shape
    Pw, Kw, N = w.shape
    assert P == Pw and K == Kw
    tm = _pick_tile(M, (256, 128, 64, 32, 16, 8))
    tk = _pick_tile(K, (512, 256, 128))
    mt, kt = M // tm, K // tk

    y, stats = pl.pallas_call(
        _mm_stats_kernel,
        out_shape=(jax.ShapeDtypeStruct((P, M, N), jnp.bfloat16),
                   jax.ShapeDtypeStruct((P, mt * 8, N), jnp.float32)),
        grid=(P, mt, kt),
        in_specs=[
            pl.BlockSpec((1, tm, tk), lambda p, i, k: (p, i, k)),
            pl.BlockSpec((1, tk, N), lambda p, i, k: (p, k, 0)),
        ],
        out_specs=[
            pl.BlockSpec((1, tm, N), lambda p, i, k: (p, i, 0)),
            pl.BlockSpec((1, 8, N), lambda p, i, k: (p, i, 0)),
        ],
        scratch_shapes=[pltpu.VMEM((tm, N), jnp.float32)],
        compiler_params=pltpu.CompilerParams(
            dimension_semantics=("parallel", "parallel", "arbitrary")),
    )(x, w)

    col_sum = jnp.sum(stats[:, 0::8, :], axis=(0, 1))
    col_sq = jnp.sum(stats[:, 1::8, :], axis=(0, 1))
    return y, col_sum, col_sq


def _mm_bias_tanh_kernel(x_ref, w_ref, b_ref, y_ref, acc_ref):
    """Phase-stacked matmul with fused bias + tanh epilogue (final layer)."""
    k = pl.program_id(2)

    @pl.when(k == 0)
    def _():
        acc_ref[...] = jnp.zeros_like(acc_ref)

    acc_ref[...] += jnp.dot(x_ref[0], w_ref[0],
                            preferred_element_type=jnp.float32)

    @pl.when(k == pl.num_programs(2) - 1)
    def _():
        y_ref[0] = jnp.tanh(acc_ref[...] + b_ref[...]).astype(y_ref.dtype)


def matmul_bias_tanh(x, w, b):
    """y = tanh(x @ w + b) per phase.  x:(P,M,K) bf16, w:(P,K,N) bf16, b:(1,N) f32."""
    P, M, K = x.shape
    N = w.shape[2]
    tm = _pick_tile(M, (256, 128, 64, 32, 16, 8))
    tk = _pick_tile(K, (512, 256, 128))

    return pl.pallas_call(
        _mm_bias_tanh_kernel,
        out_shape=jax.ShapeDtypeStruct((P, M, N), jnp.float32),
        grid=(P, M // tm, K // tk),
        in_specs=[
            pl.BlockSpec((1, tm, tk), lambda p, i, k: (p, i, k)),
            pl.BlockSpec((1, tk, N), lambda p, i, k: (p, k, 0)),
            pl.BlockSpec((1, N), lambda p, i, k: (0, 0)),
        ],
        out_specs=pl.BlockSpec((1, tm, N), lambda p, i, k: (p, i, 0)),
        scratch_shapes=[pltpu.VMEM((tm, N), jnp.float32)],
        compiler_params=pltpu.CompilerParams(
            dimension_semantics=("parallel", "parallel", "arbitrary")),
    )(x, w, b)


def _affine_relu_kernel(y_ref, sc_ref, sh_ref, o_ref):
    v = y_ref[...].astype(jnp.float32) * sc_ref[...] + sh_ref[...]
    o_ref[...] = jnp.maximum(v, 0.0).astype(o_ref.dtype)


def affine_relu(y, scale, shift, out_dtype=jnp.bfloat16):
    """out = relu(y * scale + shift), per-column scale/shift.  y:(R,C)."""
    R, C = y.shape
    tr = _pick_tile(R, (1024, 512, 256, 128, 64, 32, 16, 8))
    return pl.pallas_call(
        _affine_relu_kernel,
        out_shape=jax.ShapeDtypeStruct((R, C), out_dtype),
        grid=(R // tr,),
        in_specs=[
            pl.BlockSpec((tr, C), lambda i: (i, 0)),
            pl.BlockSpec((1, C), lambda i: (0, 0)),
            pl.BlockSpec((1, C), lambda i: (0, 0)),
        ],
        out_specs=pl.BlockSpec((tr, C), lambda i: (i, 0)),
        compiler_params=pltpu.CompilerParams(
            dimension_semantics=("parallel",)),
    )(y, scale.reshape(1, C).astype(jnp.float32),
      shift.reshape(1, C).astype(jnp.float32))


# ---------------------------------------------------------------------------
# Sub-pixel decomposition of ConvTranspose2d(k=4, s=2, p=1)  (plain-JAX glue)
# ---------------------------------------------------------------------------
# Output pixel (oh, ow) = (2m + pi, 2n + pj) only sees kernel taps whose parity
# matches: phase p = 2*pi + pj uses the 4 taps below.  (dh, dw) index the
# 1-padded input (padded index = original index + 1).
_PHASE_TAPS = (
    (((1, 1), (1, 1)), ((1, 3), (1, 0)), ((3, 1), (0, 1)), ((3, 3), (0, 0))),  # EE
    (((1, 2), (1, 1)), ((1, 0), (1, 2)), ((3, 2), (0, 1)), ((3, 0), (0, 2))),  # EO
    (((2, 1), (1, 1)), ((2, 3), (1, 0)), ((0, 1), (2, 1)), ((0, 3), (2, 0))),  # OE
    (((2, 2), (1, 1)), ((2, 0), (1, 2)), ((0, 2), (2, 1)), ((0, 0), (2, 2))),  # OO
)


def _phase_weights(w, cinp, coutp):
    """PyTorch ConvTranspose2d weight (Cin,Cout,4,4) -> (4, 4*cinp, coutp) bf16."""
    cin, cout = w.shape[:2]
    wp = jnp.zeros((cinp, coutp, 4, 4), jnp.float32).at[:cin, :cout].set(w)
    phases = []
    for taps in _PHASE_TAPS:
        mats = [wp[:, :, kh, kw] for (kh, kw), _ in taps]       # 4 x (cinp, coutp)
        phases.append(jnp.stack(mats, axis=0).reshape(4 * cinp, coutp))
    return jnp.stack(phases, axis=0).astype(jnp.bfloat16)


def _subpixel_patches(x):
    """NHWC (N,H,W,C) -> (4, N*H*W, 4*C): per-phase im2col, K = 4*C not 16*C."""
    n, h, w, c = x.shape
    xp = jnp.pad(x, ((0, 0), (1, 1), (1, 1), (0, 0)))
    phases = []
    for taps in _PHASE_TAPS:
        sl = [xp[:, dh:dh + h, dw:dw + w, :] for _, (dh, dw) in taps]
        phases.append(jnp.stack(sl, axis=3).reshape(n * h * w, 4 * c))
    return jnp.stack(phases, axis=0)


def _phases_to_nhwc(yph, n, h, w):
    """(4, n*h*w, C) phase layout -> NHWC (n, 2h, 2w, C) via pixel-shuffle."""
    c = yph.shape[-1]
    t = yph.reshape(2, 2, n, h, w, c).transpose(2, 3, 0, 4, 1, 5)
    return t.reshape(n, 2 * h, 2 * w, c)


def _bn_scale_shift(col_sum, col_sq, count, gamma_p, beta_p, eps=1e-5):
    mean = col_sum / count
    var = jnp.maximum(col_sq / count - mean * mean, 0.0)   # biased, as PyTorch BN
    scale = gamma_p * jax.lax.rsqrt(var + eps)
    shift = beta_p - mean * scale
    return scale, shift


# ---------------------------------------------------------------------------
# Parameter preparation (done once): pad channels to 128, cast to bf16
# ---------------------------------------------------------------------------

def prepare_params(params):
    prep = []
    # layer 1: ConvTranspose2d(k=4, s=1, p=0) on a 1x1 input == plain matmul
    p = params[0]
    cin, cout = p["w"].shape[:2]
    cinp, coutp = _round_up(cin, 128), _round_up(cout, 128)
    wp = jnp.zeros((cinp, coutp, 4, 4), jnp.float32).at[:cin, :cout].set(p["w"])
    wmat = wp.transpose(0, 2, 3, 1).reshape(cinp, 16 * coutp)   # cols = (kh, kw, cout)
    prep.append(dict(
        w=wmat[None].astype(jnp.bfloat16),
        gamma=jnp.zeros((coutp,), jnp.float32).at[:cout].set(p["gamma"]),
        beta=jnp.zeros((coutp,), jnp.float32).at[:cout].set(p["beta"])))
    # layers 2-4: bias dropped (training-mode BN cancels it)
    for p in params[1:4]:
        cin, cout = p["w"].shape[:2]
        cinp, coutp = _round_up(cin, 128), _round_up(cout, 128)
        prep.append(dict(
            w=_phase_weights(p["w"], cinp, coutp),
            gamma=jnp.zeros((coutp,), jnp.float32).at[:cout].set(p["gamma"]),
            beta=jnp.zeros((coutp,), jnp.float32).at[:cout].set(p["beta"])))
    # layer 5: keeps its bias, tanh fused in the matmul epilogue
    p = params[4]
    cin, cout = p["w"].shape[:2]
    cinp, coutp = _round_up(cin, 128), _round_up(cout, 128)
    prep.append(dict(
        w=_phase_weights(p["w"], cinp, coutp),
        b=jnp.zeros((1, coutp), jnp.float32).at[0, :cout].set(p["b"])))
    return prep


# ---------------------------------------------------------------------------
# topdownGenerator forward
# ---------------------------------------------------------------------------

def topdown_generator_forward(z_nchw, prep, *, output_dim):
    """z_nchw: (N, input_dim, 1, 1) -> (N, output_dim, 64, 64), NCHW like PyTorch."""
    n, zdim = z_nchw.shape[0], z_nchw.shape[1]

    # ---- layer 1: ConvTranspose2d(k=4, s=1, p=0) + BN + ReLU -----------------
    p = prep[0]
    cinp = p["w"].shape[1]
    coutp = p["gamma"].shape[0]
    mp = _round_up(n, 8)
    zmat = jnp.zeros((1, mp, cinp), jnp.bfloat16)
    zmat = zmat.at[0, :n, :zdim].set(z_nchw.reshape(n, zdim).astype(jnp.bfloat16))
    y, s1, s2 = matmul_bn_stats(zmat, p["w"])          # y: (1, mp, 16*coutp)
    col_sum = s1.reshape(16, coutp).sum(0)             # regroup: stats per channel
    col_sq = s2.reshape(16, coutp).sum(0)
    scale, shift = _bn_scale_shift(col_sum, col_sq, float(n * 16),
                                   p["gamma"], p["beta"])
    rows = y[0, :n].reshape(n * 16, coutp)             # rows ordered (n, kh, kw)
    x = affine_relu(rows, scale, shift).reshape(n, 4, 4, coutp)   # NHWC bf16

    # ---- layers 2-4: ConvTranspose2d(k=4, s=2, p=1) + BN + ReLU --------------
    for p in prep[1:4]:
        h, w = x.shape[1], x.shape[2]
        xph = _subpixel_patches(x)                     # (4, n*h*w, 4*Cinp) bf16
        y, s1, s2 = matmul_bn_stats(xph, p["w"])       # (4, n*h*w, coutp) bf16
        coutp = y.shape[-1]
        scale, shift = _bn_scale_shift(s1, s2, float(4 * n * h * w),
                                       p["gamma"], p["beta"])
        a = affine_relu(y.reshape(4 * n * h * w, coutp), scale, shift)
        x = _phases_to_nhwc(a.reshape(4, n * h * w, coutp), n, h, w)

    # ---- layer 5: ConvTranspose2d(k=4, s=2, p=1) + Tanh (fused) --------------
    p = prep[4]
    h, w = x.shape[1], x.shape[2]
    xph = _subpixel_patches(x)
    y = matmul_bias_tanh(xph, p["w"], p["b"])          # (4, n*h*w, coutp) f32
    out_nhwc = _phases_to_nhwc(y, n, h, w)
    return out_nhwc[:, :, :, :output_dim].transpose(0, 3, 1, 2)

# TODO(synk): grad_log_fn / loss_fn / train depend on an external sampler, an
# EBM, Langevin dynamics and an optimizer; only the forward pass is implemented.


# ---------------------------------------------------------------------------
# Reference (plain JAX, f32) and parameter init for the self-test
# ---------------------------------------------------------------------------

def init_params(key, input_dim, feature_dim, output_dim):
    dims = [(input_dim, feature_dim * 16), (feature_dim * 16, feature_dim * 8),
            (feature_dim * 8, feature_dim * 4), (feature_dim * 4, feature_dim * 2),
            (feature_dim * 2, output_dim)]
    params = []
    for cin, cout in dims:
        key, kw, kb, kg, kbt = jax.random.split(key, 5)
        bound = 1.0 / float(jnp.sqrt(cin * 16.0))
        params.append(dict(
            w=jax.random.uniform(kw, (cin, cout, 4, 4), jnp.float32, -bound, bound),
            b=jax.random.uniform(kb, (cout,), jnp.float32, -bound, bound),
            gamma=jax.random.uniform(kg, (cout,), jnp.float32, 0.8, 1.2),
            beta=0.1 * jax.random.normal(kbt, (cout,), jnp.float32)))
    return params


def reference_forward(z, params, eps=1e-5):
    def convT(x, w, b, stride, pad):
        k = w.shape[2]
        out = jax.lax.conv_general_dilated(
            x, jnp.flip(w, (2, 3)).transpose(1, 0, 2, 3),
            window_strides=(1, 1),
            padding=[(k - 1 - pad, k - 1 - pad)] * 2,
            lhs_dilation=(stride, stride),
            dimension_numbers=("NCHW", "OIHW", "NCHW"),
            precision=jax.lax.Precision.HIGHEST)
        return out + b.reshape(1, -1, 1, 1)

    def bn_relu(x, gamma, beta):
        mean = x.mean(axis=(0, 2, 3), keepdims=True)
        var = x.var(axis=(0, 2, 3), keepdims=True)
        y = (x - mean) / jnp.sqrt(var + eps)
        y = y * gamma.reshape(1, -1, 1, 1) + beta.reshape(1, -1, 1, 1)
        return jnp.maximum(y, 0.0)

    p = params[0]
    x = bn_relu(convT(z, p["w"], p["b"], 1, 0), p["gamma"], p["beta"])
    for p in params[1:4]:
        x = bn_relu(convT(x, p["w"], p["b"], 2, 1), p["gamma"], p["beta"])
    p = params[4]
    return jnp.tanh(convT(x, p["w"], p["b"], 2, 1))


if __name__ == "__main__":
    key = jax.random.PRNGKey(0)
    kz, kp = jax.random.split(key)

    batch, input_dim, feature_dim, output_dim = 2, 8, 4, 3
    z = jax.random.normal(kz, (batch, input_dim, 1, 1), jnp.float32)
    params = init_params(kp, input_dim, feature_dim, output_dim)
    prep = prepare_params(params)

    fwd = jax.jit(functools.partial(topdown_generator_forward,
                                    output_dim=output_dim))
    out = jax.block_until_ready(fwd(z, prep))

    assert out.shape == (batch, output_dim, 64, 64), out.shape
    assert bool(jnp.all(jnp.isfinite(out)))
    assert bool(jnp.all(jnp.abs(out) <= 1.0 + 1e-5))   # tanh range

    ref = reference_forward(z, params)
    max_err = float(jnp.max(jnp.abs(out - ref)))
    assert max_err < 0.2, f"max abs error vs f32 reference: {max_err}"

    print("KERNEL_OK")
</pallas_src>

<mosaic_0001>
module attributes {stable_mosaic.version = 11 : i64} {
  func.func @_mm_stats_kernel(%arg0: i32, %arg1: i32, %arg2: i32, %arg3: memref<1x8x128xbf16, #tpu.memory_space<vmem>>, %arg4: memref<1x128x2048xbf16, #tpu.memory_space<vmem>>, %arg5: memref<1x8x2048xbf16, #tpu.memory_space<vmem>>, %arg6: memref<1x8x2048xf32, #tpu.memory_space<vmem>>, %arg7: memref<8x2048xf32, #tpu.memory_space<vmem>>) attributes {dimension_semantics = [#tpu.dimension_semantics<parallel>, #tpu.dimension_semantics<parallel>, #tpu.dimension_semantics<arbitrary>], iteration_bounds = array<i64: 1, 1, 1>, scalar_prefetch = 0 : i64, scratch_operands = 1 : i64, tpu.core_type = #tpu.core_type<tc>, window_params = [{transform_indices = @transform_0, window_bounds = array<i64: 1, 8, 128>}, {transform_indices = @transform_1, window_bounds = array<i64: 1, 128, 2048>}, {transform_indices = @transform_2, window_bounds = array<i64: 1, 8, 2048>}, {transform_indices = @transform_3, window_bounds = array<i64: 1, 8, 2048>}]} {
    %c0_i32 = arith.constant 0 : i32
    %0 = arith.cmpi eq, %arg2, %c0_i32 : i32
    %1 = arith.extui %0 : i1 to i32
    %c0_i32_0 = arith.constant 0 : i32
    %2 = arith.cmpi ne, %1, %c0_i32_0 : i32
    scf.if %2 {
      %cst_12 = arith.constant 0.000000e+00 : f32
      %14 = vector.broadcast %cst_12 : f32 to vector<8x2048xf32>
      %c0_13 = arith.constant 0 : index
      %c0_14 = arith.constant 0 : index
      %15 = vector.load %arg7[%c0_13, %c0_14] : memref<8x2048xf32, #tpu.memory_space<vmem>>, vector<8x2048xf32>
      tpu.vector_store %arg7[%c0_13, %c0_14], %14 {strides = array<i32>} : memref<8x2048xf32, #tpu.memory_space<vmem>>, vector<8x2048xf32>,
    } else {
    }
    %c0 = arith.constant 0 : index
    %c0_1 = arith.constant 0 : index
    %3 = vector.load %arg7[%c0, %c0_1] : memref<8x2048xf32, #tpu.memory_space<vmem>>, vector<8x2048xf32>
    %c0_2 = arith.constant 0 : index
    %c0_3 = arith.constant 0 : index
    %c0_4 = arith.constant 0 : index
    %4 = vector.load %arg3[%c0_2, %c0_3, %c0_4] : memref<1x8x128xbf16, #tpu.memory_space<vmem>>, vector<1x8x128xbf16>
    %5 = vector.shape_cast %4 : vector<1x8x128xbf16> to vector<8x128xbf16>
    %c0_5 = arith.constant 0 : index
    %c0_6 = arith.constant 0 : index
    %c0_7 = arith.constant 0 : index
    %6 = vector.load %arg4[%c0_5, %c0_6, %c0_7] : memref<1x128x2048xbf16, #tpu.memory_space<vmem>>, vector<1x128x2048xbf16>
    %7 = vector.shape_cast %6 : vector<1x128x2048xbf16> to vector<128x2048xbf16>
    %cst = arith.constant dense<0.000000e+00> : vector<8x2048xf32>
    %8 = tpu.matmul %5, %7, %cst {dimension_numbers = #tpu.dot_dimension_numbers<[1], [0], [0], [1], [0, 0, 1, 1], [], []>} : vector<8x128xbf16>, vector<128x2048xbf16>, vector<8x2048xf32> -> vector<8x2048xf32>
    %9 = arith.addf %3, %8 : vector<8x2048xf32>
    %c0_8 = arith.constant 0 : index
    %c0_9 = arith.constant 0 : index
    %10 = vector.load %arg7[%c0_8, %c0_9] : memref<8x2048xf32, #tpu.memory_space<vmem>>, vector<8x2048xf32>
    tpu.vector_store %arg7[%c0_8, %c0_9], %9 {strides = array<i32>} : memref<8x2048xf32, #tpu.memory_space<vmem>>, vector<8x2048xf32>,
    %c0_i32_10 = arith.constant 0 : i32
    %11 = arith.cmpi eq, %arg2, %c0_i32_10 : i32
    %12 = arith.extui %11 : i1 to i32
    %c0_i32_11 = arith.constant 0 : i32
    %13 = arith.cmpi ne, %12, %c0_i32_11 : i32
    scf.if %13 {
      %c0_12 = arith.constant 0 : index
      %c0_13 = arith.constant 0 : index
      %14 = vector.load %arg7[%c0_12, %c0_13] : memref<8x2048xf32, #tpu.memory_space<vmem>>, vector<8x2048xf32>
      %15 = arith.truncf %14 : vector<8x2048xf32> to vector<8x2048xbf16>
      %c0_14 = arith.constant 0 : index
      %c0_15 = arith.constant 0 : index
      %c0_16 = arith.constant 0 : index
      %16 = vector.load %arg5[%c0_14, %c0_15, %c0_16] : memref<1x8x2048xbf16, #tpu.memory_space<vmem>>, vector<1x8x2048xbf16>
      %17 = vector.shape_cast %16 : vector<1x8x2048xbf16> to vector<8x2048xbf16>
      %18 = vector.shape_cast %15 : vector<8x2048xbf16> to vector<1x8x2048xbf16>
      tpu.vector_store %arg5[%c0_14, %c0_15, %c0_16], %18 {strides = array<i32>} : memref<1x8x2048xbf16, #tpu.memory_space<vmem>>, vector<1x8x2048xbf16>,
      %cst_17 = arith.constant dense<0.000000e+00> : vector<2048xf32>
      %19 = vector.multi_reduction <add>, %14, %cst_17 [0] : vector<8x2048xf32> to vector<2048xf32>
      %20 = vector.shape_cast %19 : vector<2048xf32> to vector<1x2048xf32>
      %21 = arith.mulf %14, %14 : vector<8x2048xf32>
      %cst_18 = arith.constant dense<0.000000e+00> : vector<2048xf32>
      %22 = vector.multi_reduction <add>, %21, %cst_18 [0] : vector<8x2048xf32> to vector<2048xf32>
      %23 = vector.shape_cast %22 : vector<2048xf32> to vector<1x2048xf32>
      %cst_19 = arith.constant 0.000000e+00 : f32
      %24 = vector.broadcast %cst_19 : f32 to vector<6x2048xf32>
      %25 = tpu.concatenate %20, %23, %24 in 0 : vector<1x2048xf32>, vector<1x2048xf32>, vector<6x2048xf32> -> vector<8x2048xf32>
      %c0_20 = arith.constant 0 : index
      %c0_21 = arith.constant 0 : index
      %c0_22 = arith.constant 0 : index
      %26 = vector.load %arg6[%c0_20, %c0_21, %c0_22] : memref<1x8x2048xf32, #tpu.memory_space<vmem>>, vector<1x8x2048xf32>
      %27 = vector.shape_cast %26 : vector<1x8x2048xf32> to vector<8x2048xf32>
      %28 = vector.shape_cast %25 : vector<8x2048xf32> to vector<1x8x2048xf32>
      tpu.vector_store %arg6[%c0_20, %c0_21, %c0_22], %28 {strides = array<i32>} : memref<1x8x2048xf32, #tpu.memory_space<vmem>>, vector<1x8x2048xf32>,
    } else {
    }
    return
  }
  func.func @transform_0(%arg0: i32, %arg1: i32, %arg2: i32) -> (i32, i32, i32) {
    %c0_i32 = arith.constant 0 : i32
    return %arg0, %arg1, %arg2 : i32, i32, i32
  }
  func.func @transform_1(%arg0: i32, %arg1: i32, %arg2: i32) -> (i32, i32, i32) {
    %c0_i32 = arith.constant 0 : i32
    %c0_i32_0 = arith.constant 0 : i32
    return %arg0, %arg2, %c0_i32 : i32, i32, i32
  }
  func.func @transform_2(%arg0: i32, %arg1: i32, %arg2: i32) -> (i32, i32, i32) {
    %c0_i32 = arith.constant 0 : i32
    %c0_i32_0 = arith.constant 0 : i32
    return %arg0, %arg1, %c0_i32 : i32, i32, i32
  }
  func.func @transform_3(%arg0: i32, %arg1: i32, %arg2: i32) -> (i32, i32, i32) {
    %c0_i32 = arith.constant 0 : i32
    %c0_i32_0 = arith.constant 0 : i32
    return %arg0, %arg1, %c0_i32 : i32, i32, i32
  }
}

module attributes {stable_mosaic.version = 11 : i64} {
  func.func @_affine_relu_kernel(%arg0: i32, %arg1: memref<32x128xbf16, #tpu.memory_space<vmem>>, %arg2: memref<1x128xf32, #tpu.memory_space<vmem>>, %arg3: memref<1x128xf32, #tpu.memory_space<vmem>>, %arg4: memref<32x128xbf16, #tpu.memory_space<vmem>>) attributes {dimension_semantics = [#tpu.dimension_semantics<parallel>], iteration_bounds = array<i64: 1>, scalar_prefetch = 0 : i64, scratch_operands = 0 : i64, tpu.core_type = #tpu.core_type<tc>, window_params = [{transform_indices = @transform_0, window_bounds = array<i64: 32, 128>}, {pipeline_mode = #tpu.pipeline_mode<synchronous>, transform_indices = @transform_1, window_bounds = array<i64: 1, 128>}, {pipeline_mode = #tpu.pipeline_mode<synchronous>, transform_indices = @transform_2, window_bounds = array<i64: 1, 128>}, {transform_indices = @transform_3, window_bounds = array<i64: 32, 128>}]} {
    %c0 = arith.constant 0 : index
    %c0_0 = arith.constant 0 : index
    %0 = vector.load %arg1[%c0, %c0_0] : memref<32x128xbf16, #tpu.memory_space<vmem>>, vector<32x128xbf16>
    %1 = arith.extf %0 : vector<32x128xbf16> to vector<32x128xf32>
    %c0_1 = arith.constant 0 : index
    %c0_2 = arith.constant 0 : index
    %2 = vector.load %arg2[%c0_1, %c0_2] : memref<1x128xf32, #tpu.memory_space<vmem>>, vector<1x128xf32>
    %3 = vector.broadcast %2 : vector<1x128xf32> to vector<32x128xf32>
    %4 = arith.mulf %1, %3 : vector<32x128xf32>
    %c0_3 = arith.constant 0 : index
    %c0_4 = arith.constant 0 : index
    %5 = vector.load %arg3[%c0_3, %c0_4] : memref<1x128xf32, #tpu.memory_space<vmem>>, vector<1x128xf32>
    %6 = vector.broadcast %5 : vector<1x128xf32> to vector<32x128xf32>
    %7 = arith.addf %4, %6 : vector<32x128xf32>
    %cst = arith.constant 0.000000e+00 : f32
    %8 = vector.broadcast %cst : f32 to vector<32x128xf32>
    %9 = arith.maximumf %7, %8 : vector<32x128xf32>
    %10 = arith.truncf %9 : vector<32x128xf32> to vector<32x128xbf16>
    %c0_5 = arith.constant 0 : index
    %c0_6 = arith.constant 0 : index
    %11 = vector.load %arg4[%c0_5, %c0_6] : memref<32x128xbf16, #tpu.memory_space<vmem>>, vector<32x128xbf16>
    tpu.vector_store %arg4[%c0_5, %c0_6], %10 {strides = array<i32>} : memref<32x128xbf16, #tpu.memory_space<vmem>>, vector<32x128xbf16>,
    return
  }
  func.func @transform_0(%arg0: i32) -> (i32, i32) {
    %c0_i32 = arith.constant 0 : i32
    %c0_i32_0 = arith.constant 0 : i32
    return %arg0, %c0_i32 : i32, i32
  }
  func.func @transform_1(%arg0: i32) -> (i32, i32) {
    %c0_i32 = arith.constant 0 : i32
    %c0_i32_0 = arith.constant 0 : i32
    %c0_i32_1 = arith.constant 0 : i32
    return %c0_i32, %c0_i32_0 : i32, i32
  }
  func.func @transform_2(%arg0: i32) -> (i32, i32) {
    %c0_i32 = arith.constant 0 : i32
    %c0_i32_0 = arith.constant 0 : i32
    %c0_i32_1 = arith.constant 0 : i32
    return %c0_i32, %c0_i32_0 : i32, i32
  }
  func.func @transform_3(%arg0: i32) -> (i32, i32) {
    %c0_i32 = arith.constant 0 : i32
    %c0_i32_0 = arith.constant 0 : i32
    return %arg0, %c0_i32 : i32, i32
  }
}

module attributes {stable_mosaic.version = 11 : i64} {
  func.func @_mm_stats_kernel(%arg0: i32, %arg1: i32, %arg2: i32, %arg3: memref<1x32x512xbf16, #tpu.memory_space<vmem>>, %arg4: memref<1x512x128xbf16, #tpu.memory_space<vmem>>, %arg5: memref<1x32x128xbf16, #tpu.memory_space<vmem>>, %arg6: memref<1x8x128xf32, #tpu.memory_space<vmem>>, %arg7: memref<32x128xf32, #tpu.memory_space<vmem>>) attributes {dimension_semantics = [#tpu.dimension_semantics<parallel>, #tpu.dimension_semantics<parallel>, #tpu.dimension_semantics<arbitrary>], iteration_bounds = array<i64: 4, 1, 1>, scalar_prefetch = 0 : i64, scratch_operands = 1 : i64, tpu.core_type = #tpu.core_type<tc>, window_params = [{transform_indices = @transform_0, window_bounds = array<i64: 1, 32, 512>}, {transform_indices = @transform_1, window_bounds = array<i64: 1, 512, 128>}, {transform_indices = @transform_2, window_bounds = array<i64: 1, 32, 128>}, {transform_indices = @transform_3, window_bounds = array<i64: 1, 8, 128>}]} {
    %c0_i32 = arith.constant 0 : i32
    %0 = arith.cmpi eq, %arg2, %c0_i32 : i32
    %1 = arith.extui %0 : i1 to i32
    %c0_i32_0 = arith.constant 0 : i32
    %2 = arith.cmpi ne, %1, %c0_i32_0 : i32
    scf.if %2 {
      %cst_12 = arith.constant 0.000000e+00 : f32
      %14 = vector.broadcast %cst_12 : f32 to vector<32x128xf32>
      %c0_13 = arith.constant 0 : index
      %c0_14 = arith.constant 0 : index
      %15 = vector.load %arg7[%c0_13, %c0_14] : memref<32x128xf32, #tpu.memory_space<vmem>>, vector<32x128xf32>
      tpu.vector_store %arg7[%c0_13, %c0_14], %14 {strides = array<i32>} : memref<32x128xf32, #tpu.memory_space<vmem>>, vector<32x128xf32>,
    } else {
    }
    %c0 = arith.constant 0 : index
    %c0_1 = arith.constant 0 : index
    %3 = vector.load %arg7[%c0, %c0_1] : memref<32x128xf32, #tpu.memory_space<vmem>>, vector<32x128xf32>
    %c0_2 = arith.constant 0 : index
    %c0_3 = arith.constant 0 : index
    %c0_4 = arith.constant 0 : index
    %4 = vector.load %arg3[%c0_2, %c0_3, %c0_4] : memref<1x32x512xbf16, #tpu.memory_space<vmem>>, vector<1x32x512xbf16>
    %5 = vector.shape_cast %4 : vector<1x32x512xbf16> to vector<32x512xbf16>
    %c0_5 = arith.constant 0 : index
    %c0_6 = arith.constant 0 : index
    %c0_7 = arith.constant 0 : index
    %6 = vector.load %arg4[%c0_5, %c0_6, %c0_7] : memref<1x512x128xbf16, #tpu.memory_space<vmem>>, vector<1x512x128xbf16>
    %7 = vector.shape_cast %6 : vector<1x512x128xbf16> to vector<512x128xbf16>
    %cst = arith.constant dense<0.000000e+00> : vector<32x128xf32>
    %8 = tpu.matmul %5, %7, %cst {dimension_numbers = #tpu.dot_dimension_numbers<[1], [0], [0], [1], [0, 0, 1, 1], [], []>} : vector<32x512xbf16>, vector<512x128xbf16>, vector<32x128xf32> -> vector<32x128xf32>
    %9 = arith.addf %3, %8 : vector<32x128xf32>
    %c0_8 = arith.constant 0 : index
    %c0_9 = arith.constant 0 : index
    %10 = vector.load %arg7[%c0_8, %c0_9] : memref<32x128xf32, #tpu.memory_space<vmem>>, vector<32x128xf32>
    tpu.vector_store %arg7[%c0_8, %c0_9], %9 {strides = array<i32>} : memref<32x128xf32, #tpu.memory_space<vmem>>, vector<32x128xf32>,
    %c0_i32_10 = arith.constant 0 : i32
    %11 = arith.cmpi eq, %arg2, %c0_i32_10 : i32
    %12 = arith.extui %11 : i1 to i32
    %c0_i32_11 = arith.constant 0 : i32
    %13 = arith.cmpi ne, %12, %c0_i32_11 : i32
    scf.if %13 {
      %c0_12 = arith.constant 0 : index
      %c0_13 = arith.constant 0 : index
      %14 = vector.load %arg7[%c0_12, %c0_13] : memref<32x128xf32, #tpu.memory_space<vmem>>, vector<32x128xf32>
      %15 = arith.truncf %14 : vector<32x128xf32> to vector<32x128xbf16>
      %c0_14 = arith.constant 0 : index
      %c0_15 = arith.constant 0 : index
      %c0_16 = arith.constant 0 : index
      %16 = vector.load %arg5[%c0_14, %c0_15, %c0_16] : memref<1x32x128xbf16, #tpu.memory_space<vmem>>, vector<1x32x128xbf16>
      %17 = vector.shape_cast %16 : vector<1x32x128xbf16> to vector<32x128xbf16>
      %18 = vector.shape_cast %15 : vector<32x128xbf16> to vector<1x32x128xbf16>
      tpu.vector_store %arg5[%c0_14, %c0_15, %c0_16], %18 {strides = array<i32>} : memref<1x32x128xbf16, #tpu.memory_space<vmem>>, vector<1x32x128xbf16>,
      %cst_17 = arith.constant dense<0.000000e+00> : vector<128xf32>
      %19 = vector.multi_reduction <add>, %14, %cst_17 [0] : vector<32x128xf32> to vector<128xf32>
      %20 = vector.shape_cast %19 : vector<128xf32> to vector<1x128xf32>
      %21 = arith.mulf %14, %14 : vector<32x128xf32>
      %cst_18 = arith.constant dense<0.000000e+00> : vector<128xf32>
      %22 = vector.multi_reduction <add>, %21, %cst_18 [0] : vector<32x128xf32> to vector<128xf32>
      %23 = vector.shape_cast %22 : vector<128xf32> to vector<1x128xf32>
      %cst_19 = arith.constant 0.000000e+00 : f32
      %24 = vector.broadcast %cst_19 : f32 to vector<6x128xf32>
      %25 = tpu.concatenate %20, %23, %24 in 0 : vector<1x128xf32>, vector<1x128xf32>, vector<6x128xf32> -> vector<8x128xf32>
      %c0_20 = arith.constant 0 : index
      %c0_21 = arith.constant 0 : index
      %c0_22 = arith.constant 0 : index
      %26 = vector.load %arg6[%c0_20, %c0_21, %c0_22] : memref<1x8x128xf32, #tpu.memory_space<vmem>>, vector<1x8x128xf32>
      %27 = vector.shape_cast %26 : vector<1x8x128xf32> to vector<8x128xf32>
      %28 = vector.shape_cast %25 : vector<8x128xf32> to vector<1x8x128xf32>
      tpu.vector_store %arg6[%c0_20, %c0_21, %c0_22], %28 {strides = array<i32>} : memref<1x8x128xf32, #tpu.memory_space<vmem>>, vector<1x8x128xf32>,
    } else {
    }
    return
  }
  func.func @transform_0(%arg0: i32, %arg1: i32, %arg2: i32) -> (i32, i32, i32) {
    %c0_i32 = arith.constant 0 : i32
    return %arg0, %arg1, %arg2 : i32, i32, i32
  }
  func.func @transform_1(%arg0: i32, %arg1: i32, %arg2: i32) -> (i32, i32, i32) {
    %c0_i32 = arith.constant 0 : i32
    %c0_i32_0 = arith.constant 0 : i32
    return %arg0, %arg2, %c0_i32 : i32, i32, i32
  }
  func.func @transform_2(%arg0: i32, %arg1: i32, %arg2: i32) -> (i32, i32, i32) {
    %c0_i32 = arith.constant 0 : i32
    %c0_i32_0 = arith.constant 0 : i32
    return %arg0, %arg1, %c0_i32 : i32, i32, i32
  }
  func.func @transform_3(%arg0: i32, %arg1: i32, %arg2: i32) -> (i32, i32, i32) {
    %c0_i32 = arith.constant 0 : i32
    %c0_i32_0 = arith.constant 0 : i32
    return %arg0, %arg1, %c0_i32 : i32, i32, i32
  }
}

module attributes {stable_mosaic.version = 11 : i64} {
  func.func @_affine_relu_kernel(%arg0: i32, %arg1: memref<128x128xbf16, #tpu.memory_space<vmem>>, %arg2: memref<1x128xf32, #tpu.memory_space<vmem>>, %arg3: memref<1x128xf32, #tpu.memory_space<vmem>>, %arg4: memref<128x128xbf16, #tpu.memory_space<vmem>>) attributes {dimension_semantics = [#tpu.dimension_semantics<parallel>], iteration_bounds = array<i64: 1>, scalar_prefetch = 0 : i64, scratch_operands = 0 : i64, tpu.core_type = #tpu.core_type<tc>, window_params = [{transform_indices = @transform_0, window_bounds = array<i64: 128, 128>}, {pipeline_mode = #tpu.pipeline_mode<synchronous>, transform_indices = @transform_1, window_bounds = array<i64: 1, 128>}, {pipeline_mode = #tpu.pipeline_mode<synchronous>, transform_indices = @transform_2, window_bounds = array<i64: 1, 128>}, {transform_indices = @transform_3, window_bounds = array<i64: 128, 128>}]} {
    %c0 = arith.constant 0 : index
    %c0_0 = arith.constant 0 : index
    %0 = vector.load %arg1[%c0, %c0_0] : memref<128x128xbf16, #tpu.memory_space<vmem>>, vector<128x128xbf16>
    %1 = arith.extf %0 : vector<128x128xbf16> to vector<128x128xf32>
    %c0_1 = arith.constant 0 : index
    %c0_2 = arith.constant 0 : index
    %2 = vector.load %arg2[%c0_1, %c0_2] : memref<1x128xf32, #tpu.memory_space<vmem>>, vector<1x128xf32>
    %3 = vector.broadcast %2 : vector<1x128xf32> to vector<128x128xf32>
    %4 = arith.mulf %1, %3 : vector<128x128xf32>
    %c0_3 = arith.constant 0 : index
    %c0_4 = arith.constant 0 : index
    %5 = vector.load %arg3[%c0_3, %c0_4] : memref<1x128xf32, #tpu.memory_space<vmem>>, vector<1x128xf32>
    %6 = vector.broadcast %5 : vector<1x128xf32> to vector<128x128xf32>
    %7 = arith.addf %4, %6 : vector<128x128xf32>
    %cst = arith.constant 0.000000e+00 : f32
    %8 = vector.broadcast %cst : f32 to vector<128x128xf32>
    %9 = arith.maximumf %7, %8 : vector<128x128xf32>
    %10 = arith.truncf %9 : vector<128x128xf32> to vector<128x128xbf16>
    %c0_5 = arith.constant 0 : index
    %c0_6 = arith.constant 0 : index
    %11 = vector.load %arg4[%c0_5, %c0_6] : memref<128x128xbf16, #tpu.memory_space<vmem>>, vector<128x128xbf16>
    tpu.vector_store %arg4[%c0_5, %c0_6], %10 {strides = array<i32>} : memref<128x128xbf16, #tpu.memory_space<vmem>>, vector<128x128xbf16>,
    return
  }
  func.func @transform_0(%arg0: i32) -> (i32, i32) {
    %c0_i32 = arith.constant 0 : i32
    %c0_i32_0 = arith.constant 0 : i32
    return %arg0, %c0_i32 : i32, i32
  }
  func.func @transform_1(%arg0: i32) -> (i32, i32) {
    %c0_i32 = arith.constant 0 : i32
    %c0_i32_0 = arith.constant 0 : i32
    %c0_i32_1 = arith.constant 0 : i32
    return %c0_i32, %c0_i32_0 : i32, i32
  }
  func.func @transform_2(%arg0: i32) -> (i32, i32) {
    %c0_i32 = arith.constant 0 : i32
    %c0_i32_0 = arith.constant 0 : i32
    %c0_i32_1 = arith.constant 0 : i32
    return %c0_i32, %c0_i32_0 : i32, i32
  }
  func.func @transform_3(%arg0: i32) -> (i32, i32) {
    %c0_i32 = arith.constant 0 : i32
    %c0_i32_0 = arith.constant 0 : i32
    return %arg0, %c0_i32 : i32, i32
  }
}

module attributes {stable_mosaic.version = 11 : i64} {
  func.func @_mm_stats_kernel(%arg0: i32, %arg1: i32, %arg2: i32, %arg3: memref<1x128x512xbf16, #tpu.memory_space<vmem>>, %arg4: memref<1x512x128xbf16, #tpu.memory_space<vmem>>, %arg5: memref<1x128x128xbf16, #tpu.memory_space<vmem>>, %arg6: memref<1x8x128xf32, #tpu.memory_space<vmem>>, %arg7: memref<128x128xf32, #tpu.memory_space<vmem>>) attributes {dimension_semantics = [#tpu.dimension_semantics<parallel>, #tpu.dimension_semantics<parallel>, #tpu.dimension_semantics<arbitrary>], iteration_bounds = array<i64: 4, 1, 1>, scalar_prefetch = 0 : i64, scratch_operands = 1 : i64, tpu.core_type = #tpu.core_type<tc>, window_params = [{transform_indices = @transform_0, window_bounds = array<i64: 1, 128, 512>}, {transform_indices = @transform_1, window_bounds = array<i64: 1, 512, 128>}, {transform_indices = @transform_2, window_bounds = array<i64: 1, 128, 128>}, {transform_indices = @transform_3, window_bounds = array<i64: 1, 8, 128>}]} {
    %c0_i32 = arith.constant 0 : i32
    %0 = arith.cmpi eq, %arg2, %c0_i32 : i32
    %1 = arith.extui %0 : i1 to i32
    %c0_i32_0 = arith.constant 0 : i32
    %2 = arith.cmpi ne, %1, %c0_i32_0 : i32
    scf.if %2 {
      %cst_12 = arith.constant 0.000000e+00 : f32
      %14 = vector.broadcast %cst_12 : f32 to vector<128x128xf32>
      %c0_13 = arith.constant 0 : index
      %c0_14 = arith.constant 0 : index
      %15 = vector.load %arg7[%c0_13, %c0_14] : memref<128x128xf32, #tpu.memory_space<vmem>>, vector<128x128xf32>
      tpu.vector_store %arg7[%c0_13, %c0_14], %14 {strides = array<i32>} : memref<128x128xf32, #tpu.memory_space<vmem>>, vector<128x128xf32>,
    } else {
    }
    %c0 = arith.constant 0 : index
    %c0_1 = arith.constant 0 : index
    %3 = vector.load %arg7[%c0, %c0_1] : memref<128x128xf32, #tpu.memory_space<vmem>>, vector<128x128xf32>
    %c0_2 = arith.constant 0 : index
    %c0_3 = arith.constant 0 : index
    %c0_4 = arith.constant 0 : index
    %4 = vector.load %arg3[%c0_2, %c0_3, %c0_4] : memref<1x128x512xbf16, #tpu.memory_space<vmem>>, vector<1x128x512xbf16>
    %5 = vector.shape_cast %4 : vector<1x128x512xbf16> to vector<128x512xbf16>
    %c0_5 = arith.constant 0 : index
    %c0_6 = arith.constant 0 : index
    %c0_7 = arith.constant 0 : index
    %6 = vector.load %arg4[%c0_5, %c0_6, %c0_7] : memref<1x512x128xbf16, #tpu.memory_space<vmem>>, vector<1x512x128xbf16>
    %7 = vector.shape_cast %6 : vector<1x512x128xbf16> to vector<512x128xbf16>
    %cst = arith.constant dense<0.000000e+00> : vector<128x128xf32>
    %8 = tpu.matmul %5, %7, %cst {dimension_numbers = #tpu.dot_dimension_numbers<[1], [0], [0], [1], [0, 0, 1, 1], [], []>} : vector<128x512xbf16>, vector<512x128xbf16>, vector<128x128xf32> -> vector<128x128xf32>
    %9 = arith.addf %3, %8 : vector<128x128xf32>
    %c0_8 = arith.constant 0 : index
    %c0_9 = arith.constant 0 : index
    %10 = vector.load %arg7[%c0_8, %c0_9] : memref<128x128xf32, #tpu.memory_space<vmem>>, vector<128x128xf32>
    tpu.vector_store %arg7[%c0_8, %c0_9], %9 {strides = array<i32>} : memref<128x128xf32, #tpu.memory_space<vmem>>, vector<128x128xf32>,
    %c0_i32_10 = arith.constant 0 : i32
    %11 = arith.cmpi eq, %arg2, %c0_i32_10 : i32
    %12 = arith.extui %11 : i1 to i32
    %c0_i32_11 = arith.constant 0 : i32
    %13 = arith.cmpi ne, %12, %c0_i32_11 : i32
    scf.if %13 {
      %c0_12 = arith.constant 0 : index
      %c0_13 = arith.constant 0 : index
      %14 = vector.load %arg7[%c0_12, %c0_13] : memref<128x128xf32, #tpu.memory_space<vmem>>, vector<128x128xf32>
      %15 = arith.truncf %14 : vector<128x128xf32> to vector<128x128xbf16>
      %c0_14 = arith.constant 0 : index
      %c0_15 = arith.constant 0 : index
      %c0_16 = arith.constant 0 : index
      %16 = vector.load %arg5[%c0_14, %c0_15, %c0_16] : memref<1x128x128xbf16, #tpu.memory_space<vmem>>, vector<1x128x128xbf16>
      %17 = vector.shape_cast %16 : vector<1x128x128xbf16> to vector<128x128xbf16>
      %18 = vector.shape_cast %15 : vector<128x128xbf16> to vector<1x128x128xbf16>
      tpu.vector_store %arg5[%c0_14, %c0_15, %c0_16], %18 {strides = array<i32>} : memref<1x128x128xbf16, #tpu.memory_space<vmem>>, vector<1x128x128xbf16>,
      %cst_17 = arith.constant dense<0.000000e+00> : vector<128xf32>
      %19 = vector.multi_reduction <add>, %14, %cst_17 [0] : vector<128x128xf32> to vector<128xf32>
      %20 = vector.shape_cast %19 : vector<128xf32> to vector<1x128xf32>
      %21 = arith.mulf %14, %14 : vector<128x128xf32>
      %cst_18 = arith.constant dense<0.000000e+00> : vector<128xf32>
      %22 = vector.multi_reduction <add>, %21, %cst_18 [0] : vector<128x128xf32> to vector<128xf32>
      %23 = vector.shape_cast %22 : vector<128xf32> to vector<1x128xf32>
      %cst_19 = arith.constant 0.000000e+00 : f32
      %24 = vector.broadcast %cst_19 : f32 to vector<6x128xf32>
      %25 = tpu.concatenate %20, %23, %24 in 0 : vector<1x128xf32>, vector<1x128xf32>, vector<6x128xf32> -> vector<8x128xf32>
      %c0_20 = arith.constant 0 : index
      %c0_21 = arith.constant 0 : index
      %c0_22 = arith.constant 0 : index
      %26 = vector.load %arg6[%c0_20, %c0_21, %c0_22] : memref<1x8x128xf32, #tpu.memory_space<vmem>>, vector<1x8x128xf32>
      %27 = vector.shape_cast %26 : vector<1x8x128xf32> to vector<8x128xf32>
      %28 = vector.shape_cast %25 : vector<8x128xf32> to vector<1x8x128xf32>
      tpu.vector_store %arg6[%c0_20, %c0_21, %c0_22], %28 {strides = array<i32>} : memref<1x8x128xf32, #tpu.memory_space<vmem>>, vector<1x8x128xf32>,
    } else {
    }
    return
  }
  func.func @transform_0(%arg0: i32, %arg1: i32, %arg2: i32) -> (i32, i32, i32) {
    %c0_i32 = arith.constant 0 : i32
    return %arg0, %arg1, %arg2 : i32, i32, i32
  }
  func.func @transform_1(%arg0: i32, %arg1: i32, %arg2: i32) -> (i32, i32, i32) {
    %c0_i32 = arith.constant 0 : i32
    %c0_i32_0 = arith.constant 0 : i32
    return %arg0, %arg2, %c0_i32 : i32, i32, i32
  }
  func.func @transform_2(%arg0: i32, %arg1: i32, %arg2: i32) -> (i32, i32, i32) {
    %c0_i32 = arith.constant 0 : i32
    %c0_i32_0 = arith.constant 0 : i32
    return %arg0, %arg1, %c0_i32 : i32, i32, i32
  }
  func.func @transform_3(%arg0: i32, %arg1: i32, %arg2: i32) -> (i32, i32, i32) {
    %c0_i32 = arith.constant 0 : i32
    %c0_i32_0 = arith.constant 0 : i32
    return %arg0, %arg1, %c0_i32 : i32, i32, i32
  }
}

module attributes {stable_mosaic.version = 11 : i64} {
  func.func @_affine_relu_kernel(%arg0: i32, %arg1: memref<512x128xbf16, #tpu.memory_space<vmem>>, %arg2: memref<1x128xf32, #tpu.memory_space<vmem>>, %arg3: memref<1x128xf32, #tpu.memory_space<vmem>>, %arg4: memref<512x128xbf16, #tpu.memory_space<vmem>>) attributes {dimension_semantics = [#tpu.dimension_semantics<parallel>], iteration_bounds = array<i64: 1>, scalar_prefetch = 0 : i64, scratch_operands = 0 : i64, tpu.core_type = #tpu.core_type<tc>, window_params = [{transform_indices = @transform_0, window_bounds = array<i64: 512, 128>}, {pipeline_mode = #tpu.pipeline_mode<synchronous>, transform_indices = @transform_1, window_bounds = array<i64: 1, 128>}, {pipeline_mode = #tpu.pipeline_mode<synchronous>, transform_indices = @transform_2, window_bounds = array<i64: 1, 128>}, {transform_indices = @transform_3, window_bounds = array<i64: 512, 128>}]} {
    %c0 = arith.constant 0 : index
    %c0_0 = arith.constant 0 : index
    %0 = vector.load %arg1[%c0, %c0_0] : memref<512x128xbf16, #tpu.memory_space<vmem>>, vector<512x128xbf16>
    %1 = arith.extf %0 : vector<512x128xbf16> to vector<512x128xf32>
    %c0_1 = arith.constant 0 : index
    %c0_2 = arith.constant 0 : index
    %2 = vector.load %arg2[%c0_1, %c0_2] : memref<1x128xf32, #tpu.memory_space<vmem>>, vector<1x128xf32>
    %3 = vector.broadcast %2 : vector<1x128xf32> to vector<512x128xf32>
    %4 = arith.mulf %1, %3 : vector<512x128xf32>
    %c0_3 = arith.constant 0 : index
    %c0_4 = arith.constant 0 : index
    %5 = vector.load %arg3[%c0_3, %c0_4] : memref<1x128xf32, #tpu.memory_space<vmem>>, vector<1x128xf32>
    %6 = vector.broadcast %5 : vector<1x128xf32> to vector<512x128xf32>
    %7 = arith.addf %4, %6 : vector<512x128xf32>
    %cst = arith.constant 0.000000e+00 : f32
    %8 = vector.broadcast %cst : f32 to vector<512x128xf32>
    %9 = arith.maximumf %7, %8 : vector<512x128xf32>
    %10 = arith.truncf %9 : vector<512x128xf32> to vector<512x128xbf16>
    %c0_5 = arith.constant 0 : index
    %c0_6 = arith.constant 0 : index
    %11 = vector.load %arg4[%c0_5, %c0_6] : memref<512x128xbf16, #tpu.memory_space<vmem>>, vector<512x128xbf16>
    tpu.vector_store %arg4[%c0_5, %c0_6], %10 {strides = array<i32>} : memref<512x128xbf16, #tpu.memory_space<vmem>>, vector<512x128xbf16>,
    return
  }
  func.func @transform_0(%arg0: i32) -> (i32, i32) {
    %c0_i32 = arith.constant 0 : i32
    %c0_i32_0 = arith.constant 0 : i32
    return %arg0, %c0_i32 : i32, i32
  }
  func.func @transform_1(%arg0: i32) -> (i32, i32) {
    %c0_i32 = arith.constant 0 : i32
    %c0_i32_0 = arith.constant 0 : i32
    %c0_i32_1 = arith.constant 0 : i32
    return %c0_i32, %c0_i32_0 : i32, i32
  }
  func.func @transform_2(%arg0: i32) -> (i32, i32) {
    %c0_i32 = arith.constant 0 : i32
    %c0_i32_0 = arith.constant 0 : i32
    %c0_i32_1 = arith.constant 0 : i32
    return %c0_i32, %c0_i32_0 : i32, i32
  }
  func.func @transform_3(%arg0: i32) -> (i32, i32) {
    %c0_i32 = arith.constant 0 : i32
    %c0_i32_0 = arith.constant 0 : i32
    return %arg0, %c0_i32 : i32, i32
  }
}

module attributes {stable_mosaic.version = 11 : i64} {
  func.func @_mm_stats_kernel(%arg0: i32, %arg1: i32, %arg2: i32, %arg3: memref<1x256x512xbf16, #tpu.memory_space<vmem>>, %arg4: memref<1x512x128xbf16, #tpu.memory_space<vmem>>, %arg5: memref<1x256x128xbf16, #tpu.memory_space<vmem>>, %arg6: memref<1x8x128xf32, #tpu.memory_space<vmem>>, %arg7: memref<256x128xf32, #tpu.memory_space<vmem>>) attributes {dimension_semantics = [#tpu.dimension_semantics<parallel>, #tpu.dimension_semantics<parallel>, #tpu.dimension_semantics<arbitrary>], iteration_bounds = array<i64: 4, 2, 1>, scalar_prefetch = 0 : i64, scratch_operands = 1 : i64, tpu.core_type = #tpu.core_type<tc>, window_params = [{transform_indices = @transform_0, window_bounds = array<i64: 1, 256, 512>}, {transform_indices = @transform_1, window_bounds = array<i64: 1, 512, 128>}, {transform_indices = @transform_2, window_bounds = array<i64: 1, 256, 128>}, {transform_indices = @transform_3, window_bounds = array<i64: 1, 8, 128>}]} {
    %c0_i32 = arith.constant 0 : i32
    %0 = arith.cmpi eq, %arg2, %c0_i32 : i32
    %1 = arith.extui %0 : i1 to i32
    %c0_i32_0 = arith.constant 0 : i32
    %2 = arith.cmpi ne, %1, %c0_i32_0 : i32
    scf.if %2 {
      %cst_12 = arith.constant 0.000000e+00 : f32
      %14 = vector.broadcast %cst_12 : f32 to vector<256x128xf32>
      %c0_13 = arith.constant 0 : index
      %c0_14 = arith.constant 0 : index
      %15 = vector.load %arg7[%c0_13, %c0_14] : memref<256x128xf32, #tpu.memory_space<vmem>>, vector<256x128xf32>
      tpu.vector_store %arg7[%c0_13, %c0_14], %14 {strides = array<i32>} : memref<256x128xf32, #tpu.memory_space<vmem>>, vector<256x128xf32>,
    } else {
    }
    %c0 = arith.constant 0 : index
    %c0_1 = arith.constant 0 : index
    %3 = vector.load %arg7[%c0, %c0_1] : memref<256x128xf32, #tpu.memory_space<vmem>>, vector<256x128xf32>
    %c0_2 = arith.constant 0 : index
    %c0_3 = arith.constant 0 : index
    %c0_4 = arith.constant 0 : index
    %4 = vector.load %arg3[%c0_2, %c0_3, %c0_4] : memref<1x256x512xbf16, #tpu.memory_space<vmem>>, vector<1x256x512xbf16>
    %5 = vector.shape_cast %4 : vector<1x256x512xbf16> to vector<256x512xbf16>
    %c0_5 = arith.constant 0 : index
    %c0_6 = arith.constant 0 : index
    %c0_7 = arith.constant 0 : index
    %6 = vector.load %arg4[%c0_5, %c0_6, %c0_7] : memref<1x512x128xbf16, #tpu.memory_space<vmem>>, vector<1x512x128xbf16>
    %7 = vector.shape_cast %6 : vector<1x512x128xbf16> to vector<512x128xbf16>
    %cst = arith.constant dense<0.000000e+00> : vector<256x128xf32>
    %8 = tpu.matmul %5, %7, %cst {dimension_numbers = #tpu.dot_dimension_numbers<[1], [0], [0], [1], [0, 0, 1, 1], [], []>} : vector<256x512xbf16>, vector<512x128xbf16>, vector<256x128xf32> -> vector<256x128xf32>
    %9 = arith.addf %3, %8 : vector<256x128xf32>
    %c0_8 = arith.constant 0 : index
    %c0_9 = arith.constant 0 : index
    %10 = vector.load %arg7[%c0_8, %c0_9] : memref<256x128xf32, #tpu.memory_space<vmem>>, vector<256x128xf32>
    tpu.vector_store %arg7[%c0_8, %c0_9], %9 {strides = array<i32>} : memref<256x128xf32, #tpu.memory_space<vmem>>, vector<256x128xf32>,
    %c0_i32_10 = arith.constant 0 : i32
    %11 = arith.cmpi eq, %arg2, %c0_i32_10 : i32
    %12 = arith.extui %11 : i1 to i32
    %c0_i32_11 = arith.constant 0 : i32
    %13 = arith.cmpi ne, %12, %c0_i32_11 : i32
    scf.if %13 {
      %c0_12 = arith.constant 0 : index
      %c0_13 = arith.constant 0 : index
      %14 = vector.load %arg7[%c0_12, %c0_13] : memref<256x128xf32, #tpu.memory_space<vmem>>, vector<256x128xf32>
      %15 = arith.truncf %14 : vector<256x128xf32> to vector<256x128xbf16>
      %c0_14 = arith.constant 0 : index
      %c0_15 = arith.constant 0 : index
      %c0_16 = arith.constant 0 : index
      %16 = vector.load %arg5[%c0_14, %c0_15, %c0_16] : memref<1x256x128xbf16, #tpu.memory_space<vmem>>, vector<1x256x128xbf16>
      %17 = vector.shape_cast %16 : vector<1x256x128xbf16> to vector<256x128xbf16>
      %18 = vector.shape_cast %15 : vector<256x128xbf16> to vector<1x256x128xbf16>
      tpu.vector_store %arg5[%c0_14, %c0_15, %c0_16], %18 {strides = array<i32>} : memref<1x256x128xbf16, #tpu.memory_space<vmem>>, vector<1x256x128xbf16>,
      %cst_17 = arith.constant dense<0.000000e+00> : vector<128xf32>
      %19 = vector.multi_reduction <add>, %14, %cst_17 [0] : vector<256x128xf32> to vector<128xf32>
      %20 = vector.shape_cast %19 : vector<128xf32> to vector<1x128xf32>
      %21 = arith.mulf %14, %14 : vector<256x128xf32>
      %cst_18 = arith.constant dense<0.000000e+00> : vector<128xf32>
      %22 = vector.multi_reduction <add>, %21, %cst_18 [0] : vector<256x128xf32> to vector<128xf32>
      %23 = vector.shape_cast %22 : vector<128xf32> to vector<1x128xf32>
      %cst_19 = arith.constant 0.000000e+00 : f32
      %24 = vector.broadcast %cst_19 : f32 to vector<6x128xf32>
      %25 = tpu.concatenate %20, %23, %24 in 0 : vector<1x128xf32>, vector<1x128xf32>, vector<6x128xf32> -> vector<8x128xf32>
      %c0_20 = arith.constant 0 : index
      %c0_21 = arith.constant 0 : index
      %c0_22 = arith.constant 0 : index
      %26 = vector.load %arg6[%c0_20, %c0_21, %c0_22] : memref<1x8x128xf32, #tpu.memory_space<vmem>>, vector<1x8x128xf32>
      %27 = vector.shape_cast %26 : vector<1x8x128xf32> to vector<8x128xf32>
      %28 = vector.shape_cast %25 : vector<8x128xf32> to vector<1x8x128xf32>
      tpu.vector_store %arg6[%c0_20, %c0_21, %c0_22], %28 {strides = array<i32>} : memref<1x8x128xf32, #tpu.memory_space<vmem>>, vector<1x8x128xf32>,
    } else {
    }
    return
  }
  func.func @transform_0(%arg0: i32, %arg1: i32, %arg2: i32) -> (i32, i32, i32) {
    %c0_i32 = arith.constant 0 : i32
    return %arg0, %arg1, %arg2 : i32, i32, i32
  }
  func.func @transform_1(%arg0: i32, %arg1: i32, %arg2: i32) -> (i32, i32, i32) {
    %c0_i32 = arith.constant 0 : i32
    %c0_i32_0 = arith.constant 0 : i32
    return %arg0, %arg2, %c0_i32 : i32, i32, i32
  }
  func.func @transform_2(%arg0: i32, %arg1: i32, %arg2: i32) -> (i32, i32, i32) {
    %c0_i32 = arith.constant 0 : i32
    %c0_i32_0 = arith.constant 0 : i32
    return %arg0, %arg1, %c0_i32 : i32, i32, i32
  }
  func.func @transform_3(%arg0: i32, %arg1: i32, %arg2: i32) -> (i32, i32, i32) {
    %c0_i32 = arith.constant 0 : i32
    %c0_i32_0 = arith.constant 0 : i32
    return %arg0, %arg1, %c0_i32 : i32, i32, i32
  }
}

module attributes {stable_mosaic.version = 11 : i64} {
  func.func @_affine_relu_kernel(%arg0: i32, %arg1: memref<1024x128xbf16, #tpu.memory_space<vmem>>, %arg2: memref<1x128xf32, #tpu.memory_space<vmem>>, %arg3: memref<1x128xf32, #tpu.memory_space<vmem>>, %arg4: memref<1024x128xbf16, #tpu.memory_space<vmem>>) attributes {dimension_semantics = [#tpu.dimension_semantics<parallel>], iteration_bounds = array<i64: 2>, scalar_prefetch = 0 : i64, scratch_operands = 0 : i64, tpu.core_type = #tpu.core_type<tc>, window_params = [{transform_indices = @transform_0, window_bounds = array<i64: 1024, 128>}, {pipeline_mode = #tpu.pipeline_mode<synchronous>, transform_indices = @transform_1, window_bounds = array<i64: 1, 128>}, {pipeline_mode = #tpu.pipeline_mode<synchronous>, transform_indices = @transform_2, window_bounds = array<i64: 1, 128>}, {transform_indices = @transform_3, window_bounds = array<i64: 1024, 128>}]} {
    %c0 = arith.constant 0 : index
    %c0_0 = arith.constant 0 : index
    %0 = vector.load %arg1[%c0, %c0_0] : memref<1024x128xbf16, #tpu.memory_space<vmem>>, vector<1024x128xbf16>
    %1 = arith.extf %0 : vector<1024x128xbf16> to vector<1024x128xf32>
    %c0_1 = arith.constant 0 : index
    %c0_2 = arith.constant 0 : index
    %2 = vector.load %arg2[%c0_1, %c0_2] : memref<1x128xf32, #tpu.memory_space<vmem>>, vector<1x128xf32>
    %3 = vector.broadcast %2 : vector<1x128xf32> to vector<1024x128xf32>
    %4 = arith.mulf %1, %3 : vector<1024x128xf32>
    %c0_3 = arith.constant 0 : index
    %c0_4 = arith.constant 0 : index
    %5 = vector.load %arg3[%c0_3, %c0_4] : memref<1x128xf32, #tpu.memory_space<vmem>>, vector<1x128xf32>
    %6 = vector.broadcast %5 : vector<1x128xf32> to vector<1024x128xf32>
    %7 = arith.addf %4, %6 : vector<1024x128xf32>
    %cst = arith.constant 0.000000e+00 : f32
    %8 = vector.broadcast %cst : f32 to vector<1024x128xf32>
    %9 = arith.maximumf %7, %8 : vector<1024x128xf32>
    %10 = arith.truncf %9 : vector<1024x128xf32> to vector<1024x128xbf16>
    %c0_5 = arith.constant 0 : index
    %c0_6 = arith.constant 0 : index
    %11 = vector.load %arg4[%c0_5, %c0_6] : memref<1024x128xbf16, #tpu.memory_space<vmem>>, vector<1024x128xbf16>
    tpu.vector_store %arg4[%c0_5, %c0_6], %10 {strides = array<i32>} : memref<1024x128xbf16, #tpu.memory_space<vmem>>, vector<1024x128xbf16>,
    return
  }
  func.func @transform_0(%arg0: i32) -> (i32, i32) {
    %c0_i32 = arith.constant 0 : i32
    %c0_i32_0 = arith.constant 0 : i32
    return %arg0, %c0_i32 : i32, i32
  }
  func.func @transform_1(%arg0: i32) -> (i32, i32) {
    %c0_i32 = arith.constant 0 : i32
    %c0_i32_0 = arith.constant 0 : i32
    %c0_i32_1 = arith.constant 0 : i32
    return %c0_i32, %c0_i32_0 : i32, i32
  }
  func.func @transform_2(%arg0: i32) -> (i32, i32) {
    %c0_i32 = arith.constant 0 : i32
    %c0_i32_0 = arith.constant 0 : i32
    %c0_i32_1 = arith.constant 0 : i32
    return %c0_i32, %c0_i32_0 : i32, i32
  }
  func.func @transform_3(%arg0: i32) -> (i32, i32) {
    %c0_i32 = arith.constant 0 : i32
    %c0_i32_0 = arith.constant 0 : i32
    return %arg0, %c0_i32 : i32, i32
  }
}

module attributes {stable_mosaic.version = 11 : i64} {
  func.func @_mm_bias_tanh_kernel(%arg0: i32, %arg1: i32, %arg2: i32, %arg3: memref<1x256x512xbf16, #tpu.memory_space<vmem>>, %arg4: memref<1x512x128xbf16, #tpu.memory_space<vmem>>, %arg5: memref<1x128xf32, #tpu.memory_space<vmem>>, %arg6: memref<1x256x128xf32, #tpu.memory_space<vmem>>, %arg7: memref<256x128xf32, #tpu.memory_space<vmem>>) attributes {dimension_semantics = [#tpu.dimension_semantics<parallel>, #tpu.dimension_semantics<parallel>, #tpu.dimension_semantics<arbitrary>], iteration_bounds = array<i64: 4, 8, 1>, scalar_prefetch = 0 : i64, scratch_operands = 1 : i64, tpu.core_type = #tpu.core_type<tc>, window_params = [{transform_indices = @transform_0, window_bounds = array<i64: 1, 256, 512>}, {transform_indices = @transform_1, window_bounds = array<i64: 1, 512, 128>}, {pipeline_mode = #tpu.pipeline_mode<synchronous>, transform_indices = @transform_2, window_bounds = array<i64: 1, 128>}, {transform_indices = @transform_3, window_bounds = array<i64: 1, 256, 128>}]} {
    %c0_i32 = arith.constant 0 : i32
    %0 = arith.cmpi eq, %arg2, %c0_i32 : i32
    %1 = arith.extui %0 : i1 to i32
    %c0_i32_0 = arith.constant 0 : i32
    %2 = arith.cmpi ne, %1, %c0_i32_0 : i32
    scf.if %2 {
      %cst_12 = arith.constant 0.000000e+00 : f32
      %14 = vector.broadcast %cst_12 : f32 to vector<256x128xf32>
      %c0_13 = arith.constant 0 : index
      %c0_14 = arith.constant 0 : index
      %15 = vector.load %arg7[%c0_13, %c0_14] : memref<256x128xf32, #tpu.memory_space<vmem>>, vector<256x128xf32>
      tpu.vector_store %arg7[%c0_13, %c0_14], %14 {strides = array<i32>} : memref<256x128xf32, #tpu.memory_space<vmem>>, vector<256x128xf32>,
    } else {
    }
    %c0 = arith.constant 0 : index
    %c0_1 = arith.constant 0 : index
    %3 = vector.load %arg7[%c0, %c0_1] : memref<256x128xf32, #tpu.memory_space<vmem>>, vector<256x128xf32>
    %c0_2 = arith.constant 0 : index
    %c0_3 = arith.constant 0 : index
    %c0_4 = arith.constant 0 : index
    %4 = vector.load %arg3[%c0_2, %c0_3, %c0_4] : memref<1x256x512xbf16, #tpu.memory_space<vmem>>, vector<1x256x512xbf16>
    %5 = vector.shape_cast %4 : vector<1x256x512xbf16> to vector<256x512xbf16>
    %c0_5 = arith.constant 0 : index
    %c0_6 = arith.constant 0 : index
    %c0_7 = arith.constant 0 : index
    %6 = vector.load %arg4[%c0_5, %c0_6, %c0_7] : memref<1x512x128xbf16, #tpu.memory_space<vmem>>, vector<1x512x128xbf16>
    %7 = vector.shape_cast %6 : vector<1x512x128xbf16> to vector<512x128xbf16>
    %cst = arith.constant dense<0.000000e+00> : vector<256x128xf32>
    %8 = tpu.matmul %5, %7, %cst {dimension_numbers = #tpu.dot_dimension_numbers<[1], [0], [0], [1], [0, 0, 1, 1], [], []>} : vector<256x512xbf16>, vector<512x128xbf16>, vector<256x128xf32> -> vector<256x128xf32>
    %9 = arith.addf %3, %8 : vector<256x128xf32>
    %c0_8 = arith.constant 0 : index
    %c0_9 = arith.constant 0 : index
    %10 = vector.load %arg7[%c0_8, %c0_9] : memref<256x128xf32, #tpu.memory_space<vmem>>, vector<256x128xf32>
    tpu.vector_store %arg7[%c0_8, %c0_9], %9 {strides = array<i32>} : memref<256x128xf32, #tpu.memory_space<vmem>>, vector<256x128xf32>,
    %c0_i32_10 = arith.constant 0 : i32
    %11 = arith.cmpi eq, %arg2, %c0_i32_10 : i32
    %12 = arith.extui %11 : i1 to i32
    %c0_i32_11 = arith.constant 0 : i32
    %13 = arith.cmpi ne, %12, %c0_i32_11 : i32
    scf.if %13 {
      %c0_12 = arith.constant 0 : index
      %c0_13 = arith.constant 0 : index
      %14 = vector.load %arg7[%c0_12, %c0_13] : memref<256x128xf32, #tpu.memory_space<vmem>>, vector<256x128xf32>
      %c0_14 = arith.constant 0 : index
      %c0_15 = arith.constant 0 : index
      %15 = vector.load %arg5[%c0_14, %c0_15] : memref<1x128xf32, #tpu.memory_space<vmem>>, vector<1x128xf32>
      %16 = vector.broadcast %15 : vector<1x128xf32> to vector<256x128xf32>
      %17 = arith.addf %14, %16 : vector<256x128xf32>
      %18 = math.tanh %17 : vector<256x128xf32>
      %c0_16 = arith.constant 0 : index
      %c0_17 = arith.constant 0 : index
      %c0_18 = arith.constant 0 : index
      %19 = vector.load %arg6[%c0_16, %c0_17, %c0_18] : memref<1x256x128xf32, #tpu.memory_space<vmem>>, vector<1x256x128xf32>
      %20 = vector.shape_cast %19 : vector<1x256x128xf32> to vector<256x128xf32>
      %21 = vector.shape_cast %18 : vector<256x128xf32> to vector<1x256x128xf32>
      tpu.vector_store %arg6[%c0_16, %c0_17, %c0_18], %21 {strides = array<i32>} : memref<1x256x128xf32, #tpu.memory_space<vmem>>, vector<1x256x128xf32>,
    } else {
    }
    return
  }
  func.func @transform_0(%arg0: i32, %arg1: i32, %arg2: i32) -> (i32, i32, i32) {
    %c0_i32 = arith.constant 0 : i32
    return %arg0, %arg1, %arg2 : i32, i32, i32
  }
  func.func @transform_1(%arg0: i32, %arg1: i32, %arg2: i32) -> (i32, i32, i32) {
    %c0_i32 = arith.constant 0 : i32
    %c0_i32_0 = arith.constant 0 : i32
    return %arg0, %arg2, %c0_i32 : i32, i32, i32
  }
  func.func @transform_2(%arg0: i32, %arg1: i32, %arg2: i32) -> (i32, i32) {
    %c0_i32 = arith.constant 0 : i32
    %c0_i32_0 = arith.constant 0 : i32
    %c0_i32_1 = arith.constant 0 : i32
    return %c0_i32, %c0_i32_0 : i32, i32
  }
  func.func @transform_3(%arg0: i32, %arg1: i32, %arg2: i32) -> (i32, i32, i32) {
    %c0_i32 = arith.constant 0 : i32
    %c0_i32_0 = arith.constant 0 : i32
    return %arg0, %arg1, %c0_i32 : i32, i32, i32
  }
}

</mosaic_0001>

<llo_original>
// kernel: squeeze.1
$region0: #{squeeze.1}
  %s0 = inlined_call_operand.vmem [shape: bf16[1,2,2048], index: 0, kind: input, shape index: {}]
  %s1 = inlined_call_operand.vmem [shape: bf16[32,128], index: 1, kind: output, shape index: {}]
  $region1: #{squeeze.1} parent=0
    #allocation0 [shape = 'u8[16384]{0}', space=vmem, size = 0x4000, scoped, tag = 'scoped mem for output reshape']
    #allocation1 [shape = 'u8[65536]{0}', space=vmem, size = 0x10000, scoped, tag = 'scoped mem for input reshape']
    %s3 = smul.u32 1, 2
    %s4 = sshll.u32 1, %s3
    %s5 = ssub.s32 %s4, 1
    %s6 = smul.addr 1, 15
    %s7 = scalar_lea.vmem %s0, %s6
    %s8 = sshrl.u32 %s5, 1
    %s9 = sor.u32 %s5, %s8
    %s10 = sand.u32 %s9, 85
    %s11 = sshrl.u32 %s10, 1
    %s12 = sor.u32 %s10, %s11
    %s13 = sand.u32 51, %s12
    %s14 = sshrl.u32 %s13, 2
    %s15 = sor.u32 %s13, %s14
    %s16 = sand.u32 15, %s15
    %v17 = vld [vmem:[%s7] sm:%s16]
    %v18 = vunpack.c.l.bf16 %v17
    %v19 = vunpack.c.h.bf16 %v17
    %s20 = scalar_lea.vmem [#allocation1], 120
    %21 = vst [vmem:[%s20] sm:%s5] %v18
    %s22 = smul.addr 1, 14
    %s23 = scalar_lea.vmem %s0, %s22
    %s24 = sshrl.u32 %s5, 1
    %s25 = sor.u32 %s5, %s24
    %s26 = sand.u32 %s25, 85
    %s27 = sshrl.u32 %s26, 1
    %s28 = sor.u32 %s26, %s27
    %s29 = sand.u32 51, %s28
    %s30 = sshrl.u32 %s29, 2
    %s31 = sor.u32 %s29, %s30
    %s32 = sand.u32 15, %s31
    %v33 = vld [vmem:[%s23] sm:%s32]
    %v34 = vunpack.c.l.bf16 %v33
    %v35 = vunpack.c.h.bf16 %v33
    %s36 = scalar_lea.vmem [#allocation1], 112
    %37 = vst [vmem:[%s36] sm:%s5] %v34
    %s38 = smul.addr 1, 13
    %s39 = scalar_lea.vmem %s0, %s38
    %s40 = sshrl.u32 %s5, 1
    %s41 = sor.u32 %s5, %s40
    %s42 = sand.u32 %s41, 85
    %s43 = sshrl.u32 %s42, 1
    %s44 = sor.u32 %s42, %s43
    %s45 = sand.u32 51, %s44
    %s46 = sshrl.u32 %s45, 2
    %s47 = sor.u32 %s45, %s46
    %s48 = sand.u32 15, %s47
    %v49 = vld [vmem:[%s39] sm:%s48]
    %v50 = vunpack.c.l.bf16 %v49
    %v51 = vunpack.c.h.bf16 %v49
    %s52 = scalar_lea.vmem [#allocation1], 104
    %53 = vst [vmem:[%s52] sm:%s5] %v50
    %s54 = smul.addr 1, 12
    %s55 = scalar_lea.vmem %s0, %s54
    %s56 = sshrl.u32 %s5, 1
    %s57 = sor.u32 %s5, %s56
    %s58 = sand.u32 %s57, 85
    %s59 = sshrl.u32 %s58, 1
    %s60 = sor.u32 %s58, %s59
    %s61 = sand.u32 51, %s60
    %s62 = sshrl.u32 %s61, 2
    %s63 = sor.u32 %s61, %s62
    %s64 = sand.u32 15, %s63
    %v65 = vld [vmem:[%s55] sm:%s64]
    %v66 = vunpack.c.l.bf16 %v65
    %v67 = vunpack.c.h.bf16 %v65
    %s68 = scalar_lea.vmem [#allocation1], 96
    %69 = vst [vmem:[%s68] sm:%s5] %v66
    %s70 = smul.addr 1, 11
    %s71 = scalar_lea.vmem %s0, %s70
    %s72 = sshrl.u32 %s5, 1
    %s73 = sor.u32 %s5, %s72
    %s74 = sand.u32 %s73, 85
    %s75 = sshrl.u32 %s74, 1
    %s76 = sor.u32 %s74, %s75
    %s77 = sand.u32 51, %s76
    %s78 = sshrl.u32 %s77, 2
    %s79 = sor.u32 %s77, %s78
    %s80 = sand.u32 15, %s79
    %v81 = vld [vmem:[%s71] sm:%s80]
    %v82 = vunpack.c.l.bf16 %v81
    %v83 = vunpack.c.h.bf16 %v81
    %s84 = scalar_lea.vmem [#allocation1], 88
    %85 = vst [vmem:[%s84] sm:%s5] %v82
    %s86 = smul.addr 1, 10
    %s87 = scalar_lea.vmem %s0, %s86
    %s88 = sshrl.u32 %s5, 1
    %s89 = sor.u32 %s5, %s88
    %s90 = sand.u32 %s89, 85
    %s91 = sshrl.u32 %s90, 1
    %s92 = sor.u32 %s90, %s91
    %s93 = sand.u32 51, %s92
    %s94 = sshrl.u32 %s93, 2
    %s95 = sor.u32 %s93, %s94
    %s96 = sand.u32 15, %s95
    %v97 = vld [vmem:[%s87] sm:%s96]
    %v98 = vunpack.c.l.bf16 %v97
    %v99 = vunpack.c.h.bf16 %v97
    %s100 = scalar_lea.vmem [#allocation1], 80
    %101 = vst [vmem:[%s100] sm:%s5] %v98
    %s102 = smul.addr 1, 9
    %s103 = scalar_lea.vmem %s0, %s102
    %s104 = sshrl.u32 %s5, 1
    %s105 = sor.u32 %s5, %s104
    %s106 = sand.u32 %s105, 85
    %s107 = sshrl.u32 %s106, 1
    %s108 = sor.u32 %s106, %s107
    %s109 = sand.u32 51, %s108
    %s110 = sshrl.u32 %s109, 2
    %s111 = sor.u32 %s109, %s110
    %s112 = sand.u32 15, %s111
    %v113 = vld [vmem:[%s103] sm:%s112]
    %v114 = vunpack.c.l.bf16 %v113
    %v115 = vunpack.c.h.bf16 %v113
    %s116 = scalar_lea.vmem [#allocation1], 72
    %117 = vst [vmem:[%s116] sm:%s5] %v114
    %s118 = smul.addr 1, 8
    %s119 = scalar_lea.vmem %s0, %s118
    %s120 = sshrl.u32 %s5, 1
    %s121 = sor.u32 %s5, %s120
    %s122 = sand.u32 %s121, 85
    %s123 = sshrl.u32 %s122, 1
    %s124 = sor.u32 %s122, %s123
    %s125 = sand.u32 51, %s124
    %s126 = sshrl.u32 %s125, 2
    %s127 = sor.u32 %s125, %s126
    %s128 = sand.u32 15, %s127
    %v129 = vld [vmem:[%s119] sm:%s128]
    %v130 = vunpack.c.l.bf16 %v129
    %v131 = vunpack.c.h.bf16 %v129
    %s132 = scalar_lea.vmem [#allocation1], 64
    %133 = vst [vmem:[%s132] sm:%s5] %v130
    %s134 = smul.addr 1, 7
    %s135 = scalar_lea.vmem %s0, %s134
    %s136 = sshrl.u32 %s5, 1
    %s137 = sor.u32 %s5, %s136
    %s138 = sand.u32 %s137, 85
    %s139 = sshrl.u32 %s138, 1
    %s140 = sor.u32 %s138, %s139
    %s141 = sand.u32 51, %s140
    %s142 = sshrl.u32 %s141, 2
    %s143 = sor.u32 %s141, %s142
    %s144 = sand.u32 15, %s143
    %v145 = vld [vmem:[%s135] sm:%s144]
    %v146 = vunpack.c.l.bf16 %v145
    %v147 = vunpack.c.h.bf16 %v145
    %s148 = scalar_lea.vmem [#allocation1], 56
    %149 = vst [vmem:[%s148] sm:%s5] %v146
    %s150 = smul.addr 1, 6
    %s151 = scalar_lea.vmem %s0, %s150
    %s152 = sshrl.u32 %s5, 1
    %s153 = sor.u32 %s5, %s152
    %s154 = sand.u32 %s153, 85
    %s155 = sshrl.u32 %s154, 1
    %s156 = sor.u32 %s154, %s155
    %s157 = sand.u32 51, %s156
    %s158 = sshrl.u32 %s157, 2
    %s159 = sor.u32 %s157, %s158
    %s160 = sand.u32 15, %s159
    %v161 = vld [vmem:[%s151] sm:%s160]
    %v162 = vunpack.c.l.bf16 %v161
    %v163 = vunpack.c.h.bf16 %v161
    %s164 = scalar_lea.vmem [#allocation1], 48
    %165 = vst [vmem:[%s164] sm:%s5] %v162
    %s166 = smul.addr 1, 5
    %s167 = scalar_lea.vmem %s0, %s166
    %s168 = sshrl.u32 %s5, 1
    %s169 = sor.u32 %s5, %s168
    %s170 = sand.u32 %s169, 85
    %s171 = sshrl.u32 %s170, 1
    %s172 = sor.u32 %s170, %s171
    %s173 = sand.u32 51, %s172
    %s174 = sshrl.u32 %s173, 2
    %s175 = sor.u32 %s173, %s174
    %s176 = sand.u32 15, %s175
    %v177 = vld [vmem:[%s167] sm:%s176]
    %v178 = vunpack.c.l.bf16 %v177
    %v179 = vunpack.c.h.bf16 %v177
    %s180 = scalar_lea.vmem [#allocation1], 40
    %181 = vst [vmem:[%s180] sm:%s5] %v178
    %s182 = smul.addr 1, 4
    %s183 = scalar_lea.vmem %s0, %s182
    %s184 = sshrl.u32 %s5, 1
    %s185 = sor.u32 %s5, %s184
    %s186 = sand.u32 %s185, 85
    %s187 = sshrl.u32 %s186, 1
    %s188 = sor.u32 %s186, %s187
    %s189 = sand.u32 51, %s188
    %s190 = sshrl.u32 %s189, 2
    %s191 = sor.u32 %s189, %s190
    %s192 = sand.u32 15, %s191
    %v193 = vld [vmem:[%s183] sm:%s192]
    %v194 = vunpack.c.l.bf16 %v193
    %v195 = vunpack.c.h.bf16 %v193
    %s196 = scalar_lea.vmem [#allocation1], 32
    %197 = vst [vmem:[%s196] sm:%s5] %v194
    %s198 = smul.addr 1, 3
    %s199 = scalar_lea.vmem %s0, %s198
    %s200 = sshrl.u32 %s5, 1
    %s201 = sor.u32 %s5, %s200
    %s202 = sand.u32 %s201, 85
    %s203 = sshrl.u32 %s202, 1
    %s204 = sor.u32 %s202, %s203
    %s205 = sand.u32 51, %s204
    %s206 = sshrl.u32 %s205, 2
    %s207 = sor.u32 %s205, %s206
    %s208 = sand.u32 15, %s207
    %v209 = vld [vmem:[%s199] sm:%s208]
    %v210 = vunpack.c.l.bf16 %v209
    %v211 = vunpack.c.h.bf16 %v209
    %s212 = scalar_lea.vmem [#allocation1], 24
    %213 = vst [vmem:[%s212] sm:%s5] %v210
    %s214 = smul.addr 1, 2
    %s215 = scalar_lea.vmem %s0, %s214
    %s216 = sshrl.u32 %s5, 1
    %s217 = sor.u32 %s5, %s216
    %s218 = sand.u32 %s217, 85
    %s219 = sshrl.u32 %s218, 1
    %s220 = sor.u32 %s218, %s219
    %s221 = sand.u32 51, %s220
    %s222 = sshrl.u32 %s221, 2
    %s223 = sor.u32 %s221, %s222
    %s224 = sand.u32 15, %s223
    %v225 = vld [vmem:[%s215] sm:%s224]
    %v226 = vunpack.c.l.bf16 %v225
    %v227 = vunpack.c.h.bf16 %v225
    %s228 = scalar_lea.vmem [#allocation1], 16
    %229 = vst [vmem:[%s228] sm:%s5] %v226
    %s230 = scalar_lea.vmem %s0, 1
    %s231 = sshrl.u32 %s5, 1
    %s232 = sor.u32 %s5, %s231
    %s233 = sand.u32 %s232, 85
    %s234 = sshrl.u32 %s233, 1
    %s235 = sor.u32 %s233, %s234
    %s236 = sand.u32 51, %s235
    %s237 = sshrl.u32 %s236, 2
    %s238 = sor.u32 %s236, %s237
    %s239 = sand.u32 15, %s238
    %v240 = vld [vmem:[%s230] sm:%s239]
    %v241 = vunpack.c.l.bf16 %v240
    %v242 = vunpack.c.h.bf16 %v240
    %s243 = scalar_lea.vmem [#allocation1], 8
    %244 = vst [vmem:[%s243] sm:%s5] %v241
    %s245 = sshrl.u32 %s5, 1
    %s246 = sor.u32 %s5, %s245
    %s247 = sand.u32 %s246, 85
    %s248 = sshrl.u32 %s247, 1
    %s249 = sor.u32 %s247, %s248
    %s250 = sand.u32 51, %s249
    %s251 = sshrl.u32 %s250, 2
    %s252 = sor.u32 %s250, %s251
    %s253 = sand.u32 15, %s252
    %v254 = vld [vmem:[%s0] sm:%s253]
    %v255 = vunpack.c.l.bf16 %v254
    %v256 = vunpack.c.h.bf16 %v254
    %257 = vst [vmem:[#allocation1] sm:%s5] %v255
    %v258 = vld [vmem:[#allocation1] sm:$0x3]
    %259 = vst [vmem:[#allocation0] ss:$16 sm:$0x3] %v258
    %s260 = scalar_lea.vmem [#allocation1], 8
    %v261 = vld [vmem:[%s260] sm:$0x3]
    %s262 = scalar_lea.vmem [#allocation0], 1
    %263 = vst [vmem:[%s262] ss:$16 sm:$0x3] %v261
    %s264 = scalar_lea.vmem [#allocation1], 16
    %v265 = vld [vmem:[%s264] sm:$0x3]
    %s266 = scalar_lea.vmem [#allocation0], 2
    %267 = vst [vmem:[%s266] ss:$16 sm:$0x3] %v265
    %s268 = scalar_lea.vmem [#allocation1], 24
    %v269 = vld [vmem:[%s268] sm:$0x3]
    %s270 = scalar_lea.vmem [#allocation0], 3
    %271 = vst [vmem:[%s270] ss:$16 sm:$0x3] %v269
    %s272 = scalar_lea.vmem [#allocation1], 32
    %v273 = vld [vmem:[%s272] sm:$0x3]
    %s274 = scalar_lea.vmem [#allocation0], 4
    %275 = vst [vmem:[%s274] ss:$16 sm:$0x3] %v273
    %s276 = scalar_lea.vmem [#allocation1], 40
    %v277 = vld [vmem:[%s276] sm:$0x3]
    %s278 = scalar_lea.vmem [#allocation0], 5
    %279 = vst [vmem:[%s278] ss:$16 sm:$0x3] %v277
    %s280 = scalar_lea.vmem [#allocation1], 48
    %v281 = vld [vmem:[%s280] sm:$0x3]
    %s282 = scalar_lea.vmem [#allocation0], 6
    %283 = vst [vmem:[%s282] ss:$16 sm:$0x3] %v281
    %s284 = scalar_lea.vmem [#allocation1], 56
    %v285 = vld [vmem:[%s284] sm:$0x3]
    %s286 = scalar_lea.vmem [#allocation0], 7
    %287 = vst [vmem:[%s286] ss:$16 sm:$0x3] %v285
    %s288 = scalar_lea.vmem [#allocation1], 64
    %v289 = vld [vmem:[%s288] sm:$0x3]
    %s290 = scalar_lea.vmem [#allocation0], 8
    %291 = vst [vmem:[%s290] ss:$16 sm:$0x3] %v289
    %s292 = scalar_lea.vmem [#allocation1], 72
    %v293 = vld [vmem:[%s292] sm:$0x3]
    %s294 = scalar_lea.vmem [#allocation0], 9
    %295 = vst [vmem:[%s294] ss:$16 sm:$0x3] %v293
    %s296 = scalar_lea.vmem [#allocation1], 80
    %v297 = vld [vmem:[%s296] sm:$0x3]
    %s298 = scalar_lea.vmem [#allocation0], 10
    %299 = vst [vmem:[%s298] ss:$16 sm:$0x3] %v297
    %s300 = scalar_lea.vmem [#allocation1], 88
    %v301 = vld [vmem:[%s300] sm:$0x3]
    %s302 = scalar_lea.vmem [#allocation0], 11
    %303 = vst [vmem:[%s302] ss:$16 sm:$0x3] %v301
    %s304 = scalar_lea.vmem [#allocation1], 96
    %v305 = vld [vmem:[%s304] sm:$0x3]
    %s306 = scalar_lea.vmem [#allocation0], 12
    %307 = vst [vmem:[%s306] ss:$16 sm:$0x3] %v305
    %s308 = scalar_lea.vmem [#allocation1], 104
    %v309 = vld [vmem:[%s308] sm:$0x3]
    %s310 = scalar_lea.vmem [#allocation0], 13
    %311 = vst [vmem:[%s310] ss:$16 sm:$0x3] %v309
    %s312 = scalar_lea.vmem [#allocation1], 112
    %v313 = vld [vmem:[%s312] sm:$0x3]
    %s314 = scalar_lea.vmem [#allocation0], 14
    %315 = vst [vmem:[%s314] ss:$16 sm:$0x3] %v313
    %s316 = scalar_lea.vmem [#allocation1], 120
    %v317 = vld [vmem:[%s316] sm:$0x3]
    %s318 = scalar_lea.vmem [#allocation0], 15
    %319 = vst [vmem:[%s318] ss:$16 sm:$0x3] %v317
    %s321 = smul.u32 4, 2
    %s322 = sshll.u32 1, %s321
    %s323 = ssub.s32 %s322, 1
    %s324 = sshrl.u32 %s321, 1
    %v325 = vld [vmem:[#allocation0] sm:%s323]
    %v326 = vpack.c.bf16 0.0, %v325
    %s327 = sshll.u32 1, %s324
    %s328 = ssub.s32 %s327, 1
    %329 = vst [vmem:[%s1] sm:%s328] %v326
    %s330 = scalar_lea.vmem [#allocation0], 8
    %v331 = vld [vmem:[%s330] sm:%s323]
    %v332 = vpack.c.bf16 0.0, %v331
    %s333 = sshll.u32 1, %s324
    %s334 = ssub.s32 %s333, 1
    %s335 = scalar_lea.vmem %s1, 4
    %336 = vst [vmem:[%s335] sm:%s334] %v332
    %s337 = scalar_lea.vmem [#allocation0], 16
    %v338 = vld [vmem:[%s337] sm:%s323]
    %v339 = vpack.c.bf16 0.0, %v338
    %s340 = sshll.u32 1, %s324
    %s341 = ssub.s32 %s340, 1
    %s342 = smul.addr 4, 2
    %s343 = scalar_lea.vmem %s1, %s342
    %344 = vst [vmem:[%s343] sm:%s341] %v339
    %s345 = scalar_lea.vmem [#allocation0], 24
    %v346 = vld [vmem:[%s345] sm:%s323]
    %v347 = vpack.c.bf16 0.0, %v346
    %s348 = sshll.u32 1, %s324
    %s349 = ssub.s32 %s348, 1
    %s350 = smul.addr 4, 3
    %s351 = scalar_lea.vmem %s1, %s350
    %352 = vst [vmem:[%s351] sm:%s349] %v347

// kernel: topdown_generator_forward.10
$region0: #{topdown_generator_forward.10}
  #allocation0 [shape = 'u32[]', space=smem, size = 0x4, offset = 0x4, fixed_abs, tag = 'smem constant byte address 0x4 - core index']
  #allocation1 [shape = 'u32[144,128]{1,0:T(1,128)}', space=vmem, size = 0x12000, scoped, tag = 'internal scratch']
  %s0 = inlined_call_operand.vmem [shape: bf16[32,128], index: 0, kind: input, shape index: {}]
  %s1 = inlined_call_operand.vmem [shape: f32[1,128], index: 1, kind: input, shape index: {}]
  %s2 = inlined_call_operand.vmem [shape: f32[1,128], index: 2, kind: input, shape index: {}]
  %s3 = inlined_call_operand.vmem [shape: bf16[32,128], index: 3, kind: output, shape index: {}]
  %s4 = sld [smem:[#allocation0]]
  $region22: #{topdown_generator_forward.10} parent=0
    _
  %s6 = ssub.s32 1, %s4
  %s7 = scalar_select 0, %s6, %s4
  // Predicated region
  $region2: #{topdown_generator_forward.10} parent=0 // pred_check
    _
  $region3: #{topdown_generator_forward.10} parent=0 // pred_check_branch
    %9 = sbr.rel (0) target = $region5
  $region4: #{topdown_generator_forward.10} parent=0 // pred_region
    _
  $region5: #{topdown_generator_forward.10} parent=0 // pred_fallthru
    _
  // Predicated region
  $region6: #{topdown_generator_forward.10} parent=0 // pred_check
    _
  $region7: #{topdown_generator_forward.10} parent=0 // pred_check_branch
    %11 = sbr.rel (0) target = $region9
  $region8: #{topdown_generator_forward.10} parent=0 // pred_region
    _
  $region9: #{topdown_generator_forward.10} parent=0 // pred_fallthru
    _
  // Predicated region
  $region10: #{topdown_generator_forward.10} parent=0 // pred_check
    _
  $region11: #{topdown_generator_forward.10} parent=0 // pred_check_branch
    %13 = sbr.rel (0) target = $region13
  $region12: #{topdown_generator_forward.10} parent=0 // pred_region
    _
  $region13: #{topdown_generator_forward.10} parent=0 // pred_fallthru
    _
  %v14 = vld [vmem:[%s0] sm:$0xf]
  %v15 = vld [vmem:[%s0 + $0x4] sm:$0xf]
  %v16 = vld [vmem:[%s0 + $0x8] sm:$0xf]
  %v17 = vld [vmem:[%s0 + $0xc] sm:$0xf]
  %v18 = vunpack.c.l.bf16 %v14
  %v19 = vunpack.c.l.bf16 %v15
  %v20 = vunpack.c.l.bf16 %v16
  %v21 = vunpack.c.l.bf16 %v17
  %v22 = vld [vmem:[%s1] sm:$0x1]
  %v24 = vlaneseq
  %v25 = vshrl.u32 %v24, 7
  %v26 = vsub.s32 0, %v25
  %v27 = vrot.slane %v22, %v26
  %v29 = vmul.f32 %v18, %v27
  %v30 = vmul.f32 %v19, %v27
  %v31 = vmul.f32 %v20, %v27
  %v32 = vmul.f32 %v21, %v27
  %v33 = vld [vmem:[%s2] sm:$0x1]
  %v35 = vlaneseq
  %v36 = vshrl.u32 %v35, 7
  %v37 = vsub.s32 0, %v36
  %v38 = vrot.slane %v33, %v37
  %v40 = vadd.f32 %v29, %v38
  %v41 = vadd.f32 %v30, %v38
  %v42 = vadd.f32 %v31, %v38
  %v43 = vadd.f32 %v32, %v38
  %v44 = vmax.f32 %v40, 0.0
  %v45 = vmax.f32 %v41, 0.0
  %v46 = vmax.f32 %v42, 0.0
  %v47 = vmax.f32 %v43, 0.0
  %v48 = vpack.c.bf16 %v45, %v44
  %v49 = vpack.c.bf16 %v47, %v46
  %v52 = vunpack.c.l.b16 %v48
  %v53 = vunpack.c.h.b16 %v48
  %v54 = vunpack.c.l.b16 %v49
  %v55 = vunpack.c.h.b16 %v49
  %v56 = vpack.c.b16 %v52, %v52
  %v57 = vpack.c.b16 %v53, %v53
  %v58 = vpack.c.b16 %v54, %v54
  %v59 = vpack.c.b16 %v55, %v55
  %64 = vst [vmem:[%s3] sm:$0xf] %v56
  %65 = vst [vmem:[%s3 + $0x4] sm:$0xf] %v57
  %66 = vst [vmem:[%s3 + $0x8] sm:$0xf] %v58
  %67 = vst [vmem:[%s3 + $0xc] sm:$0xf] %v59
  // Predicated region
  $region14: #{topdown_generator_forward.10} parent=0 // pred_check
    _
  $region15: #{topdown_generator_forward.10} parent=0 // pred_check_branch
    %69 = sbr.rel (0) target = $region17
  $region16: #{topdown_generator_forward.10} parent=0 // pred_region
    _
  $region17: #{topdown_generator_forward.10} parent=0 // pred_fallthru
    _
  // Predicated region
  $region18: #{topdown_generator_forward.10} parent=0 // pred_check
    _
  $region19: #{topdown_generator_forward.10} parent=0 // pred_check_branch
    %71 = sbr.rel (0) target = $region21
  $region20: #{topdown_generator_forward.10} parent=0 // pred_region
    _
  $region21: #{topdown_generator_forward.10} parent=0 // pred_fallthru
    _

// kernel: topdown_generator_forward.9
$region0: #{topdown_generator_forward.9}
  #allocation0 [shape = 'u32[]', space=smem, size = 0x4, offset = 0x4, fixed_abs, tag = 'smem constant byte address 0x4 - core index']
  #allocation1 [shape = 'u32[144,128]{1,0:T(1,128)}', space=vmem, size = 0x12000, scoped, tag = 'internal scratch']
  #allocation2 [shape = 'f32[8,2048]{1,0:T(8,128)}', space=vmem, size = 0x10000, scoped, tag = 'scratch operand']
  %s0 = inlined_call_operand.vmem [shape: bf16[1,8,128], index: 0, kind: input, shape index: {}]
  %s1 = inlined_call_operand.hbm [shape: bf16[1,128,2048], index: 1, kind: input, shape index: {}]
  %s2 = inlined_call_operand.vmem [shape: bf16[1,8,2048], index: 2, kind: output, shape index: {0}]
  %s3 = inlined_call_operand.vmem [shape: f32[1,8,2048], index: 3, kind: output, shape index: {1}]
  %4 = xla_tuple %s2, %s3
  %s5 = sld [smem:[#allocation0]]
  $region38: #{topdown_generator_forward.9} parent=0
    _
  %s7 = ssub.s32 1, %s5
  %s8 = scalar_select 0, %s7, %s5
  $region1: #{topdown_generator_forward.9} parent=0
    #allocation3 [shape = 'u8[524288]{0}', space=vmem, size = 0x80000, scoped, tag = 'input window, operand 1, single buffered']
    #allocation4 [shape = 's32[1]{0}', space=sflag, size = 0x4, scoped, tag = 'scoped memory for topdown_generator_forward.9']
    %9 = vsyncpa [#allocation4], 0
    // Predicated region
    $region2: #{topdown_generator_forward.9} parent=1 // pred_check
      _
    $region3: #{topdown_generator_forward.9} parent=1 // pred_check_branch
      %11 = sbr.rel (0) target = $region5
    $region4: #{topdown_generator_forward.9} parent=1 // pred_region
      _
    $region5: #{topdown_generator_forward.9} parent=1 // pred_fallthru
      _
    // Predicated region
    $region6: #{topdown_generator_forward.9} parent=1 // pred_check
      _
    $region7: #{topdown_generator_forward.9} parent=1 // pred_check_branch
      %13 = sbr.rel (0) target = $region9
    $region8: #{topdown_generator_forward.9} parent=1 // pred_region
      %s15 = ssub.s32 16384, 16384
      %16 = vsyncadd [#allocation4], %s15
      %s17 = sshll.u32 [#allocation3], 4
      %s18 = int_to_ptr.vmem [resolvable:$true] %s17
      %23 = dma.hbm_to_vmem [thread:$0]  %s1, 16384, %s18, [#allocation4], 1024, 1024, 64
    $region9: #{topdown_generator_forward.9} parent=1 // pred_fallthru
      _
    // Predicated region
    $region10: #{topdown_generator_forward.9} parent=1 // pred_check
      _
    $region11: #{topdown_generator_forward.9} parent=1 // pred_check_branch
      %25 = sbr.rel (0) target = $region13
    $region12: #{topdown_generator_forward.9} parent=1 // pred_region
      %26 = dma.done [#allocation4], 16384
    $region13: #{topdown_generator_forward.9} parent=1 // pred_fallthru
      _
    %p28 = scmp.eq.s32.totalorder 0, 0
    // Predicated region
    $region14: #{topdown_generator_forward.9} parent=1 // pred_check
      %p29 = pneg %p28
    $region15: #{topdown_generator_forward.9} parent=1 // pred_check_branch
      %31 = sbr.rel (%p29) target = $region17
    $region16: #{topdown_generator_forward.9} parent=1 // pred_region
      %32 = vst [vmem:[#allocation2] sm:$0xff] 0.0
      %33 = vst [vmem:[#allocation2 + $0x8] sm:$0xff] 0.0
      %34 = vst [vmem:[#allocation2 + $0x10] sm:$0xff] 0.0
      %35 = vst [vmem:[#allocation2 + $0x18] sm:$0xff] 0.0
      %36 = vst [vmem:[#allocation2 + $0x20] sm:$0xff] 0.0
      %37 = vst [vmem:[#allocation2 + $0x28] sm:$0xff] 0.0
      %38 = vst [vmem:[#allocation2 + $0x30] sm:$0xff] 0.0
      %39 = vst [vmem:[#allocation2 + $0x38] sm:$0xff] 0.0
      %40 = vst [vmem:[#allocation2 + $0x40] sm:$0xff] 0.0
      %41 = vst [vmem:[#allocation2 + $0x48] sm:$0xff] 0.0
      %42 = vst [vmem:[#allocation2 + $0x50] sm:$0xff] 0.0
      %43 = vst [vmem:[#allocation2 + $0x58] sm:$0xff] 0.0
      %44 = vst [vmem:[#allocation2 + $0x60] sm:$0xff] 0.0
      %45 = vst [vmem:[#allocation2 + $0x68] sm:$0xff] 0.0
      %46 = vst [vmem:[#allocation2 + $0x70] sm:$0xff] 0.0
      %47 = vst [vmem:[#allocation2 + $0x78] sm:$0xff] 0.0
    $region17: #{topdown_generator_forward.9} parent=1 // pred_fallthru
      _
    %v48 = vld [vmem:[#allocation2] sm:$0xff]
    %v49 = vld [vmem:[#allocation2 + $0x8] sm:$0xff]
    %v50 = vld [vmem:[#allocation2 + $0x10] sm:$0xff]
    %v51 = vld [vmem:[#allocation2 + $0x18] sm:$0xff]
    %v52 = vld [vmem:[#allocation2 + $0x20] sm:$0xff]
    %v53 = vld [vmem:[#allocation2 + $0x28] sm:$0xff]
    %v54 = vld [vmem:[#allocation2 + $0x30] sm:$0xff]
    %v55 = vld [vmem:[#allocation2 + $0x38] sm:$0xff]
    %v56 = vld [vmem:[#allocation2 + $0x40] sm:$0xff]
    %v57 = vld [vmem:[#allocation2 + $0x48] sm:$0xff]
    %v58 = vld [vmem:[#allocation2 + $0x50] sm:$0xff]
    %v59 = vld [vmem:[#allocation2 + $0x58] sm:$0xff]
    %v60 = vld [vmem:[#allocation2 + $0x60] sm:$0xff]
    %v61 = vld [vmem:[#allocation2 + $0x68] sm:$0xff]
    %v62 = vld [vmem:[#allocation2 + $0x70] sm:$0xff]
    %v63 = vld [vmem:[#allocation2 + $0x78] sm:$0xff]
    %v64 = vld [vmem:[%s0] sm:$0xf]
    %v65 = vld [vmem:[#allocation3] sm:$0xff]
    %v66 = vld [vmem:[#allocation3 + $0x8] sm:$0xff]
    %v67 = vld [vmem:[#allocation3 + $0x10] sm:$0xff]
    %v68 = vld [vmem:[#allocation3 + $0x18] sm:$0xff]
    %v69 = vld [vmem:[#allocation3 + $0x20] sm:$0xff]
    %v70 = vld [vmem:[#allocation3 + $0x28] sm:$0xff]
    %v71 = vld [vmem:[#allocation3 + $0x30] sm:$0xff]
    %v72 = vld [vmem:[#allocation3 + $0x38] sm:$0xff]
    %v73 = vld [vmem:[#allocation3 + $0x40] sm:$0xff]
    %v74 = vld [vmem:[#allocation3 + $0x48] sm:$0xff]
    %v75 = vld [vmem:[#allocation3 + $0x50] sm:$0xff]
    %v76 = vld [vmem:[#allocation3 + $0x58] sm:$0xff]
    %v77 = vld [vmem:[#allocation3 + $0x60] sm:$0xff]
    %v78 = vld [vmem:[#allocation3 + $0x68] sm:$0xff]
    %v79 = vld [vmem:[#allocation3 + $0x70] sm:$0xff]
    %v80 = vld [vmem:[#allocation3 + $0x78] sm:$0xff]
    %v81 = vld [vmem:[#allocation3 + $0x80] sm:$0xff]
    %v82 = vld [vmem:[#allocation3 + $0x88] sm:$0xff]
    %v83 = vld [vmem:[#allocation3 + $0x90] sm:$0xff]
    %v84 = vld [vmem:[#allocation3 + $0x98] sm:$0xff]
    %v85 = vld [vmem:[#allocation3 + $0xa0] sm:$0xff]
    %v86 = vld [vmem:[#allocation3 + $0xa8] sm:$0xff]
    %v87 = vld [vmem:[#allocation3 + $0xb0] sm:$0xff]
    %v88 = vld [vmem:[#allocation3 + $0xb8] sm:$0xff]
    %v89 = vld [vmem:[#allocation3 + $0xc0] sm:$0xff]
    %v90 = vld [vmem:[#allocation3 + $0xc8] sm:$0xff]
    %v91 = vld [vmem:[#allocation3 + $0xd0] sm:$0xff]
    %v92 = vld [vmem:[#allocation3 + $0xd8] sm:$0xff]
    %v93 = vld [vmem:[#allocation3 + $0xe0] sm:$0xff]
    %v94 = vld [vmem:[#allocation3 + $0xe8] sm:$0xff]
    %v95 = vld [vmem:[#allocation3 + $0xf0] sm:$0xff]
    %v96 = vld [vmem:[#allocation3 + $0xf8] sm:$0xff]
    %v97 = vld [vmem:[#allocation3 + $0x100] sm:$0xff]
    %v98 = vld [vmem:[#allocation3 + $0x108] sm:$0xff]
    %v99 = vld [vmem:[#allocation3 + $0x110] sm:$0xff]
    %v100 = vld [vmem:[#allocation3 + $0x118] sm:$0xff]
    %v101 = vld [vmem:[#allocation3 + $0x120] sm:$0xff]
    %v102 = vld [vmem:[#allocation3 + $0x128] sm:$0xff]
    %v103 = vld [vmem:[#allocation3 + $0x130] sm:$0xff]
    %v104 = vld [vmem:[#allocation3 + $0x138] sm:$0xff]
    %v105 = vld [vmem:[#allocation3 + $0x140] sm:$0xff]
    %v106 = vld [vmem:[#allocation3 + $0x148] sm:$0xff]
    %v107 = vld [vmem:[#allocation3 + $0x150] sm:$0xff]
    %v108 = vld [vmem:[#allocation3 + $0x158] sm:$0xff]
    %v109 = vld [vmem:[#allocation3 + $0x160] sm:$0xff]
    %v110 = vld [vmem:[#allocation3 + $0x168] sm:$0xff]
    %v111 = vld [vmem:[#allocation3 + $0x170] sm:$0xff]
    %v112 = vld [vmem:[#allocation3 + $0x178] sm:$0xff]
    %v113 = vld [vmem:[#allocation3 + $0x180] sm:$0xff]
    %v114 = vld [vmem:[#allocation3 + $0x188] sm:$0xff]
    %v115 = vld [vmem:[#allocation3 + $0x190] sm:$0xff]
    %v116 = vld [vmem:[#allocation3 + $0x198] sm:$0xff]
    %v117 = vld [vmem:[#allocation3 + $0x1a0] sm:$0xff]
    %v118 = vld [vmem:[#allocation3 + $0x1a8] sm:$0xff]
    %v119 = vld [vmem:[#allocation3 + $0x1b0] sm:$0xff]
    %v120 = vld [vmem:[#allocation3 + $0x1b8] sm:$0xff]
    %v121 = vld [vmem:[#allocation3 + $0x1c0] sm:$0xff]
    %v122 = vld [vmem:[#allocation3 + $0x1c8] sm:$0xff]
    %v123 = vld [vmem:[#allocation3 + $0x1d0] sm:$0xff]
    %v124 = vld [vmem:[#allocation3 + $0x1d8] sm:$0xff]
    %v125 = vld [vmem:[#allocation3 + $0x1e0] sm:$0xff]
    %v126 = vld [vmem:[#allocation3 + $0x1e8] sm:$0xff]
    %v127 = vld [vmem:[#allocation3 + $0x1f0] sm:$0xff]
    %v128 = vld [vmem:[#allocation3 + $0x1f8] sm:$0xff]
    %v129 = vld [vmem:[#allocation3 + $0x200] sm:$0xff]
    %v130 = vld [vmem:[#allocation3 + $0x208] sm:$0xff]
    %v131 = vld [vmem:[#allocation3 + $0x210] sm:$0xff]
    %v132 = vld [vmem:[#allocation3 + $0x218] sm:$0xff]
    %v133 = vld [vmem:[#allocation3 + $0x220] sm:$0xff]
    %v134 = vld [vmem:[#allocation3 + $0x228] sm:$0xff]
    %v135 = vld [vmem:[#allocation3 + $0x230] sm:$0xff]
    %v136 = vld [vmem:[#allocation3 + $0x238] sm:$0xff]
    %v137 = vld [vmem:[#allocation3 + $0x240] sm:$0xff]
    %v138 = vld [vmem:[#allocation3 + $0x248] sm:$0xff]
    %v139 = vld [vmem:[#allocation3 + $0x250] sm:$0xff]
    %v140 = vld [vmem:[#allocation3 + $0x258] sm:$0xff]
    %v141 = vld [vmem:[#allocation3 + $0x260] sm:$0xff]
    %v142 = vld [vmem:[#allocation3 + $0x268] sm:$0xff]
    %v143 = vld [vmem:[#allocation3 + $0x270] sm:$0xff]
    %v144 = vld [vmem:[#allocation3 + $0x278] sm:$0xff]
    %v145 = vld [vmem:[#allocation3 + $0x280] sm:$0xff]
    %v146 = vld [vmem:[#allocation3 + $0x288] sm:$0xff]
    %v147 = vld [vmem:[#allocation3 + $0x290] sm:$0xff]
    %v148 = vld [vmem:[#allocation3 + $0x298] sm:$0xff]
    %v149 = vld [vmem:[#allocation3 + $0x2a0] sm:$0xff]
    %v150 = vld [vmem:[#allocation3 + $0x2a8] sm:$0xff]
    %v151 = vld [vmem:[#allocation3 + $0x2b0] sm:$0xff]
    %v152 = vld [vmem:[#allocation3 + $0x2b8] sm:$0xff]
    %v153 = vld [vmem:[#allocation3 + $0x2c0] sm:$0xff]
    %v154 = vld [vmem:[#allocation3 + $0x2c8] sm:$0xff]
    %v155 = vld [vmem:[#allocation3 + $0x2d0] sm:$0xff]
    %v156 = vld [vmem:[#allocation3 + $0x2d8] sm:$0xff]
    %v157 = vld [vmem:[#allocation3 + $0x2e0] sm:$0xff]
    %v158 = vld [vmem:[#allocation3 + $0x2e8] sm:$0xff]
    %v159 = vld [vmem:[#allocation3 + $0x2f0] sm:$0xff]
    %v160 = vld [vmem:[#allocation3 + $0x2f8] sm:$0xff]
    %v161 = vld [vmem:[#allocation3 + $0x300] sm:$0xff]
    %v162 = vld [vmem:[#allocation3 + $0x308] sm:$0xff]
    %v163 = vld [vmem:[#allocation3 + $0x310] sm:$0xff]
    %v164 = vld [vmem:[#allocation3 + $0x318] sm:$0xff]
    %v165 = vld [vmem:[#allocation3 + $0x320] sm:$0xff]
    %v166 = vld [vmem:[#allocation3 + $0x328] sm:$0xff]
    %v167 = vld [vmem:[#allocation3 + $0x330] sm:$0xff]
    %v168 = vld [vmem:[#allocation3 + $0x338] sm:$0xff]
    %v169 = vld [vmem:[#allocation3 + $0x340] sm:$0xff]
    %v170 = vld [vmem:[#allocation3 + $0x348] sm:$0xff]
    %v171 = vld [vmem:[#allocation3 + $0x350] sm:$0xff]
    %v172 = vld [vmem:[#allocation3 + $0x358] sm:$0xff]
    %v173 = vld [vmem:[#allocation3 + $0x360] sm:$0xff]
    %v174 = vld [vmem:[#allocation3 + $0x368] sm:$0xff]
    %v175 = vld [vmem:[#allocation3 + $0x370] sm:$0xff]
    %v176 = vld [vmem:[#allocation3 + $0x378] sm:$0xff]
    %v177 = vld [vmem:[#allocation3 + $0x380] sm:$0xff]
    %v178 = vld [vmem:[#allocation3 + $0x388] sm:$0xff]
    %v179 = vld [vmem:[#allocation3 + $0x390] sm:$0xff]
    %v180 = vld [vmem:[#allocation3 + $0x398] sm:$0xff]
    %v181 = vld [vmem:[#allocation3 + $0x3a0] sm:$0xff]
    %v182 = vld [vmem:[#allocation3 + $0x3a8] sm:$0xff]
    %v183 = vld [vmem:[#allocation3 + $0x3b0] sm:$0xff]
    %v184 = vld [vmem:[#allocation3 + $0x3b8] sm:$0xff]
    %v185 = vld [vmem:[#allocation3 + $0x3c0] sm:$0xff]
    %v186 = vld [vmem:[#allocation3 + $0x3c8] sm:$0xff]
    %v187 = vld [vmem:[#allocation3 + $0x3d0] sm:$0xff]
    %v188 = vld [vmem:[#allocation3 + $0x3d8] sm:$0xff]
    %v189 = vld [vmem:[#allocation3 + $0x3e0] sm:$0xff]
    %v190 = vld [vmem:[#allocation3 + $0x3e8] sm:$0xff]
    %v191 = vld [vmem:[#allocation3 + $0x3f0] sm:$0xff]
    %v192 = vld [vmem:[#allocation3 + $0x3f8] sm:$0xff]
    %v321 = vunpack.c.l.b16 %v65
    %v322 = vunpack.c.h.b16 %v65
    %v323 = vunpack.c.l.b16 %v66
    %v324 = vunpack.c.h.b16 %v66
    %v325 = vunpack.c.l.b16 %v67
    %v326 = vunpack.c.h.b16 %v67
    %v327 = vunpack.c.l.b16 %v68
    %v328 = vunpack.c.h.b16 %v68
    %v329 = vunpack.c.l.b16 %v69
    %v330 = vunpack.c.h.b16 %v69
    %v331 = vunpack.c.l.b16 %v70
    %v332 = vunpack.c.h.b16 %v70
    %v333 = vunpack.c.l.b16 %v71
    %v334 = vunpack.c.h.b16 %v71
    %v335 = vunpack.c.l.b16 %v72
    %v336 = vunpack.c.h.b16 %v72
    %v337 = vunpack.c.l.b16 %v73
    %v338 = vunpack.c.h.b16 %v73
    %v339 = vunpack.c.l.b16 %v74
    %v340 = vunpack.c.h.b16 %v74
    %v341 = vunpack.c.l.b16 %v75
    %v342 = vunpack.c.h.b16 %v75
    %v343 = vunpack.c.l.b16 %v76
    %v344 = vunpack.c.h.b16 %v76
    %v345 = vunpack.c.l.b16 %v77
    %v346 = vunpack.c.h.b16 %v77
    %v347 = vunpack.c.l.b16 %v78
    %v348 = vunpack.c.h.b16 %v78
    %v349 = vunpack.c.l.b16 %v79
    %v350 = vunpack.c.h.b16 %v79
    %v351 = vunpack.c.l.b16 %v80
    %v352 = vunpack.c.h.b16 %v80
    %v353 = vunpack.c.l.b16 %v81
    %v354 = vunpack.c.h.b16 %v81
    %v355 = vunpack.c.l.b16 %v82
    %v356 = vunpack.c.h.b16 %v82
    %v357 = vunpack.c.l.b16 %v83
    %v358 = vunpack.c.h.b16 %v83
    %v359 = vunpack.c.l.b16 %v84
    %v360 = vunpack.c.h.b16 %v84
    %v361 = vunpack.c.l.b16 %v85
    %v362 = vunpack.c.h.b16 %v85
    %v363 = vunpack.c.l.b16 %v86
    %v364 = vunpack.c.h.b16 %v86
    %v365 = vunpack.c.l.b16 %v87
    %v366 = vunpack.c.h.b16 %v87
    %v367 = vunpack.c.l.b16 %v88
    %v368 = vunpack.c.h.b16 %v88
    %v369 = vunpack.c.l.b16 %v89
    %v370 = vunpack.c.h.b16 %v89
    %v371 = vunpack.c.l.b16 %v90
    %v372 = vunpack.c.h.b16 %v90
    %v373 = vunpack.c.l.b16 %v91
    %v374 = vunpack.c.h.b16 %v91
    %v375 = vunpack.c.l.b16 %v92
    %v376 = vunpack.c.h.b16 %v92
    %v377 = vunpack.c.l.b16 %v93
    %v378 = vunpack.c.h.b16 %v93
    %v379 = vunpack.c.l.b16 %v94
    %v380 = vunpack.c.h.b16 %v94
    %v381 = vunpack.c.l.b16 %v95
    %v382 = vunpack.c.h.b16 %v95
    %v383 = vunpack.c.l.b16 %v96
    %v384 = vunpack.c.h.b16 %v96
    %v385 = vunpack.c.l.b16 %v97
    %v386 = vunpack.c.h.b16 %v97
    %v387 = vunpack.c.l.b16 %v98
    %v388 = vunpack.c.h.b16 %v98
    %v389 = vunpack.c.l.b16 %v99
    %v390 = vunpack.c.h.b16 %v99
    %v391 = vunpack.c.l.b16 %v100
    %v392 = vunpack.c.h.b16 %v100
    %v393 = vunpack.c.l.b16 %v101
    %v394 = vunpack.c.h.b16 %v101
    %v395 = vunpack.c.l.b16 %v102
    %v396 = vunpack.c.h.b16 %v102
    %v397 = vunpack.c.l.b16 %v103
    %v398 = vunpack.c.h.b16 %v103
    %v399 = vunpack.c.l.b16 %v104
    %v400 = vunpack.c.h.b16 %v104
    %v401 = vunpack.c.l.b16 %v105
    %v402 = vunpack.c.h.b16 %v105
    %v403 = vunpack.c.l.b16 %v106
    %v404 = vunpack.c.h.b16 %v106
    %v405 = vunpack.c.l.b16 %v107
    %v406 = vunpack.c.h.b16 %v107
    %v407 = vunpack.c.l.b16 %v108
    %v408 = vunpack.c.h.b16 %v108
    %v409 = vunpack.c.l.b16 %v109
    %v410 = vunpack.c.h.b16 %v109
    %v411 = vunpack.c.l.b16 %v110
    %v412 = vunpack.c.h.b16 %v110
    %v413 = vunpack.c.l.b16 %v111
    %v414 = vunpack.c.h.b16 %v111
    %v415 = vunpack.c.l.b16 %v112
    %v416 = vunpack.c.h.b16 %v112
    %v417 = vunpack.c.l.b16 %v113
    %v418 = vunpack.c.h.b16 %v113
    %v419 = vunpack.c.l.b16 %v114
    %v420 = vunpack.c.h.b16 %v114
    %v421 = vunpack.c.l.b16 %v115
    %v422 = vunpack.c.h.b16 %v115
    %v423 = vunpack.c.l.b16 %v116
    %v424 = vunpack.c.h.b16 %v116
    %v425 = vunpack.c.l.b16 %v117
    %v426 = vunpack.c.h.b16 %v117
    %v427 = vunpack.c.l.b16 %v118
    %v428 = vunpack.c.h.b16 %v118
    %v429 = vunpack.c.l.b16 %v119
    %v430 = vunpack.c.h.b16 %v119
    %v431 = vunpack.c.l.b16 %v120
    %v432 = vunpack.c.h.b16 %v120
    %v433 = vunpack.c.l.b16 %v121
    %v434 = vunpack.c.h.b16 %v121
    %v435 = vunpack.c.l.b16 %v122
    %v436 = vunpack.c.h.b16 %v122
    %v437 = vunpack.c.l.b16 %v123
    %v438 = vunpack.c.h.b16 %v123
    %v439 = vunpack.c.l.b16 %v124
    %v440 = vunpack.c.h.b16 %v124
    %v441 = vunpack.c.l.b16 %v125
    %v442 = vunpack.c.h.b16 %v125
    %v443 = vunpack.c.l.b16 %v126
    %v444 = vunpack.c.h.b16 %v126
    %v445 = vunpack.c.l.b16 %v127
    %v446 = vunpack.c.h.b16 %v127
    %v447 = vunpack.c.l.b16 %v128
    %v448 = vunpack.c.h.b16 %v128
    %v449 = vunpack.c.l.b16 %v129
    %v450 = vunpack.c.h.b16 %v129
    %v451 = vunpack.c.l.b16 %v130
    %v452 = vunpack.c.h.b16 %v130
    %v453 = vunpack.c.l.b16 %v131
    %v454 = vunpack.c.h.b16 %v131
    %v455 = vunpack.c.l.b16 %v132
    %v456 = vunpack.c.h.b16 %v132
    %v457 = vunpack.c.l.b16 %v133
    %v458 = vunpack.c.h.b16 %v133
    %v459 = vunpack.c.l.b16 %v134
    %v460 = vunpack.c.h.b16 %v134
    %v461 = vunpack.c.l.b16 %v135
    %v462 = vunpack.c.h.b16 %v135
    %v463 = vunpack.c.l.b16 %v136
    %v464 = vunpack.c.h.b16 %v136
    %v465 = vunpack.c.l.b16 %v137
    %v466 = vunpack.c.h.b16 %v137
    %v467 = vunpack.c.l.b16 %v138
    %v468 = vunpack.c.h.b16 %v138
    %v469 = vunpack.c.l.b16 %v139
    %v470 = vunpack.c.h.b16 %v139
    %v471 = vunpack.c.l.b16 %v140
    %v472 = vunpack.c.h.b16 %v140
    %v473 = vunpack.c.l.b16 %v141
    %v474 = vunpack.c.h.b16 %v141
    %v475 = vunpack.c.l.b16 %v142
    %v476 = vunpack.c.h.b16 %v142
    %v477 = vunpack.c.l.b16 %v143
    %v478 = vunpack.c.h.b16 %v143
    %v479 = vunpack.c.l.b16 %v144
    %v480 = vunpack.c.h.b16 %v144
    %v481 = vunpack.c.l.b16 %v145
    %v482 = vunpack.c.h.b16 %v145
    %v483 = vunpack.c.l.b16 %v146
    %v484 = vunpack.c.h.b16 %v146
    %v485 = vunpack.c.l.b16 %v147
    %v486 = vunpack.c.h.b16 %v147
    %v487 = vunpack.c.l.b16 %v148
    %v488 = vunpack.c.h.b16 %v148
    %v489 = vunpack.c.l.b16 %v149
    %v490 = vunpack.c.h.b16 %v149
    %v491 = vunpack.c.l.b16 %v150
    %v492 = vunpack.c.h.b16 %v150
    %v493 = vunpack.c.l.b16 %v151
    %v494 = vunpack.c.h.b16 %v151
    %v495 = vunpack.c.l.b16 %v152
    %v496 = vunpack.c.h.b16 %v152
    %v497 = vunpack.c.l.b16 %v153
    %v498 = vunpack.c.h.b16 %v153
    %v499 = vunpack.c.l.b16 %v154
    %v500 = vunpack.c.h.b16 %v154
    %v501 = vunpack.c.l.b16 %v155
    %v502 = vunpack.c.h.b16 %v155
    %v503 = vunpack.c.l.b16 %v156
    %v504 = vunpack.c.h.b16 %v156
    %v505 = vunpack.c.l.b16 %v157
    %v506 = vunpack.c.h.b16 %v157
    %v507 = vunpack.c.l.b16 %v158
    %v508 = vunpack.c.h.b16 %v158
    %v509 = vunpack.c.l.b16 %v159
    %v510 = vunpack.c.h.b16 %v159
    %v511 = vunpack.c.l.b16 %v160
    %v512 = vunpack.c.h.b16 %v160
    %v513 = vunpack.c.l.b16 %v161
    %v514 = vunpack.c.h.b16 %v161
    %v515 = vunpack.c.l.b16 %v162
    %v516 = vunpack.c.h.b16 %v162
    %v517 = vunpack.c.l.b16 %v163
    %v518 = vunpack.c.h.b16 %v163
    %v519 = vunpack.c.l.b16 %v164
    %v520 = vunpack.c.h.b16 %v164
    %v521 = vunpack.c.l.b16 %v165
    %v522 = vunpack.c.h.b16 %v165
    %v523 = vunpack.c.l.b16 %v166
    %v524 = vunpack.c.h.b16 %v166
    %v525 = vunpack.c.l.b16 %v167
    %v526 = vunpack.c.h.b16 %v167
    %v527 = vunpack.c.l.b16 %v168
    %v528 = vunpack.c.h.b16 %v168
    %v529 = vunpack.c.l.b16 %v169
    %v530 = vunpack.c.h.b16 %v169
    %v531 = vunpack.c.l.b16 %v170
    %v532 = vunpack.c.h.b16 %v170
    %v533 = vunpack.c.l.b16 %v171
    %v534 = vunpack.c.h.b16 %v171
    %v535 = vunpack.c.l.b16 %v172
    %v536 = vunpack.c.h.b16 %v172
    %v537 = vunpack.c.l.b16 %v173
    %v538 = vunpack.c.h.b16 %v173
    %v539 = vunpack.c.l.b16 %v174
    %v540 = vunpack.c.h.b16 %v174
    %v541 = vunpack.c.l.b16 %v175
    %v542 = vunpack.c.h.b16 %v175
    %v543 = vunpack.c.l.b16 %v176
    %v544 = vunpack.c.h.b16 %v176
    %v545 = vunpack.c.l.b16 %v177
    %v546 = vunpack.c.h.b16 %v177
    %v547 = vunpack.c.l.b16 %v178
    %v548 = vunpack.c.h.b16 %v178
    %v549 = vunpack.c.l.b16 %v179
    %v550 = vunpack.c.h.b16 %v179
    %v551 = vunpack.c.l.b16 %v180
    %v552 = vunpack.c.h.b16 %v180
    %v553 = vunpack.c.l.b16 %v181
    %v554 = vunpack.c.h.b16 %v181
    %v555 = vunpack.c.l.b16 %v182
    %v556 = vunpack.c.h.b16 %v182
    %v557 = vunpack.c.l.b16 %v183
    %v558 = vunpack.c.h.b16 %v183
    %v559 = vunpack.c.l.b16 %v184
    %v560 = vunpack.c.h.b16 %v184
    %v561 = vunpack.c.l.b16 %v185
    %v562 = vunpack.c.h.b16 %v185
    %v563 = vunpack.c.l.b16 %v186
    %v564 = vunpack.c.h.b16 %v186
    %v565 = vunpack.c.l.b16 %v187
    %v566 = vunpack.c.h.b16 %v187
    %v567 = vunpack.c.l.b16 %v188
    %v568 = vunpack.c.h.b16 %v188
    %v569 = vunpack.c.l.b16 %v189
    %v570 = vunpack.c.h.b16 %v189
    %v571 = vunpack.c.l.b16 %v190
    %v572 = vunpack.c.h.b16 %v190
    %v573 = vunpack.c.l.b16 %v191
    %v574 = vunpack.c.h.b16 %v191
    %v575 = vunpack.c.l.b16 %v192
    %v576 = vunpack.c.h.b16 %v192
    %v577 = vpack.c.b16 %v337, %v321
    %v578 = vpack.c.b16 %v338, %v322
    %v579 = vpack.c.b16 %v339, %v323
    %v580 = vpack.c.b16 %v340, %v324
    %v581 = vpack.c.b16 %v341, %v325
    %v582 = vpack.c.b16 %v342, %v326
    %v583 = vpack.c.b16 %v343, %v327
    %v584 = vpack.c.b16 %v344, %v328
    %v585 = vpack.c.b16 %v345, %v329
    %v586 = vpack.c.b16 %v346, %v330
    %v587 = vpack.c.b16 %v347, %v331
    %v588 = vpack.c.b16 %v348, %v332
    %v589 = vpack.c.b16 %v349, %v333
    %v590 = vpack.c.b16 %v350, %v334
    %v591 = vpack.c.b16 %v351, %v335
    %v592 = vpack.c.b16 %v352, %v336
    %v593 = vpack.c.b16 %v369, %v353
    %v594 = vpack.c.b16 %v370, %v354
    %v595 = vpack.c.b16 %v371, %v355
    %v596 = vpack.c.b16 %v372, %v356
    %v597 = vpack.c.b16 %v373, %v357
    %v598 = vpack.c.b16 %v374, %v358
    %v599 = vpack.c.b16 %v375, %v359
    %v600 = vpack.c.b16 %v376, %v360
    %v601 = vpack.c.b16 %v377, %v361
    %v602 = vpack.c.b16 %v378, %v362
    %v603 = vpack.c.b16 %v379, %v363
    %v604 = vpack.c.b16 %v380, %v364
    %v605 = vpack.c.b16 %v381, %v365
    %v606 = vpack.c.b16 %v382, %v366
    %v607 = vpack.c.b16 %v383, %v367
    %v608 = vpack.c.b16 %v384, %v368
    %v609 = vpack.c.b16 %v401, %v385
    %v610 = vpack.c.b16 %v402, %v386
    %v611 = vpack.c.b16 %v403, %v387
    %v612 = vpack.c.b16 %v404, %v388
    %v613 = vpack.c.b16 %v405, %v389
    %v614 = vpack.c.b16 %v406, %v390
    %v615 = vpack.c.b16 %v407, %v391
    %v616 = vpack.c.b16 %v408, %v392
    %v617 = vpack.c.b16 %v409, %v393
    %v618 = vpack.c.b16 %v410, %v394
    %v619 = vpack.c.b16 %v411, %v395
    %v620 = vpack.c.b16 %v412, %v396
    %v621 = vpack.c.b16 %v413, %v397
    %v622 = vpack.c.b16 %v414, %v398
    %v623 = vpack.c.b16 %v415, %v399
    %v624 = vpack.c.b16 %v416, %v400
    %v625 = vpack.c.b16 %v433, %v417
    %v626 = vpack.c.b16 %v434, %v418
    %v627 = vpack.c.b16 %v435, %v419
    %v628 = vpack.c.b16 %v436, %v420
    %v629 = vpack.c.b16 %v437, %v421
    %v630 = vpack.c.b16 %v438, %v422
    %v631 = vpack.c.b16 %v439, %v423
    %v632 = vpack.c.b16 %v440, %v424
    %v633 = vpack.c.b16 %v441, %v425
    %v634 = vpack.c.b16 %v442, %v426
    %v635 = vpack.c.b16 %v443, %v427
    %v636 = vpack.c.b16 %v444, %v428
    %v637 = vpack.c.b16 %v445, %v429
    %v638 = vpack.c.b16 %v446, %v430
    %v639 = vpack.c.b16 %v447, %v431
    %v640 = vpack.c.b16 %v448, %v432
    %v641 = vpack.c.b16 %v465, %v449
    %v642 = vpack.c.b16 %v466, %v450
    %v643 = vpack.c.b16 %v467, %v451
    %v644 = vpack.c.b16 %v468, %v452
    %v645 = vpack.c.b16 %v469, %v453
    %v646 = vpack.c.b16 %v470, %v454
    %v647 = vpack.c.b16 %v471, %v455
    %v648 = vpack.c.b16 %v472, %v456
    %v649 = vpack.c.b16 %v473, %v457
    %v650 = vpack.c.b16 %v474, %v458
    %v651 = vpack.c.b16 %v475, %v459
    %v652 = vpack.c.b16 %v476, %v460
    %v653 = vpack.c.b16 %v477, %v461
    %v654 = vpack.c.b16 %v478, %v462
    %v655 = vpack.c.b16 %v479, %v463
    %v656 = vpack.c.b16 %v480, %v464
    %v657 = vpack.c.b16 %v497, %v481
    %v658 = vpack.c.b16 %v498, %v482
    %v659 = vpack.c.b16 %v499, %v483
    %v660 = vpack.c.b16 %v500, %v484
    %v661 = vpack.c.b16 %v501, %v485
    %v662 = vpack.c.b16 %v502, %v486
    %v663 = vpack.c.b16 %v503, %v487
    %v664 = vpack.c.b16 %v504, %v488
    %v665 = vpack.c.b16 %v505, %v489
    %v666 = vpack.c.b16 %v506, %v490
    %v667 = vpack.c.b16 %v507, %v491
    %v668 = vpack.c.b16 %v508, %v492
    %v669 = vpack.c.b16 %v509, %v493
    %v670 = vpack.c.b16 %v510, %v494
    %v671 = vpack.c.b16 %v511, %v495
    %v672 = vpack.c.b16 %v512, %v496
    %v673 = vpack.c.b16 %v529, %v513
    %v674 = vpack.c.b16 %v530, %v514
    %v675 = vpack.c.b16 %v531, %v515
    %v676 = vpack.c.b16 %v532, %v516
    %v677 = vpack.c.b16 %v533, %v517
    %v678 = vpack.c.b16 %v534, %v518
    %v679 = vpack.c.b16 %v535, %v519
    %v680 = vpack.c.b16 %v536, %v520
    %v681 = vpack.c.b16 %v537, %v521
    %v682 = vpack.c.b16 %v538, %v522
    %v683 = vpack.c.b16 %v539, %v523
    %v684 = vpack.c.b16 %v540, %v524
    %v685 = vpack.c.b16 %v541, %v525
    %v686 = vpack.c.b16 %v542, %v526
    %v687 = vpack.c.b16 %v543, %v527
    %v688 = vpack.c.b16 %v544, %v528
    %v689 = vpack.c.b16 %v561, %v545
    %v690 = vpack.c.b16 %v562, %v546
    %v691 = vpack.c.b16 %v563, %v547
    %v692 = vpack.c.b16 %v564, %v548
    %v693 = vpack.c.b16 %v565, %v549
    %v694 = vpack.c.b16 %v566, %v550
    %v695 = vpack.c.b16 %v567, %v551
    %v696 = vpack.c.b16 %v568, %v552
    %v697 = vpack.c.b16 %v569, %v553
    %v698 = vpack.c.b16 %v570, %v554
    %v699 = vpack.c.b16 %v571, %v555
    %v700 = vpack.c.b16 %v572, %v556
    %v701 = vpack.c.b16 %v573, %v557
    %v702 = vpack.c.b16 %v574, %v558
    %v703 = vpack.c.b16 %v575, %v559
    %v704 = vpack.c.b16 %v576, %v560
    %833 = vmatprep.subr.bf16.mxu0 %v690
    %834 = vmatpush1.bf16.msra.mxu0 %v689
    %835 = vmatprep.subr.bf16.mxu0 %v674
    %836 = vmatpush1.bf16.msra.mxu0 %v673
    %837 = vmatprep.subr.bf16.mxu0 %v658
    %838 = vmatpush1.bf16.msra.mxu0 %v657
    %839 = vmatprep.subr.bf16.mxu0 %v642
    %840 = vmatpush1.bf16.msra.mxu0 %v641
    %841 = vmatprep.subr.bf16.mxu0 %v626
    %842 = vmatpush1.bf16.msra.mxu0 %v625
    %843 = vmatprep.subr.bf16.mxu0 %v610
    %844 = vmatpush1.bf16.msra.mxu0 %v609
    %845 = vmatprep.subr.bf16.mxu0 %v594
    %846 = vmatpush1.bf16.msra.mxu0 %v593
    %847 = vmatprep.subr.bf16.mxu0 %v578
    %848 = vmatpush1.bf16.msra.mxu0 %v577
    %849 = vmatprep.subr.bf16.mxu0 0
    %850 = vmatpush2.bf16.msra.mxu0 0
    %851 = vmatprep.subr.bf16.mxu0 0
    %852 = vmatpush2.bf16.msra.mxu0 0
    %853 = vmatprep.subr.bf16.mxu0 0
    %854 = vmatpush2.bf16.msra.mxu0 0
    %855 = vmatprep.subr.bf16.mxu0 0
    %856 = vmatpush2.bf16.msra.mxu0 0
    %857 = vmatprep.subr.bf16.mxu0 0
    %858 = vmatpush2.bf16.msra.mxu0 0
    %859 = vmatprep.subr.bf16.mxu0 0
    %860 = vmatpush2.bf16.msra.mxu0 0
    %861 = vmatprep.subr.bf16.mxu0 0
    %862 = vmatpush2.bf16.msra.mxu0 0
    %863 = vmatprep.subr.bf16.mxu0 0
    %864 = vmatpush2.bf16.msra.mxu0 0
    %865 = vmatprep.mubr.bf16.mxu0 0
    %866 = vmatmul.mubr.bf16.gmra.mxu0 %v64
    %v867 = vpop.f32.mrf.mxu0
    %v868 = vadd.f32 0.0, %v867
    %v869 = vpop.f32.mrf.mxu0
    %v870 = vadd.f32 0.0, %v869
    %v871 = vpop.f32.mrf.mxu0
    %v872 = vpop.f32.mrf.mxu0
    %873 = vdwg.mxu0
    %874 = vmatprep.subr.bf16.mxu0 %v692
    %875 = vmatpush1.bf16.msra.mxu0 %v691
    %876 = vmatprep.subr.bf16.mxu0 %v676
    %877 = vmatpush1.bf16.msra.mxu0 %v675
    %878 = vmatprep.subr.bf16.mxu0 %v660
    %879 = vmatpush1.bf16.msra.mxu0 %v659
    %880 = vmatprep.subr.bf16.mxu0 %v644
    %881 = vmatpush1.bf16.msra.mxu0 %v643
    %882 = vmatprep.subr.bf16.mxu0 %v628
    %883 = vmatpush1.bf16.msra.mxu0 %v627
    %884 = vmatprep.subr.bf16.mxu0 %v612
    %885 = vmatpush1.bf16.msra.mxu0 %v611
    %886 = vmatprep.subr.bf16.mxu0 %v596
    %887 = vmatpush1.bf16.msra.mxu0 %v595
    %888 = vmatprep.subr.bf16.mxu0 %v580
    %889 = vmatpush1.bf16.msra.mxu0 %v579
    %890 = vmatprep.subr.bf16.mxu0 0
    %891 = vmatpush2.bf16.msra.mxu0 0
    %892 = vmatprep.subr.bf16.mxu0 0
    %893 = vmatpush2.bf16.msra.mxu0 0
    %894 = vmatprep.subr.bf16.mxu0 0
    %895 = vmatpush2.bf16.msra.mxu0 0
    %896 = vmatprep.subr.bf16.mxu0 0
    %897 = vmatpush2.bf16.msra.mxu0 0
    %898 = vmatprep.subr.bf16.mxu0 0
    %899 = vmatpush2.bf16.msra.mxu0 0
    %900 = vmatprep.subr.bf16.mxu0 0
    %901 = vmatpush2.bf16.msra.mxu0 0
    %902 = vmatprep.subr.bf16.mxu0 0
    %903 = vmatpush2.bf16.msra.mxu0 0
    %904 = vmatprep.subr.bf16.mxu0 0
    %905 = vmatpush2.bf16.msra.mxu0 0
    %906 = vmatprep.mubr.bf16.mxu0 0
    %907 = vmatmul.mubr.bf16.gmra.mxu0 %v64
    %v908 = vpop.f32.mrf.mxu0
    %v909 = vadd.f32 0.0, %v908
    %v910 = vpop.f32.mrf.mxu0
    %v911 = vadd.f32 0.0, %v910
    %v912 = vpop.f32.mrf.mxu0
    %v913 = vpop.f32.mrf.mxu0
    %914 = vdwg.mxu0
    %915 = vmatprep.subr.bf16.mxu0 %v694
    %916 = vmatpush1.bf16.msra.mxu0 %v693
    %917 = vmatprep.subr.bf16.mxu0 %v678
    %918 = vmatpush1.bf16.msra.mxu0 %v677
    %919 = vmatprep.subr.bf16.mxu0 %v662
    %920 = vmatpush1.bf16.msra.mxu0 %v661
    %921 = vmatprep.subr.bf16.mxu0 %v646
    %922 = vmatpush1.bf16.msra.mxu0 %v645
    %923 = vmatprep.subr.bf16.mxu0 %v630
    %924 = vmatpush1.bf16.msra.mxu0 %v629
    %925 = vmatprep.subr.bf16.mxu0 %v614
    %926 = vmatpush1.bf16.msra.mxu0 %v613
    %927 = vmatprep.subr.bf16.mxu0 %v598
    %928 = vmatpush1.bf16.msra.mxu0 %v597
    %929 = vmatprep.subr.bf16.mxu0 %v582
    %930 = vmatpush1.bf16.msra.mxu0 %v581
    %931 = vmatprep.subr.bf16.mxu0 0
    %932 = vmatpush2.bf16.msra.mxu0 0
    %933 = vmatprep.subr.bf16.mxu0 0
    %934 = vmatpush2.bf16.msra.mxu0 0
    %935 = vmatprep.subr.bf16.mxu0 0
    %936 = vmatpush2.bf16.msra.mxu0 0
    %937 = vmatprep.subr.bf16.mxu0 0
    %938 = vmatpush2.bf16.msra.mxu0 0
    %939 = vmatprep.subr.bf16.mxu0 0
    %940 = vmatpush2.bf16.msra.mxu0 0
    %941 = vmatprep.subr.bf16.mxu0 0
    %942 = vmatpush2.bf16.msra.mxu0 0
    %943 = vmatprep.subr.bf16.mxu0 0
    %944 = vmatpush2.bf16.msra.mxu0 0
    %945 = vmatprep.subr.bf16.mxu0 0
    %946 = vmatpush2.bf16.msra.mxu0 0
    %947 = vmatprep.mubr.bf16.mxu0 0
    %948 = vmatmul.mubr.bf16.gmra.mxu0 %v64
    %v949 = vpop.f32.mrf.mxu0
    %v950 = vadd.f32 0.0, %v949
    %v951 = vpop.f32.mrf.mxu0
    %v952 = vadd.f32 0.0, %v951
    %v953 = vpop.f32.mrf.mxu0
    %v954 = vpop.f32.mrf.mxu0
    %955 = vdwg.mxu0
    %956 = vmatprep.subr.bf16.mxu0 %v696
    %957 = vmatpush1.bf16.msra.mxu0 %v695
    %958 = vmatprep.subr.bf16.mxu0 %v680
    %959 = vmatpush1.bf16.msra.mxu0 %v679
    %960 = vmatprep.subr.bf16.mxu0 %v664
    %961 = vmatpush1.bf16.msra.mxu0 %v663
    %962 = vmatprep.subr.bf16.mxu0 %v648
    %963 = vmatpush1.bf16.msra.mxu0 %v647
    %964 = vmatprep.subr.bf16.mxu0 %v632
    %965 = vmatpush1.bf16.msra.mxu0 %v631
    %966 = vmatprep.subr.bf16.mxu0 %v616
    %967 = vmatpush1.bf16.msra.mxu0 %v615
    %968 = vmatprep.subr.bf16.mxu0 %v600
    %969 = vmatpush1.bf16.msra.mxu0 %v599
    %970 = vmatprep.subr.bf16.mxu0 %v584
    %971 = vmatpush1.bf16.msra.mxu0 %v583
    %972 = vmatprep.subr.bf16.mxu0 0
    %973 = vmatpush2.bf16.msra.mxu0 0
    %974 = vmatprep.subr.bf16.mxu0 0
    %975 = vmatpush2.bf16.msra.mxu0 0
    %976 = vmatprep.subr.bf16.mxu0 0
    %977 = vmatpush2.bf16.msra.mxu0 0
    %978 = vmatprep.subr.bf16.mxu0 0
    %979 = vmatpush2.bf16.msra.mxu0 0
    %980 = vmatprep.subr.bf16.mxu0 0
    %981 = vmatpush2.bf16.msra.mxu0 0
    %982 = vmatprep.subr.bf16.mxu0 0
    %983 = vmatpush2.bf16.msra.mxu0 0
    %984 = vmatprep.subr.bf16.mxu0 0
    %985 = vmatpush2.bf16.msra.mxu0 0
    %986 = vmatprep.subr.bf16.mxu0 0
    %987 = vmatpush2.bf16.msra.mxu0 0
    %988 = vmatprep.mubr.bf16.mxu0 0
    %989 = vmatmul.mubr.bf16.gmra.mxu0 %v64
    %v990 = vpop.f32.mrf.mxu0
    %v991 = vadd.f32 0.0, %v990
    %v992 = vpop.f32.mrf.mxu0
    %v993 = vadd.f32 0.0, %v992
    %v994 = vpop.f32.mrf.mxu0
    %v995 = vpop.f32.mrf.mxu0
    %996 = vdwg.mxu0
    %997 = vmatprep.subr.bf16.mxu0 %v698
    %998 = vmatpush1.bf16.msra.mxu0 %v697
    %999 = vmatprep.subr.bf16.mxu0 %v682
    %1000 = vmatpush1.bf16.msra.mxu0 %v681
    %1001 = vmatprep.subr.bf16.mxu0 %v666
    %1002 = vmatpush1.bf16.msra.mxu0 %v665
    %1003 = vmatprep.subr.bf16.mxu0 %v650
    %1004 = vmatpush1.bf16.msra.mxu0 %v649
    %1005 = vmatprep.subr.bf16.mxu0 %v634
    %1006 = vmatpush1.bf16.msra.mxu0 %v633
    %1007 = vmatprep.subr.bf16.mxu0 %v618
    %1008 = vmatpush1.bf16.msra.mxu0 %v617
    %1009 = vmatprep.subr.bf16.mxu0 %v602
    %1010 = vmatpush1.bf16.msra.mxu0 %v601
    %1011 = vmatprep.subr.bf16.mxu0 %v586
    %1012 = vmatpush1.bf16.msra.mxu0 %v585
    %1013 = vmatprep.subr.bf16.mxu0 0
    %1014 = vmatpush2.bf16.msra.mxu0 0
    %1015 = vmatprep.subr.bf16.mxu0 0
    %1016 = vmatpush2.bf16.msra.mxu0 0
    %1017 = vmatprep.subr.bf16.mxu0 0
    %1018 = vmatpush2.bf16.msra.mxu0 0
    %1019 = vmatprep.subr.bf16.mxu0 0
    %1020 = vmatpush2.bf16.msra.mxu0 0
    %1021 = vmatprep.subr.bf16.mxu0 0
    %1022 = vmatpush2.bf16.msra.mxu0 0
    %1023 = vmatprep.subr.bf16.mxu0 0
    %1024 = vmatpush2.bf16.msra.mxu0 0
    %1025 = vmatprep.subr.bf16.mxu0 0
    %1026 = vmatpush2.bf16.msra.mxu0 0
    %1027 = vmatprep.subr.bf16.mxu0 0
    %1028 = vmatpush2.bf16.msra.mxu0 0
    %1029 = vmatprep.mubr.bf16.mxu0 0
    %1030 = vmatmul.mubr.bf16.gmra.mxu0 %v64
    %v1031 = vpop.f32.mrf.mxu0
    %v1032 = vadd.f32 0.0, %v1031
    %v1033 = vpop.f32.mrf.mxu0
    %v1034 = vadd.f32 0.0, %v1033
    %v1035 = vpop.f32.mrf.mxu0
    %v1036 = vpop.f32.mrf.mxu0
    %1037 = vdwg.mxu0
    %1038 = vmatprep.subr.bf16.mxu0 %v700
    %1039 = vmatpush1.bf16.msra.mxu0 %v699
    %1040 = vmatprep.subr.bf16.mxu0 %v684
    %1041 = vmatpush1.bf16.msra.mxu0 %v683
    %1042 = vmatprep.subr.bf16.mxu0 %v668
    %1043 = vmatpush1.bf16.msra.mxu0 %v667
    %1044 = vmatprep.subr.bf16.mxu0 %v652
    %1045 = vmatpush1.bf16.msra.mxu0 %v651
    %1046 = vmatprep.subr.bf16.mxu0 %v636
    %1047 = vmatpush1.bf16.msra.mxu0 %v635
    %1048 = vmatprep.subr.bf16.mxu0 %v620
    %1049 = vmatpush1.bf16.msra.mxu0 %v619
    %1050 = vmatprep.subr.bf16.mxu0 %v604
    %1051 = vmatpush1.bf16.msra.mxu0 %v603
    %1052 = vmatprep.subr.bf16.mxu0 %v588
    %1053 = vmatpush1.bf16.msra.mxu0 %v587
    %1054 = vmatprep.subr.bf16.mxu0 0
    %1055 = vmatpush2.bf16.msra.mxu0 0
    %1056 = vmatprep.subr.bf16.mxu0 0
    %1057 = vmatpush2.bf16.msra.mxu0 0
    %1058 = vmatprep.subr.bf16.mxu0 0
    %1059 = vmatpush2.bf16.msra.mxu0 0
    %1060 = vmatprep.subr.bf16.mxu0 0
    %1061 = vmatpush2.bf16.msra.mxu0 0
    %1062 = vmatprep.subr.bf16.mxu0 0
    %1063 = vmatpush2.bf16.msra.mxu0 0
    %1064 = vmatprep.subr.bf16.mxu0 0
    %1065 = vmatpush2.bf16.msra.mxu0 0
    %1066 = vmatprep.subr.bf16.mxu0 0
    %1067 = vmatpush2.bf16.msra.mxu0 0
    %1068 = vmatprep.subr.bf16.mxu0 0
    %1069 = vmatpush2.bf16.msra.mxu0 0
    %1070 = vmatprep.mubr.bf16.mxu0 0
    %1071 = vmatmul.mubr.bf16.gmra.mxu0 %v64
    %v1072 = vpop.f32.mrf.mxu0
    %v1073 = vadd.f32 0.0, %v1072
    %v1074 = vpop.f32.mrf.mxu0
    %v1075 = vadd.f32 0.0, %v1074
    %v1076 = vpop.f32.mrf.mxu0
    %v1077 = vpop.f32.mrf.mxu0
    %1078 = vdwg.mxu0
    %1079 = vmatprep.subr.bf16.mxu0 %v702
    %1080 = vmatpush1.bf16.msra.mxu0 %v701
    %1081 = vmatprep.subr.bf16.mxu0 %v686
    %1082 = vmatpush1.bf16.msra.mxu0 %v685
    %1083 = vmatprep.subr.bf16.mxu0 %v670
    %1084 = vmatpush1.bf16.msra.mxu0 %v669
    %1085 = vmatprep.subr.bf16.mxu0 %v654
    %1086 = vmatpush1.bf16.msra.mxu0 %v653
    %1087 = vmatprep.subr.bf16.mxu0 %v638
    %1088 = vmatpush1.bf16.msra.mxu0 %v637
    %1089 = vmatprep.subr.bf16.mxu0 %v622
    %1090 = vmatpush1.bf16.msra.mxu0 %v621
    %1091 = vmatprep.subr.bf16.mxu0 %v606
    %1092 = vmatpush1.bf16.msra.mxu0 %v605
    %1093 = vmatprep.subr.bf16.mxu0 %v590
    %1094 = vmatpush1.bf16.msra.mxu0 %v589
    %1095 = vmatprep.subr.bf16.mxu0 0
    %1096 = vmatpush2.bf16.msra.mxu0 0
    %1097 = vmatprep.subr.bf16.mxu0 0
    %1098 = vmatpush2.bf16.msra.mxu0 0
    %1099 = vmatprep.subr.bf16.mxu0 0
    %1100 = vmatpush2.bf16.msra.mxu0 0
    %1101 = vmatprep.subr.bf16.mxu0 0
    %1102 = vmatpush2.bf16.msra.mxu0 0
    %1103 = vmatprep.subr.bf16.mxu0 0
    %1104 = vmatpush2.bf16.msra.mxu0 0
    %1105 = vmatprep.subr.bf16.mxu0 0
    %1106 = vmatpush2.bf16.msra.mxu0 0
    %1107 = vmatprep.subr.bf16.mxu0 0
    %1108 = vmatpush2.bf16.msra.mxu0 0
    %1109 = vmatprep.subr.bf16.mxu0 0
    %1110 = vmatpush2.bf16.msra.mxu0 0
    %1111 = vmatprep.mubr.bf16.mxu0 0
    %1112 = vmatmul.mubr.bf16.gmra.mxu0 %v64
    %v1113 = vpop.f32.mrf.mxu0
    %v1114 = vadd.f32 0.0, %v1113
    %v1115 = vpop.f32.mrf.mxu0
    %v1116 = vadd.f32 0.0, %v1115
    %v1117 = vpop.f32.mrf.mxu0
    %v1118 = vpop.f32.mrf.mxu0
    %1119 = vdwg.mxu0
    %1120 = vmatprep.subr.bf16.mxu0 %v704
    %1121 = vmatpush1.bf16.msra.mxu0 %v703
    %1122 = vmatprep.subr.bf16.mxu0 %v688
    %1123 = vmatpush1.bf16.msra.mxu0 %v687
    %1124 = vmatprep.subr.bf16.mxu0 %v672
    %1125 = vmatpush1.bf16.msra.mxu0 %v671
    %1126 = vmatprep.subr.bf16.mxu0 %v656
    %1127 = vmatpush1.bf16.msra.mxu0 %v655
    %1128 = vmatprep.subr.bf16.mxu0 %v640
    %1129 = vmatpush1.bf16.msra.mxu0 %v639
    %1130 = vmatprep.subr.bf16.mxu0 %v624
    %1131 = vmatpush1.bf16.msra.mxu0 %v623
    %1132 = vmatprep.subr.bf16.mxu0 %v608
    %1133 = vmatpush1.bf16.msra.mxu0 %v607
    %1134 = vmatprep.subr.bf16.mxu0 %v592
    %1135 = vmatpush1.bf16.msra.mxu0 %v591
    %1136 = vmatprep.subr.bf16.mxu0 0
    %1137 = vmatpush2.bf16.msra.mxu0 0
    %1138 = vmatprep.subr.bf16.mxu0 0
    %1139 = vmatpush2.bf16.msra.mxu0 0
    %1140 = vmatprep.subr.bf16.mxu0 0
    %1141 = vmatpush2.bf16.msra.mxu0 0
    %1142 = vmatprep.subr.bf16.mxu0 0
    %1143 = vmatpush2.bf16.msra.mxu0 0
    %1144 = vmatprep.subr.bf16.mxu0 0
    %1145 = vmatpush2.bf16.msra.mxu0 0
    %1146 = vmatprep.subr.bf16.mxu0 0
    %1147 = vmatpush2.bf16.msra.mxu0 0
    %1148 = vmatprep.subr.bf16.mxu0 0
    %1149 = vmatpush2.bf16.msra.mxu0 0
    %1150 = vmatprep.subr.bf16.mxu0 0
    %1151 = vmatpush2.bf16.msra.mxu0 0
    %1152 = vmatprep.mubr.bf16.mxu0 0
    %1153 = vmatmul.mubr.bf16.gmra.mxu0 %v64
    %v1154 = vpop.f32.mrf.mxu0
    %v1155 = vadd.f32 0.0, %v1154
    %v1156 = vpop.f32.mrf.mxu0
    %v1157 = vadd.f32 0.0, %v1156
    %v1158 = vpop.f32.mrf.mxu0
    %v1159 = vpop.f32.mrf.mxu0
    %1160 = vdwg.mxu0
    %v1161 = vadd.f32 %v48, %v868
    %v1162 = vadd.f32 %v49, %v870
    %v1163 = vadd.f32 %v50, %v909
    %v1164 = vadd.f32 %v51, %v911
    %v1165 = vadd.f32 %v52, %v950
    %v1166 = vadd.f32 %v53, %v952
    %v1167 = vadd.f32 %v54, %v991
    %v1168 = vadd.f32 %v55, %v993
    %v1169 = vadd.f32 %v56, %v1032
    %v1170 = vadd.f32 %v57, %v1034
    %v1171 = vadd.f32 %v58, %v1073
    %v1172 = vadd.f32 %v59, %v1075
    %v1173 = vadd.f32 %v60, %v1114
    %v1174 = vadd.f32 %v61, %v1116
    %v1175 = vadd.f32 %v62, %v1155
    %v1176 = vadd.f32 %v63, %v1157
    %1177 = vst [vmem:[#allocation2] sm:$0xff] %v1161
    %1178 = vst [vmem:[#allocation2 + $0x8] sm:$0xff] %v1162
    %1179 = vst [vmem:[#allocation2 + $0x10] sm:$0xff] %v1163
    %1180 = vst [vmem:[#allocation2 + $0x18] sm:$0xff] %v1164
    %1181 = vst [vmem:[#allocation2 + $0x20] sm:$0xff] %v1165
    %1182 = vst [vmem:[#allocation2 + $0x28] sm:$0xff] %v1166
    %1183 = vst [vmem:[#allocation2 + $0x30] sm:$0xff] %v1167
    %1184 = vst [vmem:[#allocation2 + $0x38] sm:$0xff] %v1168
    %1185 = vst [vmem:[#allocation2 + $0x40] sm:$0xff] %v1169
    %1186 = vst [vmem:[#allocation2 + $0x48] sm:$0xff] %v1170
    %1187 = vst [vmem:[#allocation2 + $0x50] sm:$0xff] %v1171
    %1188 = vst [vmem:[#allocation2 + $0x58] sm:$0xff] %v1172
    %1189 = vst [vmem:[#allocation2 + $0x60] sm:$0xff] %v1173
    %1190 = vst [vmem:[#allocation2 + $0x68] sm:$0xff] %v1174
    %1191 = vst [vmem:[#allocation2 + $0x70] sm:$0xff] %v1175
    %1192 = vst [vmem:[#allocation2 + $0x78] sm:$0xff] %v1176
    // Predicated region
    $region18: #{topdown_generator_forward.9} parent=1 // pred_check
      %p1193 = pneg %p28
    $region19: #{topdown_generator_forward.9} parent=1 // pred_check_branch
      %1195 = sbr.rel (%p1193) target = $region21
    $region20: #{topdown_generator_forward.9} parent=1 // pred_region
      %v1196 = vld [vmem:[#allocation2] sm:$0xff]
      %v1197 = vld [vmem:[#allocation2 + $0x8] sm:$0xff]
      %v1198 = vld [vmem:[#allocation2 + $0x10] sm:$0xff]
      %v1199 = vld [vmem:[#allocation2 + $0x18] sm:$0xff]
      %v1200 = vld [vmem:[#allocation2 + $0x20] sm:$0xff]
      %v1201 = vld [vmem:[#allocation2 + $0x28] sm:$0xff]
      %v1202 = vld [vmem:[#allocation2 + $0x30] sm:$0xff]
      %v1203 = vld [vmem:[#allocation2 + $0x38] sm:$0xff]
      %v1204 = vld [vmem:[#allocation2 + $0x40] sm:$0xff]
      %v1205 = vld [vmem:[#allocation2 + $0x48] sm:$0xff]
      %v1206 = vld [vmem:[#allocation2 + $0x50] sm:$0xff]
      %v1207 = vld [vmem:[#allocation2 + $0x58] sm:$0xff]
      %v1208 = vld [vmem:[#allocation2 + $0x60] sm:$0xff]
      %v1209 = vld [vmem:[#allocation2 + $0x68] sm:$0xff]
      %v1210 = vld [vmem:[#allocation2 + $0x70] sm:$0xff]
      %v1211 = vld [vmem:[#allocation2 + $0x78] sm:$0xff]
      %v1212 = vpack.c.bf16 %v1196, %v1196
      %v1213 = vpack.c.bf16 %v1197, %v1197
      %v1214 = vpack.c.bf16 %v1198, %v1198
      %v1215 = vpack.c.bf16 %v1199, %v1199
      %v1216 = vpack.c.bf16 %v1200, %v1200
      %v1217 = vpack.c.bf16 %v1201, %v1201
      %v1218 = vpack.c.bf16 %v1202, %v1202
      %v1219 = vpack.c.bf16 %v1203, %v1203
      %v1220 = vpack.c.bf16 %v1204, %v1204
      %v1221 = vpack.c.bf16 %v1205, %v1205
      %v1222 = vpack.c.bf16 %v1206, %v1206
      %v1223 = vpack.c.bf16 %v1207, %v1207
      %v1224 = vpack.c.bf16 %v1208, %v1208
      %v1225 = vpack.c.bf16 %v1209, %v1209
      %v1226 = vpack.c.bf16 %v1210, %v1210
      %v1227 = vpack.c.bf16 %v1211, %v1211
      %v1244 = vunpack.c.l.b16 %v1212
      %v1245 = vunpack.c.l.b16 %v1213
      %v1246 = vunpack.c.l.b16 %v1214
      %v1247 = vunpack.c.l.b16 %v1215
      %v1248 = vunpack.c.l.b16 %v1216
      %v1249 = vunpack.c.l.b16 %v1217
      %v1250 = vunpack.c.l.b16 %v1218
      %v1251 = vunpack.c.l.b16 %v1219
      %v1252 = vunpack.c.l.b16 %v1220
      %v1253 = vunpack.c.l.b16 %v1221
      %v1254 = vunpack.c.l.b16 %v1222
      %v1255 = vunpack.c.l.b16 %v1223
      %v1256 = vunpack.c.l.b16 %v1224
      %v1257 = vunpack.c.l.b16 %v1225
      %v1258 = vunpack.c.l.b16 %v1226
      %v1259 = vunpack.c.l.b16 %v1227
      %v1260 = vpack.c.b16 %v1245, %v1244
      %v1261 = vpack.c.b16 %v1247, %v1246
      %v1262 = vpack.c.b16 %v1249, %v1248
      %v1263 = vpack.c.b16 %v1251, %v1250
      %v1264 = vpack.c.b16 %v1253, %v1252
      %v1265 = vpack.c.b16 %v1255, %v1254
      %v1266 = vpack.c.b16 %v1257, %v1256
      %v1267 = vpack.c.b16 %v1259, %v1258
      %1276 = vst [vmem:[%s2] sm:$0xff] %v1260
      %1277 = vst [vmem:[%s2 + $0x8] sm:$0xff] %v1261
      %1278 = vst [vmem:[%s2 + $0x10] sm:$0xff] %v1262
      %1279 = vst [vmem:[%s2 + $0x18] sm:$0xff] %v1263
      %1280 = vst [vmem:[%s2 + $0x20] sm:$0xff] %v1264
      %1281 = vst [vmem:[%s2 + $0x28] sm:$0xff] %v1265
      %1282 = vst [vmem:[%s2 + $0x30] sm:$0xff] %v1266
      %1283 = vst [vmem:[%s2 + $0x38] sm:$0xff] %v1267
      %v1284 = vrot.slane %v1196, 4
      %v1285 = vadd.f32 %v1196, %v1284
      %v1286 = vrot.slane %v1285, 2
      %v1287 = vadd.f32 %v1285, %v1286
      %v1288 = vrot.slane %v1287, 1
      %v1289 = vadd.f32 %v1287, %v1288
      %v1290 = vrot.slane %v1197, 4
      %v1291 = vadd.f32 %v1197, %v1290
      %v1292 = vrot.slane %v1291, 2
      %v1293 = vadd.f32 %v1291, %v1292
      %v1294 = vrot.slane %v1293, 1
      %v1295 = vadd.f32 %v1293, %v1294
      %v1296 = vrot.slane %v1198, 4
      %v1297 = vadd.f32 %v1198, %v1296
      %v1298 = vrot.slane %v1297, 2
      %v1299 = vadd.f32 %v1297, %v1298
      %v1300 = vrot.slane %v1299, 1
      %v1301 = vadd.f32 %v1299, %v1300
      %v1302 = vrot.slane %v1199, 4
      %v1303 = vadd.f32 %v1199, %v1302
      %v1304 = vrot.slane %v1303, 2
      %v1305 = vadd.f32 %v1303, %v1304
      %v1306 = vrot.slane %v1305, 1
      %v1307 = vadd.f32 %v1305, %v1306
      %v1308 = vrot.slane %v1200, 4
      %v1309 = vadd.f32 %v1200, %v1308
      %v1310 = vrot.slane %v1309, 2
      %v1311 = vadd.f32 %v1309, %v1310
      %v1312 = vrot.slane %v1311, 1
      %v1313 = vadd.f32 %v1311, %v1312
      %v1314 = vrot.slane %v1201, 4
      %v1315 = vadd.f32 %v1201, %v1314
      %v1316 = vrot.slane %v1315, 2
      %v1317 = vadd.f32 %v1315, %v1316
      %v1318 = vrot.slane %v1317, 1
      %v1319 = vadd.f32 %v1317, %v1318
      %v1320 = vrot.slane %v1202, 4
      %v1321 = vadd.f32 %v1202, %v1320
      %v1322 = vrot.slane %v1321, 2
      %v1323 = vadd.f32 %v1321, %v1322
      %v1324 = vrot.slane %v1323, 1
      %v1325 = vadd.f32 %v1323, %v1324
      %v1326 = vrot.slane %v1203, 4
      %v1327 = vadd.f32 %v1203, %v1326
      %v1328 = vrot.slane %v1327, 2
      %v1329 = vadd.f32 %v1327, %v1328
      %v1330 = vrot.slane %v1329, 1
      %v1331 = vadd.f32 %v1329, %v1330
      %v1332 = vrot.slane %v1204, 4
      %v1333 = vadd.f32 %v1204, %v1332
      %v1334 = vrot.slane %v1333, 2
      %v1335 = vadd.f32 %v1333, %v1334
      %v1336 = vrot.slane %v1335, 1
      %v1337 = vadd.f32 %v1335, %v1336
      %v1338 = vrot.slane %v1205, 4
      %v1339 = vadd.f32 %v1205, %v1338
      %v1340 = vrot.slane %v1339, 2
      %v1341 = vadd.f32 %v1339, %v1340
      %v1342 = vrot.slane %v1341, 1
      %v1343 = vadd.f32 %v1341, %v1342
      %v1344 = vrot.slane %v1206, 4
      %v1345 = vadd.f32 %v1206, %v1344
      %v1346 = vrot.slane %v1345, 2
      %v1347 = vadd.f32 %v1345, %v1346
      %v1348 = vrot.slane %v1347, 1
      %v1349 = vadd.f32 %v1347, %v1348
      %v1350 = vrot.slane %v1207, 4
      %v1351 = vadd.f32 %v1207, %v1350
      %v1352 = vrot.slane %v1351, 2
      %v1353 = vadd.f32 %v1351, %v1352
      %v1354 = vrot.slane %v1353, 1
      %v1355 = vadd.f32 %v1353, %v1354
      %v1356 = vrot.slane %v1208, 4
      %v1357 = vadd.f32 %v1208, %v1356
      %v1358 = vrot.slane %v1357, 2
      %v1359 = vadd.f32 %v1357, %v1358
      %v1360 = vrot.slane %v1359, 1
      %v1361 = vadd.f32 %v1359, %v1360
      %v1362 = vrot.slane %v1209, 4
      %v1363 = vadd.f32 %v1209, %v1362
      %v1364 = vrot.slane %v1363, 2
      %v1365 = vadd.f32 %v1363, %v1364
      %v1366 = vrot.slane %v1365, 1
      %v1367 = vadd.f32 %v1365, %v1366
      %v1368 = vrot.slane %v1210, 4
      %v1369 = vadd.f32 %v1210, %v1368
      %v1370 = vrot.slane %v1369, 2
      %v1371 = vadd.f32 %v1369, %v1370
      %v1372 = vrot.slane %v1371, 1
      %v1373 = vadd.f32 %v1371, %v1372
      %v1374 = vrot.slane %v1211, 4
      %v1375 = vadd.f32 %v1211, %v1374
      %v1376 = vrot.slane %v1375, 2
      %v1377 = vadd.f32 %v1375, %v1376
      %v1378 = vrot.slane %v1377, 1
      %v1379 = vadd.f32 %v1377, %v1378
      %v1380 = vmul.f32 %v1196, %v1196
      %v1381 = vmul.f32 %v1197, %v1197
      %v1382 = vmul.f32 %v1198, %v1198
      %v1383 = vmul.f32 %v1199, %v1199
      %v1384 = vmul.f32 %v1200, %v1200
      %v1385 = vmul.f32 %v1201, %v1201
      %v1386 = vmul.f32 %v1202, %v1202
      %v1387 = vmul.f32 %v1203, %v1203
      %v1388 = vmul.f32 %v1204, %v1204
      %v1389 = vmul.f32 %v1205, %v1205
      %v1390 = vmul.f32 %v1206, %v1206
      %v1391 = vmul.f32 %v1207, %v1207
      %v1392 = vmul.f32 %v1208, %v1208
      %v1393 = vmul.f32 %v1209, %v1209
      %v1394 = vmul.f32 %v1210, %v1210
      %v1395 = vmul.f32 %v1211, %v1211
      %v1396 = vrot.slane %v1380, 4
      %v1397 = vadd.f32 %v1380, %v1396
      %v1398 = vrot.slane %v1397, 2
      %v1399 = vadd.f32 %v1397, %v1398
      %v1400 = vrot.slane %v1399, 1
      %v1401 = vadd.f32 %v1399, %v1400
      %v1402 = vrot.slane %v1381, 4
      %v1403 = vadd.f32 %v1381, %v1402
      %v1404 = vrot.slane %v1403, 2
      %v1405 = vadd.f32 %v1403, %v1404
      %v1406 = vrot.slane %v1405, 1
      %v1407 = vadd.f32 %v1405, %v1406
      %v1408 = vrot.slane %v1382, 4
      %v1409 = vadd.f32 %v1382, %v1408
      %v1410 = vrot.slane %v1409, 2
      %v1411 = vadd.f32 %v1409, %v1410
      %v1412 = vrot.slane %v1411, 1
      %v1413 = vadd.f32 %v1411, %v1412
      %v1414 = vrot.slane %v1383, 4
      %v1415 = vadd.f32 %v1383, %v1414
      %v1416 = vrot.slane %v1415, 2
      %v1417 = vadd.f32 %v1415, %v1416
      %v1418 = vrot.slane %v1417, 1
      %v1419 = vadd.f32 %v1417, %v1418
      %v1420 = vrot.slane %v1384, 4
      %v1421 = vadd.f32 %v1384, %v1420
      %v1422 = vrot.slane %v1421, 2
      %v1423 = vadd.f32 %v1421, %v1422
      %v1424 = vrot.slane %v1423, 1
      %v1425 = vadd.f32 %v1423, %v1424
      %v1426 = vrot.slane %v1385, 4
      %v1427 = vadd.f32 %v1385, %v1426
      %v1428 = vrot.slane %v1427, 2
      %v1429 = vadd.f32 %v1427, %v1428
      %v1430 = vrot.slane %v1429, 1
      %v1431 = vadd.f32 %v1429, %v1430
      %v1432 = vrot.slane %v1386, 4
      %v1433 = vadd.f32 %v1386, %v1432
      %v1434 = vrot.slane %v1433, 2
      %v1435 = vadd.f32 %v1433, %v1434
      %v1436 = vrot.slane %v1435, 1
      %v1437 = vadd.f32 %v1435, %v1436
      %v1438 = vrot.slane %v1387, 4
      %v1439 = vadd.f32 %v1387, %v1438
      %v1440 = vrot.slane %v1439, 2
      %v1441 = vadd.f32 %v1439, %v1440
      %v1442 = vrot.slane %v1441, 1
      %v1443 = vadd.f32 %v1441, %v1442
      %v1444 = vrot.slane %v1388, 4
      %v1445 = vadd.f32 %v1388, %v1444
      %v1446 = vrot.slane %v1445, 2
      %v1447 = vadd.f32 %v1445, %v1446
      %v1448 = vrot.slane %v1447, 1
      %v1449 = vadd.f32 %v1447, %v1448
      %v1450 = vrot.slane %v1389, 4
      %v1451 = vadd.f32 %v1389, %v1450
      %v1452 = vrot.slane %v1451, 2
      %v1453 = vadd.f32 %v1451, %v1452
      %v1454 = vrot.slane %v1453, 1
      %v1455 = vadd.f32 %v1453, %v1454
      %v1456 = vrot.slane %v1390, 4
      %v1457 = vadd.f32 %v1390, %v1456
      %v1458 = vrot.slane %v1457, 2
      %v1459 = vadd.f32 %v1457, %v1458
      %v1460 = vrot.slane %v1459, 1
      %v1461 = vadd.f32 %v1459, %v1460
      %v1462 = vrot.slane %v1391, 4
      %v1463 = vadd.f32 %v1391, %v1462
      %v1464 = vrot.slane %v1463, 2
      %v1465 = vadd.f32 %v1463, %v1464
      %v1466 = vrot.slane %v1465, 1
      %v1467 = vadd.f32 %v1465, %v1466
      %v1468 = vrot.slane %v1392, 4
      %v1469 = vadd.f32 %v1392, %v1468
      %v1470 = vrot.slane %v1469, 2
      %v1471 = vadd.f32 %v1469, %v1470
      %v1472 = vrot.slane %v1471, 1
      %v1473 = vadd.f32 %v1471, %v1472
      %v1474 = vrot.slane %v1393, 4
      %v1475 = vadd.f32 %v1393, %v1474
      %v1476 = vrot.slane %v1475, 2
      %v1477 = vadd.f32 %v1475, %v1476
      %v1478 = vrot.slane %v1477, 1
      %v1479 = vadd.f32 %v1477, %v1478
      %v1480 = vrot.slane %v1394, 4
      %v1481 = vadd.f32 %v1394, %v1480
      %v1482 = vrot.slane %v1481, 2
      %v1483 = vadd.f32 %v1481, %v1482
      %v1484 = vrot.slane %v1483, 1
      %v1485 = vadd.f32 %v1483, %v1484
      %v1486 = vrot.slane %v1395, 4
      %v1487 = vadd.f32 %v1395, %v1486
      %v1488 = vrot.slane %v1487, 2
      %v1489 = vadd.f32 %v1487, %v1488
      %v1490 = vrot.slane %v1489, 1
      %v1491 = vadd.f32 %v1489, %v1490
      %vm1492 = vcmask 1040384
      %v1493 = vsel %vm1492, %v1289, %v1401
      %v1494 = vsel %vm1492, %v1295, %v1407
      %v1495 = vsel %vm1492, %v1301, %v1413
      %v1496 = vsel %vm1492, %v1307, %v1419
      %v1497 = vsel %vm1492, %v1313, %v1425
      %v1498 = vsel %vm1492, %v1319, %v1431
      %v1499 = vsel %vm1492, %v1325, %v1437
      %v1500 = vsel %vm1492, %v1331, %v1443
      %v1501 = vsel %vm1492, %v1337, %v1449
      %v1502 = vsel %vm1492, %v1343, %v1455
      %v1503 = vsel %vm1492, %v1349, %v1461
      %v1504 = vsel %vm1492, %v1355, %v1467
      %v1505 = vsel %vm1492, %v1361, %v1473
      %v1506 = vsel %vm1492, %v1367, %v1479
      %v1507 = vsel %vm1492, %v1373, %v1485
      %v1508 = vsel %vm1492, %v1379, %v1491
      %vm1509 = vcmask 1041408
      %v1510 = vsel %vm1509, %v1493, 0.0
      %v1511 = vsel %vm1509, %v1494, 0.0
      %v1512 = vsel %vm1509, %v1495, 0.0
      %v1513 = vsel %vm1509, %v1496, 0.0
      %v1514 = vsel %vm1509, %v1497, 0.0
      %v1515 = vsel %vm1509, %v1498, 0.0
      %v1516 = vsel %vm1509, %v1499, 0.0
      %v1517 = vsel %vm1509, %v1500, 0.0
      %v1518 = vsel %vm1509, %v1501, 0.0
      %v1519 = vsel %vm1509, %v1502, 0.0
      %v1520 = vsel %vm1509, %v1503, 0.0
      %v1521 = vsel %vm1509, %v1504, 0.0
      %v1522 = vsel %vm1509, %v1505, 0.0
      %v1523 = vsel %vm1509, %v1506, 0.0
      %v1524 = vsel %vm1509, %v1507, 0.0
      %v1525 = vsel %vm1509, %v1508, 0.0
      %1526 = vst [vmem:[%s3] sm:$0xff] %v1510
      %1527 = vst [vmem:[%s3 + $0x8] sm:$0xff] %v1511
      %1528 = vst [vmem:[%s3 + $0x10] sm:$0xff] %v1512
      %1529 = vst [vmem:[%s3 + $0x18] sm:$0xff] %v1513
      %1530 = vst [vmem:[%s3 + $0x20] sm:$0xff] %v1514
      %1531 = vst [vmem:[%s3 + $0x28] sm:$0xff] %v1515
      %1532 = vst [vmem:[%s3 + $0x30] sm:$0xff] %v1516
      %1533 = vst [vmem:[%s3 + $0x38] sm:$0xff] %v1517
      %1534 = vst [vmem:[%s3 + $0x40] sm:$0xff] %v1518
      %1535 = vst [vmem:[%s3 + $0x48] sm:$0xff] %v1519
      %1536 = vst [vmem:[%s3 + $0x50] sm:$0xff] %v1520
      %1537 = vst [vmem:[%s3 + $0x58] sm:$0xff] %v1521
      %1538 = vst [vmem:[%s3 + $0x60] sm:$0xff] %v1522
      %1539 = vst [vmem:[%s3 + $0x68] sm:$0xff] %v1523
      %1540 = vst [vmem:[%s3 + $0x70] sm:$0xff] %v1524
      %1541 = vst [vmem:[%s3 + $0x78] sm:$0xff] %v1525
    $region21: #{topdown_generator_forward.9} parent=1 // pred_fallthru
      _
    // Predicated region
    $region22: #{topdown_generator_forward.9} parent=1 // pred_check
      _
    $region23: #{topdown_generator_forward.9} parent=1 // pred_check_branch
      %1543 = sbr.rel (0) target = $region25
    $region24: #{topdown_generator_forward.9} parent=1 // pred_region
      _
    $region25: #{topdown_generator_forward.9} parent=1 // pred_fallthru
      _
    // Predicated region
    $region26: #{topdown_generator_forward.9} parent=1 // pred_check
      _
    $region27: #{topdown_generator_forward.9} parent=1 // pred_check_branch
      %1545 = sbr.rel (0) target = $region29
    $region28: #{topdown_generator_forward.9} parent=1 // pred_region
      _
    $region29: #{topdown_generator_forward.9} parent=1 // pred_fallthru
      _
    // Predicated region
    $region30: #{topdown_generator_forward.9} parent=1 // pred_check
      _
    $region31: #{topdown_generator_forward.9} parent=1 // pred_check_branch
      %1547 = sbr.rel (0) target = $region33
    $region32: #{topdown_generator_forward.9} parent=1 // pred_region
      _
    $region33: #{topdown_generator_forward.9} parent=1 // pred_fallthru
      _
    // Predicated region
    $region34: #{topdown_generator_forward.9} parent=1 // pred_check
      _
    $region35: #{topdown_generator_forward.9} parent=1 // pred_check_branch
      %1549 = sbr.rel (0) target = $region37
    $region36: #{topdown_generator_forward.9} parent=1 // pred_region
      _
    $region37: #{topdown_generator_forward.9} parent=1 // pred_fallthru
      _
    %1550 = vsyncpa [#allocation4], 1

// kernel: topdown_generator_forward.11
$region0: #{topdown_generator_forward.11}
  #allocation0 [shape = 'u32[]', space=smem, size = 0x4, offset = 0x4, fixed_abs, tag = 'smem constant byte address 0x4 - core index']
  #allocation1 [shape = 'u32[144,128]{1,0:T(1,128)}', space=vmem, size = 0x12000, scoped, tag = 'internal scratch']
  #allocation2 [shape = 'f32[32,128]{1,0:T(8,128)}', space=vmem, size = 0x4000, scoped, tag = 'scratch operand']
  %s0 = inlined_call_operand.vmem [shape: bf16[4,32,512], index: 0, kind: input, shape index: {}]
  %s1 = inlined_call_operand.vmem [shape: bf16[4,512,128], index: 1, kind: input, shape index: {}]
  %s2 = inlined_call_operand.vmem [shape: bf16[4,32,128], index: 2, kind: output, shape index: {0}]
  %s3 = inlined_call_operand.vmem [shape: f32[4,8,128], index: 3, kind: output, shape index: {1}]
  %4 = xla_tuple %s2, %s3
  %s5 = sld [smem:[#allocation0]]
  $region57: #{topdown_generator_forward.11} parent=0
    _
  %s7 = ssub.s32 1, %s5
  %s8 = scalar_select 0, %s7, %s5
  loop: start=0, step=1, limit=6
  $region2: #{topdown_generator_forward.11} parent=0 // loop_pre_header
    _
  $region3: #{topdown_generator_forward.11} parent=0 // loop_header
    %s10 = sphi 0, %s14
    %p11 = scmp.ge.s32.totalorder %s10, 6
    %s17 = sphi 0, %s36
    %s18 = sphi 0, %s32
    %s19 = sphi 0, %s28
    %s20 = sphi 0, %s17
    %s21 = sphi 0, %s18
    %s22 = sphi 0, %s19
    %s23 = sphi 0, %s20
    %s24 = sphi 0, %s21
    %s25 = sphi 0, %s22
    %s43 = sphi 0, %s45
    %s46 = sphi 0, %s43
    %s47 = sphi 0, %s46
    %s63 = sphi 0, %s47
    %s71 = sphi 0, %s73
    %s74 = sphi 0, %s71
    %s75 = sphi 0, %s74
    %s91 = sphi 0, %s75
    %s99 = sphi 0, %s101
    %s102 = sphi 0, %s99
    %s103 = sphi 0, %s102
    %s119 = sphi 0, %s103
    %s127 = sphi 0, %s129
    %s130 = sphi 0, %s127
    %s131 = sphi 0, %s130
    %s147 = sphi 0, %s131
  $region4: #{topdown_generator_forward.11} parent=0 // loop_header_branch
    %13 = sbr.rel (%p11) target = $region8
  $region5: #{topdown_generator_forward.11} parent=0 // loop_body
    %s15 = ssub.s32 %s10, 1
    %s16 = ssub.s32 %s10, 2
    %s26 = sadd.s32 1, %s19
    %p27 = scmp.ge.s32.totalorder %s26, 1
    %s28 = scalar_select %p27, 0, %s26
    %s29 = sadd.s32 1, %s18
    %s30 = scalar_select %p27, %s29, %s18
    %p31 = scmp.ge.s32.totalorder %s30, 1
    %s32 = scalar_select %p31, 0, %s30
    %s33 = sadd.s32 1, %s17
    %s34 = scalar_select %p31, %s33, %s17
    %p35 = scmp.ge.s32.totalorder %s34, 4
    %s36 = scalar_select %p35, 0, %s34
    %s37 = ssub.s32 %s17, %s36
    %s38 = ssub.s32 %s18, %s32
    %s39 = sor.u32 %s37, %s38
    %s40 = ssub.s32 %s19, %s28
    %s41 = sor.u32 %s39, %s40
    %p42 = scmp.eq.s32.totalorder %s41, 0
    %s44 = sadd.s32 %s43, 1
    %s45 = scalar_select %p42, %s43, %s44
    %p48 = pneg %p42
    %p49 = scmp.eq.s32.totalorder %s10, 3
    %p50 = por %p48, %p49
    %p51 = scmp.ne.s32.totalorder %s43, %s46
    %p52 = scmp.eq.s32.totalorder %s10, 0
    %p53 = por %p51, %p52
    %p54 = scmp.ne.s32.totalorder %s43, %s46
    %p55 = scmp.eq.s32.totalorder %s15, 3
    %p56 = por %p54, %p55
    %p57 = scmp.ne.s32.totalorder %s46, %s47
    %p58 = scmp.eq.s32.totalorder %s15, 0
    %p59 = por %p57, %p58
    %p60 = scmp.ne.s32.totalorder %s46, %s47
    %p61 = scmp.eq.s32.totalorder %s16, 3
    %p62 = por %p60, %p61
    %p64 = scmp.ne.s32.totalorder %s47, %s63
    %p65 = scmp.eq.s32.totalorder %s16, 0
    %p66 = por %p64, %p65
    %s67 = ssub.s32 %s17, %s36
    %s68 = ssub.s32 %s19, %s28
    %s69 = sor.u32 %s67, %s68
    %p70 = scmp.eq.s32.totalorder %s69, 0
    %s72 = sadd.s32 %s71, 1
    %s73 = scalar_select %p70, %s71, %s72
    %p76 = pneg %p70
    %p77 = scmp.eq.s32.totalorder %s10, 3
    %p78 = por %p76, %p77
    %p79 = scmp.ne.s32.totalorder %s71, %s74
    %p80 = scmp.eq.s32.totalorder %s10, 0
    %p81 = por %p79, %p80
    %p82 = scmp.ne.s32.totalorder %s71, %s74
    %p83 = scmp.eq.s32.totalorder %s15, 3
    %p84 = por %p82, %p83
    %p85 = scmp.ne.s32.totalorder %s74, %s75
    %p86 = scmp.eq.s32.totalorder %s15, 0
    %p87 = por %p85, %p86
    %p88 = scmp.ne.s32.totalorder %s74, %s75
    %p89 = scmp.eq.s32.totalorder %s16, 3
    %p90 = por %p88, %p89
    %p92 = scmp.ne.s32.totalorder %s75, %s91
    %p93 = scmp.eq.s32.totalorder %s16, 0
    %p94 = por %p92, %p93
    %s95 = ssub.s32 %s17, %s36
    %s96 = ssub.s32 %s18, %s32
    %s97 = sor.u32 %s95, %s96
    %p98 = scmp.eq.s32.totalorder %s97, 0
    %s100 = sadd.s32 %s99, 1
    %s101 = scalar_select %p98, %s99, %s100
    %p104 = pneg %p98
    %p105 = scmp.eq.s32.totalorder %s10, 3
    %p106 = por %p104, %p105
    %p107 = scmp.ne.s32.totalorder %s99, %s102
    %p108 = scmp.eq.s32.totalorder %s10, 0
    %p109 = por %p107, %p108
    %p110 = scmp.ne.s32.totalorder %s99, %s102
    %p111 = scmp.eq.s32.totalorder %s15, 3
    %p112 = por %p110, %p111
    %p113 = scmp.ne.s32.totalorder %s102, %s103
    %p114 = scmp.eq.s32.totalorder %s15, 0
    %p115 = por %p113, %p114
    %p116 = scmp.ne.s32.totalorder %s102, %s103
    %p117 = scmp.eq.s32.totalorder %s16, 3
    %p118 = por %p116, %p117
    %p120 = scmp.ne.s32.totalorder %s103, %s119
    %p121 = scmp.eq.s32.totalorder %s16, 0
    %p122 = por %p120, %p121
    %s123 = ssub.s32 %s17, %s36
    %s124 = ssub.s32 %s18, %s32
    %s125 = sor.u32 %s123, %s124
    %p126 = scmp.eq.s32.totalorder %s125, 0
    %s128 = sadd.s32 %s127, 1
    %s129 = scalar_select %p126, %s127, %s128
    %p132 = pneg %p126
    %p133 = scmp.eq.s32.totalorder %s10, 3
    %p134 = por %p132, %p133
    %p135 = scmp.ne.s32.totalorder %s127, %s130
    %p136 = scmp.eq.s32.totalorder %s10, 0
    %p137 = por %p135, %p136
    %p138 = scmp.ne.s32.totalorder %s127, %s130
    %p139 = scmp.eq.s32.totalorder %s15, 3
    %p140 = por %p138, %p139
    %p141 = scmp.ne.s32.totalorder %s130, %s131
    %p142 = scmp.eq.s32.totalorder %s15, 0
    %p143 = por %p141, %p142
    %p144 = scmp.ne.s32.totalorder %s130, %s131
    %p145 = scmp.eq.s32.totalorder %s16, 3
    %p146 = por %p144, %p145
    %p148 = scmp.ne.s32.totalorder %s131, %s147
    %p149 = scmp.eq.s32.totalorder %s16, 0
    %p150 = por %p148, %p149
    %p151 = scmp.le.s32.totalorder 1, %s10
    %p152 = scmp.lt.s32.totalorder %s10, 5
    %p153 = pnand %p151, %p152
    %p154 = pneg %p153
    // Predicated region
    $region9: #{topdown_generator_forward.11} parent=5 // pred_check
      _
    $region10: #{topdown_generator_forward.11} parent=5 // pred_check_branch
      %156 = sbr.rel (%p153) target = $region12
    $region11: #{topdown_generator_forward.11} parent=5 // pred_region
      %s157 = ssub.s32 %s10, 1
    $region12: #{topdown_generator_forward.11} parent=5 // pred_fallthru
      _
    %p158 = scmp.lt.s32.totalorder %s10, 4
    // Predicated region
    $region13: #{topdown_generator_forward.11} parent=5 // pred_check
      %p159 = pneg %p158
    $region14: #{topdown_generator_forward.11} parent=5 // pred_check_branch
      %161 = sbr.rel (%p159) target = $region16
    $region15: #{topdown_generator_forward.11} parent=5 // pred_region
      // Predicated region
      $region17: #{topdown_generator_forward.11} parent=15 // pred_check
        %p162 = pneg %p53
      $region18: #{topdown_generator_forward.11} parent=15 // pred_check_branch
        %164 = sbr.rel (%p162) target = $region20
      $region19: #{topdown_generator_forward.11} parent=15 // pred_region
        %s165 = smul.u32 4, %s18
        %s166 = smul.u32 4, %s19
        %p167 = scmp.lt.s32.totalorder %s17, 3
        %s168 = scalar_select %p167, %s17, 3
        %p169 = scmp.lt.s32.totalorder %s165, 3
        %s170 = scalar_select %p169, %s165, 3
        %p171 = scmp.lt.s32.totalorder %s166, 3
        %s172 = scalar_select %p171, %s166, 3
        %s173 = smul.addr %s170, 4
        %s174 = sadd.s32 %s172, %s173
        %s175 = smul.addr %s168, 16
        %s176 = sadd.s32 %s174, %s175
        %s177 = smul.addr %s176, 4
        %s178 = scalar_lea.vmem %s0, %s177
        %s179 = smul.u32 4, %s18
        %s180 = smul.u32 4, %s19
      $region20: #{topdown_generator_forward.11} parent=15 // pred_fallthru
        _
      // Predicated region
      $region21: #{topdown_generator_forward.11} parent=15 // pred_check
        %p181 = pneg %p81
      $region22: #{topdown_generator_forward.11} parent=15 // pred_check_branch
        %183 = sbr.rel (%p181) target = $region24
      $region23: #{topdown_generator_forward.11} parent=15 // pred_region
        %s184 = smul.u32 64, %s19
        %p185 = scmp.lt.s32.totalorder %s17, 3
        %s186 = scalar_select %p185, %s17, 3
        %p187 = scmp.lt.s32.totalorder %s184, 63
        %s188 = scalar_select %p187, %s184, 63
        %s189 = smul.addr %s186, 64
        %s190 = sadd.s32 %s188, %s189
        %s191 = smul.addr %s190, 4
        %s192 = scalar_lea.vmem %s1, %s191
        %s193 = smul.u32 64, %s19
      $region24: #{topdown_generator_forward.11} parent=15 // pred_fallthru
        _
    $region16: #{topdown_generator_forward.11} parent=5 // pred_fallthru
      _
    %p194 = scmp.le.s32.totalorder 1, %s10
    %p195 = scmp.lt.s32.totalorder %s10, 5
    %p196 = pnand %p194, %p195
    %p197 = pneg %p196
    // Predicated region
    $region25: #{topdown_generator_forward.11} parent=5 // pred_check
      _
    $region26: #{topdown_generator_forward.11} parent=5 // pred_check_branch
      %199 = sbr.rel (%p196) target = $region28
    $region27: #{topdown_generator_forward.11} parent=5 // pred_region
      %s200 = ssub.s32 %s10, 1
      %s201 = smul.u32 4, %s21
      %s202 = smul.u32 4, %s22
      %p203 = scmp.lt.s32.totalorder %s20, 3
      %s204 = scalar_select %p203, %s20, 3
      %p205 = scmp.lt.s32.totalorder %s201, 3
      %s206 = scalar_select %p205, %s201, 3
      %p207 = scmp.lt.s32.totalorder %s202, 3
      %s208 = scalar_select %p207, %s202, 3
      %s209 = smul.addr %s206, 4
      %s210 = sadd.s32 %s208, %s209
      %s211 = smul.addr %s204, 16
      %s212 = sadd.s32 %s210, %s211
      %s213 = smul.addr %s212, 4
      %s214 = scalar_lea.vmem %s0, %s213
      %p215 = pneg %p59
      %p216 = pneg %p56
      %s217 = smul.u32 64, %s22
      %p218 = scmp.lt.s32.totalorder %s20, 3
      %s219 = scalar_select %p218, %s20, 3
      %p220 = scmp.lt.s32.totalorder %s217, 63
      %s221 = scalar_select %p220, %s217, 63
      %s222 = smul.addr %s219, 64
      %s223 = sadd.s32 %s221, %s222
      %s224 = smul.addr %s223, 4
      %s225 = scalar_lea.vmem %s1, %s224
      %p226 = pneg %p87
      %p227 = pneg %p84
      %p228 = pneg %p115
      %p229 = pneg %p112
      %s230 = smul.u32 4, %s21
      %p231 = scmp.lt.s32.totalorder %s20, 3
      %s232 = scalar_select %p231, %s20, 3
      %p233 = scmp.lt.s32.totalorder %s230, 3
      %s234 = scalar_select %p233, %s230, 3
      %s235 = smul.addr %s232, 4
      %s236 = sadd.s32 %s234, %s235
      %s237 = smul.addr %s236, 4
      %s238 = scalar_lea.vmem %s2, %s237
      %p239 = pneg %p143
      %p240 = pneg %p140
      %p241 = scmp.lt.s32.totalorder %s20, 3
      %s242 = scalar_select %p241, %s20, 3
      %p243 = scmp.lt.s32.totalorder %s21, 0
      %s244 = scalar_select %p243, %s21, 0
      %s245 = sadd.s32 %s244, %s242
      %s246 = smul.addr %s245, 8
      %s247 = scalar_lea.vmem %s3, %s246
      %s248 = smul.u32 4, %s21
      %s249 = smul.u32 4, %s22
      %p250 = scmp.lt.s32.totalorder %s20, 3
      %s251 = scalar_select %p250, %s20, 3
      %p252 = scmp.lt.s32.totalorder %s248, 3
      %s253 = scalar_select %p252, %s248, 3
      %p254 = scmp.lt.s32.totalorder %s249, 3
      %s255 = scalar_select %p254, %s249, 3
      %s256 = smul.addr %s253, 4
      %s257 = sadd.s32 %s255, %s256
      %s258 = smul.addr %s251, 16
      %s259 = sadd.s32 %s257, %s258
      %s260 = smul.addr %s259, 4
      %s261 = scalar_lea.vmem %s0, %s260
      %s262 = smul.u32 4, %s21
      %s263 = smul.u32 4, %s22
      %s264 = smul.u32 64, %s22
      %p265 = scmp.lt.s32.totalorder %s20, 3
      %s266 = scalar_select %p265, %s20, 3
      %p267 = scmp.lt.s32.totalorder %s264, 63
      %s268 = scalar_select %p267, %s264, 63
      %s269 = smul.addr %s266, 64
      %s270 = sadd.s32 %s268, %s269
      %s271 = smul.addr %s270, 4
      %s272 = scalar_lea.vmem %s1, %s271
      %s273 = smul.u32 64, %s22
      %s274 = smul.u32 4, %s21
      %p275 = scmp.lt.s32.totalorder %s20, 3
      %s276 = scalar_select %p275, %s20, 3
      %p277 = scmp.lt.s32.totalorder %s274, 3
      %s278 = scalar_select %p277, %s274, 3
      %s279 = smul.addr %s276, 4
      %s280 = sadd.s32 %s278, %s279
      %s281 = smul.addr %s280, 4
      %s282 = scalar_lea.vmem %s2, %s281
      %s283 = smul.u32 4, %s21
      %p284 = scmp.lt.s32.totalorder %s20, 3
      %s285 = scalar_select %p284, %s20, 3
      %p286 = scmp.lt.s32.totalorder %s21, 0
      %s287 = scalar_select %p286, %s21, 0
      %s288 = sadd.s32 %s287, %s285
      %s289 = smul.addr %s288, 8
      %s290 = scalar_lea.vmem %s3, %s289
      %p292 = scmp.eq.s32.totalorder %s22, 0
      // Predicated region
      $region29: #{topdown_generator_forward.11} parent=27 // pred_check
        %p293 = pneg %p292
      $region30: #{topdown_generator_forward.11} parent=27 // pred_check_branch
        %295 = sbr.rel (%p293) target = $region32
      $region31: #{topdown_generator_forward.11} parent=27 // pred_region
        %296 = vst [vmem:[#allocation2] sm:$0xff] 0.0
        %297 = vst [vmem:[#allocation2 + $0x8] sm:$0xff] 0.0
        %298 = vst [vmem:[#allocation2 + $0x10] sm:$0xff] 0.0
        %299 = vst [vmem:[#allocation2 + $0x18] sm:$0xff] 0.0
      $region32: #{topdown_generator_forward.11} parent=27 // pred_fallthru
        _
      %v300 = vld [vmem:[#allocation2] sm:$0xff]
      %v301 = vld [vmem:[#allocation2 + $0x8] sm:$0xff]
      %v302 = vld [vmem:[#allocation2 + $0x10] sm:$0xff]
      %v303 = vld [vmem:[#allocation2 + $0x18] sm:$0xff]
      %v304 = vld [vmem:[%s261] sm:$0xff]
      %v305 = vld [vmem:[%s261 + $0x8] sm:$0xff]
      %v306 = vld [vmem:[%s261 + $0x10] sm:$0xff]
      %v307 = vld [vmem:[%s261 + $0x18] sm:$0xff]
      %v308 = vld [vmem:[%s261 + $0x20] sm:$0xff]
      %v309 = vld [vmem:[%s261 + $0x28] sm:$0xff]
      %v310 = vld [vmem:[%s261 + $0x30] sm:$0xff]
      %v311 = vld [vmem:[%s261 + $0x38] sm:$0xff]
      %v312 = vld [vmem:[%s272] sm:$0xf]
      %v313 = vld [vmem:[%s272 + $0x4] sm:$0xf]
      %v314 = vld [vmem:[%s272 + $0x8] sm:$0xf]
      %v315 = vld [vmem:[%s272 + $0xc] sm:$0xf]
      %v316 = vld [vmem:[%s272 + $0x10] sm:$0xf]
      %v317 = vld [vmem:[%s272 + $0x14] sm:$0xf]
      %v318 = vld [vmem:[%s272 + $0x18] sm:$0xf]
      %v319 = vld [vmem:[%s272 + $0x1c] sm:$0xf]
      %v320 = vld [vmem:[%s272 + $0x20] sm:$0xf]
      %v321 = vld [vmem:[%s272 + $0x24] sm:$0xf]
      %v322 = vld [vmem:[%s272 + $0x28] sm:$0xf]
      %v323 = vld [vmem:[%s272 + $0x2c] sm:$0xf]
      %v324 = vld [vmem:[%s272 + $0x30] sm:$0xf]
      %v325 = vld [vmem:[%s272 + $0x34] sm:$0xf]
      %v326 = vld [vmem:[%s272 + $0x38] sm:$0xf]
      %v327 = vld [vmem:[%s272 + $0x3c] sm:$0xf]
      %v328 = vld [vmem:[%s272 + $0x40] sm:$0xf]
      %v329 = vld [vmem:[%s272 + $0x44] sm:$0xf]
      %v330 = vld [vmem:[%s272 + $0x48] sm:$0xf]
      %v331 = vld [vmem:[%s272 + $0x4c] sm:$0xf]
      %v332 = vld [vmem:[%s272 + $0x50] sm:$0xf]
      %v333 = vld [vmem:[%s272 + $0x54] sm:$0xf]
      %v334 = vld [vmem:[%s272 + $0x58] sm:$0xf]
      %v335 = vld [vmem:[%s272 + $0x5c] sm:$0xf]
      %v336 = vld [vmem:[%s272 + $0x60] sm:$0xf]
      %v337 = vld [vmem:[%s272 + $0x64] sm:$0xf]
      %v338 = vld [vmem:[%s272 + $0x68] sm:$0xf]
      %v339 = vld [vmem:[%s272 + $0x6c] sm:$0xf]
      %v340 = vld [vmem:[%s272 + $0x70] sm:$0xf]
      %v341 = vld [vmem:[%s272 + $0x74] sm:$0xf]
      %v342 = vld [vmem:[%s272 + $0x78] sm:$0xf]
      %v343 = vld [vmem:[%s272 + $0x7c] sm:$0xf]
      %v344 = vld [vmem:[%s272 + $0x80] sm:$0xf]
      %v345 = vld [vmem:[%s272 + $0x84] sm:$0xf]
      %v346 = vld [vmem:[%s272 + $0x88] sm:$0xf]
      %v347 = vld [vmem:[%s272 + $0x8c] sm:$0xf]
      %v348 = vld [vmem:[%s272 + $0x90] sm:$0xf]
      %v349 = vld [vmem:[%s272 + $0x94] sm:$0xf]
      %v350 = vld [vmem:[%s272 + $0x98] sm:$0xf]
      %v351 = vld [vmem:[%s272 + $0x9c] sm:$0xf]
      %v352 = vld [vmem:[%s272 + $0xa0] sm:$0xf]
      %v353 = vld [vmem:[%s272 + $0xa4] sm:$0xf]
      %v354 = vld [vmem:[%s272 + $0xa8] sm:$0xf]
      %v355 = vld [vmem:[%s272 + $0xac] sm:$0xf]
      %v356 = vld [vmem:[%s272 + $0xb0] sm:$0xf]
      %v357 = vld [vmem:[%s272 + $0xb4] sm:$0xf]
      %v358 = vld [vmem:[%s272 + $0xb8] sm:$0xf]
      %v359 = vld [vmem:[%s272 + $0xbc] sm:$0xf]
      %v360 = vld [vmem:[%s272 + $0xc0] sm:$0xf]
      %v361 = vld [vmem:[%s272 + $0xc4] sm:$0xf]
      %v362 = vld [vmem:[%s272 + $0xc8] sm:$0xf]
      %v363 = vld [vmem:[%s272 + $0xcc] sm:$0xf]
      %v364 = vld [vmem:[%s272 + $0xd0] sm:$0xf]
      %v365 = vld [vmem:[%s272 + $0xd4] sm:$0xf]
      %v366 = vld [vmem:[%s272 + $0xd8] sm:$0xf]
      %v367 = vld [vmem:[%s272 + $0xdc] sm:$0xf]
      %v368 = vld [vmem:[%s272 + $0xe0] sm:$0xf]
      %v369 = vld [vmem:[%s272 + $0xe4] sm:$0xf]
      %v370 = vld [vmem:[%s272 + $0xe8] sm:$0xf]
      %v371 = vld [vmem:[%s272 + $0xec] sm:$0xf]
      %v372 = vld [vmem:[%s272 + $0xf0] sm:$0xf]
      %v373 = vld [vmem:[%s272 + $0xf4] sm:$0xf]
      %v374 = vld [vmem:[%s272 + $0xf8] sm:$0xf]
      %v375 = vld [vmem:[%s272 + $0xfc] sm:$0xf]
      %v384 = vunpack.c.l.b16 %v304
      %v385 = vunpack.c.h.b16 %v304
      %v386 = vunpack.c.l.b16 %v305
      %v387 = vunpack.c.h.b16 %v305
      %v388 = vunpack.c.l.b16 %v306
      %v389 = vunpack.c.h.b16 %v306
      %v390 = vunpack.c.l.b16 %v307
      %v391 = vunpack.c.h.b16 %v307
      %v392 = vunpack.c.l.b16 %v308
      %v393 = vunpack.c.h.b16 %v308
      %v394 = vunpack.c.l.b16 %v309
      %v395 = vunpack.c.h.b16 %v309
      %v396 = vunpack.c.l.b16 %v310
      %v397 = vunpack.c.h.b16 %v310
      %v398 = vunpack.c.l.b16 %v311
      %v399 = vunpack.c.h.b16 %v311
      %v400 = vpack.c.b16 %v388, %v384
      %v401 = vpack.c.b16 %v389, %v385
      %v402 = vpack.c.b16 %v390, %v386
      %v403 = vpack.c.b16 %v391, %v387
      %v404 = vpack.c.b16 %v396, %v392
      %v405 = vpack.c.b16 %v397, %v393
      %v406 = vpack.c.b16 %v398, %v394
      %v407 = vpack.c.b16 %v399, %v395
      %v480 = vunpack.c.l.b16 %v312
      %v481 = vunpack.c.l.b16 %v313
      %v482 = vunpack.c.l.b16 %v314
      %v483 = vunpack.c.l.b16 %v315
      %v484 = vunpack.c.l.b16 %v316
      %v485 = vunpack.c.l.b16 %v317
      %v486 = vunpack.c.l.b16 %v318
      %v487 = vunpack.c.l.b16 %v319
      %v488 = vunpack.c.l.b16 %v320
      %v489 = vunpack.c.l.b16 %v321
      %v490 = vunpack.c.l.b16 %v322
      %v491 = vunpack.c.l.b16 %v323
      %v492 = vunpack.c.l.b16 %v324
      %v493 = vunpack.c.l.b16 %v325
      %v494 = vunpack.c.l.b16 %v326
      %v495 = vunpack.c.l.b16 %v327
      %v496 = vunpack.c.l.b16 %v328
      %v497 = vunpack.c.l.b16 %v329
      %v498 = vunpack.c.l.b16 %v330
      %v499 = vunpack.c.l.b16 %v331
      %v500 = vunpack.c.l.b16 %v332
      %v501 = vunpack.c.l.b16 %v333
      %v502 = vunpack.c.l.b16 %v334
      %v503 = vunpack.c.l.b16 %v335
      %v504 = vunpack.c.l.b16 %v336
      %v505 = vunpack.c.l.b16 %v337
      %v506 = vunpack.c.l.b16 %v338
      %v507 = vunpack.c.l.b16 %v339
      %v508 = vunpack.c.l.b16 %v340
      %v509 = vunpack.c.l.b16 %v341
      %v510 = vunpack.c.l.b16 %v342
      %v511 = vunpack.c.l.b16 %v343
      %v512 = vunpack.c.l.b16 %v344
      %v513 = vunpack.c.l.b16 %v345
      %v514 = vunpack.c.l.b16 %v346
      %v515 = vunpack.c.l.b16 %v347
      %v516 = vunpack.c.l.b16 %v348
      %v517 = vunpack.c.l.b16 %v349
      %v518 = vunpack.c.l.b16 %v350
      %v519 = vunpack.c.l.b16 %v351
      %v520 = vunpack.c.l.b16 %v352
      %v521 = vunpack.c.l.b16 %v353
      %v522 = vunpack.c.l.b16 %v354
      %v523 = vunpack.c.l.b16 %v355
      %v524 = vunpack.c.l.b16 %v356
      %v525 = vunpack.c.l.b16 %v357
      %v526 = vunpack.c.l.b16 %v358
      %v527 = vunpack.c.l.b16 %v359
      %v528 = vunpack.c.l.b16 %v360
      %v529 = vunpack.c.l.b16 %v361
      %v530 = vunpack.c.l.b16 %v362
      %v531 = vunpack.c.l.b16 %v363
      %v532 = vunpack.c.l.b16 %v364
      %v533 = vunpack.c.l.b16 %v365
      %v534 = vunpack.c.l.b16 %v366
      %v535 = vunpack.c.l.b16 %v367
      %v536 = vunpack.c.l.b16 %v368
      %v537 = vunpack.c.l.b16 %v369
      %v538 = vunpack.c.l.b16 %v370
      %v539 = vunpack.c.l.b16 %v371
      %v540 = vunpack.c.l.b16 %v372
      %v541 = vunpack.c.l.b16 %v373
      %v542 = vunpack.c.l.b16 %v374
      %v543 = vunpack.c.l.b16 %v375
      %v544 = vpack.c.b16 %v481, %v480
      %v545 = vpack.c.b16 %v483, %v482
      %v546 = vpack.c.b16 %v485, %v484
      %v547 = vpack.c.b16 %v487, %v486
      %v548 = vpack.c.b16 %v489, %v488
      %v549 = vpack.c.b16 %v491, %v490
      %v550 = vpack.c.b16 %v493, %v492
      %v551 = vpack.c.b16 %v495, %v494
      %v552 = vpack.c.b16 %v497, %v496
      %v553 = vpack.c.b16 %v499, %v498
      %v554 = vpack.c.b16 %v501, %v500
      %v555 = vpack.c.b16 %v503, %v502
      %v556 = vpack.c.b16 %v505, %v504
      %v557 = vpack.c.b16 %v507, %v506
      %v558 = vpack.c.b16 %v509, %v508
      %v559 = vpack.c.b16 %v511, %v510
      %v560 = vpack.c.b16 %v513, %v512
      %v561 = vpack.c.b16 %v515, %v514
      %v562 = vpack.c.b16 %v517, %v516
      %v563 = vpack.c.b16 %v519, %v518
      %v564 = vpack.c.b16 %v521, %v520
      %v565 = vpack.c.b16 %v523, %v522
      %v566 = vpack.c.b16 %v525, %v524
      %v567 = vpack.c.b16 %v527, %v526
      %v568 = vpack.c.b16 %v529, %v528
      %v569 = vpack.c.b16 %v531, %v530
      %v570 = vpack.c.b16 %v533, %v532
      %v571 = vpack.c.b16 %v535, %v534
      %v572 = vpack.c.b16 %v537, %v536
      %v573 = vpack.c.b16 %v539, %v538
      %v574 = vpack.c.b16 %v541, %v540
      %v575 = vpack.c.b16 %v543, %v542
      %608 = vmatprep.subr.bf16.mxu0 0
      %609 = vmatpush1.bf16.msra.mxu0 %v551
      %610 = vmatprep.subr.bf16.mxu0 0
      %611 = vmatpush1.bf16.msra.mxu0 %v550
      %612 = vmatprep.subr.bf16.mxu0 0
      %613 = vmatpush1.bf16.msra.mxu0 %v549
      %614 = vmatprep.subr.bf16.mxu0 0
      %615 = vmatpush1.bf16.msra.mxu0 %v548
      %616 = vmatprep.subr.bf16.mxu0 0
      %617 = vmatpush1.bf16.msra.mxu0 %v547
      %618 = vmatprep.subr.bf16.mxu0 0
      %619 = vmatpush1.bf16.msra.mxu0 %v546
      %620 = vmatprep.subr.bf16.mxu0 0
      %621 = vmatpush1.bf16.msra.mxu0 %v545
      %622 = vmatprep.subr.bf16.mxu0 0
      %623 = vmatpush1.bf16.msra.mxu0 %v544
      %624 = vmatprep.subr.bf16.mxu0 0
      %625 = vmatpush2.bf16.msra.mxu0 %v559
      %626 = vmatprep.subr.bf16.mxu0 0
      %627 = vmatpush2.bf16.msra.mxu0 %v558
      %628 = vmatprep.subr.bf16.mxu0 0
      %629 = vmatpush2.bf16.msra.mxu0 %v557
      %630 = vmatprep.subr.bf16.mxu0 0
      %631 = vmatpush2.bf16.msra.mxu0 %v556
      %632 = vmatprep.subr.bf16.mxu0 0
      %633 = vmatpush2.bf16.msra.mxu0 %v555
      %634 = vmatprep.subr.bf16.mxu0 0
      %635 = vmatpush2.bf16.msra.mxu0 %v554
      %636 = vmatprep.subr.bf16.mxu0 0
      %637 = vmatpush2.bf16.msra.mxu0 %v553
      %638 = vmatprep.subr.bf16.mxu0 0
      %639 = vmatpush2.bf16.msra.mxu0 %v552
      %640 = vmatprep.mubr.bf16.mxu0 %v401
      %641 = vmatmul.mubr.bf16.gmra.mxu0 %v400
      %v642 = vpop.f32.mrf.mxu0
      %v643 = vadd.f32 0.0, %v642
      %v644 = vpop.f32.mrf.mxu0
      %v645 = vpop.f32.mrf.mxu0
      %v646 = vadd.f32 0.0, %v645
      %v647 = vpop.f32.mrf.mxu0
      %648 = vmatprep.mubr.bf16.mxu0 %v405
      %649 = vmatmul.mubr.bf16.gmra.mxu0 %v404
      %v650 = vpop.f32.mrf.mxu0
      %v651 = vadd.f32 0.0, %v650
      %v652 = vpop.f32.mrf.mxu0
      %v653 = vpop.f32.mrf.mxu0
      %v654 = vadd.f32 0.0, %v653
      %v655 = vpop.f32.mrf.mxu0
      %656 = vdwg.mxu0
      %657 = vmatprep.subr.bf16.mxu0 0
      %658 = vmatpush1.bf16.msra.mxu0 %v567
      %659 = vmatprep.subr.bf16.mxu0 0
      %660 = vmatpush1.bf16.msra.mxu0 %v566
      %661 = vmatprep.subr.bf16.mxu0 0
      %662 = vmatpush1.bf16.msra.mxu0 %v565
      %663 = vmatprep.subr.bf16.mxu0 0
      %664 = vmatpush1.bf16.msra.mxu0 %v564
      %665 = vmatprep.subr.bf16.mxu0 0
      %666 = vmatpush1.bf16.msra.mxu0 %v563
      %667 = vmatprep.subr.bf16.mxu0 0
      %668 = vmatpush1.bf16.msra.mxu0 %v562
      %669 = vmatprep.subr.bf16.mxu0 0
      %670 = vmatpush1.bf16.msra.mxu0 %v561
      %671 = vmatprep.subr.bf16.mxu0 0
      %672 = vmatpush1.bf16.msra.mxu0 %v560
      %673 = vmatprep.subr.bf16.mxu0 0
      %674 = vmatpush2.bf16.msra.mxu0 %v575
      %675 = vmatprep.subr.bf16.mxu0 0
      %676 = vmatpush2.bf16.msra.mxu0 %v574
      %677 = vmatprep.subr.bf16.mxu0 0
      %678 = vmatpush2.bf16.msra.mxu0 %v573
      %679 = vmatprep.subr.bf16.mxu0 0
      %680 = vmatpush2.bf16.msra.mxu0 %v572
      %681 = vmatprep.subr.bf16.mxu0 0
      %682 = vmatpush2.bf16.msra.mxu0 %v571
      %683 = vmatprep.subr.bf16.mxu0 0
      %684 = vmatpush2.bf16.msra.mxu0 %v570
      %685 = vmatprep.subr.bf16.mxu0 0
      %686 = vmatpush2.bf16.msra.mxu0 %v569
      %687 = vmatprep.subr.bf16.mxu0 0
      %688 = vmatpush2.bf16.msra.mxu0 %v568
      %689 = vmatprep.mubr.bf16.mxu0 %v403
      %690 = vmatmul.mubr.bf16.gmra.mxu0 %v402
      %v691 = vpop.f32.mrf.mxu0
      %v692 = vadd.f32 %v643, %v691
      %v693 = vpop.f32.mrf.mxu0
      %v694 = vpop.f32.mrf.mxu0
      %v695 = vadd.f32 %v646, %v694
      %v696 = vpop.f32.mrf.mxu0
      %697 = vmatprep.mubr.bf16.mxu0 %v407
      %698 = vmatmul.mubr.bf16.gmra.mxu0 %v406
      %v699 = vpop.f32.mrf.mxu0
      %v700 = vadd.f32 %v651, %v699
      %v701 = vpop.f32.mrf.mxu0
      %v702 = vpop.f32.mrf.mxu0
      %v703 = vadd.f32 %v654, %v702
      %v704 = vpop.f32.mrf.mxu0
      %705 = vdwg.mxu0
      %v706 = vadd.f32 %v300, %v692
      %v707 = vadd.f32 %v301, %v695
      %v708 = vadd.f32 %v302, %v700
      %v709 = vadd.f32 %v303, %v703
      %710 = vst [vmem:[#allocation2] sm:$0xff] %v706
      %711 = vst [vmem:[#allocation2 + $0x8] sm:$0xff] %v707
      %712 = vst [vmem:[#allocation2 + $0x10] sm:$0xff] %v708
      %713 = vst [vmem:[#allocation2 + $0x18] sm:$0xff] %v709
      // Predicated region
      $region33: #{topdown_generator_forward.11} parent=27 // pred_check
        %p714 = pneg %p292
      $region34: #{topdown_generator_forward.11} parent=27 // pred_check_branch
        %716 = sbr.rel (%p714) target = $region36
      $region35: #{topdown_generator_forward.11} parent=27 // pred_region
        %v717 = vld [vmem:[#allocation2] sm:$0xff]
        %v718 = vld [vmem:[#allocation2 + $0x8] sm:$0xff]
        %v719 = vld [vmem:[#allocation2 + $0x10] sm:$0xff]
        %v720 = vld [vmem:[#allocation2 + $0x18] sm:$0xff]
        %v721 = vpack.c.bf16 %v718, %v717
        %v722 = vpack.c.bf16 %v720, %v719
        %v725 = vunpack.c.l.b16 %v721
        %v726 = vunpack.c.h.b16 %v721
        %v727 = vunpack.c.l.b16 %v722
        %v728 = vunpack.c.h.b16 %v722
        %v729 = vpack.c.b16 %v725, %v725
        %v730 = vpack.c.b16 %v726, %v726
        %v731 = vpack.c.b16 %v727, %v727
        %v732 = vpack.c.b16 %v728, %v728
        %737 = vst [vmem:[%s282] sm:$0xf] %v729
        %738 = vst [vmem:[%s282 + $0x4] sm:$0xf] %v730
        %739 = vst [vmem:[%s282 + $0x8] sm:$0xf] %v731
        %740 = vst [vmem:[%s282 + $0xc] sm:$0xf] %v732
        %v741 = vadd.f32 %v717, %v718
        %v742 = vadd.f32 %v741, %v719
        %v743 = vadd.f32 %v742, %v720
        %v744 = vrot.slane %v743, 4
        %v745 = vadd.f32 %v743, %v744
        %v746 = vrot.slane %v745, 2
        %v747 = vadd.f32 %v745, %v746
        %v748 = vrot.slane %v747, 1
        %v749 = vadd.f32 %v747, %v748
        %v750 = vmul.f32 %v717, %v717
        %v751 = vmul.f32 %v718, %v718
        %v752 = vmul.f32 %v719, %v719
        %v753 = vmul.f32 %v720, %v720
        %v754 = vadd.f32 %v750, %v751
        %v755 = vadd.f32 %v754, %v752
        %v756 = vadd.f32 %v755, %v753
        %v757 = vrot.slane %v756, 4
        %v758 = vadd.f32 %v756, %v757
        %v759 = vrot.slane %v758, 2
        %v760 = vadd.f32 %v758, %v759
        %v761 = vrot.slane %v760, 1
        %v762 = vadd.f32 %v760, %v761
        %vm763 = vcmask 1040384
        %v764 = vsel %vm763, %v749, %v762
        %vm765 = vcmask 1041408
        %v766 = vsel %vm765, %v764, 0.0
        %767 = vst [vmem:[%s290] sm:$0xff] %v766
      $region36: #{topdown_generator_forward.11} parent=27 // pred_fallthru
        _
      %s768 = smul.u32 4, %s21
      %p769 = scmp.lt.s32.totalorder %s20, 3
      %s770 = scalar_select %p769, %s20, 3
      %p771 = scmp.lt.s32.totalorder %s768, 3
      %s772 = scalar_select %p771, %s768, 3
      %s773 = smul.addr %s770, 4
      %s774 = sadd.s32 %s772, %s773
      %s775 = smul.addr %s774, 4
      %s776 = scalar_lea.vmem %s2, %s775
      %p777 = scmp.lt.s32.totalorder %s20, 3
      %s778 = scalar_select %p777, %s20, 3
      %p779 = scmp.lt.s32.totalorder %s21, 0
      %s780 = scalar_select %p779, %s21, 0
      %s781 = sadd.s32 %s780, %s778
      %s782 = smul.addr %s781, 8
      %s783 = scalar_lea.vmem %s3, %s782
      // Predicated region
      $region37: #{topdown_generator_forward.11} parent=27 // pred_check
        %p784 = pneg %p112
      $region38: #{topdown_generator_forward.11} parent=27 // pred_check_branch
        %786 = sbr.rel (%p784) target = $region40
      $region39: #{topdown_generator_forward.11} parent=27 // pred_region
        %s787 = smul.u32 4, %s21
      $region40: #{topdown_generator_forward.11} parent=27 // pred_fallthru
        _
      // Predicated region
      $region41: #{topdown_generator_forward.11} parent=27 // pred_check
        %p788 = pneg %p140
      $region42: #{topdown_generator_forward.11} parent=27 // pred_check_branch
        %790 = sbr.rel (%p788) target = $region44
      $region43: #{topdown_generator_forward.11} parent=27 // pred_region
        _
      $region44: #{topdown_generator_forward.11} parent=27 // pred_fallthru
        _
    $region28: #{topdown_generator_forward.11} parent=5 // pred_fallthru
      _
    %p791 = scmp.le.s32.totalorder 2, %s10
    // Predicated region
    $region45: #{topdown_generator_forward.11} parent=5 // pred_check
      %p792 = pneg %p791
    $region46: #{topdown_generator_forward.11} parent=5 // pred_check_branch
      %794 = sbr.rel (%p792) target = $region48
    $region47: #{topdown_generator_forward.11} parent=5 // pred_region
      %s795 = ssub.s32 %s10, 2
      // Predicated region
      $region49: #{topdown_generator_forward.11} parent=47 // pred_check
        %p796 = pneg %p118
      $region50: #{topdown_generator_forward.11} parent=47 // pred_check_branch
        %798 = sbr.rel (%p796) target = $region52
      $region51: #{topdown_generator_forward.11} parent=47 // pred_region
        %s799 = smul.u32 4, %s24
        %p800 = scmp.lt.s32.totalorder %s23, 3
        %s801 = scalar_select %p800, %s23, 3
        %p802 = scmp.lt.s32.totalorder %s799, 3
        %s803 = scalar_select %p802, %s799, 3
        %s804 = smul.addr %s801, 4
        %s805 = sadd.s32 %s803, %s804
        %s806 = smul.addr %s805, 4
        %s807 = scalar_lea.vmem %s2, %s806
      $region52: #{topdown_generator_forward.11} parent=47 // pred_fallthru
        _
      // Predicated region
      $region53: #{topdown_generator_forward.11} parent=47 // pred_check
        %p808 = pneg %p146
      $region54: #{topdown_generator_forward.11} parent=47 // pred_check_branch
        %810 = sbr.rel (%p808) target = $region56
      $region55: #{topdown_generator_forward.11} parent=47 // pred_region
        %p811 = scmp.lt.s32.totalorder %s23, 3
        %s812 = scalar_select %p811, %s23, 3
        %p813 = scmp.lt.s32.totalorder %s24, 0
        %s814 = scalar_select %p813, %s24, 0
        %s815 = sadd.s32 %s814, %s812
        %s816 = smul.addr %s815, 8
        %s817 = scalar_lea.vmem %s3, %s816
      $region56: #{topdown_generator_forward.11} parent=47 // pred_fallthru
        _
    $region48: #{topdown_generator_forward.11} parent=5 // pred_fallthru
      _
  $region6: #{topdown_generator_forward.11} parent=0 // loop_footer
    %s14 = sadd.s32 1, %s10
  $region7: #{topdown_generator_forward.11} parent=0 // loop_footer_branch
    %9 = sbr.rel target = $region3
  $region8: #{topdown_generator_forward.11} parent=0 // loop_exit
    _

// kernel: topdown_generator_forward.12
$region0: #{topdown_generator_forward.12}
  #allocation0 [shape = 'u32[]', space=smem, size = 0x4, offset = 0x4, fixed_abs, tag = 'smem constant byte address 0x4 - core index']
  #allocation1 [shape = 'u32[144,128]{1,0:T(1,128)}', space=vmem, size = 0x12000, scoped, tag = 'internal scratch']
  %s0 = inlined_call_operand.vmem [shape: bf16[128,128], index: 0, kind: input, shape index: {}]
  %s1 = inlined_call_operand.vmem [shape: f32[1,128], index: 1, kind: input, shape index: {}]
  %s2 = inlined_call_operand.vmem [shape: f32[1,128], index: 2, kind: input, shape index: {}]
  %s3 = inlined_call_operand.vmem [shape: bf16[128,128], index: 3, kind: output, shape index: {}]
  %s4 = sld [smem:[#allocation0]]
  $region22: #{topdown_generator_forward.12} parent=0
    _
  %s6 = ssub.s32 1, %s4
  %s7 = scalar_select 0, %s6, %s4
  // Predicated region
  $region2: #{topdown_generator_forward.12} parent=0 // pred_check
    _
  $region3: #{topdown_generator_forward.12} parent=0 // pred_check_branch
    %9 = sbr.rel (0) target = $region5
  $region4: #{topdown_generator_forward.12} parent=0 // pred_region
    _
  $region5: #{topdown_generator_forward.12} parent=0 // pred_fallthru
    _
  // Predicated region
  $region6: #{topdown_generator_forward.12} parent=0 // pred_check
    _
  $region7: #{topdown_generator_forward.12} parent=0 // pred_check_branch
    %11 = sbr.rel (0) target = $region9
  $region8: #{topdown_generator_forward.12} parent=0 // pred_region
    _
  $region9: #{topdown_generator_forward.12} parent=0 // pred_fallthru
    _
  // Predicated region
  $region10: #{topdown_generator_forward.12} parent=0 // pred_check
    _
  $region11: #{topdown_generator_forward.12} parent=0 // pred_check_branch
    %13 = sbr.rel (0) target = $region13
  $region12: #{topdown_generator_forward.12} parent=0 // pred_region
    _
  $region13: #{topdown_generator_forward.12} parent=0 // pred_fallthru
    _
  %v14 = vld [vmem:[%s0] sm:$0xf]
  %v15 = vld [vmem:[%s0 + $0x4] sm:$0xf]
  %v16 = vld [vmem:[%s0 + $0x8] sm:$0xf]
  %v17 = vld [vmem:[%s0 + $0xc] sm:$0xf]
  %v18 = vld [vmem:[%s0 + $0x10] sm:$0xf]
  %v19 = vld [vmem:[%s0 + $0x14] sm:$0xf]
  %v20 = vld [vmem:[%s0 + $0x18] sm:$0xf]
  %v21 = vld [vmem:[%s0 + $0x1c] sm:$0xf]
  %v22 = vld [vmem:[%s0 + $0x20] sm:$0xf]
  %v23 = vld [vmem:[%s0 + $0x24] sm:$0xf]
  %v24 = vld [vmem:[%s0 + $0x28] sm:$0xf]
  %v25 = vld [vmem:[%s0 + $0x2c] sm:$0xf]
  %v26 = vld [vmem:[%s0 + $0x30] sm:$0xf]
  %v27 = vld [vmem:[%s0 + $0x34] sm:$0xf]
  %v28 = vld [vmem:[%s0 + $0x38] sm:$0xf]
  %v29 = vld [vmem:[%s0 + $0x3c] sm:$0xf]
  %v30 = vunpack.c.l.bf16 %v14
  %v31 = vunpack.c.l.bf16 %v15
  %v32 = vunpack.c.l.bf16 %v16
  %v33 = vunpack.c.l.bf16 %v17
  %v34 = vunpack.c.l.bf16 %v18
  %v35 = vunpack.c.l.bf16 %v19
  %v36 = vunpack.c.l.bf16 %v20
  %v37 = vunpack.c.l.bf16 %v21
  %v38 = vunpack.c.l.bf16 %v22
  %v39 = vunpack.c.l.bf16 %v23
  %v40 = vunpack.c.l.bf16 %v24
  %v41 = vunpack.c.l.bf16 %v25
  %v42 = vunpack.c.l.bf16 %v26
  %v43 = vunpack.c.l.bf16 %v27
  %v44 = vunpack.c.l.bf16 %v28
  %v45 = vunpack.c.l.bf16 %v29
  %v46 = vld [vmem:[%s1] sm:$0x1]
  %v48 = vlaneseq
  %v49 = vshrl.u32 %v48, 7
  %v50 = vsub.s32 0, %v49
  %v51 = vrot.slane %v46, %v50
  %v53 = vmul.f32 %v30, %v51
  %v54 = vmul.f32 %v31, %v51
  %v55 = vmul.f32 %v32, %v51
  %v56 = vmul.f32 %v33, %v51
  %v57 = vmul.f32 %v34, %v51
  %v58 = vmul.f32 %v35, %v51
  %v59 = vmul.f32 %v36, %v51
  %v60 = vmul.f32 %v37, %v51
  %v61 = vmul.f32 %v38, %v51
  %v62 = vmul.f32 %v39, %v51
  %v63 = vmul.f32 %v40, %v51
  %v64 = vmul.f32 %v41, %v51
  %v65 = vmul.f32 %v42, %v51
  %v66 = vmul.f32 %v43, %v51
  %v67 = vmul.f32 %v44, %v51
  %v68 = vmul.f32 %v45, %v51
  %v69 = vld [vmem:[%s2] sm:$0x1]
  %v71 = vlaneseq
  %v72 = vshrl.u32 %v71, 7
  %v73 = vsub.s32 0, %v72
  %v74 = vrot.slane %v69, %v73
  %v76 = vadd.f32 %v53, %v74
  %v77 = vadd.f32 %v54, %v74
  %v78 = vadd.f32 %v55, %v74
  %v79 = vadd.f32 %v56, %v74
  %v80 = vadd.f32 %v57, %v74
  %v81 = vadd.f32 %v58, %v74
  %v82 = vadd.f32 %v59, %v74
  %v83 = vadd.f32 %v60, %v74
  %v84 = vadd.f32 %v61, %v74
  %v85 = vadd.f32 %v62, %v74
  %v86 = vadd.f32 %v63, %v74
  %v87 = vadd.f32 %v64, %v74
  %v88 = vadd.f32 %v65, %v74
  %v89 = vadd.f32 %v66, %v74
  %v90 = vadd.f32 %v67, %v74
  %v91 = vadd.f32 %v68, %v74
  %v92 = vmax.f32 %v76, 0.0
  %v93 = vmax.f32 %v77, 0.0
  %v94 = vmax.f32 %v78, 0.0
  %v95 = vmax.f32 %v79, 0.0
  %v96 = vmax.f32 %v80, 0.0
  %v97 = vmax.f32 %v81, 0.0
  %v98 = vmax.f32 %v82, 0.0
  %v99 = vmax.f32 %v83, 0.0
  %v100 = vmax.f32 %v84, 0.0
  %v101 = vmax.f32 %v85, 0.0
  %v102 = vmax.f32 %v86, 0.0
  %v103 = vmax.f32 %v87, 0.0
  %v104 = vmax.f32 %v88, 0.0
  %v105 = vmax.f32 %v89, 0.0
  %v106 = vmax.f32 %v90, 0.0
  %v107 = vmax.f32 %v91, 0.0
  %v108 = vpack.c.bf16 %v93, %v92
  %v109 = vpack.c.bf16 %v95, %v94
  %v110 = vpack.c.bf16 %v97, %v96
  %v111 = vpack.c.bf16 %v99, %v98
  %v112 = vpack.c.bf16 %v101, %v100
  %v113 = vpack.c.bf16 %v103, %v102
  %v114 = vpack.c.bf16 %v105, %v104
  %v115 = vpack.c.bf16 %v107, %v106
  %v124 = vunpack.c.l.b16 %v108
  %v125 = vunpack.c.h.b16 %v108
  %v126 = vunpack.c.l.b16 %v109
  %v127 = vunpack.c.h.b16 %v109
  %v128 = vunpack.c.l.b16 %v110
  %v129 = vunpack.c.h.b16 %v110
  %v130 = vunpack.c.l.b16 %v111
  %v131 = vunpack.c.h.b16 %v111
  %v132 = vunpack.c.l.b16 %v112
  %v133 = vunpack.c.h.b16 %v112
  %v134 = vunpack.c.l.b16 %v113
  %v135 = vunpack.c.h.b16 %v113
  %v136 = vunpack.c.l.b16 %v114
  %v137 = vunpack.c.h.b16 %v114
  %v138 = vunpack.c.l.b16 %v115
  %v139 = vunpack.c.h.b16 %v115
  %v140 = vpack.c.b16 %v124, %v124
  %v141 = vpack.c.b16 %v125, %v125
  %v142 = vpack.c.b16 %v126, %v126
  %v143 = vpack.c.b16 %v127, %v127
  %v144 = vpack.c.b16 %v128, %v128
  %v145 = vpack.c.b16 %v129, %v129
  %v146 = vpack.c.b16 %v130, %v130
  %v147 = vpack.c.b16 %v131, %v131
  %v148 = vpack.c.b16 %v132, %v132
  %v149 = vpack.c.b16 %v133, %v133
  %v150 = vpack.c.b16 %v134, %v134
  %v151 = vpack.c.b16 %v135, %v135
  %v152 = vpack.c.b16 %v136, %v136
  %v153 = vpack.c.b16 %v137, %v137
  %v154 = vpack.c.b16 %v138, %v138
  %v155 = vpack.c.b16 %v139, %v139
  %172 = vst [vmem:[%s3] sm:$0xf] %v140
  %173 = vst [vmem:[%s3 + $0x4] sm:$0xf] %v141
  %174 = vst [vmem:[%s3 + $0x8] sm:$0xf] %v142
  %175 = vst [vmem:[%s3 + $0xc] sm:$0xf] %v143
  %176 = vst [vmem:[%s3 + $0x10] sm:$0xf] %v144
  %177 = vst [vmem:[%s3 + $0x14] sm:$0xf] %v145
  %178 = vst [vmem:[%s3 + $0x18] sm:$0xf] %v146
  %179 = vst [vmem:[%s3 + $0x1c] sm:$0xf] %v147
  %180 = vst [vmem:[%s3 + $0x20] sm:$0xf] %v148
  %181 = vst [vmem:[%s3 + $0x24] sm:$0xf] %v149
  %182 = vst [vmem:[%s3 + $0x28] sm:$0xf] %v150
  %183 = vst [vmem:[%s3 + $0x2c] sm:$0xf] %v151
  %184 = vst [vmem:[%s3 + $0x30] sm:$0xf] %v152
  %185 = vst [vmem:[%s3 + $0x34] sm:$0xf] %v153
  %186 = vst [vmem:[%s3 + $0x38] sm:$0xf] %v154
  %187 = vst [vmem:[%s3 + $0x3c] sm:$0xf] %v155
  // Predicated region
  $region14: #{topdown_generator_forward.12} parent=0 // pred_check
    _
  $region15: #{topdown_generator_forward.12} parent=0 // pred_check_branch
    %189 = sbr.rel (0) target = $region17
  $region16: #{topdown_generator_forward.12} parent=0 // pred_region
    _
  $region17: #{topdown_generator_forward.12} parent=0 // pred_fallthru
    _
  // Predicated region
  $region18: #{topdown_generator_forward.12} parent=0 // pred_check
    _
  $region19: #{topdown_generator_forward.12} parent=0 // pred_check_branch
    %191 = sbr.rel (0) target = $region21
  $region20: #{topdown_generator_forward.12} parent=0 // pred_region
    _
  $region21: #{topdown_generator_forward.12} parent=0 // pred_fallthru
    _

// kernel: topdown_generator_forward.13
$region0: #{topdown_generator_forward.13}
  #allocation0 [shape = 'u32[]', space=smem, size = 0x4, offset = 0x4, fixed_abs, tag = 'smem constant byte address 0x4 - core index']
  #allocation1 [shape = 'u32[144,128]{1,0:T(1,128)}', space=vmem, size = 0x12000, scoped, tag = 'internal scratch']
  #allocation2 [shape = 'f32[128,128]{1,0:T(8,128)}', space=vmem, size = 0x10000, scoped, tag = 'scratch operand']
  %s0 = inlined_call_operand.vmem [shape: bf16[4,128,512], index: 0, kind: input, shape index: {}]
  %s1 = inlined_call_operand.vmem [shape: bf16[4,512,128], index: 1, kind: input, shape index: {}]
  %s2 = inlined_call_operand.vmem [shape: bf16[4,128,128], index: 2, kind: output, shape index: {0}]
  %s3 = inlined_call_operand.vmem [shape: f32[4,8,128], index: 3, kind: output, shape index: {1}]
  %4 = xla_tuple %s2, %s3
  %s5 = sld [smem:[#allocation0]]
  $region57: #{topdown_generator_forward.13} parent=0
    _
  %s7 = ssub.s32 1, %s5
  %s8 = scalar_select 0, %s7, %s5
  loop: start=0, step=1, limit=6
  $region2: #{topdown_generator_forward.13} parent=0 // loop_pre_header
    _
  $region3: #{topdown_generator_forward.13} parent=0 // loop_header
    %s10 = sphi 0, %s14
    %p11 = scmp.ge.s32.totalorder %s10, 6
    %s17 = sphi 0, %s36
    %s18 = sphi 0, %s32
    %s19 = sphi 0, %s28
    %s20 = sphi 0, %s17
    %s21 = sphi 0, %s18
    %s22 = sphi 0, %s19
    %s23 = sphi 0, %s20
    %s24 = sphi 0, %s21
    %s25 = sphi 0, %s22
    %s43 = sphi 0, %s45
    %s46 = sphi 0, %s43
    %s47 = sphi 0, %s46
    %s63 = sphi 0, %s47
    %s71 = sphi 0, %s73
    %s74 = sphi 0, %s71
    %s75 = sphi 0, %s74
    %s91 = sphi 0, %s75
    %s99 = sphi 0, %s101
    %s102 = sphi 0, %s99
    %s103 = sphi 0, %s102
    %s119 = sphi 0, %s103
    %s127 = sphi 0, %s129
    %s130 = sphi 0, %s127
    %s131 = sphi 0, %s130
    %s147 = sphi 0, %s131
  $region4: #{topdown_generator_forward.13} parent=0 // loop_header_branch
    %13 = sbr.rel (%p11) target = $region8
  $region5: #{topdown_generator_forward.13} parent=0 // loop_body
    %s15 = ssub.s32 %s10, 1
    %s16 = ssub.s32 %s10, 2
    %s26 = sadd.s32 1, %s19
    %p27 = scmp.ge.s32.totalorder %s26, 1
    %s28 = scalar_select %p27, 0, %s26
    %s29 = sadd.s32 1, %s18
    %s30 = scalar_select %p27, %s29, %s18
    %p31 = scmp.ge.s32.totalorder %s30, 1
    %s32 = scalar_select %p31, 0, %s30
    %s33 = sadd.s32 1, %s17
    %s34 = scalar_select %p31, %s33, %s17
    %p35 = scmp.ge.s32.totalorder %s34, 4
    %s36 = scalar_select %p35, 0, %s34
    %s37 = ssub.s32 %s17, %s36
    %s38 = ssub.s32 %s18, %s32
    %s39 = sor.u32 %s37, %s38
    %s40 = ssub.s32 %s19, %s28
    %s41 = sor.u32 %s39, %s40
    %p42 = scmp.eq.s32.totalorder %s41, 0
    %s44 = sadd.s32 %s43, 1
    %s45 = scalar_select %p42, %s43, %s44
    %p48 = pneg %p42
    %p49 = scmp.eq.s32.totalorder %s10, 3
    %p50 = por %p48, %p49
    %p51 = scmp.ne.s32.totalorder %s43, %s46
    %p52 = scmp.eq.s32.totalorder %s10, 0
    %p53 = por %p51, %p52
    %p54 = scmp.ne.s32.totalorder %s43, %s46
    %p55 = scmp.eq.s32.totalorder %s15, 3
    %p56 = por %p54, %p55
    %p57 = scmp.ne.s32.totalorder %s46, %s47
    %p58 = scmp.eq.s32.totalorder %s15, 0
    %p59 = por %p57, %p58
    %p60 = scmp.ne.s32.totalorder %s46, %s47
    %p61 = scmp.eq.s32.totalorder %s16, 3
    %p62 = por %p60, %p61
    %p64 = scmp.ne.s32.totalorder %s47, %s63
    %p65 = scmp.eq.s32.totalorder %s16, 0
    %p66 = por %p64, %p65
    %s67 = ssub.s32 %s17, %s36
    %s68 = ssub.s32 %s19, %s28
    %s69 = sor.u32 %s67, %s68
    %p70 = scmp.eq.s32.totalorder %s69, 0
    %s72 = sadd.s32 %s71, 1
    %s73 = scalar_select %p70, %s71, %s72
    %p76 = pneg %p70
    %p77 = scmp.eq.s32.totalorder %s10, 3
    %p78 = por %p76, %p77
    %p79 = scmp.ne.s32.totalorder %s71, %s74
    %p80 = scmp.eq.s32.totalorder %s10, 0
    %p81 = por %p79, %p80
    %p82 = scmp.ne.s32.totalorder %s71, %s74
    %p83 = scmp.eq.s32.totalorder %s15, 3
    %p84 = por %p82, %p83
    %p85 = scmp.ne.s32.totalorder %s74, %s75
    %p86 = scmp.eq.s32.totalorder %s15, 0
    %p87 = por %p85, %p86
    %p88 = scmp.ne.s32.totalorder %s74, %s75
    %p89 = scmp.eq.s32.totalorder %s16, 3
    %p90 = por %p88, %p89
    %p92 = scmp.ne.s32.totalorder %s75, %s91
    %p93 = scmp.eq.s32.totalorder %s16, 0
    %p94 = por %p92, %p93
    %s95 = ssub.s32 %s17, %s36
    %s96 = ssub.s32 %s18, %s32
    %s97 = sor.u32 %s95, %s96
    %p98 = scmp.eq.s32.totalorder %s97, 0
    %s100 = sadd.s32 %s99, 1
    %s101 = scalar_select %p98, %s99, %s100
    %p104 = pneg %p98
    %p105 = scmp.eq.s32.totalorder %s10, 3
    %p106 = por %p104, %p105
    %p107 = scmp.ne.s32.totalorder %s99, %s102
    %p108 = scmp.eq.s32.totalorder %s10, 0
    %p109 = por %p107, %p108
    %p110 = scmp.ne.s32.totalorder %s99, %s102
    %p111 = scmp.eq.s32.totalorder %s15, 3
    %p112 = por %p110, %p111
    %p113 = scmp.ne.s32.totalorder %s102, %s103
    %p114 = scmp.eq.s32.totalorder %s15, 0
    %p115 = por %p113, %p114
    %p116 = scmp.ne.s32.totalorder %s102, %s103
    %p117 = scmp.eq.s32.totalorder %s16, 3
    %p118 = por %p116, %p117
    %p120 = scmp.ne.s32.totalorder %s103, %s119
    %p121 = scmp.eq.s32.totalorder %s16, 0
    %p122 = por %p120, %p121
    %s123 = ssub.s32 %s17, %s36
    %s124 = ssub.s32 %s18, %s32
    %s125 = sor.u32 %s123, %s124
    %p126 = scmp.eq.s32.totalorder %s125, 0
    %s128 = sadd.s32 %s127, 1
    %s129 = scalar_select %p126, %s127, %s128
    %p132 = pneg %p126
    %p133 = scmp.eq.s32.totalorder %s10, 3
    %p134 = por %p132, %p133
    %p135 = scmp.ne.s32.totalorder %s127, %s130
    %p136 = scmp.eq.s32.totalorder %s10, 0
    %p137 = por %p135, %p136
    %p138 = scmp.ne.s32.totalorder %s127, %s130
    %p139 = scmp.eq.s32.totalorder %s15, 3
    %p140 = por %p138, %p139
    %p141 = scmp.ne.s32.totalorder %s130, %s131
    %p142 = scmp.eq.s32.totalorder %s15, 0
    %p143 = por %p141, %p142
    %p144 = scmp.ne.s32.totalorder %s130, %s131
    %p145 = scmp.eq.s32.totalorder %s16, 3
    %p146 = por %p144, %p145
    %p148 = scmp.ne.s32.totalorder %s131, %s147
    %p149 = scmp.eq.s32.totalorder %s16, 0
    %p150 = por %p148, %p149
    %p151 = scmp.le.s32.totalorder 1, %s10
    %p152 = scmp.lt.s32.totalorder %s10, 5
    %p153 = pnand %p151, %p152
    %p154 = pneg %p153
    // Predicated region
    $region9: #{topdown_generator_forward.13} parent=5 // pred_check
      _
    $region10: #{topdown_generator_forward.13} parent=5 // pred_check_branch
      %156 = sbr.rel (%p153) target = $region12
    $region11: #{topdown_generator_forward.13} parent=5 // pred_region
      %s157 = ssub.s32 %s10, 1
    $region12: #{topdown_generator_forward.13} parent=5 // pred_fallthru
      _
    %p158 = scmp.lt.s32.totalorder %s10, 4
    // Predicated region
    $region13: #{topdown_generator_forward.13} parent=5 // pred_check
      %p159 = pneg %p158
    $region14: #{topdown_generator_forward.13} parent=5 // pred_check_branch
      %161 = sbr.rel (%p159) target = $region16
    $region15: #{topdown_generator_forward.13} parent=5 // pred_region
      // Predicated region
      $region17: #{topdown_generator_forward.13} parent=15 // pred_check
        %p162 = pneg %p53
      $region18: #{topdown_generator_forward.13} parent=15 // pred_check_branch
        %164 = sbr.rel (%p162) target = $region20
      $region19: #{topdown_generator_forward.13} parent=15 // pred_region
        %s165 = smul.u32 16, %s18
        %s166 = smul.u32 4, %s19
        %p167 = scmp.lt.s32.totalorder %s17, 3
        %s168 = scalar_select %p167, %s17, 3
        %p169 = scmp.lt.s32.totalorder %s165, 15
        %s170 = scalar_select %p169, %s165, 15
        %p171 = scmp.lt.s32.totalorder %s166, 3
        %s172 = scalar_select %p171, %s166, 3
        %s173 = smul.addr %s170, 4
        %s174 = sadd.s32 %s172, %s173
        %s175 = smul.addr %s168, 64
        %s176 = sadd.s32 %s174, %s175
        %s177 = smul.addr %s176, 4
        %s178 = scalar_lea.vmem %s0, %s177
        %s179 = smul.u32 16, %s18
        %s180 = smul.u32 4, %s19
      $region20: #{topdown_generator_forward.13} parent=15 // pred_fallthru
        _
      // Predicated region
      $region21: #{topdown_generator_forward.13} parent=15 // pred_check
        %p181 = pneg %p81
      $region22: #{topdown_generator_forward.13} parent=15 // pred_check_branch
        %183 = sbr.rel (%p181) target = $region24
      $region23: #{topdown_generator_forward.13} parent=15 // pred_region
        %s184 = smul.u32 64, %s19
        %p185 = scmp.lt.s32.totalorder %s17, 3
        %s186 = scalar_select %p185, %s17, 3
        %p187 = scmp.lt.s32.totalorder %s184, 63
        %s188 = scalar_select %p187, %s184, 63
        %s189 = smul.addr %s186, 64
        %s190 = sadd.s32 %s188, %s189
        %s191 = smul.addr %s190, 4
        %s192 = scalar_lea.vmem %s1, %s191
        %s193 = smul.u32 64, %s19
      $region24: #{topdown_generator_forward.13} parent=15 // pred_fallthru
        _
    $region16: #{topdown_generator_forward.13} parent=5 // pred_fallthru
      _
    %p194 = scmp.le.s32.totalorder 1, %s10
    %p195 = scmp.lt.s32.totalorder %s10, 5
    %p196 = pnand %p194, %p195
    %p197 = pneg %p196
    // Predicated region
    $region25: #{topdown_generator_forward.13} parent=5 // pred_check
      _
    $region26: #{topdown_generator_forward.13} parent=5 // pred_check_branch
      %199 = sbr.rel (%p196) target = $region28
    $region27: #{topdown_generator_forward.13} parent=5 // pred_region
      %s200 = ssub.s32 %s10, 1
      %s201 = smul.u32 16, %s21
      %s202 = smul.u32 4, %s22
      %p203 = scmp.lt.s32.totalorder %s20, 3
      %s204 = scalar_select %p203, %s20, 3
      %p205 = scmp.lt.s32.totalorder %s201, 15
      %s206 = scalar_select %p205, %s201, 15
      %p207 = scmp.lt.s32.totalorder %s202, 3
      %s208 = scalar_select %p207, %s202, 3
      %s209 = smul.addr %s206, 4
      %s210 = sadd.s32 %s208, %s209
      %s211 = smul.addr %s204, 64
      %s212 = sadd.s32 %s210, %s211
      %s213 = smul.addr %s212, 4
      %s214 = scalar_lea.vmem %s0, %s213
      %p215 = pneg %p59
      %p216 = pneg %p56
      %s217 = smul.u32 64, %s22
      %p218 = scmp.lt.s32.totalorder %s20, 3
      %s219 = scalar_select %p218, %s20, 3
      %p220 = scmp.lt.s32.totalorder %s217, 63
      %s221 = scalar_select %p220, %s217, 63
      %s222 = smul.addr %s219, 64
      %s223 = sadd.s32 %s221, %s222
      %s224 = smul.addr %s223, 4
      %s225 = scalar_lea.vmem %s1, %s224
      %p226 = pneg %p87
      %p227 = pneg %p84
      %p228 = pneg %p115
      %p229 = pneg %p112
      %s230 = smul.u32 16, %s21
      %p231 = scmp.lt.s32.totalorder %s20, 3
      %s232 = scalar_select %p231, %s20, 3
      %p233 = scmp.lt.s32.totalorder %s230, 15
      %s234 = scalar_select %p233, %s230, 15
      %s235 = smul.addr %s232, 16
      %s236 = sadd.s32 %s234, %s235
      %s237 = smul.addr %s236, 4
      %s238 = scalar_lea.vmem %s2, %s237
      %p239 = pneg %p143
      %p240 = pneg %p140
      %p241 = scmp.lt.s32.totalorder %s20, 3
      %s242 = scalar_select %p241, %s20, 3
      %p243 = scmp.lt.s32.totalorder %s21, 0
      %s244 = scalar_select %p243, %s21, 0
      %s245 = sadd.s32 %s244, %s242
      %s246 = smul.addr %s245, 8
      %s247 = scalar_lea.vmem %s3, %s246
      %s248 = smul.u32 16, %s21
      %s249 = smul.u32 4, %s22
      %p250 = scmp.lt.s32.totalorder %s20, 3
      %s251 = scalar_select %p250, %s20, 3
      %p252 = scmp.lt.s32.totalorder %s248, 15
      %s253 = scalar_select %p252, %s248, 15
      %p254 = scmp.lt.s32.totalorder %s249, 3
      %s255 = scalar_select %p254, %s249, 3
      %s256 = smul.addr %s253, 4
      %s257 = sadd.s32 %s255, %s256
      %s258 = smul.addr %s251, 64
      %s259 = sadd.s32 %s257, %s258
      %s260 = smul.addr %s259, 4
      %s261 = scalar_lea.vmem %s0, %s260
      %s262 = smul.u32 16, %s21
      %s263 = smul.u32 4, %s22
      %s264 = smul.u32 64, %s22
      %p265 = scmp.lt.s32.totalorder %s20, 3
      %s266 = scalar_select %p265, %s20, 3
      %p267 = scmp.lt.s32.totalorder %s264, 63
      %s268 = scalar_select %p267, %s264, 63
      %s269 = smul.addr %s266, 64
      %s270 = sadd.s32 %s268, %s269
      %s271 = smul.addr %s270, 4
      %s272 = scalar_lea.vmem %s1, %s271
      %s273 = smul.u32 64, %s22
      %s274 = smul.u32 16, %s21
      %p275 = scmp.lt.s32.totalorder %s20, 3
      %s276 = scalar_select %p275, %s20, 3
      %p277 = scmp.lt.s32.totalorder %s274, 15
      %s278 = scalar_select %p277, %s274, 15
      %s279 = smul.addr %s276, 16
      %s280 = sadd.s32 %s278, %s279
      %s281 = smul.addr %s280, 4
      %s282 = scalar_lea.vmem %s2, %s281
      %s283 = smul.u32 16, %s21
      %p284 = scmp.lt.s32.totalorder %s20, 3
      %s285 = scalar_select %p284, %s20, 3
      %p286 = scmp.lt.s32.totalorder %s21, 0
      %s287 = scalar_select %p286, %s21, 0
      %s288 = sadd.s32 %s287, %s285
      %s289 = smul.addr %s288, 8
      %s290 = scalar_lea.vmem %s3, %s289
      %p292 = scmp.eq.s32.totalorder %s22, 0
      // Predicated region
      $region29: #{topdown_generator_forward.13} parent=27 // pred_check
        %p293 = pneg %p292
      $region30: #{topdown_generator_forward.13} parent=27 // pred_check_branch
        %295 = sbr.rel (%p293) target = $region32
      $region31: #{topdown_generator_forward.13} parent=27 // pred_region
        %296 = vst [vmem:[#allocation2] sm:$0xff] 0.0
        %297 = vst [vmem:[#allocation2 + $0x8] sm:$0xff] 0.0
        %298 = vst [vmem:[#allocation2 + $0x10] sm:$0xff] 0.0
        %299 = vst [vmem:[#allocation2 + $0x18] sm:$0xff] 0.0
        %300 = vst [vmem:[#allocation2 + $0x20] sm:$0xff] 0.0
        %301 = vst [vmem:[#allocation2 + $0x28] sm:$0xff] 0.0
        %302 = vst [vmem:[#allocation2 + $0x30] sm:$0xff] 0.0
        %303 = vst [vmem:[#allocation2 + $0x38] sm:$0xff] 0.0
        %304 = vst [vmem:[#allocation2 + $0x40] sm:$0xff] 0.0
        %305 = vst [vmem:[#allocation2 + $0x48] sm:$0xff] 0.0
        %306 = vst [vmem:[#allocation2 + $0x50] sm:$0xff] 0.0
        %307 = vst [vmem:[#allocation2 + $0x58] sm:$0xff] 0.0
        %308 = vst [vmem:[#allocation2 + $0x60] sm:$0xff] 0.0
        %309 = vst [vmem:[#allocation2 + $0x68] sm:$0xff] 0.0
        %310 = vst [vmem:[#allocation2 + $0x70] sm:$0xff] 0.0
        %311 = vst [vmem:[#allocation2 + $0x78] sm:$0xff] 0.0
      $region32: #{topdown_generator_forward.13} parent=27 // pred_fallthru
        _
      %v312 = vld [vmem:[#allocation2] sm:$0xff]
      %v313 = vld [vmem:[#allocation2 + $0x8] sm:$0xff]
      %v314 = vld [vmem:[#allocation2 + $0x10] sm:$0xff]
      %v315 = vld [vmem:[#allocation2 + $0x18] sm:$0xff]
      %v316 = vld [vmem:[#allocation2 + $0x20] sm:$0xff]
      %v317 = vld [vmem:[#allocation2 + $0x28] sm:$0xff]
      %v318 = vld [vmem:[#allocation2 + $0x30] sm:$0xff]
      %v319 = vld [vmem:[#allocation2 + $0x38] sm:$0xff]
      %v320 = vld [vmem:[#allocation2 + $0x40] sm:$0xff]
      %v321 = vld [vmem:[#allocation2 + $0x48] sm:$0xff]
      %v322 = vld [vmem:[#allocation2 + $0x50] sm:$0xff]
      %v323 = vld [vmem:[#allocation2 + $0x58] sm:$0xff]
      %v324 = vld [vmem:[#allocation2 + $0x60] sm:$0xff]
      %v325 = vld [vmem:[#allocation2 + $0x68] sm:$0xff]
      %v326 = vld [vmem:[#allocation2 + $0x70] sm:$0xff]
      %v327 = vld [vmem:[#allocation2 + $0x78] sm:$0xff]
      %v328 = vld [vmem:[%s261] sm:$0xff]
      %v329 = vld [vmem:[%s261 + $0x8] sm:$0xff]
      %v330 = vld [vmem:[%s261 + $0x10] sm:$0xff]
      %v331 = vld [vmem:[%s261 + $0x18] sm:$0xff]
      %v332 = vld [vmem:[%s261 + $0x20] sm:$0xff]
      %v333 = vld [vmem:[%s261 + $0x28] sm:$0xff]
      %v334 = vld [vmem:[%s261 + $0x30] sm:$0xff]
      %v335 = vld [vmem:[%s261 + $0x38] sm:$0xff]
      %v336 = vld [vmem:[%s261 + $0x40] sm:$0xff]
      %v337 = vld [vmem:[%s261 + $0x48] sm:$0xff]
      %v338 = vld [vmem:[%s261 + $0x50] sm:$0xff]
      %v339 = vld [vmem:[%s261 + $0x58] sm:$0xff]
      %v340 = vld [vmem:[%s261 + $0x60] sm:$0xff]
      %v341 = vld [vmem:[%s261 + $0x68] sm:$0xff]
      %v342 = vld [vmem:[%s261 + $0x70] sm:$0xff]
      %v343 = vld [vmem:[%s261 + $0x78] sm:$0xff]
      %v344 = vld [vmem:[%s261 + $0x80] sm:$0xff]
      %v345 = vld [vmem:[%s261 + $0x88] sm:$0xff]
      %v346 = vld [vmem:[%s261 + $0x90] sm:$0xff]
      %v347 = vld [vmem:[%s261 + $0x98] sm:$0xff]
      %v348 = vld [vmem:[%s261 + $0xa0] sm:$0xff]
      %v349 = vld [vmem:[%s261 + $0xa8] sm:$0xff]
      %v350 = vld [vmem:[%s261 + $0xb0] sm:$0xff]
      %v351 = vld [vmem:[%s261 + $0xb8] sm:$0xff]
      %v352 = vld [vmem:[%s261 + $0xc0] sm:$0xff]
      %v353 = vld [vmem:[%s261 + $0xc8] sm:$0xff]
      %v354 = vld [vmem:[%s261 + $0xd0] sm:$0xff]
      %v355 = vld [vmem:[%s261 + $0xd8] sm:$0xff]
      %v356 = vld [vmem:[%s261 + $0xe0] sm:$0xff]
      %v357 = vld [vmem:[%s261 + $0xe8] sm:$0xff]
      %v358 = vld [vmem:[%s261 + $0xf0] sm:$0xff]
      %v359 = vld [vmem:[%s261 + $0xf8] sm:$0xff]
      %v360 = vld [vmem:[%s272] sm:$0xf]
      %v361 = vld [vmem:[%s272 + $0x4] sm:$0xf]
      %v362 = vld [vmem:[%s272 + $0x8] sm:$0xf]
      %v363 = vld [vmem:[%s272 + $0xc] sm:$0xf]
      %v364 = vld [vmem:[%s272 + $0x10] sm:$0xf]
      %v365 = vld [vmem:[%s272 + $0x14] sm:$0xf]
      %v366 = vld [vmem:[%s272 + $0x18] sm:$0xf]
      %v367 = vld [vmem:[%s272 + $0x1c] sm:$0xf]
      %v368 = vld [vmem:[%s272 + $0x20] sm:$0xf]
      %v369 = vld [vmem:[%s272 + $0x24] sm:$0xf]
      %v370 = vld [vmem:[%s272 + $0x28] sm:$0xf]
      %v371 = vld [vmem:[%s272 + $0x2c] sm:$0xf]
      %v372 = vld [vmem:[%s272 + $0x30] sm:$0xf]
      %v373 = vld [vmem:[%s272 + $0x34] sm:$0xf]
      %v374 = vld [vmem:[%s272 + $0x38] sm:$0xf]
      %v375 = vld [vmem:[%s272 + $0x3c] sm:$0xf]
      %v376 = vld [vmem:[%s272 + $0x40] sm:$0xf]
      %v377 = vld [vmem:[%s272 + $0x44] sm:$0xf]
      %v378 = vld [vmem:[%s272 + $0x48] sm:$0xf]
      %v379 = vld [vmem:[%s272 + $0x4c] sm:$0xf]
      %v380 = vld [vmem:[%s272 + $0x50] sm:$0xf]
      %v381 = vld [vmem:[%s272 + $0x54] sm:$0xf]
      %v382 = vld [vmem:[%s272 + $0x58] sm:$0xf]
      %v383 = vld [vmem:[%s272 + $0x5c] sm:$0xf]
      %v384 = vld [vmem:[%s272 + $0x60] sm:$0xf]
      %v385 = vld [vmem:[%s272 + $0x64] sm:$0xf]
      %v386 = vld [vmem:[%s272 + $0x68] sm:$0xf]
      %v387 = vld [vmem:[%s272 + $0x6c] sm:$0xf]
      %v388 = vld [vmem:[%s272 + $0x70] sm:$0xf]
      %v389 = vld [vmem:[%s272 + $0x74] sm:$0xf]
      %v390 = vld [vmem:[%s272 + $0x78] sm:$0xf]
      %v391 = vld [vmem:[%s272 + $0x7c] sm:$0xf]
      %v392 = vld [vmem:[%s272 + $0x80] sm:$0xf]
      %v393 = vld [vmem:[%s272 + $0x84] sm:$0xf]
      %v394 = vld [vmem:[%s272 + $0x88] sm:$0xf]
      %v395 = vld [vmem:[%s272 + $0x8c] sm:$0xf]
      %v396 = vld [vmem:[%s272 + $0x90] sm:$0xf]
      %v397 = vld [vmem:[%s272 + $0x94] sm:$0xf]
      %v398 = vld [vmem:[%s272 + $0x98] sm:$0xf]
      %v399 = vld [vmem:[%s272 + $0x9c] sm:$0xf]
      %v400 = vld [vmem:[%s272 + $0xa0] sm:$0xf]
      %v401 = vld [vmem:[%s272 + $0xa4] sm:$0xf]
      %v402 = vld [vmem:[%s272 + $0xa8] sm:$0xf]
      %v403 = vld [vmem:[%s272 + $0xac] sm:$0xf]
      %v404 = vld [vmem:[%s272 + $0xb0] sm:$0xf]
      %v405 = vld [vmem:[%s272 + $0xb4] sm:$0xf]
      %v406 = vld [vmem:[%s272 + $0xb8] sm:$0xf]
      %v407 = vld [vmem:[%s272 + $0xbc] sm:$0xf]
      %v408 = vld [vmem:[%s272 + $0xc0] sm:$0xf]
      %v409 = vld [vmem:[%s272 + $0xc4] sm:$0xf]
      %v410 = vld [vmem:[%s272 + $0xc8] sm:$0xf]
      %v411 = vld [vmem:[%s272 + $0xcc] sm:$0xf]
      %v412 = vld [vmem:[%s272 + $0xd0] sm:$0xf]
      %v413 = vld [vmem:[%s272 + $0xd4] sm:$0xf]
      %v414 = vld [vmem:[%s272 + $0xd8] sm:$0xf]
      %v415 = vld [vmem:[%s272 + $0xdc] sm:$0xf]
      %v416 = vld [vmem:[%s272 + $0xe0] sm:$0xf]
      %v417 = vld [vmem:[%s272 + $0xe4] sm:$0xf]
      %v418 = vld [vmem:[%s272 + $0xe8] sm:$0xf]
      %v419 = vld [vmem:[%s272 + $0xec] sm:$0xf]
      %v420 = vld [vmem:[%s272 + $0xf0] sm:$0xf]
      %v421 = vld [vmem:[%s272 + $0xf4] sm:$0xf]
      %v422 = vld [vmem:[%s272 + $0xf8] sm:$0xf]
      %v423 = vld [vmem:[%s272 + $0xfc] sm:$0xf]
      %v456 = vunpack.c.l.b16 %v328
      %v457 = vunpack.c.h.b16 %v328
      %v458 = vunpack.c.l.b16 %v329
      %v459 = vunpack.c.h.b16 %v329
      %v460 = vunpack.c.l.b16 %v330
      %v461 = vunpack.c.h.b16 %v330
      %v462 = vunpack.c.l.b16 %v331
      %v463 = vunpack.c.h.b16 %v331
      %v464 = vunpack.c.l.b16 %v332
      %v465 = vunpack.c.h.b16 %v332
      %v466 = vunpack.c.l.b16 %v333
      %v467 = vunpack.c.h.b16 %v333
      %v468 = vunpack.c.l.b16 %v334
      %v469 = vunpack.c.h.b16 %v334
      %v470 = vunpack.c.l.b16 %v335
      %v471 = vunpack.c.h.b16 %v335
      %v472 = vunpack.c.l.b16 %v336
      %v473 = vunpack.c.h.b16 %v336
      %v474 = vunpack.c.l.b16 %v337
      %v475 = vunpack.c.h.b16 %v337
      %v476 = vunpack.c.l.b16 %v338
      %v477 = vunpack.c.h.b16 %v338
      %v478 = vunpack.c.l.b16 %v339
      %v479 = vunpack.c.h.b16 %v339
      %v480 = vunpack.c.l.b16 %v340
      %v481 = vunpack.c.h.b16 %v340
      %v482 = vunpack.c.l.b16 %v341
      %v483 = vunpack.c.h.b16 %v341
      %v484 = vunpack.c.l.b16 %v342
      %v485 = vunpack.c.h.b16 %v342
      %v486 = vunpack.c.l.b16 %v343
      %v487 = vunpack.c.h.b16 %v343
      %v488 = vunpack.c.l.b16 %v344
      %v489 = vunpack.c.h.b16 %v344
      %v490 = vunpack.c.l.b16 %v345
      %v491 = vunpack.c.h.b16 %v345
      %v492 = vunpack.c.l.b16 %v346
      %v493 = vunpack.c.h.b16 %v346
      %v494 = vunpack.c.l.b16 %v347
      %v495 = vunpack.c.h.b16 %v347
      %v496 = vunpack.c.l.b16 %v348
      %v497 = vunpack.c.h.b16 %v348
      %v498 = vunpack.c.l.b16 %v349
      %v499 = vunpack.c.h.b16 %v349
      %v500 = vunpack.c.l.b16 %v350
      %v501 = vunpack.c.h.b16 %v350
      %v502 = vunpack.c.l.b16 %v351
      %v503 = vunpack.c.h.b16 %v351
      %v504 = vunpack.c.l.b16 %v352
      %v505 = vunpack.c.h.b16 %v352
      %v506 = vunpack.c.l.b16 %v353
      %v507 = vunpack.c.h.b16 %v353
      %v508 = vunpack.c.l.b16 %v354
      %v509 = vunpack.c.h.b16 %v354
      %v510 = vunpack.c.l.b16 %v355
      %v511 = vunpack.c.h.b16 %v355
      %v512 = vunpack.c.l.b16 %v356
      %v513 = vunpack.c.h.b16 %v356
      %v514 = vunpack.c.l.b16 %v357
      %v515 = vunpack.c.h.b16 %v357
      %v516 = vunpack.c.l.b16 %v358
      %v517 = vunpack.c.h.b16 %v358
      %v518 = vunpack.c.l.b16 %v359
      %v519 = vunpack.c.h.b16 %v359
      %v520 = vpack.c.b16 %v460, %v456
      %v521 = vpack.c.b16 %v461, %v457
      %v522 = vpack.c.b16 %v462, %v458
      %v523 = vpack.c.b16 %v463, %v459
      %v524 = vpack.c.b16 %v468, %v464
      %v525 = vpack.c.b16 %v469, %v465
      %v526 = vpack.c.b16 %v470, %v466
      %v527 = vpack.c.b16 %v471, %v467
      %v528 = vpack.c.b16 %v476, %v472
      %v529 = vpack.c.b16 %v477, %v473
      %v530 = vpack.c.b16 %v478, %v474
      %v531 = vpack.c.b16 %v479, %v475
      %v532 = vpack.c.b16 %v484, %v480
      %v533 = vpack.c.b16 %v485, %v481
      %v534 = vpack.c.b16 %v486, %v482
      %v535 = vpack.c.b16 %v487, %v483
      %v536 = vpack.c.b16 %v492, %v488
      %v537 = vpack.c.b16 %v493, %v489
      %v538 = vpack.c.b16 %v494, %v490
      %v539 = vpack.c.b16 %v495, %v491
      %v540 = vpack.c.b16 %v500, %v496
      %v541 = vpack.c.b16 %v501, %v497
      %v542 = vpack.c.b16 %v502, %v498
      %v543 = vpack.c.b16 %v503, %v499
      %v544 = vpack.c.b16 %v508, %v504
      %v545 = vpack.c.b16 %v509, %v505
      %v546 = vpack.c.b16 %v510, %v506
      %v547 = vpack.c.b16 %v511, %v507
      %v548 = vpack.c.b16 %v516, %v512
      %v549 = vpack.c.b16 %v517, %v513
      %v550 = vpack.c.b16 %v518, %v514
      %v551 = vpack.c.b16 %v519, %v515
      %v648 = vunpack.c.l.b16 %v360
      %v649 = vunpack.c.l.b16 %v361
      %v650 = vunpack.c.l.b16 %v362
      %v651 = vunpack.c.l.b16 %v363
      %v652 = vunpack.c.l.b16 %v364
      %v653 = vunpack.c.l.b16 %v365
      %v654 = vunpack.c.l.b16 %v366
      %v655 = vunpack.c.l.b16 %v367
      %v656 = vunpack.c.l.b16 %v368
      %v657 = vunpack.c.l.b16 %v369
      %v658 = vunpack.c.l.b16 %v370
      %v659 = vunpack.c.l.b16 %v371
      %v660 = vunpack.c.l.b16 %v372
      %v661 = vunpack.c.l.b16 %v373
      %v662 = vunpack.c.l.b16 %v374
      %v663 = vunpack.c.l.b16 %v375
      %v664 = vunpack.c.l.b16 %v376
      %v665 = vunpack.c.l.b16 %v377
      %v666 = vunpack.c.l.b16 %v378
      %v667 = vunpack.c.l.b16 %v379
      %v668 = vunpack.c.l.b16 %v380
      %v669 = vunpack.c.l.b16 %v381
      %v670 = vunpack.c.l.b16 %v382
      %v671 = vunpack.c.l.b16 %v383
      %v672 = vunpack.c.l.b16 %v384
      %v673 = vunpack.c.l.b16 %v385
      %v674 = vunpack.c.l.b16 %v386
      %v675 = vunpack.c.l.b16 %v387
      %v676 = vunpack.c.l.b16 %v388
      %v677 = vunpack.c.l.b16 %v389
      %v678 = vunpack.c.l.b16 %v390
      %v679 = vunpack.c.l.b16 %v391
      %v680 = vunpack.c.l.b16 %v392
      %v681 = vunpack.c.l.b16 %v393
      %v682 = vunpack.c.l.b16 %v394
      %v683 = vunpack.c.l.b16 %v395
      %v684 = vunpack.c.l.b16 %v396
      %v685 = vunpack.c.l.b16 %v397
      %v686 = vunpack.c.l.b16 %v398
      %v687 = vunpack.c.l.b16 %v399
      %v688 = vunpack.c.l.b16 %v400
      %v689 = vunpack.c.l.b16 %v401
      %v690 = vunpack.c.l.b16 %v402
      %v691 = vunpack.c.l.b16 %v403
      %v692 = vunpack.c.l.b16 %v404
      %v693 = vunpack.c.l.b16 %v405
      %v694 = vunpack.c.l.b16 %v406
      %v695 = vunpack.c.l.b16 %v407
      %v696 = vunpack.c.l.b16 %v408
      %v697 = vunpack.c.l.b16 %v409
      %v698 = vunpack.c.l.b16 %v410
      %v699 = vunpack.c.l.b16 %v411
      %v700 = vunpack.c.l.b16 %v412
      %v701 = vunpack.c.l.b16 %v413
      %v702 = vunpack.c.l.b16 %v414
      %v703 = vunpack.c.l.b16 %v415
      %v704 = vunpack.c.l.b16 %v416
      %v705 = vunpack.c.l.b16 %v417
      %v706 = vunpack.c.l.b16 %v418
      %v707 = vunpack.c.l.b16 %v419
      %v708 = vunpack.c.l.b16 %v420
      %v709 = vunpack.c.l.b16 %v421
      %v710 = vunpack.c.l.b16 %v422
      %v711 = vunpack.c.l.b16 %v423
      %v712 = vpack.c.b16 %v649, %v648
      %v713 = vpack.c.b16 %v651, %v650
      %v714 = vpack.c.b16 %v653, %v652
      %v715 = vpack.c.b16 %v655, %v654
      %v716 = vpack.c.b16 %v657, %v656
      %v717 = vpack.c.b16 %v659, %v658
      %v718 = vpack.c.b16 %v661, %v660
      %v719 = vpack.c.b16 %v663, %v662
      %v720 = vpack.c.b16 %v665, %v664
      %v721 = vpack.c.b16 %v667, %v666
      %v722 = vpack.c.b16 %v669, %v668
      %v723 = vpack.c.b16 %v671, %v670
      %v724 = vpack.c.b16 %v673, %v672
      %v725 = vpack.c.b16 %v675, %v674
      %v726 = vpack.c.b16 %v677, %v676
      %v727 = vpack.c.b16 %v679, %v678
      %v728 = vpack.c.b16 %v681, %v680
      %v729 = vpack.c.b16 %v683, %v682
      %v730 = vpack.c.b16 %v685, %v684
      %v731 = vpack.c.b16 %v687, %v686
      %v732 = vpack.c.b16 %v689, %v688
      %v733 = vpack.c.b16 %v691, %v690
      %v734 = vpack.c.b16 %v693, %v692
      %v735 = vpack.c.b16 %v695, %v694
      %v736 = vpack.c.b16 %v697, %v696
      %v737 = vpack.c.b16 %v699, %v698
      %v738 = vpack.c.b16 %v701, %v700
      %v739 = vpack.c.b16 %v703, %v702
      %v740 = vpack.c.b16 %v705, %v704
      %v741 = vpack.c.b16 %v707, %v706
      %v742 = vpack.c.b16 %v709, %v708
      %v743 = vpack.c.b16 %v711, %v710
      %776 = vmatprep.subr.bf16.mxu0 0
      %777 = vmatpush1.bf16.msra.mxu0 %v719
      %778 = vmatprep.subr.bf16.mxu0 0
      %779 = vmatpush1.bf16.msra.mxu0 %v718
      %780 = vmatprep.subr.bf16.mxu0 0
      %781 = vmatpush1.bf16.msra.mxu0 %v717
      %782 = vmatprep.subr.bf16.mxu0 0
      %783 = vmatpush1.bf16.msra.mxu0 %v716
      %784 = vmatprep.subr.bf16.mxu0 0
      %785 = vmatpush1.bf16.msra.mxu0 %v715
      %786 = vmatprep.subr.bf16.mxu0 0
      %787 = vmatpush1.bf16.msra.mxu0 %v714
      %788 = vmatprep.subr.bf16.mxu0 0
      %789 = vmatpush1.bf16.msra.mxu0 %v713
      %790 = vmatprep.subr.bf16.mxu0 0
      %791 = vmatpush1.bf16.msra.mxu0 %v712
      %792 = vmatprep.subr.bf16.mxu0 0
      %793 = vmatpush2.bf16.msra.mxu0 %v727
      %794 = vmatprep.subr.bf16.mxu0 0
      %795 = vmatpush2.bf16.msra.mxu0 %v726
      %796 = vmatprep.subr.bf16.mxu0 0
      %797 = vmatpush2.bf16.msra.mxu0 %v725
      %798 = vmatprep.subr.bf16.mxu0 0
      %799 = vmatpush2.bf16.msra.mxu0 %v724
      %800 = vmatprep.subr.bf16.mxu0 0
      %801 = vmatpush2.bf16.msra.mxu0 %v723
      %802 = vmatprep.subr.bf16.mxu0 0
      %803 = vmatpush2.bf16.msra.mxu0 %v722
      %804 = vmatprep.subr.bf16.mxu0 0
      %805 = vmatpush2.bf16.msra.mxu0 %v721
      %806 = vmatprep.subr.bf16.mxu0 0
      %807 = vmatpush2.bf16.msra.mxu0 %v720
      %808 = vmatprep.mubr.bf16.mxu0 %v521
      %809 = vmatmul.mubr.bf16.gmra.mxu0 %v520
      %v810 = vpop.f32.mrf.mxu0
      %v811 = vadd.f32 0.0, %v810
      %v812 = vpop.f32.mrf.mxu0
      %v813 = vpop.f32.mrf.mxu0
      %v814 = vadd.f32 0.0, %v813
      %v815 = vpop.f32.mrf.mxu0
      %816 = vmatprep.mubr.bf16.mxu0 %v525
      %817 = vmatmul.mubr.bf16.gmra.mxu0 %v524
      %v818 = vpop.f32.mrf.mxu0
      %v819 = vadd.f32 0.0, %v818
      %v820 = vpop.f32.mrf.mxu0
      %v821 = vpop.f32.mrf.mxu0
      %v822 = vadd.f32 0.0, %v821
      %v823 = vpop.f32.mrf.mxu0
      %824 = vmatprep.mubr.bf16.mxu0 %v529
      %825 = vmatmul.mubr.bf16.gmra.mxu0 %v528
      %v826 = vpop.f32.mrf.mxu0
      %v827 = vadd.f32 0.0, %v826
      %v828 = vpop.f32.mrf.mxu0
      %v829 = vpop.f32.mrf.mxu0
      %v830 = vadd.f32 0.0, %v829
      %v831 = vpop.f32.mrf.mxu0
      %832 = vmatprep.mubr.bf16.mxu0 %v533
      %833 = vmatmul.mubr.bf16.gmra.mxu0 %v532
      %v834 = vpop.f32.mrf.mxu0
      %v835 = vadd.f32 0.0, %v834
      %v836 = vpop.f32.mrf.mxu0
      %v837 = vpop.f32.mrf.mxu0
      %v838 = vadd.f32 0.0, %v837
      %v839 = vpop.f32.mrf.mxu0
      %840 = vmatprep.mubr.bf16.mxu0 %v537
      %841 = vmatmul.mubr.bf16.gmra.mxu0 %v536
      %v842 = vpop.f32.mrf.mxu0
      %v843 = vadd.f32 0.0, %v842
      %v844 = vpop.f32.mrf.mxu0
      %v845 = vpop.f32.mrf.mxu0
      %v846 = vadd.f32 0.0, %v845
      %v847 = vpop.f32.mrf.mxu0
      %848 = vmatprep.mubr.bf16.mxu0 %v541
      %849 = vmatmul.mubr.bf16.gmra.mxu0 %v540
      %v850 = vpop.f32.mrf.mxu0
      %v851 = vadd.f32 0.0, %v850
      %v852 = vpop.f32.mrf.mxu0
      %v853 = vpop.f32.mrf.mxu0
      %v854 = vadd.f32 0.0, %v853
      %v855 = vpop.f32.mrf.mxu0
      %856 = vmatprep.mubr.bf16.mxu0 %v545
      %857 = vmatmul.mubr.bf16.gmra.mxu0 %v544
      %v858 = vpop.f32.mrf.mxu0
      %v859 = vadd.f32 0.0, %v858
      %v860 = vpop.f32.mrf.mxu0
      %v861 = vpop.f32.mrf.mxu0
      %v862 = vadd.f32 0.0, %v861
      %v863 = vpop.f32.mrf.mxu0
      %864 = vmatprep.mubr.bf16.mxu0 %v549
      %865 = vmatmul.mubr.bf16.gmra.mxu0 %v548
      %v866 = vpop.f32.mrf.mxu0
      %v867 = vadd.f32 0.0, %v866
      %v868 = vpop.f32.mrf.mxu0
      %v869 = vpop.f32.mrf.mxu0
      %v870 = vadd.f32 0.0, %v869
      %v871 = vpop.f32.mrf.mxu0
      %872 = vdwg.mxu0
      %873 = vmatprep.subr.bf16.mxu0 0
      %874 = vmatpush1.bf16.msra.mxu0 %v735
      %875 = vmatprep.subr.bf16.mxu0 0
      %876 = vmatpush1.bf16.msra.mxu0 %v734
      %877 = vmatprep.subr.bf16.mxu0 0
      %878 = vmatpush1.bf16.msra.mxu0 %v733
      %879 = vmatprep.subr.bf16.mxu0 0
      %880 = vmatpush1.bf16.msra.mxu0 %v732
      %881 = vmatprep.subr.bf16.mxu0 0
      %882 = vmatpush1.bf16.msra.mxu0 %v731
      %883 = vmatprep.subr.bf16.mxu0 0
      %884 = vmatpush1.bf16.msra.mxu0 %v730
      %885 = vmatprep.subr.bf16.mxu0 0
      %886 = vmatpush1.bf16.msra.mxu0 %v729
      %887 = vmatprep.subr.bf16.mxu0 0
      %888 = vmatpush1.bf16.msra.mxu0 %v728
      %889 = vmatprep.subr.bf16.mxu0 0
      %890 = vmatpush2.bf16.msra.mxu0 %v743
      %891 = vmatprep.subr.bf16.mxu0 0
      %892 = vmatpush2.bf16.msra.mxu0 %v742
      %893 = vmatprep.subr.bf16.mxu0 0
      %894 = vmatpush2.bf16.msra.mxu0 %v741
      %895 = vmatprep.subr.bf16.mxu0 0
      %896 = vmatpush2.bf16.msra.mxu0 %v740
      %897 = vmatprep.subr.bf16.mxu0 0
      %898 = vmatpush2.bf16.msra.mxu0 %v739
      %899 = vmatprep.subr.bf16.mxu0 0
      %900 = vmatpush2.bf16.msra.mxu0 %v738
      %901 = vmatprep.subr.bf16.mxu0 0
      %902 = vmatpush2.bf16.msra.mxu0 %v737
      %903 = vmatprep.subr.bf16.mxu0 0
      %904 = vmatpush2.bf16.msra.mxu0 %v736
      %905 = vmatprep.mubr.bf16.mxu0 %v523
      %906 = vmatmul.mubr.bf16.gmra.mxu0 %v522
      %v907 = vpop.f32.mrf.mxu0
      %v908 = vadd.f32 %v811, %v907
      %v909 = vpop.f32.mrf.mxu0
      %v910 = vpop.f32.mrf.mxu0
      %v911 = vadd.f32 %v814, %v910
      %v912 = vpop.f32.mrf.mxu0
      %913 = vmatprep.mubr.bf16.mxu0 %v527
      %914 = vmatmul.mubr.bf16.gmra.mxu0 %v526
      %v915 = vpop.f32.mrf.mxu0
      %v916 = vadd.f32 %v819, %v915
      %v917 = vpop.f32.mrf.mxu0
      %v918 = vpop.f32.mrf.mxu0
      %v919 = vadd.f32 %v822, %v918
      %v920 = vpop.f32.mrf.mxu0
      %921 = vmatprep.mubr.bf16.mxu0 %v531
      %922 = vmatmul.mubr.bf16.gmra.mxu0 %v530
      %v923 = vpop.f32.mrf.mxu0
      %v924 = vadd.f32 %v827, %v923
      %v925 = vpop.f32.mrf.mxu0
      %v926 = vpop.f32.mrf.mxu0
      %v927 = vadd.f32 %v830, %v926
      %v928 = vpop.f32.mrf.mxu0
      %929 = vmatprep.mubr.bf16.mxu0 %v535
      %930 = vmatmul.mubr.bf16.gmra.mxu0 %v534
      %v931 = vpop.f32.mrf.mxu0
      %v932 = vadd.f32 %v835, %v931
      %v933 = vpop.f32.mrf.mxu0
      %v934 = vpop.f32.mrf.mxu0
      %v935 = vadd.f32 %v838, %v934
      %v936 = vpop.f32.mrf.mxu0
      %937 = vmatprep.mubr.bf16.mxu0 %v539
      %938 = vmatmul.mubr.bf16.gmra.mxu0 %v538
      %v939 = vpop.f32.mrf.mxu0
      %v940 = vadd.f32 %v843, %v939
      %v941 = vpop.f32.mrf.mxu0
      %v942 = vpop.f32.mrf.mxu0
      %v943 = vadd.f32 %v846, %v942
      %v944 = vpop.f32.mrf.mxu0
      %945 = vmatprep.mubr.bf16.mxu0 %v543
      %946 = vmatmul.mubr.bf16.gmra.mxu0 %v542
      %v947 = vpop.f32.mrf.mxu0
      %v948 = vadd.f32 %v851, %v947
      %v949 = vpop.f32.mrf.mxu0
      %v950 = vpop.f32.mrf.mxu0
      %v951 = vadd.f32 %v854, %v950
      %v952 = vpop.f32.mrf.mxu0
      %953 = vmatprep.mubr.bf16.mxu0 %v547
      %954 = vmatmul.mubr.bf16.gmra.mxu0 %v546
      %v955 = vpop.f32.mrf.mxu0
      %v956 = vadd.f32 %v859, %v955
      %v957 = vpop.f32.mrf.mxu0
      %v958 = vpop.f32.mrf.mxu0
      %v959 = vadd.f32 %v862, %v958
      %v960 = vpop.f32.mrf.mxu0
      %961 = vmatprep.mubr.bf16.mxu0 %v551
      %962 = vmatmul.mubr.bf16.gmra.mxu0 %v550
      %v963 = vpop.f32.mrf.mxu0
      %v964 = vadd.f32 %v867, %v963
      %v965 = vpop.f32.mrf.mxu0
      %v966 = vpop.f32.mrf.mxu0
      %v967 = vadd.f32 %v870, %v966
      %v968 = vpop.f32.mrf.mxu0
      %969 = vdwg.mxu0
      %v970 = vadd.f32 %v312, %v908
      %v971 = vadd.f32 %v313, %v911
      %v972 = vadd.f32 %v314, %v916
      %v973 = vadd.f32 %v315, %v919
      %v974 = vadd.f32 %v316, %v924
      %v975 = vadd.f32 %v317, %v927
      %v976 = vadd.f32 %v318, %v932
      %v977 = vadd.f32 %v319, %v935
      %v978 = vadd.f32 %v320, %v940
      %v979 = vadd.f32 %v321, %v943
      %v980 = vadd.f32 %v322, %v948
      %v981 = vadd.f32 %v323, %v951
      %v982 = vadd.f32 %v324, %v956
      %v983 = vadd.f32 %v325, %v959
      %v984 = vadd.f32 %v326, %v964
      %v985 = vadd.f32 %v327, %v967
      %986 = vst [vmem:[#allocation2] sm:$0xff] %v970
      %987 = vst [vmem:[#allocation2 + $0x8] sm:$0xff] %v971
      %988 = vst [vmem:[#allocation2 + $0x10] sm:$0xff] %v972
      %989 = vst [vmem:[#allocation2 + $0x18] sm:$0xff] %v973
      %990 = vst [vmem:[#allocation2 + $0x20] sm:$0xff] %v974
      %991 = vst [vmem:[#allocation2 + $0x28] sm:$0xff] %v975
      %992 = vst [vmem:[#allocation2 + $0x30] sm:$0xff] %v976
      %993 = vst [vmem:[#allocation2 + $0x38] sm:$0xff] %v977
      %994 = vst [vmem:[#allocation2 + $0x40] sm:$0xff] %v978
      %995 = vst [vmem:[#allocation2 + $0x48] sm:$0xff] %v979
      %996 = vst [vmem:[#allocation2 + $0x50] sm:$0xff] %v980
      %997 = vst [vmem:[#allocation2 + $0x58] sm:$0xff] %v981
      %998 = vst [vmem:[#allocation2 + $0x60] sm:$0xff] %v982
      %999 = vst [vmem:[#allocation2 + $0x68] sm:$0xff] %v983
      %1000 = vst [vmem:[#allocation2 + $0x70] sm:$0xff] %v984
      %1001 = vst [vmem:[#allocation2 + $0x78] sm:$0xff] %v985
      // Predicated region
      $region33: #{topdown_generator_forward.13} parent=27 // pred_check
        %p1002 = pneg %p292
      $region34: #{topdown_generator_forward.13} parent=27 // pred_check_branch
        %1004 = sbr.rel (%p1002) target = $region36
      $region35: #{topdown_generator_forward.13} parent=27 // pred_region
        %v1005 = vld [vmem:[#allocation2] sm:$0xff]
        %v1006 = vld [vmem:[#allocation2 + $0x8] sm:$0xff]
        %v1007 = vld [vmem:[#allocation2 + $0x10] sm:$0xff]
        %v1008 = vld [vmem:[#allocation2 + $0x18] sm:$0xff]
        %v1009 = vld [vmem:[#allocation2 + $0x20] sm:$0xff]
        %v1010 = vld [vmem:[#allocation2 + $0x28] sm:$0xff]
        %v1011 = vld [vmem:[#allocation2 + $0x30] sm:$0xff]
        %v1012 = vld [vmem:[#allocation2 + $0x38] sm:$0xff]
        %v1013 = vld [vmem:[#allocation2 + $0x40] sm:$0xff]
        %v1014 = vld [vmem:[#allocation2 + $0x48] sm:$0xff]
        %v1015 = vld [vmem:[#allocation2 + $0x50] sm:$0xff]
        %v1016 = vld [vmem:[#allocation2 + $0x58] sm:$0xff]
        %v1017 = vld [vmem:[#allocation2 + $0x60] sm:$0xff]
        %v1018 = vld [vmem:[#allocation2 + $0x68] sm:$0xff]
        %v1019 = vld [vmem:[#allocation2 + $0x70] sm:$0xff]
        %v1020 = vld [vmem:[#allocation2 + $0x78] sm:$0xff]
        %v1021 = vpack.c.bf16 %v1006, %v1005
        %v1022 = vpack.c.bf16 %v1008, %v1007
        %v1023 = vpack.c.bf16 %v1010, %v1009
        %v1024 = vpack.c.bf16 %v1012, %v1011
        %v1025 = vpack.c.bf16 %v1014, %v1013
        %v1026 = vpack.c.bf16 %v1016, %v1015
        %v1027 = vpack.c.bf16 %v1018, %v1017
        %v1028 = vpack.c.bf16 %v1020, %v1019
        %v1037 = vunpack.c.l.b16 %v1021
        %v1038 = vunpack.c.h.b16 %v1021
        %v1039 = vunpack.c.l.b16 %v1022
        %v1040 = vunpack.c.h.b16 %v1022
        %v1041 = vunpack.c.l.b16 %v1023
        %v1042 = vunpack.c.h.b16 %v1023
        %v1043 = vunpack.c.l.b16 %v1024
        %v1044 = vunpack.c.h.b16 %v1024
        %v1045 = vunpack.c.l.b16 %v1025
        %v1046 = vunpack.c.h.b16 %v1025
        %v1047 = vunpack.c.l.b16 %v1026
        %v1048 = vunpack.c.h.b16 %v1026
        %v1049 = vunpack.c.l.b16 %v1027
        %v1050 = vunpack.c.h.b16 %v1027
        %v1051 = vunpack.c.l.b16 %v1028
        %v1052 = vunpack.c.h.b16 %v1028
        %v1053 = vpack.c.b16 %v1037, %v1037
        %v1054 = vpack.c.b16 %v1038, %v1038
        %v1055 = vpack.c.b16 %v1039, %v1039
        %v1056 = vpack.c.b16 %v1040, %v1040
        %v1057 = vpack.c.b16 %v1041, %v1041
        %v1058 = vpack.c.b16 %v1042, %v1042
        %v1059 = vpack.c.b16 %v1043, %v1043
        %v1060 = vpack.c.b16 %v1044, %v1044
        %v1061 = vpack.c.b16 %v1045, %v1045
        %v1062 = vpack.c.b16 %v1046, %v1046
        %v1063 = vpack.c.b16 %v1047, %v1047
        %v1064 = vpack.c.b16 %v1048, %v1048
        %v1065 = vpack.c.b16 %v1049, %v1049
        %v1066 = vpack.c.b16 %v1050, %v1050
        %v1067 = vpack.c.b16 %v1051, %v1051
        %v1068 = vpack.c.b16 %v1052, %v1052
        %1085 = vst [vmem:[%s282] sm:$0xf] %v1053
        %1086 = vst [vmem:[%s282 + $0x4] sm:$0xf] %v1054
        %1087 = vst [vmem:[%s282 + $0x8] sm:$0xf] %v1055
        %1088 = vst [vmem:[%s282 + $0xc] sm:$0xf] %v1056
        %1089 = vst [vmem:[%s282 + $0x10] sm:$0xf] %v1057
        %1090 = vst [vmem:[%s282 + $0x14] sm:$0xf] %v1058
        %1091 = vst [vmem:[%s282 + $0x18] sm:$0xf] %v1059
        %1092 = vst [vmem:[%s282 + $0x1c] sm:$0xf] %v1060
        %1093 = vst [vmem:[%s282 + $0x20] sm:$0xf] %v1061
        %1094 = vst [vmem:[%s282 + $0x24] sm:$0xf] %v1062
        %1095 = vst [vmem:[%s282 + $0x28] sm:$0xf] %v1063
        %1096 = vst [vmem:[%s282 + $0x2c] sm:$0xf] %v1064
        %1097 = vst [vmem:[%s282 + $0x30] sm:$0xf] %v1065
        %1098 = vst [vmem:[%s282 + $0x34] sm:$0xf] %v1066
        %1099 = vst [vmem:[%s282 + $0x38] sm:$0xf] %v1067
        %1100 = vst [vmem:[%s282 + $0x3c] sm:$0xf] %v1068
        %v1101 = vadd.f32 %v1005, %v1006
        %v1102 = vadd.f32 %v1101, %v1007
        %v1103 = vadd.f32 %v1102, %v1008
        %v1104 = vadd.f32 %v1103, %v1009
        %v1105 = vadd.f32 %v1104, %v1010
        %v1106 = vadd.f32 %v1105, %v1011
        %v1107 = vadd.f32 %v1106, %v1012
        %v1108 = vadd.f32 %v1107, %v1013
        %v1109 = vadd.f32 %v1108, %v1014
        %v1110 = vadd.f32 %v1109, %v1015
        %v1111 = vadd.f32 %v1110, %v1016
        %v1112 = vadd.f32 %v1111, %v1017
        %v1113 = vadd.f32 %v1112, %v1018
        %v1114 = vadd.f32 %v1113, %v1019
        %v1115 = vadd.f32 %v1114, %v1020
        %v1116 = vrot.slane %v1115, 4
        %v1117 = vadd.f32 %v1115, %v1116
        %v1118 = vrot.slane %v1117, 2
        %v1119 = vadd.f32 %v1117, %v1118
        %v1120 = vrot.slane %v1119, 1
        %v1121 = vadd.f32 %v1119, %v1120
        %v1122 = vmul.f32 %v1005, %v1005
        %v1123 = vmul.f32 %v1006, %v1006
        %v1124 = vmul.f32 %v1007, %v1007
        %v1125 = vmul.f32 %v1008, %v1008
        %v1126 = vmul.f32 %v1009, %v1009
        %v1127 = vmul.f32 %v1010, %v1010
        %v1128 = vmul.f32 %v1011, %v1011
        %v1129 = vmul.f32 %v1012, %v1012
        %v1130 = vmul.f32 %v1013, %v1013
        %v1131 = vmul.f32 %v1014, %v1014
        %v1132 = vmul.f32 %v1015, %v1015
        %v1133 = vmul.f32 %v1016, %v1016
        %v1134 = vmul.f32 %v1017, %v1017
        %v1135 = vmul.f32 %v1018, %v1018
        %v1136 = vmul.f32 %v1019, %v1019
        %v1137 = vmul.f32 %v1020, %v1020
        %v1138 = vadd.f32 %v1122, %v1123
        %v1139 = vadd.f32 %v1138, %v1124
        %v1140 = vadd.f32 %v1139, %v1125
        %v1141 = vadd.f32 %v1140, %v1126
        %v1142 = vadd.f32 %v1141, %v1127
        %v1143 = vadd.f32 %v1142, %v1128
        %v1144 = vadd.f32 %v1143, %v1129
        %v1145 = vadd.f32 %v1144, %v1130
        %v1146 = vadd.f32 %v1145, %v1131
        %v1147 = vadd.f32 %v1146, %v1132
        %v1148 = vadd.f32 %v1147, %v1133
        %v1149 = vadd.f32 %v1148, %v1134
        %v1150 = vadd.f32 %v1149, %v1135
        %v1151 = vadd.f32 %v1150, %v1136
        %v1152 = vadd.f32 %v1151, %v1137
        %v1153 = vrot.slane %v1152, 4
        %v1154 = vadd.f32 %v1152, %v1153
        %v1155 = vrot.slane %v1154, 2
        %v1156 = vadd.f32 %v1154, %v1155
        %v1157 = vrot.slane %v1156, 1
        %v1158 = vadd.f32 %v1156, %v1157
        %vm1159 = vcmask 1040384
        %v1160 = vsel %vm1159, %v1121, %v1158
        %vm1161 = vcmask 1041408
        %v1162 = vsel %vm1161, %v1160, 0.0
        %1163 = vst [vmem:[%s290] sm:$0xff] %v1162
      $region36: #{topdown_generator_forward.13} parent=27 // pred_fallthru
        _
      %s1164 = smul.u32 16, %s21
      %p1165 = scmp.lt.s32.totalorder %s20, 3
      %s1166 = scalar_select %p1165, %s20, 3
      %p1167 = scmp.lt.s32.totalorder %s1164, 15
      %s1168 = scalar_select %p1167, %s1164, 15
      %s1169 = smul.addr %s1166, 16
      %s1170 = sadd.s32 %s1168, %s1169
      %s1171 = smul.addr %s1170, 4
      %s1172 = scalar_lea.vmem %s2, %s1171
      %p1173 = scmp.lt.s32.totalorder %s20, 3
      %s1174 = scalar_select %p1173, %s20, 3
      %p1175 = scmp.lt.s32.totalorder %s21, 0
      %s1176 = scalar_select %p1175, %s21, 0
      %s1177 = sadd.s32 %s1176, %s1174
      %s1178 = smul.addr %s1177, 8
      %s1179 = scalar_lea.vmem %s3, %s1178
      // Predicated region
      $region37: #{topdown_generator_forward.13} parent=27 // pred_check
        %p1180 = pneg %p112
      $region38: #{topdown_generator_forward.13} parent=27 // pred_check_branch
        %1182 = sbr.rel (%p1180) target = $region40
      $region39: #{topdown_generator_forward.13} parent=27 // pred_region
        %s1183 = smul.u32 16, %s21
      $region40: #{topdown_generator_forward.13} parent=27 // pred_fallthru
        _
      // Predicated region
      $region41: #{topdown_generator_forward.13} parent=27 // pred_check
        %p1184 = pneg %p140
      $region42: #{topdown_generator_forward.13} parent=27 // pred_check_branch
        %1186 = sbr.rel (%p1184) target = $region44
      $region43: #{topdown_generator_forward.13} parent=27 // pred_region
        _
      $region44: #{topdown_generator_forward.13} parent=27 // pred_fallthru
        _
    $region28: #{topdown_generator_forward.13} parent=5 // pred_fallthru
      _
    %p1187 = scmp.le.s32.totalorder 2, %s10
    // Predicated region
    $region45: #{topdown_generator_forward.13} parent=5 // pred_check
      %p1188 = pneg %p1187
    $region46: #{topdown_generator_forward.13} parent=5 // pred_check_branch
      %1190 = sbr.rel (%p1188) target = $region48
    $region47: #{topdown_generator_forward.13} parent=5 // pred_region
      %s1191 = ssub.s32 %s10, 2
      // Predicated region
      $region49: #{topdown_generator_forward.13} parent=47 // pred_check
        %p1192 = pneg %p118
      $region50: #{topdown_generator_forward.13} parent=47 // pred_check_branch
        %1194 = sbr.rel (%p1192) target = $region52
      $region51: #{topdown_generator_forward.13} parent=47 // pred_region
        %s1195 = smul.u32 16, %s24
        %p1196 = scmp.lt.s32.totalorder %s23, 3
        %s1197 = scalar_select %p1196, %s23, 3
        %p1198 = scmp.lt.s32.totalorder %s1195, 15
        %s1199 = scalar_select %p1198, %s1195, 15
        %s1200 = smul.addr %s1197, 16
        %s1201 = sadd.s32 %s1199, %s1200
        %s1202 = smul.addr %s1201, 4
        %s1203 = scalar_lea.vmem %s2, %s1202
      $region52: #{topdown_generator_forward.13} parent=47 // pred_fallthru
        _
      // Predicated region
      $region53: #{topdown_generator_forward.13} parent=47 // pred_check
        %p1204 = pneg %p146
      $region54: #{topdown_generator_forward.13} parent=47 // pred_check_branch
        %1206 = sbr.rel (%p1204) target = $region56
      $region55: #{topdown_generator_forward.13} parent=47 // pred_region
        %p1207 = scmp.lt.s32.totalorder %s23, 3
        %s1208 = scalar_select %p1207, %s23, 3
        %p1209 = scmp.lt.s32.totalorder %s24, 0
        %s1210 = scalar_select %p1209, %s24, 0
        %s1211 = sadd.s32 %s1210, %s1208
        %s1212 = smul.addr %s1211, 8
        %s1213 = scalar_lea.vmem %s3, %s1212
      $region56: #{topdown_generator_forward.13} parent=47 // pred_fallthru
        _
    $region48: #{topdown_generator_forward.13} parent=5 // pred_fallthru
      _
  $region6: #{topdown_generator_forward.13} parent=0 // loop_footer
    %s14 = sadd.s32 1, %s10
  $region7: #{topdown_generator_forward.13} parent=0 // loop_footer_branch
    %9 = sbr.rel target = $region3
  $region8: #{topdown_generator_forward.13} parent=0 // loop_exit
    _

// kernel: topdown_generator_forward.14
$region0: #{topdown_generator_forward.14}
  #allocation0 [shape = 'u32[]', space=smem, size = 0x4, offset = 0x4, fixed_abs, tag = 'smem constant byte address 0x4 - core index']
  #allocation1 [shape = 'u32[144,128]{1,0:T(1,128)}', space=vmem, size = 0x12000, scoped, tag = 'internal scratch']
  %s0 = inlined_call_operand.vmem [shape: bf16[512,128], index: 0, kind: input, shape index: {}]
  %s1 = inlined_call_operand.vmem [shape: f32[1,128], index: 1, kind: input, shape index: {}]
  %s2 = inlined_call_operand.vmem [shape: f32[1,128], index: 2, kind: input, shape index: {}]
  %s3 = inlined_call_operand.vmem [shape: bf16[512,128], index: 3, kind: output, shape index: {}]
  %s4 = sld [smem:[#allocation0]]
  $region22: #{topdown_generator_forward.14} parent=0
    _
  %s6 = ssub.s32 1, %s4
  %s7 = scalar_select 0, %s6, %s4
  // Predicated region
  $region2: #{topdown_generator_forward.14} parent=0 // pred_check
    _
  $region3: #{topdown_generator_forward.14} parent=0 // pred_check_branch
    %9 = sbr.rel (0) target = $region5
  $region4: #{topdown_generator_forward.14} parent=0 // pred_region
    _
  $region5: #{topdown_generator_forward.14} parent=0 // pred_fallthru
    _
  // Predicated region
  $region6: #{topdown_generator_forward.14} parent=0 // pred_check
    _
  $region7: #{topdown_generator_forward.14} parent=0 // pred_check_branch
    %11 = sbr.rel (0) target = $region9
  $region8: #{topdown_generator_forward.14} parent=0 // pred_region
    _
  $region9: #{topdown_generator_forward.14} parent=0 // pred_fallthru
    _
  // Predicated region
  $region10: #{topdown_generator_forward.14} parent=0 // pred_check
    _
  $region11: #{topdown_generator_forward.14} parent=0 // pred_check_branch
    %13 = sbr.rel (0) target = $region13
  $region12: #{topdown_generator_forward.14} parent=0 // pred_region
    _
  $region13: #{topdown_generator_forward.14} parent=0 // pred_fallthru
    _
  %v14 = vld [vmem:[%s0] sm:$0xf]
  %v15 = vld [vmem:[%s0 + $0x4] sm:$0xf]
  %v16 = vld [vmem:[%s0 + $0x8] sm:$0xf]
  %v17 = vld [vmem:[%s0 + $0xc] sm:$0xf]
  %v18 = vld [vmem:[%s0 + $0x10] sm:$0xf]
  %v19 = vld [vmem:[%s0 + $0x14] sm:$0xf]
  %v20 = vld [vmem:[%s0 + $0x18] sm:$0xf]
  %v21 = vld [vmem:[%s0 + $0x1c] sm:$0xf]
  %v22 = vld [vmem:[%s0 + $0x20] sm:$0xf]
  %v23 = vld [vmem:[%s0 + $0x24] sm:$0xf]
  %v24 = vld [vmem:[%s0 + $0x28] sm:$0xf]
  %v25 = vld [vmem:[%s0 + $0x2c] sm:$0xf]
  %v26 = vld [vmem:[%s0 + $0x30] sm:$0xf]
  %v27 = vld [vmem:[%s0 + $0x34] sm:$0xf]
  %v28 = vld [vmem:[%s0 + $0x38] sm:$0xf]
  %v29 = vld [vmem:[%s0 + $0x3c] sm:$0xf]
  %v30 = vld [vmem:[%s0 + $0x40] sm:$0xf]
  %v31 = vld [vmem:[%s0 + $0x44] sm:$0xf]
  %v32 = vld [vmem:[%s0 + $0x48] sm:$0xf]
  %v33 = vld [vmem:[%s0 + $0x4c] sm:$0xf]
  %v34 = vld [vmem:[%s0 + $0x50] sm:$0xf]
  %v35 = vld [vmem:[%s0 + $0x54] sm:$0xf]
  %v36 = vld [vmem:[%s0 + $0x58] sm:$0xf]
  %v37 = vld [vmem:[%s0 + $0x5c] sm:$0xf]
  %v38 = vld [vmem:[%s0 + $0x60] sm:$0xf]
  %v39 = vld [vmem:[%s0 + $0x64] sm:$0xf]
  %v40 = vld [vmem:[%s0 + $0x68] sm:$0xf]
  %v41 = vld [vmem:[%s0 + $0x6c] sm:$0xf]
  %v42 = vld [vmem:[%s0 + $0x70] sm:$0xf]
  %v43 = vld [vmem:[%s0 + $0x74] sm:$0xf]
  %v44 = vld [vmem:[%s0 + $0x78] sm:$0xf]
  %v45 = vld [vmem:[%s0 + $0x7c] sm:$0xf]
  %v46 = vld [vmem:[%s0 + $0x80] sm:$0xf]
  %v47 = vld [vmem:[%s0 + $0x84] sm:$0xf]
  %v48 = vld [vmem:[%s0 + $0x88] sm:$0xf]
  %v49 = vld [vmem:[%s0 + $0x8c] sm:$0xf]
  %v50 = vld [vmem:[%s0 + $0x90] sm:$0xf]
  %v51 = vld [vmem:[%s0 + $0x94] sm:$0xf]
  %v52 = vld [vmem:[%s0 + $0x98] sm:$0xf]
  %v53 = vld [vmem:[%s0 + $0x9c] sm:$0xf]
  %v54 = vld [vmem:[%s0 + $0xa0] sm:$0xf]
  %v55 = vld [vmem:[%s0 + $0xa4] sm:$0xf]
  %v56 = vld [vmem:[%s0 + $0xa8] sm:$0xf]
  %v57 = vld [vmem:[%s0 + $0xac] sm:$0xf]
  %v58 = vld [vmem:[%s0 + $0xb0] sm:$0xf]
  %v59 = vld [vmem:[%s0 + $0xb4] sm:$0xf]
  %v60 = vld [vmem:[%s0 + $0xb8] sm:$0xf]
  %v61 = vld [vmem:[%s0 + $0xbc] sm:$0xf]
  %v62 = vld [vmem:[%s0 + $0xc0] sm:$0xf]
  %v63 = vld [vmem:[%s0 + $0xc4] sm:$0xf]
  %v64 = vld [vmem:[%s0 + $0xc8] sm:$0xf]
  %v65 = vld [vmem:[%s0 + $0xcc] sm:$0xf]
  %v66 = vld [vmem:[%s0 + $0xd0] sm:$0xf]
  %v67 = vld [vmem:[%s0 + $0xd4] sm:$0xf]
  %v68 = vld [vmem:[%s0 + $0xd8] sm:$0xf]
  %v69 = vld [vmem:[%s0 + $0xdc] sm:$0xf]
  %v70 = vld [vmem:[%s0 + $0xe0] sm:$0xf]
  %v71 = vld [vmem:[%s0 + $0xe4] sm:$0xf]
  %v72 = vld [vmem:[%s0 + $0xe8] sm:$0xf]
  %v73 = vld [vmem:[%s0 + $0xec] sm:$0xf]
  %v74 = vld [vmem:[%s0 + $0xf0] sm:$0xf]
  %v75 = vld [vmem:[%s0 + $0xf4] sm:$0xf]
  %v76 = vld [vmem:[%s0 + $0xf8] sm:$0xf]
  %v77 = vld [vmem:[%s0 + $0xfc] sm:$0xf]
  %v78 = vunpack.c.l.bf16 %v14
  %v79 = vunpack.c.l.bf16 %v15
  %v80 = vunpack.c.l.bf16 %v16
  %v81 = vunpack.c.l.bf16 %v17
  %v82 = vunpack.c.l.bf16 %v18
  %v83 = vunpack.c.l.bf16 %v19
  %v84 = vunpack.c.l.bf16 %v20
  %v85 = vunpack.c.l.bf16 %v21
  %v86 = vunpack.c.l.bf16 %v22
  %v87 = vunpack.c.l.bf16 %v23
  %v88 = vunpack.c.l.bf16 %v24
  %v89 = vunpack.c.l.bf16 %v25
  %v90 = vunpack.c.l.bf16 %v26
  %v91 = vunpack.c.l.bf16 %v27
  %v92 = vunpack.c.l.bf16 %v28
  %v93 = vunpack.c.l.bf16 %v29
  %v94 = vunpack.c.l.bf16 %v30
  %v95 = vunpack.c.l.bf16 %v31
  %v96 = vunpack.c.l.bf16 %v32
  %v97 = vunpack.c.l.bf16 %v33
  %v98 = vunpack.c.l.bf16 %v34
  %v99 = vunpack.c.l.bf16 %v35
  %v100 = vunpack.c.l.bf16 %v36
  %v101 = vunpack.c.l.bf16 %v37
  %v102 = vunpack.c.l.bf16 %v38
  %v103 = vunpack.c.l.bf16 %v39
  %v104 = vunpack.c.l.bf16 %v40
  %v105 = vunpack.c.l.bf16 %v41
  %v106 = vunpack.c.l.bf16 %v42
  %v107 = vunpack.c.l.bf16 %v43
  %v108 = vunpack.c.l.bf16 %v44
  %v109 = vunpack.c.l.bf16 %v45
  %v110 = vunpack.c.l.bf16 %v46
  %v111 = vunpack.c.l.bf16 %v47
  %v112 = vunpack.c.l.bf16 %v48
  %v113 = vunpack.c.l.bf16 %v49
  %v114 = vunpack.c.l.bf16 %v50
  %v115 = vunpack.c.l.bf16 %v51
  %v116 = vunpack.c.l.bf16 %v52
  %v117 = vunpack.c.l.bf16 %v53
  %v118 = vunpack.c.l.bf16 %v54
  %v119 = vunpack.c.l.bf16 %v55
  %v120 = vunpack.c.l.bf16 %v56
  %v121 = vunpack.c.l.bf16 %v57
  %v122 = vunpack.c.l.bf16 %v58
  %v123 = vunpack.c.l.bf16 %v59
  %v124 = vunpack.c.l.bf16 %v60
  %v125 = vunpack.c.l.bf16 %v61
  %v126 = vunpack.c.l.bf16 %v62
  %v127 = vunpack.c.l.bf16 %v63
  %v128 = vunpack.c.l.bf16 %v64
  %v129 = vunpack.c.l.bf16 %v65
  %v130 = vunpack.c.l.bf16 %v66
  %v131 = vunpack.c.l.bf16 %v67
  %v132 = vunpack.c.l.bf16 %v68
  %v133 = vunpack.c.l.bf16 %v69
  %v134 = vunpack.c.l.bf16 %v70
  %v135 = vunpack.c.l.bf16 %v71
  %v136 = vunpack.c.l.bf16 %v72
  %v137 = vunpack.c.l.bf16 %v73
  %v138 = vunpack.c.l.bf16 %v74
  %v139 = vunpack.c.l.bf16 %v75
  %v140 = vunpack.c.l.bf16 %v76
  %v141 = vunpack.c.l.bf16 %v77
  %v142 = vld [vmem:[%s1] sm:$0x1]
  %v144 = vlaneseq
  %v145 = vshrl.u32 %v144, 7
  %v146 = vsub.s32 0, %v145
  %v147 = vrot.slane %v142, %v146
  %v149 = vmul.f32 %v78, %v147
  %v150 = vmul.f32 %v79, %v147
  %v151 = vmul.f32 %v80, %v147
  %v152 = vmul.f32 %v81, %v147
  %v153 = vmul.f32 %v82, %v147
  %v154 = vmul.f32 %v83, %v147
  %v155 = vmul.f32 %v84, %v147
  %v156 = vmul.f32 %v85, %v147
  %v157 = vmul.f32 %v86, %v147
  %v158 = vmul.f32 %v87, %v147
  %v159 = vmul.f32 %v88, %v147
  %v160 = vmul.f32 %v89, %v147
  %v161 = vmul.f32 %v90, %v147
  %v162 = vmul.f32 %v91, %v147
  %v163 = vmul.f32 %v92, %v147
  %v164 = vmul.f32 %v93, %v147
  %v165 = vmul.f32 %v94, %v147
  %v166 = vmul.f32 %v95, %v147
  %v167 = vmul.f32 %v96, %v147
  %v168 = vmul.f32 %v97, %v147
  %v169 = vmul.f32 %v98, %v147
  %v170 = vmul.f32 %v99, %v147
  %v171 = vmul.f32 %v100, %v147
  %v172 = vmul.f32 %v101, %v147
  %v173 = vmul.f32 %v102, %v147
  %v174 = vmul.f32 %v103, %v147
  %v175 = vmul.f32 %v104, %v147
  %v176 = vmul.f32 %v105, %v147
  %v177 = vmul.f32 %v106, %v147
  %v178 = vmul.f32 %v107, %v147
  %v179 = vmul.f32 %v108, %v147
  %v180 = vmul.f32 %v109, %v147
  %v181 = vmul.f32 %v110, %v147
  %v182 = vmul.f32 %v111, %v147
  %v183 = vmul.f32 %v112, %v147
  %v184 = vmul.f32 %v113, %v147
  %v185 = vmul.f32 %v114, %v147
  %v186 = vmul.f32 %v115, %v147
  %v187 = vmul.f32 %v116, %v147
  %v188 = vmul.f32 %v117, %v147
  %v189 = vmul.f32 %v118, %v147
  %v190 = vmul.f32 %v119, %v147
  %v191 = vmul.f32 %v120, %v147
  %v192 = vmul.f32 %v121, %v147
  %v193 = vmul.f32 %v122, %v147
  %v194 = vmul.f32 %v123, %v147
  %v195 = vmul.f32 %v124, %v147
  %v196 = vmul.f32 %v125, %v147
  %v197 = vmul.f32 %v126, %v147
  %v198 = vmul.f32 %v127, %v147
  %v199 = vmul.f32 %v128, %v147
  %v200 = vmul.f32 %v129, %v147
  %v201 = vmul.f32 %v130, %v147
  %v202 = vmul.f32 %v131, %v147
  %v203 = vmul.f32 %v132, %v147
  %v204 = vmul.f32 %v133, %v147
  %v205 = vmul.f32 %v134, %v147
  %v206 = vmul.f32 %v135, %v147
  %v207 = vmul.f32 %v136, %v147
  %v208 = vmul.f32 %v137, %v147
  %v209 = vmul.f32 %v138, %v147
  %v210 = vmul.f32 %v139, %v147
  %v211 = vmul.f32 %v140, %v147
  %v212 = vmul.f32 %v141, %v147
  %v213 = vld [vmem:[%s2] sm:$0x1]
  %v215 = vlaneseq
  %v216 = vshrl.u32 %v215, 7
  %v217 = vsub.s32 0, %v216
  %v218 = vrot.slane %v213, %v217
  %v220 = vadd.f32 %v149, %v218
  %v221 = vadd.f32 %v150, %v218
  %v222 = vadd.f32 %v151, %v218
  %v223 = vadd.f32 %v152, %v218
  %v224 = vadd.f32 %v153, %v218
  %v225 = vadd.f32 %v154, %v218
  %v226 = vadd.f32 %v155, %v218
  %v227 = vadd.f32 %v156, %v218
  %v228 = vadd.f32 %v157, %v218
  %v229 = vadd.f32 %v158, %v218
  %v230 = vadd.f32 %v159, %v218
  %v231 = vadd.f32 %v160, %v218
  %v232 = vadd.f32 %v161, %v218
  %v233 = vadd.f32 %v162, %v218
  %v234 = vadd.f32 %v163, %v218
  %v235 = vadd.f32 %v164, %v218
  %v236 = vadd.f32 %v165, %v218
  %v237 = vadd.f32 %v166, %v218
  %v238 = vadd.f32 %v167, %v218
  %v239 = vadd.f32 %v168, %v218
  %v240 = vadd.f32 %v169, %v218
  %v241 = vadd.f32 %v170, %v218
  %v242 = vadd.f32 %v171, %v218
  %v243 = vadd.f32 %v172, %v218
  %v244 = vadd.f32 %v173, %v218
  %v245 = vadd.f32 %v174, %v218
  %v246 = vadd.f32 %v175, %v218
  %v247 = vadd.f32 %v176, %v218
  %v248 = vadd.f32 %v177, %v218
  %v249 = vadd.f32 %v178, %v218
  %v250 = vadd.f32 %v179, %v218
  %v251 = vadd.f32 %v180, %v218
  %v252 = vadd.f32 %v181, %v218
  %v253 = vadd.f32 %v182, %v218
  %v254 = vadd.f32 %v183, %v218
  %v255 = vadd.f32 %v184, %v218
  %v256 = vadd.f32 %v185, %v218
  %v257 = vadd.f32 %v186, %v218
  %v258 = vadd.f32 %v187, %v218
  %v259 = vadd.f32 %v188, %v218
  %v260 = vadd.f32 %v189, %v218
  %v261 = vadd.f32 %v190, %v218
  %v262 = vadd.f32 %v191, %v218
  %v263 = vadd.f32 %v192, %v218
  %v264 = vadd.f32 %v193, %v218
  %v265 = vadd.f32 %v194, %v218
  %v266 = vadd.f32 %v195, %v218
  %v267 = vadd.f32 %v196, %v218
  %v268 = vadd.f32 %v197, %v218
  %v269 = vadd.f32 %v198, %v218
  %v270 = vadd.f32 %v199, %v218
  %v271 = vadd.f32 %v200, %v218
  %v272 = vadd.f32 %v201, %v218
  %v273 = vadd.f32 %v202, %v218
  %v274 = vadd.f32 %v203, %v218
  %v275 = vadd.f32 %v204, %v218
  %v276 = vadd.f32 %v205, %v218
  %v277 = vadd.f32 %v206, %v218
  %v278 = vadd.f32 %v207, %v218
  %v279 = vadd.f32 %v208, %v218
  %v280 = vadd.f32 %v209, %v218
  %v281 = vadd.f32 %v210, %v218
  %v282 = vadd.f32 %v211, %v218
  %v283 = vadd.f32 %v212, %v218
  %v284 = vmax.f32 %v220, 0.0
  %v285 = vmax.f32 %v221, 0.0
  %v286 = vmax.f32 %v222, 0.0
  %v287 = vmax.f32 %v223, 0.0
  %v288 = vmax.f32 %v224, 0.0
  %v289 = vmax.f32 %v225, 0.0
  %v290 = vmax.f32 %v226, 0.0
  %v291 = vmax.f32 %v227, 0.0
  %v292 = vmax.f32 %v228, 0.0
  %v293 = vmax.f32 %v229, 0.0
  %v294 = vmax.f32 %v230, 0.0
  %v295 = vmax.f32 %v231, 0.0
  %v296 = vmax.f32 %v232, 0.0
  %v297 = vmax.f32 %v233, 0.0
  %v298 = vmax.f32 %v234, 0.0
  %v299 = vmax.f32 %v235, 0.0
  %v300 = vmax.f32 %v236, 0.0
  %v301 = vmax.f32 %v237, 0.0
  %v302 = vmax.f32 %v238, 0.0
  %v303 = vmax.f32 %v239, 0.0
  %v304 = vmax.f32 %v240, 0.0
  %v305 = vmax.f32 %v241, 0.0
  %v306 = vmax.f32 %v242, 0.0
  %v307 = vmax.f32 %v243, 0.0
  %v308 = vmax.f32 %v244, 0.0
  %v309 = vmax.f32 %v245, 0.0
  %v310 = vmax.f32 %v246, 0.0
  %v311 = vmax.f32 %v247, 0.0
  %v312 = vmax.f32 %v248, 0.0
  %v313 = vmax.f32 %v249, 0.0
  %v314 = vmax.f32 %v250, 0.0
  %v315 = vmax.f32 %v251, 0.0
  %v316 = vmax.f32 %v252, 0.0
  %v317 = vmax.f32 %v253, 0.0
  %v318 = vmax.f32 %v254, 0.0
  %v319 = vmax.f32 %v255, 0.0
  %v320 = vmax.f32 %v256, 0.0
  %v321 = vmax.f32 %v257, 0.0
  %v322 = vmax.f32 %v258, 0.0
  %v323 = vmax.f32 %v259, 0.0
  %v324 = vmax.f32 %v260, 0.0
  %v325 = vmax.f32 %v261, 0.0
  %v326 = vmax.f32 %v262, 0.0
  %v327 = vmax.f32 %v263, 0.0
  %v328 = vmax.f32 %v264, 0.0
  %v329 = vmax.f32 %v265, 0.0
  %v330 = vmax.f32 %v266, 0.0
  %v331 = vmax.f32 %v267, 0.0
  %v332 = vmax.f32 %v268, 0.0
  %v333 = vmax.f32 %v269, 0.0
  %v334 = vmax.f32 %v270, 0.0
  %v335 = vmax.f32 %v271, 0.0
  %v336 = vmax.f32 %v272, 0.0
  %v337 = vmax.f32 %v273, 0.0
  %v338 = vmax.f32 %v274, 0.0
  %v339 = vmax.f32 %v275, 0.0
  %v340 = vmax.f32 %v276, 0.0
  %v341 = vmax.f32 %v277, 0.0
  %v342 = vmax.f32 %v278, 0.0
  %v343 = vmax.f32 %v279, 0.0
  %v344 = vmax.f32 %v280, 0.0
  %v345 = vmax.f32 %v281, 0.0
  %v346 = vmax.f32 %v282, 0.0
  %v347 = vmax.f32 %v283, 0.0
  %v348 = vpack.c.bf16 %v285, %v284
  %v349 = vpack.c.bf16 %v287, %v286
  %v350 = vpack.c.bf16 %v289, %v288
  %v351 = vpack.c.bf16 %v291, %v290
  %v352 = vpack.c.bf16 %v293, %v292
  %v353 = vpack.c.bf16 %v295, %v294
  %v354 = vpack.c.bf16 %v297, %v296
  %v355 = vpack.c.bf16 %v299, %v298
  %v356 = vpack.c.bf16 %v301, %v300
  %v357 = vpack.c.bf16 %v303, %v302
  %v358 = vpack.c.bf16 %v305, %v304
  %v359 = vpack.c.bf16 %v307, %v306
  %v360 = vpack.c.bf16 %v309, %v308
  %v361 = vpack.c.bf16 %v311, %v310
  %v362 = vpack.c.bf16 %v313, %v312
  %v363 = vpack.c.bf16 %v315, %v314
  %v364 = vpack.c.bf16 %v317, %v316
  %v365 = vpack.c.bf16 %v319, %v318
  %v366 = vpack.c.bf16 %v321, %v320
  %v367 = vpack.c.bf16 %v323, %v322
  %v368 = vpack.c.bf16 %v325, %v324
  %v369 = vpack.c.bf16 %v327, %v326
  %v370 = vpack.c.bf16 %v329, %v328
  %v371 = vpack.c.bf16 %v331, %v330
  %v372 = vpack.c.bf16 %v333, %v332
  %v373 = vpack.c.bf16 %v335, %v334
  %v374 = vpack.c.bf16 %v337, %v336
  %v375 = vpack.c.bf16 %v339, %v338
  %v376 = vpack.c.bf16 %v341, %v340
  %v377 = vpack.c.bf16 %v343, %v342
  %v378 = vpack.c.bf16 %v345, %v344
  %v379 = vpack.c.bf16 %v347, %v346
  %v412 = vunpack.c.l.b16 %v348
  %v413 = vunpack.c.h.b16 %v348
  %v414 = vunpack.c.l.b16 %v349
  %v415 = vunpack.c.h.b16 %v349
  %v416 = vunpack.c.l.b16 %v350
  %v417 = vunpack.c.h.b16 %v350
  %v418 = vunpack.c.l.b16 %v351
  %v419 = vunpack.c.h.b16 %v351
  %v420 = vunpack.c.l.b16 %v352
  %v421 = vunpack.c.h.b16 %v352
  %v422 = vunpack.c.l.b16 %v353
  %v423 = vunpack.c.h.b16 %v353
  %v424 = vunpack.c.l.b16 %v354
  %v425 = vunpack.c.h.b16 %v354
  %v426 = vunpack.c.l.b16 %v355
  %v427 = vunpack.c.h.b16 %v355
  %v428 = vunpack.c.l.b16 %v356
  %v429 = vunpack.c.h.b16 %v356
  %v430 = vunpack.c.l.b16 %v357
  %v431 = vunpack.c.h.b16 %v357
  %v432 = vunpack.c.l.b16 %v358
  %v433 = vunpack.c.h.b16 %v358
  %v434 = vunpack.c.l.b16 %v359
  %v435 = vunpack.c.h.b16 %v359
  %v436 = vunpack.c.l.b16 %v360
  %v437 = vunpack.c.h.b16 %v360
  %v438 = vunpack.c.l.b16 %v361
  %v439 = vunpack.c.h.b16 %v361
  %v440 = vunpack.c.l.b16 %v362
  %v441 = vunpack.c.h.b16 %v362
  %v442 = vunpack.c.l.b16 %v363
  %v443 = vunpack.c.h.b16 %v363
  %v444 = vunpack.c.l.b16 %v364
  %v445 = vunpack.c.h.b16 %v364
  %v446 = vunpack.c.l.b16 %v365
  %v447 = vunpack.c.h.b16 %v365
  %v448 = vunpack.c.l.b16 %v366
  %v449 = vunpack.c.h.b16 %v366
  %v450 = vunpack.c.l.b16 %v367
  %v451 = vunpack.c.h.b16 %v367
  %v452 = vunpack.c.l.b16 %v368
  %v453 = vunpack.c.h.b16 %v368
  %v454 = vunpack.c.l.b16 %v369
  %v455 = vunpack.c.h.b16 %v369
  %v456 = vunpack.c.l.b16 %v370
  %v457 = vunpack.c.h.b16 %v370
  %v458 = vunpack.c.l.b16 %v371
  %v459 = vunpack.c.h.b16 %v371
  %v460 = vunpack.c.l.b16 %v372
  %v461 = vunpack.c.h.b16 %v372
  %v462 = vunpack.c.l.b16 %v373
  %v463 = vunpack.c.h.b16 %v373
  %v464 = vunpack.c.l.b16 %v374
  %v465 = vunpack.c.h.b16 %v374
  %v466 = vunpack.c.l.b16 %v375
  %v467 = vunpack.c.h.b16 %v375
  %v468 = vunpack.c.l.b16 %v376
  %v469 = vunpack.c.h.b16 %v376
  %v470 = vunpack.c.l.b16 %v377
  %v471 = vunpack.c.h.b16 %v377
  %v472 = vunpack.c.l.b16 %v378
  %v473 = vunpack.c.h.b16 %v378
  %v474 = vunpack.c.l.b16 %v379
  %v475 = vunpack.c.h.b16 %v379
  %v476 = vpack.c.b16 %v412, %v412
  %v477 = vpack.c.b16 %v413, %v413
  %v478 = vpack.c.b16 %v414, %v414
  %v479 = vpack.c.b16 %v415, %v415
  %v480 = vpack.c.b16 %v416, %v416
  %v481 = vpack.c.b16 %v417, %v417
  %v482 = vpack.c.b16 %v418, %v418
  %v483 = vpack.c.b16 %v419, %v419
  %v484 = vpack.c.b16 %v420, %v420
  %v485 = vpack.c.b16 %v421, %v421
  %v486 = vpack.c.b16 %v422, %v422
  %v487 = vpack.c.b16 %v423, %v423
  %v488 = vpack.c.b16 %v424, %v424
  %v489 = vpack.c.b16 %v425, %v425
  %v490 = vpack.c.b16 %v426, %v426
  %v491 = vpack.c.b16 %v427, %v427
  %v492 = vpack.c.b16 %v428, %v428
  %v493 = vpack.c.b16 %v429, %v429
  %v494 = vpack.c.b16 %v430, %v430
  %v495 = vpack.c.b16 %v431, %v431
  %v496 = vpack.c.b16 %v432, %v432
  %v497 = vpack.c.b16 %v433, %v433
  %v498 = vpack.c.b16 %v434, %v434
  %v499 = vpack.c.b16 %v435, %v435
  %v500 = vpack.c.b16 %v436, %v436
  %v501 = vpack.c.b16 %v437, %v437
  %v502 = vpack.c.b16 %v438, %v438
  %v503 = vpack.c.b16 %v439, %v439
  %v504 = vpack.c.b16 %v440, %v440
  %v505 = vpack.c.b16 %v441, %v441
  %v506 = vpack.c.b16 %v442, %v442
  %v507 = vpack.c.b16 %v443, %v443
  %v508 = vpack.c.b16 %v444, %v444
  %v509 = vpack.c.b16 %v445, %v445
  %v510 = vpack.c.b16 %v446, %v446
  %v511 = vpack.c.b16 %v447, %v447
  %v512 = vpack.c.b16 %v448, %v448
  %v513 = vpack.c.b16 %v449, %v449
  %v514 = vpack.c.b16 %v450, %v450
  %v515 = vpack.c.b16 %v451, %v451
  %v516 = vpack.c.b16 %v452, %v452
  %v517 = vpack.c.b16 %v453, %v453
  %v518 = vpack.c.b16 %v454, %v454
  %v519 = vpack.c.b16 %v455, %v455
  %v520 = vpack.c.b16 %v456, %v456
  %v521 = vpack.c.b16 %v457, %v457
  %v522 = vpack.c.b16 %v458, %v458
  %v523 = vpack.c.b16 %v459, %v459
  %v524 = vpack.c.b16 %v460, %v460
  %v525 = vpack.c.b16 %v461, %v461
  %v526 = vpack.c.b16 %v462, %v462
  %v527 = vpack.c.b16 %v463, %v463
  %v528 = vpack.c.b16 %v464, %v464
  %v529 = vpack.c.b16 %v465, %v465
  %v530 = vpack.c.b16 %v466, %v466
  %v531 = vpack.c.b16 %v467, %v467
  %v532 = vpack.c.b16 %v468, %v468
  %v533 = vpack.c.b16 %v469, %v469
  %v534 = vpack.c.b16 %v470, %v470
  %v535 = vpack.c.b16 %v471, %v471
  %v536 = vpack.c.b16 %v472, %v472
  %v537 = vpack.c.b16 %v473, %v473
  %v538 = vpack.c.b16 %v474, %v474
  %v539 = vpack.c.b16 %v475, %v475
  %604 = vst [vmem:[%s3] sm:$0xf] %v476
  %605 = vst [vmem:[%s3 + $0x4] sm:$0xf] %v477
  %606 = vst [vmem:[%s3 + $0x8] sm:$0xf] %v478
  %607 = vst [vmem:[%s3 + $0xc] sm:$0xf] %v479
  %608 = vst [vmem:[%s3 + $0x10] sm:$0xf] %v480
  %609 = vst [vmem:[%s3 + $0x14] sm:$0xf] %v481
  %610 = vst [vmem:[%s3 + $0x18] sm:$0xf] %v482
  %611 = vst [vmem:[%s3 + $0x1c] sm:$0xf] %v483
  %612 = vst [vmem:[%s3 + $0x20] sm:$0xf] %v484
  %613 = vst [vmem:[%s3 + $0x24] sm:$0xf] %v485
  %614 = vst [vmem:[%s3 + $0x28] sm:$0xf] %v486
  %615 = vst [vmem:[%s3 + $0x2c] sm:$0xf] %v487
  %616 = vst [vmem:[%s3 + $0x30] sm:$0xf] %v488
  %617 = vst [vmem:[%s3 + $0x34] sm:$0xf] %v489
  %618 = vst [vmem:[%s3 + $0x38] sm:$0xf] %v490
  %619 = vst [vmem:[%s3 + $0x3c] sm:$0xf] %v491
  %620 = vst [vmem:[%s3 + $0x40] sm:$0xf] %v492
  %621 = vst [vmem:[%s3 + $0x44] sm:$0xf] %v493
  %622 = vst [vmem:[%s3 + $0x48] sm:$0xf] %v494
  %623 = vst [vmem:[%s3 + $0x4c] sm:$0xf] %v495
  %624 = vst [vmem:[%s3 + $0x50] sm:$0xf] %v496
  %625 = vst [vmem:[%s3 + $0x54] sm:$0xf] %v497
  %626 = vst [vmem:[%s3 + $0x58] sm:$0xf] %v498
  %627 = vst [vmem:[%s3 + $0x5c] sm:$0xf] %v499
  %628 = vst [vmem:[%s3 + $0x60] sm:$0xf] %v500
  %629 = vst [vmem:[%s3 + $0x64] sm:$0xf] %v501
  %630 = vst [vmem:[%s3 + $0x68] sm:$0xf] %v502
  %631 = vst [vmem:[%s3 + $0x6c] sm:$0xf] %v503
  %632 = vst [vmem:[%s3 + $0x70] sm:$0xf] %v504
  %633 = vst [vmem:[%s3 + $0x74] sm:$0xf] %v505
  %634 = vst [vmem:[%s3 + $0x78] sm:$0xf] %v506
  %635 = vst [vmem:[%s3 + $0x7c] sm:$0xf] %v507
  %636 = vst [vmem:[%s3 + $0x80] sm:$0xf] %v508
  %637 = vst [vmem:[%s3 + $0x84] sm:$0xf] %v509
  %638 = vst [vmem:[%s3 + $0x88] sm:$0xf] %v510
  %639 = vst [vmem:[%s3 + $0x8c] sm:$0xf] %v511
  %640 = vst [vmem:[%s3 + $0x90] sm:$0xf] %v512
  %641 = vst [vmem:[%s3 + $0x94] sm:$0xf] %v513
  %642 = vst [vmem:[%s3 + $0x98] sm:$0xf] %v514
  %643 = vst [vmem:[%s3 + $0x9c] sm:$0xf] %v515
  %644 = vst [vmem:[%s3 + $0xa0] sm:$0xf] %v516
  %645 = vst [vmem:[%s3 + $0xa4] sm:$0xf] %v517
  %646 = vst [vmem:[%s3 + $0xa8] sm:$0xf] %v518
  %647 = vst [vmem:[%s3 + $0xac] sm:$0xf] %v519
  %648 = vst [vmem:[%s3 + $0xb0] sm:$0xf] %v520
  %649 = vst [vmem:[%s3 + $0xb4] sm:$0xf] %v521
  %650 = vst [vmem:[%s3 + $0xb8] sm:$0xf] %v522
  %651 = vst [vmem:[%s3 + $0xbc] sm:$0xf] %v523
  %652 = vst [vmem:[%s3 + $0xc0] sm:$0xf] %v524
  %653 = vst [vmem:[%s3 + $0xc4] sm:$0xf] %v525
  %654 = vst [vmem:[%s3 + $0xc8] sm:$0xf] %v526
  %655 = vst [vmem:[%s3 + $0xcc] sm:$0xf] %v527
  %656 = vst [vmem:[%s3 + $0xd0] sm:$0xf] %v528
  %657 = vst [vmem:[%s3 + $0xd4] sm:$0xf] %v529
  %658 = vst [vmem:[%s3 + $0xd8] sm:$0xf] %v530
  %659 = vst [vmem:[%s3 + $0xdc] sm:$0xf] %v531
  %660 = vst [vmem:[%s3 + $0xe0] sm:$0xf] %v532
  %661 = vst [vmem:[%s3 + $0xe4] sm:$0xf] %v533
  %662 = vst [vmem:[%s3 + $0xe8] sm:$0xf] %v534
  %663 = vst [vmem:[%s3 + $0xec] sm:$0xf] %v535
  %664 = vst [vmem:[%s3 + $0xf0] sm:$0xf] %v536
  %665 = vst [vmem:[%s3 + $0xf4] sm:$0xf] %v537
  %666 = vst [vmem:[%s3 + $0xf8] sm:$0xf] %v538
  %667 = vst [vmem:[%s3 + $0xfc] sm:$0xf] %v539
  // Predicated region
  $region14: #{topdown_generator_forward.14} parent=0 // pred_check
    _
  $region15: #{topdown_generator_forward.14} parent=0 // pred_check_branch
    %669 = sbr.rel (0) target = $region17
  $region16: #{topdown_generator_forward.14} parent=0 // pred_region
    _
  $region17: #{topdown_generator_forward.14} parent=0 // pred_fallthru
    _
  // Predicated region
  $region18: #{topdown_generator_forward.14} parent=0 // pred_check
    _
  $region19: #{topdown_generator_forward.14} parent=0 // pred_check_branch
    %671 = sbr.rel (0) target = $region21
  $region20: #{topdown_generator_forward.14} parent=0 // pred_region
    _
  $region21: #{topdown_generator_forward.14} parent=0 // pred_fallthru
    _

// kernel: topdown_generator_forward.15
$region0: #{topdown_generator_forward.15}
  #allocation0 [shape = 'u32[]', space=smem, size = 0x4, offset = 0x4, fixed_abs, tag = 'smem constant byte address 0x4 - core index']
  #allocation1 [shape = 'u32[144,128]{1,0:T(1,128)}', space=vmem, size = 0x12000, scoped, tag = 'internal scratch']
  #allocation2 [shape = 'f32[256,128]{1,0:T(8,128)}', space=vmem, size = 0x20000, scoped, tag = 'scratch operand']
  %s0 = inlined_call_operand.vmem [shape: bf16[4,512,512], index: 0, kind: input, shape index: {}]
  %s1 = inlined_call_operand.vmem [shape: bf16[4,512,128], index: 1, kind: input, shape index: {}]
  %s2 = inlined_call_operand.vmem [shape: bf16[4,512,128], index: 2, kind: output, shape index: {0}]
  %s3 = inlined_call_operand.vmem [shape: f32[4,16,128], index: 3, kind: output, shape index: {1}]
  %4 = xla_tuple %s2, %s3
  %s5 = sld [smem:[#allocation0]]
  $region57: #{topdown_generator_forward.15} parent=0
    _
  %s7 = ssub.s32 1, %s5
  %s8 = scalar_select 0, %s7, %s5
  loop: start=0, step=1, limit=10
  $region2: #{topdown_generator_forward.15} parent=0 // loop_pre_header
    _
  $region3: #{topdown_generator_forward.15} parent=0 // loop_header
    %s10 = sphi 0, %s14
    %p11 = scmp.ge.s32.totalorder %s10, 10
    %s17 = sphi 0, %s36
    %s18 = sphi 0, %s32
    %s19 = sphi 0, %s28
    %s20 = sphi 0, %s17
    %s21 = sphi 0, %s18
    %s22 = sphi 0, %s19
    %s23 = sphi 0, %s20
    %s24 = sphi 0, %s21
    %s25 = sphi 0, %s22
    %s43 = sphi 0, %s45
    %s46 = sphi 0, %s43
    %s47 = sphi 0, %s46
    %s63 = sphi 0, %s47
    %s71 = sphi 0, %s73
    %s74 = sphi 0, %s71
    %s75 = sphi 0, %s74
    %s91 = sphi 0, %s75
    %s99 = sphi 0, %s101
    %s102 = sphi 0, %s99
    %s103 = sphi 0, %s102
    %s119 = sphi 0, %s103
    %s127 = sphi 0, %s129
    %s130 = sphi 0, %s127
    %s131 = sphi 0, %s130
    %s147 = sphi 0, %s131
  $region4: #{topdown_generator_forward.15} parent=0 // loop_header_branch
    %13 = sbr.rel (%p11) target = $region8
  $region5: #{topdown_generator_forward.15} parent=0 // loop_body
    %s15 = ssub.s32 %s10, 1
    %s16 = ssub.s32 %s10, 2
    %s26 = sadd.s32 1, %s19
    %p27 = scmp.ge.s32.totalorder %s26, 1
    %s28 = scalar_select %p27, 0, %s26
    %s29 = sadd.s32 1, %s18
    %s30 = scalar_select %p27, %s29, %s18
    %p31 = scmp.ge.s32.totalorder %s30, 2
    %s32 = scalar_select %p31, 0, %s30
    %s33 = sadd.s32 1, %s17
    %s34 = scalar_select %p31, %s33, %s17
    %p35 = scmp.ge.s32.totalorder %s34, 4
    %s36 = scalar_select %p35, 0, %s34
    %s37 = ssub.s32 %s17, %s36
    %s38 = ssub.s32 %s18, %s32
    %s39 = sor.u32 %s37, %s38
    %s40 = ssub.s32 %s19, %s28
    %s41 = sor.u32 %s39, %s40
    %p42 = scmp.eq.s32.totalorder %s41, 0
    %s44 = sadd.s32 %s43, 1
    %s45 = scalar_select %p42, %s43, %s44
    %p48 = pneg %p42
    %p49 = scmp.eq.s32.totalorder %s10, 7
    %p50 = por %p48, %p49
    %p51 = scmp.ne.s32.totalorder %s43, %s46
    %p52 = scmp.eq.s32.totalorder %s10, 0
    %p53 = por %p51, %p52
    %p54 = scmp.ne.s32.totalorder %s43, %s46
    %p55 = scmp.eq.s32.totalorder %s15, 7
    %p56 = por %p54, %p55
    %p57 = scmp.ne.s32.totalorder %s46, %s47
    %p58 = scmp.eq.s32.totalorder %s15, 0
    %p59 = por %p57, %p58
    %p60 = scmp.ne.s32.totalorder %s46, %s47
    %p61 = scmp.eq.s32.totalorder %s16, 7
    %p62 = por %p60, %p61
    %p64 = scmp.ne.s32.totalorder %s47, %s63
    %p65 = scmp.eq.s32.totalorder %s16, 0
    %p66 = por %p64, %p65
    %s67 = ssub.s32 %s17, %s36
    %s68 = ssub.s32 %s19, %s28
    %s69 = sor.u32 %s67, %s68
    %p70 = scmp.eq.s32.totalorder %s69, 0
    %s72 = sadd.s32 %s71, 1
    %s73 = scalar_select %p70, %s71, %s72
    %p76 = pneg %p70
    %p77 = scmp.eq.s32.totalorder %s10, 7
    %p78 = por %p76, %p77
    %p79 = scmp.ne.s32.totalorder %s71, %s74
    %p80 = scmp.eq.s32.totalorder %s10, 0
    %p81 = por %p79, %p80
    %p82 = scmp.ne.s32.totalorder %s71, %s74
    %p83 = scmp.eq.s32.totalorder %s15, 7
    %p84 = por %p82, %p83
    %p85 = scmp.ne.s32.totalorder %s74, %s75
    %p86 = scmp.eq.s32.totalorder %s15, 0
    %p87 = por %p85, %p86
    %p88 = scmp.ne.s32.totalorder %s74, %s75
    %p89 = scmp.eq.s32.totalorder %s16, 7
    %p90 = por %p88, %p89
    %p92 = scmp.ne.s32.totalorder %s75, %s91
    %p93 = scmp.eq.s32.totalorder %s16, 0
    %p94 = por %p92, %p93
    %s95 = ssub.s32 %s17, %s36
    %s96 = ssub.s32 %s18, %s32
    %s97 = sor.u32 %s95, %s96
    %p98 = scmp.eq.s32.totalorder %s97, 0
    %s100 = sadd.s32 %s99, 1
    %s101 = scalar_select %p98, %s99, %s100
    %p104 = pneg %p98
    %p105 = scmp.eq.s32.totalorder %s10, 7
    %p106 = por %p104, %p105
    %p107 = scmp.ne.s32.totalorder %s99, %s102
    %p108 = scmp.eq.s32.totalorder %s10, 0
    %p109 = por %p107, %p108
    %p110 = scmp.ne.s32.totalorder %s99, %s102
    %p111 = scmp.eq.s32.totalorder %s15, 7
    %p112 = por %p110, %p111
    %p113 = scmp.ne.s32.totalorder %s102, %s103
    %p114 = scmp.eq.s32.totalorder %s15, 0
    %p115 = por %p113, %p114
    %p116 = scmp.ne.s32.totalorder %s102, %s103
    %p117 = scmp.eq.s32.totalorder %s16, 7
    %p118 = por %p116, %p117
    %p120 = scmp.ne.s32.totalorder %s103, %s119
    %p121 = scmp.eq.s32.totalorder %s16, 0
    %p122 = por %p120, %p121
    %s123 = ssub.s32 %s17, %s36
    %s124 = ssub.s32 %s18, %s32
    %s125 = sor.u32 %s123, %s124
    %p126 = scmp.eq.s32.totalorder %s125, 0
    %s128 = sadd.s32 %s127, 1
    %s129 = scalar_select %p126, %s127, %s128
    %p132 = pneg %p126
    %p133 = scmp.eq.s32.totalorder %s10, 7
    %p134 = por %p132, %p133
    %p135 = scmp.ne.s32.totalorder %s127, %s130
    %p136 = scmp.eq.s32.totalorder %s10, 0
    %p137 = por %p135, %p136
    %p138 = scmp.ne.s32.totalorder %s127, %s130
    %p139 = scmp.eq.s32.totalorder %s15, 7
    %p140 = por %p138, %p139
    %p141 = scmp.ne.s32.totalorder %s130, %s131
    %p142 = scmp.eq.s32.totalorder %s15, 0
    %p143 = por %p141, %p142
    %p144 = scmp.ne.s32.totalorder %s130, %s131
    %p145 = scmp.eq.s32.totalorder %s16, 7
    %p146 = por %p144, %p145
    %p148 = scmp.ne.s32.totalorder %s131, %s147
    %p149 = scmp.eq.s32.totalorder %s16, 0
    %p150 = por %p148, %p149
    %p151 = scmp.le.s32.totalorder 1, %s10
    %p152 = scmp.lt.s32.totalorder %s10, 9
    %p153 = pnand %p151, %p152
    %p154 = pneg %p153
    // Predicated region
    $region9: #{topdown_generator_forward.15} parent=5 // pred_check
      _
    $region10: #{topdown_generator_forward.15} parent=5 // pred_check_branch
      %156 = sbr.rel (%p153) target = $region12
    $region11: #{topdown_generator_forward.15} parent=5 // pred_region
      %s157 = ssub.s32 %s10, 1
    $region12: #{topdown_generator_forward.15} parent=5 // pred_fallthru
      _
    %p158 = scmp.lt.s32.totalorder %s10, 8
    // Predicated region
    $region13: #{topdown_generator_forward.15} parent=5 // pred_check
      %p159 = pneg %p158
    $region14: #{topdown_generator_forward.15} parent=5 // pred_check_branch
      %161 = sbr.rel (%p159) target = $region16
    $region15: #{topdown_generator_forward.15} parent=5 // pred_region
      // Predicated region
      $region17: #{topdown_generator_forward.15} parent=15 // pred_check
        %p162 = pneg %p53
      $region18: #{topdown_generator_forward.15} parent=15 // pred_check_branch
        %164 = sbr.rel (%p162) target = $region20
      $region19: #{topdown_generator_forward.15} parent=15 // pred_region
        %s165 = smul.u32 32, %s18
        %s166 = smul.u32 4, %s19
        %p167 = scmp.lt.s32.totalorder %s17, 3
        %s168 = scalar_select %p167, %s17, 3
        %p169 = scmp.lt.s32.totalorder %s165, 63
        %s170 = scalar_select %p169, %s165, 63
        %p171 = scmp.lt.s32.totalorder %s166, 3
        %s172 = scalar_select %p171, %s166, 3
        %s173 = smul.addr %s170, 4
        %s174 = sadd.s32 %s172, %s173
        %s175 = smul.addr %s168, 256
        %s176 = sadd.s32 %s174, %s175
        %s177 = smul.addr %s176, 4
        %s178 = scalar_lea.vmem %s0, %s177
        %s179 = smul.u32 32, %s18
        %s180 = smul.u32 4, %s19
      $region20: #{topdown_generator_forward.15} parent=15 // pred_fallthru
        _
      // Predicated region
      $region21: #{topdown_generator_forward.15} parent=15 // pred_check
        %p181 = pneg %p81
      $region22: #{topdown_generator_forward.15} parent=15 // pred_check_branch
        %183 = sbr.rel (%p181) target = $region24
      $region23: #{topdown_generator_forward.15} parent=15 // pred_region
        %s184 = smul.u32 64, %s19
        %p185 = scmp.lt.s32.totalorder %s17, 3
        %s186 = scalar_select %p185, %s17, 3
        %p187 = scmp.lt.s32.totalorder %s184, 63
        %s188 = scalar_select %p187, %s184, 63
        %s189 = smul.addr %s186, 64
        %s190 = sadd.s32 %s188, %s189
        %s191 = smul.addr %s190, 4
        %s192 = scalar_lea.vmem %s1, %s191
        %s193 = smul.u32 64, %s19
      $region24: #{topdown_generator_forward.15} parent=15 // pred_fallthru
        _
    $region16: #{topdown_generator_forward.15} parent=5 // pred_fallthru
      _
    %p194 = scmp.le.s32.totalorder 1, %s10
    %p195 = scmp.lt.s32.totalorder %s10, 9
    %p196 = pnand %p194, %p195
    %p197 = pneg %p196
    // Predicated region
    $region25: #{topdown_generator_forward.15} parent=5 // pred_check
      _
    $region26: #{topdown_generator_forward.15} parent=5 // pred_check_branch
      %199 = sbr.rel (%p196) target = $region28
    $region27: #{topdown_generator_forward.15} parent=5 // pred_region
      %s200 = ssub.s32 %s10, 1
      %s201 = smul.u32 32, %s21
      %s202 = smul.u32 4, %s22
      %p203 = scmp.lt.s32.totalorder %s20, 3
      %s204 = scalar_select %p203, %s20, 3
      %p205 = scmp.lt.s32.totalorder %s201, 63
      %s206 = scalar_select %p205, %s201, 63
      %p207 = scmp.lt.s32.totalorder %s202, 3
      %s208 = scalar_select %p207, %s202, 3
      %s209 = smul.addr %s206, 4
      %s210 = sadd.s32 %s208, %s209
      %s211 = smul.addr %s204, 256
      %s212 = sadd.s32 %s210, %s211
      %s213 = smul.addr %s212, 4
      %s214 = scalar_lea.vmem %s0, %s213
      %p215 = pneg %p59
      %p216 = pneg %p56
      %s217 = smul.u32 64, %s22
      %p218 = scmp.lt.s32.totalorder %s20, 3
      %s219 = scalar_select %p218, %s20, 3
      %p220 = scmp.lt.s32.totalorder %s217, 63
      %s221 = scalar_select %p220, %s217, 63
      %s222 = smul.addr %s219, 64
      %s223 = sadd.s32 %s221, %s222
      %s224 = smul.addr %s223, 4
      %s225 = scalar_lea.vmem %s1, %s224
      %p226 = pneg %p87
      %p227 = pneg %p84
      %p228 = pneg %p115
      %p229 = pneg %p112
      %s230 = smul.u32 32, %s21
      %p231 = scmp.lt.s32.totalorder %s20, 3
      %s232 = scalar_select %p231, %s20, 3
      %p233 = scmp.lt.s32.totalorder %s230, 63
      %s234 = scalar_select %p233, %s230, 63
      %s235 = smul.addr %s232, 64
      %s236 = sadd.s32 %s234, %s235
      %s237 = smul.addr %s236, 4
      %s238 = scalar_lea.vmem %s2, %s237
      %p239 = pneg %p143
      %p240 = pneg %p140
      %p241 = scmp.lt.s32.totalorder %s20, 3
      %s242 = scalar_select %p241, %s20, 3
      %p243 = scmp.lt.s32.totalorder %s21, 1
      %s244 = scalar_select %p243, %s21, 1
      %s245 = smul.addr %s242, 2
      %s246 = sadd.s32 %s244, %s245
      %s247 = smul.addr %s246, 8
      %s248 = scalar_lea.vmem %s3, %s247
      %s249 = smul.u32 32, %s21
      %s250 = smul.u32 4, %s22
      %p251 = scmp.lt.s32.totalorder %s20, 3
      %s252 = scalar_select %p251, %s20, 3
      %p253 = scmp.lt.s32.totalorder %s249, 63
      %s254 = scalar_select %p253, %s249, 63
      %p255 = scmp.lt.s32.totalorder %s250, 3
      %s256 = scalar_select %p255, %s250, 3
      %s257 = smul.addr %s254, 4
      %s258 = sadd.s32 %s256, %s257
      %s259 = smul.addr %s252, 256
      %s260 = sadd.s32 %s258, %s259
      %s261 = smul.addr %s260, 4
      %s262 = scalar_lea.vmem %s0, %s261
      %s263 = smul.u32 32, %s21
      %s264 = smul.u32 4, %s22
      %s265 = smul.u32 64, %s22
      %p266 = scmp.lt.s32.totalorder %s20, 3
      %s267 = scalar_select %p266, %s20, 3
      %p268 = scmp.lt.s32.totalorder %s265, 63
      %s269 = scalar_select %p268, %s265, 63
      %s270 = smul.addr %s267, 64
      %s271 = sadd.s32 %s269, %s270
      %s272 = smul.addr %s271, 4
      %s273 = scalar_lea.vmem %s1, %s272
      %s274 = smul.u32 64, %s22
      %s275 = smul.u32 32, %s21
      %p276 = scmp.lt.s32.totalorder %s20, 3
      %s277 = scalar_select %p276, %s20, 3
      %p278 = scmp.lt.s32.totalorder %s275, 63
      %s279 = scalar_select %p278, %s275, 63
      %s280 = smul.addr %s277, 64
      %s281 = sadd.s32 %s279, %s280
      %s282 = smul.addr %s281, 4
      %s283 = scalar_lea.vmem %s2, %s282
      %s284 = smul.u32 32, %s21
      %p285 = scmp.lt.s32.totalorder %s20, 3
      %s286 = scalar_select %p285, %s20, 3
      %p287 = scmp.lt.s32.totalorder %s21, 1
      %s288 = scalar_select %p287, %s21, 1
      %s289 = smul.addr %s286, 2
      %s290 = sadd.s32 %s288, %s289
      %s291 = smul.addr %s290, 8
      %s292 = scalar_lea.vmem %s3, %s291
      %p294 = scmp.eq.s32.totalorder %s22, 0
      // Predicated region
      $region29: #{topdown_generator_forward.15} parent=27 // pred_check
        %p295 = pneg %p294
      $region30: #{topdown_generator_forward.15} parent=27 // pred_check_branch
        %297 = sbr.rel (%p295) target = $region32
      $region31: #{topdown_generator_forward.15} parent=27 // pred_region
        %298 = vst [vmem:[#allocation2] sm:$0xff] 0.0
        %299 = vst [vmem:[#allocation2 + $0x8] sm:$0xff] 0.0
        %300 = vst [vmem:[#allocation2 + $0x10] sm:$0xff] 0.0
        %301 = vst [vmem:[#allocation2 + $0x18] sm:$0xff] 0.0
        %302 = vst [vmem:[#allocation2 + $0x20] sm:$0xff] 0.0
        %303 = vst [vmem:[#allocation2 + $0x28] sm:$0xff] 0.0
        %304 = vst [vmem:[#allocation2 + $0x30] sm:$0xff] 0.0
        %305 = vst [vmem:[#allocation2 + $0x38] sm:$0xff] 0.0
        %306 = vst [vmem:[#allocation2 + $0x40] sm:$0xff] 0.0
        %307 = vst [vmem:[#allocation2 + $0x48] sm:$0xff] 0.0
        %308 = vst [vmem:[#allocation2 + $0x50] sm:$0xff] 0.0
        %309 = vst [vmem:[#allocation2 + $0x58] sm:$0xff] 0.0
        %310 = vst [vmem:[#allocation2 + $0x60] sm:$0xff] 0.0
        %311 = vst [vmem:[#allocation2 + $0x68] sm:$0xff] 0.0
        %312 = vst [vmem:[#allocation2 + $0x70] sm:$0xff] 0.0
        %313 = vst [vmem:[#allocation2 + $0x78] sm:$0xff] 0.0
        %314 = vst [vmem:[#allocation2 + $0x80] sm:$0xff] 0.0
        %315 = vst [vmem:[#allocation2 + $0x88] sm:$0xff] 0.0
        %316 = vst [vmem:[#allocation2 + $0x90] sm:$0xff] 0.0
        %317 = vst [vmem:[#allocation2 + $0x98] sm:$0xff] 0.0
        %318 = vst [vmem:[#allocation2 + $0xa0] sm:$0xff] 0.0
        %319 = vst [vmem:[#allocation2 + $0xa8] sm:$0xff] 0.0
        %320 = vst [vmem:[#allocation2 + $0xb0] sm:$0xff] 0.0
        %321 = vst [vmem:[#allocation2 + $0xb8] sm:$0xff] 0.0
        %322 = vst [vmem:[#allocation2 + $0xc0] sm:$0xff] 0.0
        %323 = vst [vmem:[#allocation2 + $0xc8] sm:$0xff] 0.0
        %324 = vst [vmem:[#allocation2 + $0xd0] sm:$0xff] 0.0
        %325 = vst [vmem:[#allocation2 + $0xd8] sm:$0xff] 0.0
        %326 = vst [vmem:[#allocation2 + $0xe0] sm:$0xff] 0.0
        %327 = vst [vmem:[#allocation2 + $0xe8] sm:$0xff] 0.0
        %328 = vst [vmem:[#allocation2 + $0xf0] sm:$0xff] 0.0
        %329 = vst [vmem:[#allocation2 + $0xf8] sm:$0xff] 0.0
      $region32: #{topdown_generator_forward.15} parent=27 // pred_fallthru
        _
      %v330 = vld [vmem:[#allocation2] sm:$0xff]
      %v331 = vld [vmem:[#allocation2 + $0x8] sm:$0xff]
      %v332 = vld [vmem:[#allocation2 + $0x10] sm:$0xff]
      %v333 = vld [vmem:[#allocation2 + $0x18] sm:$0xff]
      %v334 = vld [vmem:[#allocation2 + $0x20] sm:$0xff]
      %v335 = vld [vmem:[#allocation2 + $0x28] sm:$0xff]
      %v336 = vld [vmem:[#allocation2 + $0x30] sm:$0xff]
      %v337 = vld [vmem:[#allocation2 + $0x38] sm:$0xff]
      %v338 = vld [vmem:[#allocation2 + $0x40] sm:$0xff]
      %v339 = vld [vmem:[#allocation2 + $0x48] sm:$0xff]
      %v340 = vld [vmem:[#allocation2 + $0x50] sm:$0xff]
      %v341 = vld [vmem:[#allocation2 + $0x58] sm:$0xff]
      %v342 = vld [vmem:[#allocation2 + $0x60] sm:$0xff]
      %v343 = vld [vmem:[#allocation2 + $0x68] sm:$0xff]
      %v344 = vld [vmem:[#allocation2 + $0x70] sm:$0xff]
      %v345 = vld [vmem:[#allocation2 + $0x78] sm:$0xff]
      %v346 = vld [vmem:[#allocation2 + $0x80] sm:$0xff]
      %v347 = vld [vmem:[#allocation2 + $0x88] sm:$0xff]
      %v348 = vld [vmem:[#allocation2 + $0x90] sm:$0xff]
      %v349 = vld [vmem:[#allocation2 + $0x98] sm:$0xff]
      %v350 = vld [vmem:[#allocation2 + $0xa0] sm:$0xff]
      %v351 = vld [vmem:[#allocation2 + $0xa8] sm:$0xff]
      %v352 = vld [vmem:[#allocation2 + $0xb0] sm:$0xff]
      %v353 = vld [vmem:[#allocation2 + $0xb8] sm:$0xff]
      %v354 = vld [vmem:[#allocation2 + $0xc0] sm:$0xff]
      %v355 = vld [vmem:[#allocation2 + $0xc8] sm:$0xff]
      %v356 = vld [vmem:[#allocation2 + $0xd0] sm:$0xff]
      %v357 = vld [vmem:[#allocation2 + $0xd8] sm:$0xff]
      %v358 = vld [vmem:[#allocation2 + $0xe0] sm:$0xff]
      %v359 = vld [vmem:[#allocation2 + $0xe8] sm:$0xff]
      %v360 = vld [vmem:[#allocation2 + $0xf0] sm:$0xff]
      %v361 = vld [vmem:[#allocation2 + $0xf8] sm:$0xff]
      %v362 = vld [vmem:[%s262] sm:$0xff]
      %v363 = vld [vmem:[%s262 + $0x8] sm:$0xff]
      %v364 = vld [vmem:[%s262 + $0x10] sm:$0xff]
      %v365 = vld [vmem:[%s262 + $0x18] sm:$0xff]
      %v366 = vld [vmem:[%s262 + $0x20] sm:$0xff]
      %v367 = vld [vmem:[%s262 + $0x28] sm:$0xff]
      %v368 = vld [vmem:[%s262 + $0x30] sm:$0xff]
      %v369 = vld [vmem:[%s262 + $0x38] sm:$0xff]
      %v370 = vld [vmem:[%s262 + $0x40] sm:$0xff]
      %v371 = vld [vmem:[%s262 + $0x48] sm:$0xff]
      %v372 = vld [vmem:[%s262 + $0x50] sm:$0xff]
      %v373 = vld [vmem:[%s262 + $0x58] sm:$0xff]
      %v374 = vld [vmem:[%s262 + $0x60] sm:$0xff]
      %v375 = vld [vmem:[%s262 + $0x68] sm:$0xff]
      %v376 = vld [vmem:[%s262 + $0x70] sm:$0xff]
      %v377 = vld [vmem:[%s262 + $0x78] sm:$0xff]
      %v378 = vld [vmem:[%s262 + $0x80] sm:$0xff]
      %v379 = vld [vmem:[%s262 + $0x88] sm:$0xff]
      %v380 = vld [vmem:[%s262 + $0x90] sm:$0xff]
      %v381 = vld [vmem:[%s262 + $0x98] sm:$0xff]
      %v382 = vld [vmem:[%s262 + $0xa0] sm:$0xff]
      %v383 = vld [vmem:[%s262 + $0xa8] sm:$0xff]
      %v384 = vld [vmem:[%s262 + $0xb0] sm:$0xff]
      %v385 = vld [vmem:[%s262 + $0xb8] sm:$0xff]
      %v386 = vld [vmem:[%s262 + $0xc0] sm:$0xff]
      %v387 = vld [vmem:[%s262 + $0xc8] sm:$0xff]
      %v388 = vld [vmem:[%s262 + $0xd0] sm:$0xff]
      %v389 = vld [vmem:[%s262 + $0xd8] sm:$0xff]
      %v390 = vld [vmem:[%s262 + $0xe0] sm:$0xff]
      %v391 = vld [vmem:[%s262 + $0xe8] sm:$0xff]
      %v392 = vld [vmem:[%s262 + $0xf0] sm:$0xff]
      %v393 = vld [vmem:[%s262 + $0xf8] sm:$0xff]
      %v394 = vld [vmem:[%s262 + $0x100] sm:$0xff]
      %v395 = vld [vmem:[%s262 + $0x108] sm:$0xff]
      %v396 = vld [vmem:[%s262 + $0x110] sm:$0xff]
      %v397 = vld [vmem:[%s262 + $0x118] sm:$0xff]
      %v398 = vld [vmem:[%s262 + $0x120] sm:$0xff]
      %v399 = vld [vmem:[%s262 + $0x128] sm:$0xff]
      %v400 = vld [vmem:[%s262 + $0x130] sm:$0xff]
      %v401 = vld [vmem:[%s262 + $0x138] sm:$0xff]
      %v402 = vld [vmem:[%s262 + $0x140] sm:$0xff]
      %v403 = vld [vmem:[%s262 + $0x148] sm:$0xff]
      %v404 = vld [vmem:[%s262 + $0x150] sm:$0xff]
      %v405 = vld [vmem:[%s262 + $0x158] sm:$0xff]
      %v406 = vld [vmem:[%s262 + $0x160] sm:$0xff]
      %v407 = vld [vmem:[%s262 + $0x168] sm:$0xff]
      %v408 = vld [vmem:[%s262 + $0x170] sm:$0xff]
      %v409 = vld [vmem:[%s262 + $0x178] sm:$0xff]
      %v410 = vld [vmem:[%s262 + $0x180] sm:$0xff]
      %v411 = vld [vmem:[%s262 + $0x188] sm:$0xff]
      %v412 = vld [vmem:[%s262 + $0x190] sm:$0xff]
      %v413 = vld [vmem:[%s262 + $0x198] sm:$0xff]
      %v414 = vld [vmem:[%s262 + $0x1a0] sm:$0xff]
      %v415 = vld [vmem:[%s262 + $0x1a8] sm:$0xff]
      %v416 = vld [vmem:[%s262 + $0x1b0] sm:$0xff]
      %v417 = vld [vmem:[%s262 + $0x1b8] sm:$0xff]
      %v418 = vld [vmem:[%s262 + $0x1c0] sm:$0xff]
      %v419 = vld [vmem:[%s262 + $0x1c8] sm:$0xff]
      %v420 = vld [vmem:[%s262 + $0x1d0] sm:$0xff]
      %v421 = vld [vmem:[%s262 + $0x1d8] sm:$0xff]
      %v422 = vld [vmem:[%s262 + $0x1e0] sm:$0xff]
      %v423 = vld [vmem:[%s262 + $0x1e8] sm:$0xff]
      %v424 = vld [vmem:[%s262 + $0x1f0] sm:$0xff]
      %v425 = vld [vmem:[%s262 + $0x1f8] sm:$0xff]
      %v426 = vld [vmem:[%s273] sm:$0xf]
      %v427 = vld [vmem:[%s273 + $0x4] sm:$0xf]
      %v428 = vld [vmem:[%s273 + $0x8] sm:$0xf]
      %v429 = vld [vmem:[%s273 + $0xc] sm:$0xf]
      %v430 = vld [vmem:[%s273 + $0x10] sm:$0xf]
      %v431 = vld [vmem:[%s273 + $0x14] sm:$0xf]
      %v432 = vld [vmem:[%s273 + $0x18] sm:$0xf]
      %v433 = vld [vmem:[%s273 + $0x1c] sm:$0xf]
      %v434 = vld [vmem:[%s273 + $0x20] sm:$0xf]
      %v435 = vld [vmem:[%s273 + $0x24] sm:$0xf]
      %v436 = vld [vmem:[%s273 + $0x28] sm:$0xf]
      %v437 = vld [vmem:[%s273 + $0x2c] sm:$0xf]
      %v438 = vld [vmem:[%s273 + $0x30] sm:$0xf]
      %v439 = vld [vmem:[%s273 + $0x34] sm:$0xf]
      %v440 = vld [vmem:[%s273 + $0x38] sm:$0xf]
      %v441 = vld [vmem:[%s273 + $0x3c] sm:$0xf]
      %v442 = vld [vmem:[%s273 + $0x40] sm:$0xf]
      %v443 = vld [vmem:[%s273 + $0x44] sm:$0xf]
      %v444 = vld [vmem:[%s273 + $0x48] sm:$0xf]
      %v445 = vld [vmem:[%s273 + $0x4c] sm:$0xf]
      %v446 = vld [vmem:[%s273 + $0x50] sm:$0xf]
      %v447 = vld [vmem:[%s273 + $0x54] sm:$0xf]
      %v448 = vld [vmem:[%s273 + $0x58] sm:$0xf]
      %v449 = vld [vmem:[%s273 + $0x5c] sm:$0xf]
      %v450 = vld [vmem:[%s273 + $0x60] sm:$0xf]
      %v451 = vld [vmem:[%s273 + $0x64] sm:$0xf]
      %v452 = vld [vmem:[%s273 + $0x68] sm:$0xf]
      %v453 = vld [vmem:[%s273 + $0x6c] sm:$0xf]
      %v454 = vld [vmem:[%s273 + $0x70] sm:$0xf]
      %v455 = vld [vmem:[%s273 + $0x74] sm:$0xf]
      %v456 = vld [vmem:[%s273 + $0x78] sm:$0xf]
      %v457 = vld [vmem:[%s273 + $0x7c] sm:$0xf]
      %v458 = vld [vmem:[%s273 + $0x80] sm:$0xf]
      %v459 = vld [vmem:[%s273 + $0x84] sm:$0xf]
      %v460 = vld [vmem:[%s273 + $0x88] sm:$0xf]
      %v461 = vld [vmem:[%s273 + $0x8c] sm:$0xf]
      %v462 = vld [vmem:[%s273 + $0x90] sm:$0xf]
      %v463 = vld [vmem:[%s273 + $0x94] sm:$0xf]
      %v464 = vld [vmem:[%s273 + $0x98] sm:$0xf]
      %v465 = vld [vmem:[%s273 + $0x9c] sm:$0xf]
      %v466 = vld [vmem:[%s273 + $0xa0] sm:$0xf]
      %v467 = vld [vmem:[%s273 + $0xa4] sm:$0xf]
      %v468 = vld [vmem:[%s273 + $0xa8] sm:$0xf]
      %v469 = vld [vmem:[%s273 + $0xac] sm:$0xf]
      %v470 = vld [vmem:[%s273 + $0xb0] sm:$0xf]
      %v471 = vld [vmem:[%s273 + $0xb4] sm:$0xf]
      %v472 = vld [vmem:[%s273 + $0xb8] sm:$0xf]
      %v473 = vld [vmem:[%s273 + $0xbc] sm:$0xf]
      %v474 = vld [vmem:[%s273 + $0xc0] sm:$0xf]
      %v475 = vld [vmem:[%s273 + $0xc4] sm:$0xf]
      %v476 = vld [vmem:[%s273 + $0xc8] sm:$0xf]
      %v477 = vld [vmem:[%s273 + $0xcc] sm:$0xf]
      %v478 = vld [vmem:[%s273 + $0xd0] sm:$0xf]
      %v479 = vld [vmem:[%s273 + $0xd4] sm:$0xf]
      %v480 = vld [vmem:[%s273 + $0xd8] sm:$0xf]
      %v481 = vld [vmem:[%s273 + $0xdc] sm:$0xf]
      %v482 = vld [vmem:[%s273 + $0xe0] sm:$0xf]
      %v483 = vld [vmem:[%s273 + $0xe4] sm:$0xf]
      %v484 = vld [vmem:[%s273 + $0xe8] sm:$0xf]
      %v485 = vld [vmem:[%s273 + $0xec] sm:$0xf]
      %v486 = vld [vmem:[%s273 + $0xf0] sm:$0xf]
      %v487 = vld [vmem:[%s273 + $0xf4] sm:$0xf]
      %v488 = vld [vmem:[%s273 + $0xf8] sm:$0xf]
      %v489 = vld [vmem:[%s273 + $0xfc] sm:$0xf]
      %v554 = vunpack.c.l.b16 %v362
      %v555 = vunpack.c.h.b16 %v362
      %v556 = vunpack.c.l.b16 %v363
      %v557 = vunpack.c.h.b16 %v363
      %v558 = vunpack.c.l.b16 %v364
      %v559 = vunpack.c.h.b16 %v364
      %v560 = vunpack.c.l.b16 %v365
      %v561 = vunpack.c.h.b16 %v365
      %v562 = vunpack.c.l.b16 %v366
      %v563 = vunpack.c.h.b16 %v366
      %v564 = vunpack.c.l.b16 %v367
      %v565 = vunpack.c.h.b16 %v367
      %v566 = vunpack.c.l.b16 %v368
      %v567 = vunpack.c.h.b16 %v368
      %v568 = vunpack.c.l.b16 %v369
      %v569 = vunpack.c.h.b16 %v369
      %v570 = vunpack.c.l.b16 %v370
      %v571 = vunpack.c.h.b16 %v370
      %v572 = vunpack.c.l.b16 %v371
      %v573 = vunpack.c.h.b16 %v371
      %v574 = vunpack.c.l.b16 %v372
      %v575 = vunpack.c.h.b16 %v372
      %v576 = vunpack.c.l.b16 %v373
      %v577 = vunpack.c.h.b16 %v373
      %v578 = vunpack.c.l.b16 %v374
      %v579 = vunpack.c.h.b16 %v374
      %v580 = vunpack.c.l.b16 %v375
      %v581 = vunpack.c.h.b16 %v375
      %v582 = vunpack.c.l.b16 %v376
      %v583 = vunpack.c.h.b16 %v376
      %v584 = vunpack.c.l.b16 %v377
      %v585 = vunpack.c.h.b16 %v377
      %v586 = vunpack.c.l.b16 %v378
      %v587 = vunpack.c.h.b16 %v378
      %v588 = vunpack.c.l.b16 %v379
      %v589 = vunpack.c.h.b16 %v379
      %v590 = vunpack.c.l.b16 %v380
      %v591 = vunpack.c.h.b16 %v380
      %v592 = vunpack.c.l.b16 %v381
      %v593 = vunpack.c.h.b16 %v381
      %v594 = vunpack.c.l.b16 %v382
      %v595 = vunpack.c.h.b16 %v382
      %v596 = vunpack.c.l.b16 %v383
      %v597 = vunpack.c.h.b16 %v383
      %v598 = vunpack.c.l.b16 %v384
      %v599 = vunpack.c.h.b16 %v384
      %v600 = vunpack.c.l.b16 %v385
      %v601 = vunpack.c.h.b16 %v385
      %v602 = vunpack.c.l.b16 %v386
      %v603 = vunpack.c.h.b16 %v386
      %v604 = vunpack.c.l.b16 %v387
      %v605 = vunpack.c.h.b16 %v387
      %v606 = vunpack.c.l.b16 %v388
      %v607 = vunpack.c.h.b16 %v388
      %v608 = vunpack.c.l.b16 %v389
      %v609 = vunpack.c.h.b16 %v389
      %v610 = vunpack.c.l.b16 %v390
      %v611 = vunpack.c.h.b16 %v390
      %v612 = vunpack.c.l.b16 %v391
      %v613 = vunpack.c.h.b16 %v391
      %v614 = vunpack.c.l.b16 %v392
      %v615 = vunpack.c.h.b16 %v392
      %v616 = vunpack.c.l.b16 %v393
      %v617 = vunpack.c.h.b16 %v393
      %v618 = vunpack.c.l.b16 %v394
      %v619 = vunpack.c.h.b16 %v394
      %v620 = vunpack.c.l.b16 %v395
      %v621 = vunpack.c.h.b16 %v395
      %v622 = vunpack.c.l.b16 %v396
      %v623 = vunpack.c.h.b16 %v396
      %v624 = vunpack.c.l.b16 %v397
      %v625 = vunpack.c.h.b16 %v397
      %v626 = vunpack.c.l.b16 %v398
      %v627 = vunpack.c.h.b16 %v398
      %v628 = vunpack.c.l.b16 %v399
      %v629 = vunpack.c.h.b16 %v399
      %v630 = vunpack.c.l.b16 %v400
      %v631 = vunpack.c.h.b16 %v400
      %v632 = vunpack.c.l.b16 %v401
      %v633 = vunpack.c.h.b16 %v401
      %v634 = vunpack.c.l.b16 %v402
      %v635 = vunpack.c.h.b16 %v402
      %v636 = vunpack.c.l.b16 %v403
      %v637 = vunpack.c.h.b16 %v403
      %v638 = vunpack.c.l.b16 %v404
      %v639 = vunpack.c.h.b16 %v404
      %v640 = vunpack.c.l.b16 %v405
      %v641 = vunpack.c.h.b16 %v405
      %v642 = vunpack.c.l.b16 %v406
      %v643 = vunpack.c.h.b16 %v406
      %v644 = vunpack.c.l.b16 %v407
      %v645 = vunpack.c.h.b16 %v407
      %v646 = vunpack.c.l.b16 %v408
      %v647 = vunpack.c.h.b16 %v408
      %v648 = vunpack.c.l.b16 %v409
      %v649 = vunpack.c.h.b16 %v409
      %v650 = vunpack.c.l.b16 %v410
      %v651 = vunpack.c.h.b16 %v410
      %v652 = vunpack.c.l.b16 %v411
      %v653 = vunpack.c.h.b16 %v411
      %v654 = vunpack.c.l.b16 %v412
      %v655 = vunpack.c.h.b16 %v412
      %v656 = vunpack.c.l.b16 %v413
      %v657 = vunpack.c.h.b16 %v413
      %v658 = vunpack.c.l.b16 %v414
      %v659 = vunpack.c.h.b16 %v414
      %v660 = vunpack.c.l.b16 %v415
      %v661 = vunpack.c.h.b16 %v415
      %v662 = vunpack.c.l.b16 %v416
      %v663 = vunpack.c.h.b16 %v416
      %v664 = vunpack.c.l.b16 %v417
      %v665 = vunpack.c.h.b16 %v417
      %v666 = vunpack.c.l.b16 %v418
      %v667 = vunpack.c.h.b16 %v418
      %v668 = vunpack.c.l.b16 %v419
      %v669 = vunpack.c.h.b16 %v419
      %v670 = vunpack.c.l.b16 %v420
      %v671 = vunpack.c.h.b16 %v420
      %v672 = vunpack.c.l.b16 %v421
      %v673 = vunpack.c.h.b16 %v421
      %v674 = vunpack.c.l.b16 %v422
      %v675 = vunpack.c.h.b16 %v422
      %v676 = vunpack.c.l.b16 %v423
      %v677 = vunpack.c.h.b16 %v423
      %v678 = vunpack.c.l.b16 %v424
      %v679 = vunpack.c.h.b16 %v424
      %v680 = vunpack.c.l.b16 %v425
      %v681 = vunpack.c.h.b16 %v425
      %v682 = vpack.c.b16 %v558, %v554
      %v683 = vpack.c.b16 %v559, %v555
      %v684 = vpack.c.b16 %v560, %v556
      %v685 = vpack.c.b16 %v561, %v557
      %v686 = vpack.c.b16 %v566, %v562
      %v687 = vpack.c.b16 %v567, %v563
      %v688 = vpack.c.b16 %v568, %v564
      %v689 = vpack.c.b16 %v569, %v565
      %v690 = vpack.c.b16 %v574, %v570
      %v691 = vpack.c.b16 %v575, %v571
      %v692 = vpack.c.b16 %v576, %v572
      %v693 = vpack.c.b16 %v577, %v573
      %v694 = vpack.c.b16 %v582, %v578
      %v695 = vpack.c.b16 %v583, %v579
      %v696 = vpack.c.b16 %v584, %v580
      %v697 = vpack.c.b16 %v585, %v581
      %v698 = vpack.c.b16 %v590, %v586
      %v699 = vpack.c.b16 %v591, %v587
      %v700 = vpack.c.b16 %v592, %v588
      %v701 = vpack.c.b16 %v593, %v589
      %v702 = vpack.c.b16 %v598, %v594
      %v703 = vpack.c.b16 %v599, %v595
      %v704 = vpack.c.b16 %v600, %v596
      %v705 = vpack.c.b16 %v601, %v597
      %v706 = vpack.c.b16 %v606, %v602
      %v707 = vpack.c.b16 %v607, %v603
      %v708 = vpack.c.b16 %v608, %v604
      %v709 = vpack.c.b16 %v609, %v605
      %v710 = vpack.c.b16 %v614, %v610
      %v711 = vpack.c.b16 %v615, %v611
      %v712 = vpack.c.b16 %v616, %v612
      %v713 = vpack.c.b16 %v617, %v613
      %v714 = vpack.c.b16 %v622, %v618
      %v715 = vpack.c.b16 %v623, %v619
      %v716 = vpack.c.b16 %v624, %v620
      %v717 = vpack.c.b16 %v625, %v621
      %v718 = vpack.c.b16 %v630, %v626
      %v719 = vpack.c.b16 %v631, %v627
      %v720 = vpack.c.b16 %v632, %v628
      %v721 = vpack.c.b16 %v633, %v629
      %v722 = vpack.c.b16 %v638, %v634
      %v723 = vpack.c.b16 %v639, %v635
      %v724 = vpack.c.b16 %v640, %v636
      %v725 = vpack.c.b16 %v641, %v637
      %v726 = vpack.c.b16 %v646, %v642
      %v727 = vpack.c.b16 %v647, %v643
      %v728 = vpack.c.b16 %v648, %v644
      %v729 = vpack.c.b16 %v649, %v645
      %v730 = vpack.c.b16 %v654, %v650
      %v731 = vpack.c.b16 %v655, %v651
      %v732 = vpack.c.b16 %v656, %v652
      %v733 = vpack.c.b16 %v657, %v653
      %v734 = vpack.c.b16 %v662, %v658
      %v735 = vpack.c.b16 %v663, %v659
      %v736 = vpack.c.b16 %v664, %v660
      %v737 = vpack.c.b16 %v665, %v661
      %v738 = vpack.c.b16 %v670, %v666
      %v739 = vpack.c.b16 %v671, %v667
      %v740 = vpack.c.b16 %v672, %v668
      %v741 = vpack.c.b16 %v673, %v669
      %v742 = vpack.c.b16 %v678, %v674
      %v743 = vpack.c.b16 %v679, %v675
      %v744 = vpack.c.b16 %v680, %v676
      %v745 = vpack.c.b16 %v681, %v677
      %v874 = vunpack.c.l.b16 %v426
      %v875 = vunpack.c.l.b16 %v427
      %v876 = vunpack.c.l.b16 %v428
      %v877 = vunpack.c.l.b16 %v429
      %v878 = vunpack.c.l.b16 %v430
      %v879 = vunpack.c.l.b16 %v431
      %v880 = vunpack.c.l.b16 %v432
      %v881 = vunpack.c.l.b16 %v433
      %v882 = vunpack.c.l.b16 %v434
      %v883 = vunpack.c.l.b16 %v435
      %v884 = vunpack.c.l.b16 %v436
      %v885 = vunpack.c.l.b16 %v437
      %v886 = vunpack.c.l.b16 %v438
      %v887 = vunpack.c.l.b16 %v439
      %v888 = vunpack.c.l.b16 %v440
      %v889 = vunpack.c.l.b16 %v441
      %v890 = vunpack.c.l.b16 %v442
      %v891 = vunpack.c.l.b16 %v443
      %v892 = vunpack.c.l.b16 %v444
      %v893 = vunpack.c.l.b16 %v445
      %v894 = vunpack.c.l.b16 %v446
      %v895 = vunpack.c.l.b16 %v447
      %v896 = vunpack.c.l.b16 %v448
      %v897 = vunpack.c.l.b16 %v449
      %v898 = vunpack.c.l.b16 %v450
      %v899 = vunpack.c.l.b16 %v451
      %v900 = vunpack.c.l.b16 %v452
      %v901 = vunpack.c.l.b16 %v453
      %v902 = vunpack.c.l.b16 %v454
      %v903 = vunpack.c.l.b16 %v455
      %v904 = vunpack.c.l.b16 %v456
      %v905 = vunpack.c.l.b16 %v457
      %v906 = vunpack.c.l.b16 %v458
      %v907 = vunpack.c.l.b16 %v459
      %v908 = vunpack.c.l.b16 %v460
      %v909 = vunpack.c.l.b16 %v461
      %v910 = vunpack.c.l.b16 %v462
      %v911 = vunpack.c.l.b16 %v463
      %v912 = vunpack.c.l.b16 %v464
      %v913 = vunpack.c.l.b16 %v465
      %v914 = vunpack.c.l.b16 %v466
      %v915 = vunpack.c.l.b16 %v467
      %v916 = vunpack.c.l.b16 %v468
      %v917 = vunpack.c.l.b16 %v469
      %v918 = vunpack.c.l.b16 %v470
      %v919 = vunpack.c.l.b16 %v471
      %v920 = vunpack.c.l.b16 %v472
      %v921 = vunpack.c.l.b16 %v473
      %v922 = vunpack.c.l.b16 %v474
      %v923 = vunpack.c.l.b16 %v475
      %v924 = vunpack.c.l.b16 %v476
      %v925 = vunpack.c.l.b16 %v477
      %v926 = vunpack.c.l.b16 %v478
      %v927 = vunpack.c.l.b16 %v479
      %v928 = vunpack.c.l.b16 %v480
      %v929 = vunpack.c.l.b16 %v481
      %v930 = vunpack.c.l.b16 %v482
      %v931 = vunpack.c.l.b16 %v483
      %v932 = vunpack.c.l.b16 %v484
      %v933 = vunpack.c.l.b16 %v485
      %v934 = vunpack.c.l.b16 %v486
      %v935 = vunpack.c.l.b16 %v487
      %v936 = vunpack.c.l.b16 %v488
      %v937 = vunpack.c.l.b16 %v489
      %v938 = vpack.c.b16 %v875, %v874
      %v939 = vpack.c.b16 %v877, %v876
      %v940 = vpack.c.b16 %v879, %v878
      %v941 = vpack.c.b16 %v881, %v880
      %v942 = vpack.c.b16 %v883, %v882
      %v943 = vpack.c.b16 %v885, %v884
      %v944 = vpack.c.b16 %v887, %v886
      %v945 = vpack.c.b16 %v889, %v888
      %v946 = vpack.c.b16 %v891, %v890
      %v947 = vpack.c.b16 %v893, %v892
      %v948 = vpack.c.b16 %v895, %v894
      %v949 = vpack.c.b16 %v897, %v896
      %v950 = vpack.c.b16 %v899, %v898
      %v951 = vpack.c.b16 %v901, %v900
      %v952 = vpack.c.b16 %v903, %v902
      %v953 = vpack.c.b16 %v905, %v904
      %v954 = vpack.c.b16 %v907, %v906
      %v955 = vpack.c.b16 %v909, %v908
      %v956 = vpack.c.b16 %v911, %v910
      %v957 = vpack.c.b16 %v913, %v912
      %v958 = vpack.c.b16 %v915, %v914
      %v959 = vpack.c.b16 %v917, %v916
      %v960 = vpack.c.b16 %v919, %v918
      %v961 = vpack.c.b16 %v921, %v920
      %v962 = vpack.c.b16 %v923, %v922
      %v963 = vpack.c.b16 %v925, %v924
      %v964 = vpack.c.b16 %v927, %v926
      %v965 = vpack.c.b16 %v929, %v928
      %v966 = vpack.c.b16 %v931, %v930
      %v967 = vpack.c.b16 %v933, %v932
      %v968 = vpack.c.b16 %v935, %v934
      %v969 = vpack.c.b16 %v937, %v936
      %1002 = vmatprep.subr.bf16.mxu0 0
      %1003 = vmatpush1.bf16.msra.mxu0 %v945
      %1004 = vmatprep.subr.bf16.mxu0 0
      %1005 = vmatpush1.bf16.msra.mxu0 %v944
      %1006 = vmatprep.subr.bf16.mxu0 0
      %1007 = vmatpush1.bf16.msra.mxu0 %v943
      %1008 = vmatprep.subr.bf16.mxu0 0
      %1009 = vmatpush1.bf16.msra.mxu0 %v942
      %1010 = vmatprep.subr.bf16.mxu0 0
      %1011 = vmatpush1.bf16.msra.mxu0 %v941
      %1012 = vmatprep.subr.bf16.mxu0 0
      %1013 = vmatpush1.bf16.msra.mxu0 %v940
      %1014 = vmatprep.subr.bf16.mxu0 0
      %1015 = vmatpush1.bf16.msra.mxu0 %v939
      %1016 = vmatprep.subr.bf16.mxu0 0
      %1017 = vmatpush1.bf16.msra.mxu0 %v938
      %1018 = vmatprep.subr.bf16.mxu0 0
      %1019 = vmatpush2.bf16.msra.mxu0 %v953
      %1020 = vmatprep.subr.bf16.mxu0 0
      %1021 = vmatpush2.bf16.msra.mxu0 %v952
      %1022 = vmatprep.subr.bf16.mxu0 0
      %1023 = vmatpush2.bf16.msra.mxu0 %v951
      %1024 = vmatprep.subr.bf16.mxu0 0
      %1025 = vmatpush2.bf16.msra.mxu0 %v950
      %1026 = vmatprep.subr.bf16.mxu0 0
      %1027 = vmatpush2.bf16.msra.mxu0 %v949
      %1028 = vmatprep.subr.bf16.mxu0 0
      %1029 = vmatpush2.bf16.msra.mxu0 %v948
      %1030 = vmatprep.subr.bf16.mxu0 0
      %1031 = vmatpush2.bf16.msra.mxu0 %v947
      %1032 = vmatprep.subr.bf16.mxu0 0
      %1033 = vmatpush2.bf16.msra.mxu0 %v946
      %1034 = vmatprep.mubr.bf16.mxu0 %v683
      %1035 = vmatmul.mubr.bf16.gmra.mxu0 %v682
      %v1036 = vpop.f32.mrf.mxu0
      %v1037 = vadd.f32 0.0, %v1036
      %v1038 = vpop.f32.mrf.mxu0
      %v1039 = vpop.f32.mrf.mxu0
      %v1040 = vadd.f32 0.0, %v1039
      %v1041 = vpop.f32.mrf.mxu0
      %1042 = vmatprep.mubr.bf16.mxu0 %v687
      %1043 = vmatmul.mubr.bf16.gmra.mxu0 %v686
      %v1044 = vpop.f32.mrf.mxu0
      %v1045 = vadd.f32 0.0, %v1044
      %v1046 = vpop.f32.mrf.mxu0
      %v1047 = vpop.f32.mrf.mxu0
      %v1048 = vadd.f32 0.0, %v1047
      %v1049 = vpop.f32.mrf.mxu0
      %1050 = vmatprep.mubr.bf16.mxu0 %v691
      %1051 = vmatmul.mubr.bf16.gmra.mxu0 %v690
      %v1052 = vpop.f32.mrf.mxu0
      %v1053 = vadd.f32 0.0, %v1052
      %v1054 = vpop.f32.mrf.mxu0
      %v1055 = vpop.f32.mrf.mxu0
      %v1056 = vadd.f32 0.0, %v1055
      %v1057 = vpop.f32.mrf.mxu0
      %1058 = vmatprep.mubr.bf16.mxu0 %v695
      %1059 = vmatmul.mubr.bf16.gmra.mxu0 %v694
      %v1060 = vpop.f32.mrf.mxu0
      %v1061 = vadd.f32 0.0, %v1060
      %v1062 = vpop.f32.mrf.mxu0
      %v1063 = vpop.f32.mrf.mxu0
      %v1064 = vadd.f32 0.0, %v1063
      %v1065 = vpop.f32.mrf.mxu0
      %1066 = vmatprep.mubr.bf16.mxu0 %v699
      %1067 = vmatmul.mubr.bf16.gmra.mxu0 %v698
      %v1068 = vpop.f32.mrf.mxu0
      %v1069 = vadd.f32 0.0, %v1068
      %v1070 = vpop.f32.mrf.mxu0
      %v1071 = vpop.f32.mrf.mxu0
      %v1072 = vadd.f32 0.0, %v1071
      %v1073 = vpop.f32.mrf.mxu0
      %1074 = vmatprep.mubr.bf16.mxu0 %v703
      %1075 = vmatmul.mubr.bf16.gmra.mxu0 %v702
      %v1076 = vpop.f32.mrf.mxu0
      %v1077 = vadd.f32 0.0, %v1076
      %v1078 = vpop.f32.mrf.mxu0
      %v1079 = vpop.f32.mrf.mxu0
      %v1080 = vadd.f32 0.0, %v1079
      %v1081 = vpop.f32.mrf.mxu0
      %1082 = vmatprep.mubr.bf16.mxu0 %v707
      %1083 = vmatmul.mubr.bf16.gmra.mxu0 %v706
      %v1084 = vpop.f32.mrf.mxu0
      %v1085 = vadd.f32 0.0, %v1084
      %v1086 = vpop.f32.mrf.mxu0
      %v1087 = vpop.f32.mrf.mxu0
      %v1088 = vadd.f32 0.0, %v1087
      %v1089 = vpop.f32.mrf.mxu0
      %1090 = vmatprep.mubr.bf16.mxu0 %v711
      %1091 = vmatmul.mubr.bf16.gmra.mxu0 %v710
      %v1092 = vpop.f32.mrf.mxu0
      %v1093 = vadd.f32 0.0, %v1092
      %v1094 = vpop.f32.mrf.mxu0
      %v1095 = vpop.f32.mrf.mxu0
      %v1096 = vadd.f32 0.0, %v1095
      %v1097 = vpop.f32.mrf.mxu0
      %1098 = vmatprep.mubr.bf16.mxu0 %v715
      %1099 = vmatmul.mubr.bf16.gmra.mxu0 %v714
      %v1100 = vpop.f32.mrf.mxu0
      %v1101 = vadd.f32 0.0, %v1100
      %v1102 = vpop.f32.mrf.mxu0
      %v1103 = vpop.f32.mrf.mxu0
      %v1104 = vadd.f32 0.0, %v1103
      %v1105 = vpop.f32.mrf.mxu0
      %1106 = vmatprep.mubr.bf16.mxu0 %v719
      %1107 = vmatmul.mubr.bf16.gmra.mxu0 %v718
      %v1108 = vpop.f32.mrf.mxu0
      %v1109 = vadd.f32 0.0, %v1108
      %v1110 = vpop.f32.mrf.mxu0
      %v1111 = vpop.f32.mrf.mxu0
      %v1112 = vadd.f32 0.0, %v1111
      %v1113 = vpop.f32.mrf.mxu0
      %1114 = vmatprep.mubr.bf16.mxu0 %v723
      %1115 = vmatmul.mubr.bf16.gmra.mxu0 %v722
      %v1116 = vpop.f32.mrf.mxu0
      %v1117 = vadd.f32 0.0, %v1116
      %v1118 = vpop.f32.mrf.mxu0
      %v1119 = vpop.f32.mrf.mxu0
      %v1120 = vadd.f32 0.0, %v1119
      %v1121 = vpop.f32.mrf.mxu0
      %1122 = vmatprep.mubr.bf16.mxu0 %v727
      %1123 = vmatmul.mubr.bf16.gmra.mxu0 %v726
      %v1124 = vpop.f32.mrf.mxu0
      %v1125 = vadd.f32 0.0, %v1124
      %v1126 = vpop.f32.mrf.mxu0
      %v1127 = vpop.f32.mrf.mxu0
      %v1128 = vadd.f32 0.0, %v1127
      %v1129 = vpop.f32.mrf.mxu0
      %1130 = vmatprep.mubr.bf16.mxu0 %v731
      %1131 = vmatmul.mubr.bf16.gmra.mxu0 %v730
      %v1132 = vpop.f32.mrf.mxu0
      %v1133 = vadd.f32 0.0, %v1132
      %v1134 = vpop.f32.mrf.mxu0
      %v1135 = vpop.f32.mrf.mxu0
      %v1136 = vadd.f32 0.0, %v1135
      %v1137 = vpop.f32.mrf.mxu0
      %1138 = vmatprep.mubr.bf16.mxu0 %v735
      %1139 = vmatmul.mubr.bf16.gmra.mxu0 %v734
      %v1140 = vpop.f32.mrf.mxu0
      %v1141 = vadd.f32 0.0, %v1140
      %v1142 = vpop.f32.mrf.mxu0
      %v1143 = vpop.f32.mrf.mxu0
      %v1144 = vadd.f32 0.0, %v1143
      %v1145 = vpop.f32.mrf.mxu0
      %1146 = vmatprep.mubr.bf16.mxu0 %v739
      %1147 = vmatmul.mubr.bf16.gmra.mxu0 %v738
      %v1148 = vpop.f32.mrf.mxu0
      %v1149 = vadd.f32 0.0, %v1148
      %v1150 = vpop.f32.mrf.mxu0
      %v1151 = vpop.f32.mrf.mxu0
      %v1152 = vadd.f32 0.0, %v1151
      %v1153 = vpop.f32.mrf.mxu0
      %1154 = vmatprep.mubr.bf16.mxu0 %v743
      %1155 = vmatmul.mubr.bf16.gmra.mxu0 %v742
      %v1156 = vpop.f32.mrf.mxu0
      %v1157 = vadd.f32 0.0, %v1156
      %v1158 = vpop.f32.mrf.mxu0
      %v1159 = vpop.f32.mrf.mxu0
      %v1160 = vadd.f32 0.0, %v1159
      %v1161 = vpop.f32.mrf.mxu0
      %1162 = vdwg.mxu0
      %1163 = vmatprep.subr.bf16.mxu0 0
      %1164 = vmatpush1.bf16.msra.mxu0 %v961
      %1165 = vmatprep.subr.bf16.mxu0 0
      %1166 = vmatpush1.bf16.msra.mxu0 %v960
      %1167 = vmatprep.subr.bf16.mxu0 0
      %1168 = vmatpush1.bf16.msra.mxu0 %v959
      %1169 = vmatprep.subr.bf16.mxu0 0
      %1170 = vmatpush1.bf16.msra.mxu0 %v958
      %1171 = vmatprep.subr.bf16.mxu0 0
      %1172 = vmatpush1.bf16.msra.mxu0 %v957
      %1173 = vmatprep.subr.bf16.mxu0 0
      %1174 = vmatpush1.bf16.msra.mxu0 %v956
      %1175 = vmatprep.subr.bf16.mxu0 0
      %1176 = vmatpush1.bf16.msra.mxu0 %v955
      %1177 = vmatprep.subr.bf16.mxu0 0
      %1178 = vmatpush1.bf16.msra.mxu0 %v954
      %1179 = vmatprep.subr.bf16.mxu0 0
      %1180 = vmatpush2.bf16.msra.mxu0 %v969
      %1181 = vmatprep.subr.bf16.mxu0 0
      %1182 = vmatpush2.bf16.msra.mxu0 %v968
      %1183 = vmatprep.subr.bf16.mxu0 0
      %1184 = vmatpush2.bf16.msra.mxu0 %v967
      %1185 = vmatprep.subr.bf16.mxu0 0
      %1186 = vmatpush2.bf16.msra.mxu0 %v966
      %1187 = vmatprep.subr.bf16.mxu0 0
      %1188 = vmatpush2.bf16.msra.mxu0 %v965
      %1189 = vmatprep.subr.bf16.mxu0 0
      %1190 = vmatpush2.bf16.msra.mxu0 %v964
      %1191 = vmatprep.subr.bf16.mxu0 0
      %1192 = vmatpush2.bf16.msra.mxu0 %v963
      %1193 = vmatprep.subr.bf16.mxu0 0
      %1194 = vmatpush2.bf16.msra.mxu0 %v962
      %1195 = vmatprep.mubr.bf16.mxu0 %v685
      %1196 = vmatmul.mubr.bf16.gmra.mxu0 %v684
      %v1197 = vpop.f32.mrf.mxu0
      %v1198 = vadd.f32 %v1037, %v1197
      %v1199 = vpop.f32.mrf.mxu0
      %v1200 = vpop.f32.mrf.mxu0
      %v1201 = vadd.f32 %v1040, %v1200
      %v1202 = vpop.f32.mrf.mxu0
      %1203 = vmatprep.mubr.bf16.mxu0 %v689
      %1204 = vmatmul.mubr.bf16.gmra.mxu0 %v688
      %v1205 = vpop.f32.mrf.mxu0
      %v1206 = vadd.f32 %v1045, %v1205
      %v1207 = vpop.f32.mrf.mxu0
      %v1208 = vpop.f32.mrf.mxu0
      %v1209 = vadd.f32 %v1048, %v1208
      %v1210 = vpop.f32.mrf.mxu0
      %1211 = vmatprep.mubr.bf16.mxu0 %v693
      %1212 = vmatmul.mubr.bf16.gmra.mxu0 %v692
      %v1213 = vpop.f32.mrf.mxu0
      %v1214 = vadd.f32 %v1053, %v1213
      %v1215 = vpop.f32.mrf.mxu0
      %v1216 = vpop.f32.mrf.mxu0
      %v1217 = vadd.f32 %v1056, %v1216
      %v1218 = vpop.f32.mrf.mxu0
      %1219 = vmatprep.mubr.bf16.mxu0 %v697
      %1220 = vmatmul.mubr.bf16.gmra.mxu0 %v696
      %v1221 = vpop.f32.mrf.mxu0
      %v1222 = vadd.f32 %v1061, %v1221
      %v1223 = vpop.f32.mrf.mxu0
      %v1224 = vpop.f32.mrf.mxu0
      %v1225 = vadd.f32 %v1064, %v1224
      %v1226 = vpop.f32.mrf.mxu0
      %1227 = vmatprep.mubr.bf16.mxu0 %v701
      %1228 = vmatmul.mubr.bf16.gmra.mxu0 %v700
      %v1229 = vpop.f32.mrf.mxu0
      %v1230 = vadd.f32 %v1069, %v1229
      %v1231 = vpop.f32.mrf.mxu0
      %v1232 = vpop.f32.mrf.mxu0
      %v1233 = vadd.f32 %v1072, %v1232
      %v1234 = vpop.f32.mrf.mxu0
      %1235 = vmatprep.mubr.bf16.mxu0 %v705
      %1236 = vmatmul.mubr.bf16.gmra.mxu0 %v704
      %v1237 = vpop.f32.mrf.mxu0
      %v1238 = vadd.f32 %v1077, %v1237
      %v1239 = vpop.f32.mrf.mxu0
      %v1240 = vpop.f32.mrf.mxu0
      %v1241 = vadd.f32 %v1080, %v1240
      %v1242 = vpop.f32.mrf.mxu0
      %1243 = vmatprep.mubr.bf16.mxu0 %v709
      %1244 = vmatmul.mubr.bf16.gmra.mxu0 %v708
      %v1245 = vpop.f32.mrf.mxu0
      %v1246 = vadd.f32 %v1085, %v1245
      %v1247 = vpop.f32.mrf.mxu0
      %v1248 = vpop.f32.mrf.mxu0
      %v1249 = vadd.f32 %v1088, %v1248
      %v1250 = vpop.f32.mrf.mxu0
      %1251 = vmatprep.mubr.bf16.mxu0 %v713
      %1252 = vmatmul.mubr.bf16.gmra.mxu0 %v712
      %v1253 = vpop.f32.mrf.mxu0
      %v1254 = vadd.f32 %v1093, %v1253
      %v1255 = vpop.f32.mrf.mxu0
      %v1256 = vpop.f32.mrf.mxu0
      %v1257 = vadd.f32 %v1096, %v1256
      %v1258 = vpop.f32.mrf.mxu0
      %1259 = vmatprep.mubr.bf16.mxu0 %v717
      %1260 = vmatmul.mubr.bf16.gmra.mxu0 %v716
      %v1261 = vpop.f32.mrf.mxu0
      %v1262 = vadd.f32 %v1101, %v1261
      %v1263 = vpop.f32.mrf.mxu0
      %v1264 = vpop.f32.mrf.mxu0
      %v1265 = vadd.f32 %v1104, %v1264
      %v1266 = vpop.f32.mrf.mxu0
      %1267 = vmatprep.mubr.bf16.mxu0 %v721
      %1268 = vmatmul.mubr.bf16.gmra.mxu0 %v720
      %v1269 = vpop.f32.mrf.mxu0
      %v1270 = vadd.f32 %v1109, %v1269
      %v1271 = vpop.f32.mrf.mxu0
      %v1272 = vpop.f32.mrf.mxu0
      %v1273 = vadd.f32 %v1112, %v1272
      %v1274 = vpop.f32.mrf.mxu0
      %1275 = vmatprep.mubr.bf16.mxu0 %v725
      %1276 = vmatmul.mubr.bf16.gmra.mxu0 %v724
      %v1277 = vpop.f32.mrf.mxu0
      %v1278 = vadd.f32 %v1117, %v1277
      %v1279 = vpop.f32.mrf.mxu0
      %v1280 = vpop.f32.mrf.mxu0
      %v1281 = vadd.f32 %v1120, %v1280
      %v1282 = vpop.f32.mrf.mxu0
      %1283 = vmatprep.mubr.bf16.mxu0 %v729
      %1284 = vmatmul.mubr.bf16.gmra.mxu0 %v728
      %v1285 = vpop.f32.mrf.mxu0
      %v1286 = vadd.f32 %v1125, %v1285
      %v1287 = vpop.f32.mrf.mxu0
      %v1288 = vpop.f32.mrf.mxu0
      %v1289 = vadd.f32 %v1128, %v1288
      %v1290 = vpop.f32.mrf.mxu0
      %1291 = vmatprep.mubr.bf16.mxu0 %v733
      %1292 = vmatmul.mubr.bf16.gmra.mxu0 %v732
      %v1293 = vpop.f32.mrf.mxu0
      %v1294 = vadd.f32 %v1133, %v1293
      %v1295 = vpop.f32.mrf.mxu0
      %v1296 = vpop.f32.mrf.mxu0
      %v1297 = vadd.f32 %v1136, %v1296
      %v1298 = vpop.f32.mrf.mxu0
      %1299 = vmatprep.mubr.bf16.mxu0 %v737
      %1300 = vmatmul.mubr.bf16.gmra.mxu0 %v736
      %v1301 = vpop.f32.mrf.mxu0
      %v1302 = vadd.f32 %v1141, %v1301
      %v1303 = vpop.f32.mrf.mxu0
      %v1304 = vpop.f32.mrf.mxu0
      %v1305 = vadd.f32 %v1144, %v1304
      %v1306 = vpop.f32.mrf.mxu0
      %1307 = vmatprep.mubr.bf16.mxu0 %v741
      %1308 = vmatmul.mubr.bf16.gmra.mxu0 %v740
      %v1309 = vpop.f32.mrf.mxu0
      %v1310 = vadd.f32 %v1149, %v1309
      %v1311 = vpop.f32.mrf.mxu0
      %v1312 = vpop.f32.mrf.mxu0
      %v1313 = vadd.f32 %v1152, %v1312
      %v1314 = vpop.f32.mrf.mxu0
      %1315 = vmatprep.mubr.bf16.mxu0 %v745
      %1316 = vmatmul.mubr.bf16.gmra.mxu0 %v744
      %v1317 = vpop.f32.mrf.mxu0
      %v1318 = vadd.f32 %v1157, %v1317
      %v1319 = vpop.f32.mrf.mxu0
      %v1320 = vpop.f32.mrf.mxu0
      %v1321 = vadd.f32 %v1160, %v1320
      %v1322 = vpop.f32.mrf.mxu0
      %1323 = vdwg.mxu0
      %v1324 = vadd.f32 %v330, %v1198
      %v1325 = vadd.f32 %v331, %v1201
      %v1326 = vadd.f32 %v332, %v1206
      %v1327 = vadd.f32 %v333, %v1209
      %v1328 = vadd.f32 %v334, %v1214
      %v1329 = vadd.f32 %v335, %v1217
      %v1330 = vadd.f32 %v336, %v1222
      %v1331 = vadd.f32 %v337, %v1225
      %v1332 = vadd.f32 %v338, %v1230
      %v1333 = vadd.f32 %v339, %v1233
      %v1334 = vadd.f32 %v340, %v1238
      %v1335 = vadd.f32 %v341, %v1241
      %v1336 = vadd.f32 %v342, %v1246
      %v1337 = vadd.f32 %v343, %v1249
      %v1338 = vadd.f32 %v344, %v1254
      %v1339 = vadd.f32 %v345, %v1257
      %v1340 = vadd.f32 %v346, %v1262
      %v1341 = vadd.f32 %v347, %v1265
      %v1342 = vadd.f32 %v348, %v1270
      %v1343 = vadd.f32 %v349, %v1273
      %v1344 = vadd.f32 %v350, %v1278
      %v1345 = vadd.f32 %v351, %v1281
      %v1346 = vadd.f32 %v352, %v1286
      %v1347 = vadd.f32 %v353, %v1289
      %v1348 = vadd.f32 %v354, %v1294
      %v1349 = vadd.f32 %v355, %v1297
      %v1350 = vadd.f32 %v356, %v1302
      %v1351 = vadd.f32 %v357, %v1305
      %v1352 = vadd.f32 %v358, %v1310
      %v1353 = vadd.f32 %v359, %v1313
      %v1354 = vadd.f32 %v360, %v1318
      %v1355 = vadd.f32 %v361, %v1321
      %1356 = vst [vmem:[#allocation2] sm:$0xff] %v1324
      %1357 = vst [vmem:[#allocation2 + $0x8] sm:$0xff] %v1325
      %1358 = vst [vmem:[#allocation2 + $0x10] sm:$0xff] %v1326
      %1359 = vst [vmem:[#allocation2 + $0x18] sm:$0xff] %v1327
      %1360 = vst [vmem:[#allocation2 + $0x20] sm:$0xff] %v1328
      %1361 = vst [vmem:[#allocation2 + $0x28] sm:$0xff] %v1329
      %1362 = vst [vmem:[#allocation2 + $0x30] sm:$0xff] %v1330
      %1363 = vst [vmem:[#allocation2 + $0x38] sm:$0xff] %v1331
      %1364 = vst [vmem:[#allocation2 + $0x40] sm:$0xff] %v1332
      %1365 = vst [vmem:[#allocation2 + $0x48] sm:$0xff] %v1333
      %1366 = vst [vmem:[#allocation2 + $0x50] sm:$0xff] %v1334
      %1367 = vst [vmem:[#allocation2 + $0x58] sm:$0xff] %v1335
      %1368 = vst [vmem:[#allocation2 + $0x60] sm:$0xff] %v1336
      %1369 = vst [vmem:[#allocation2 + $0x68] sm:$0xff] %v1337
      %1370 = vst [vmem:[#allocation2 + $0x70] sm:$0xff] %v1338
      %1371 = vst [vmem:[#allocation2 + $0x78] sm:$0xff] %v1339
      %1372 = vst [vmem:[#allocation2 + $0x80] sm:$0xff] %v1340
      %1373 = vst [vmem:[#allocation2 + $0x88] sm:$0xff] %v1341
      %1374 = vst [vmem:[#allocation2 + $0x90] sm:$0xff] %v1342
      %1375 = vst [vmem:[#allocation2 + $0x98] sm:$0xff] %v1343
      %1376 = vst [vmem:[#allocation2 + $0xa0] sm:$0xff] %v1344
      %1377 = vst [vmem:[#allocation2 + $0xa8] sm:$0xff] %v1345
      %1378 = vst [vmem:[#allocation2 + $0xb0] sm:$0xff] %v1346
      %1379 = vst [vmem:[#allocation2 + $0xb8] sm:$0xff] %v1347
      %1380 = vst [vmem:[#allocation2 + $0xc0] sm:$0xff] %v1348
      %1381 = vst [vmem:[#allocation2 + $0xc8] sm:$0xff] %v1349
      %1382 = vst [vmem:[#allocation2 + $0xd0] sm:$0xff] %v1350
      %1383 = vst [vmem:[#allocation2 + $0xd8] sm:$0xff] %v1351
      %1384 = vst [vmem:[#allocation2 + $0xe0] sm:$0xff] %v1352
      %1385 = vst [vmem:[#allocation2 + $0xe8] sm:$0xff] %v1353
      %1386 = vst [vmem:[#allocation2 + $0xf0] sm:$0xff] %v1354
      %1387 = vst [vmem:[#allocation2 + $0xf8] sm:$0xff] %v1355
      // Predicated region
      $region33: #{topdown_generator_forward.15} parent=27 // pred_check
        %p1388 = pneg %p294
      $region34: #{topdown_generator_forward.15} parent=27 // pred_check_branch
        %1390 = sbr.rel (%p1388) target = $region36
      $region35: #{topdown_generator_forward.15} parent=27 // pred_region
        %v1391 = vld [vmem:[#allocation2] sm:$0xff]
        %v1392 = vld [vmem:[#allocation2 + $0x8] sm:$0xff]
        %v1393 = vld [vmem:[#allocation2 + $0x10] sm:$0xff]
        %v1394 = vld [vmem:[#allocation2 + $0x18] sm:$0xff]
        %v1395 = vld [vmem:[#allocation2 + $0x20] sm:$0xff]
        %v1396 = vld [vmem:[#allocation2 + $0x28] sm:$0xff]
        %v1397 = vld [vmem:[#allocation2 + $0x30] sm:$0xff]
        %v1398 = vld [vmem:[#allocation2 + $0x38] sm:$0xff]
        %v1399 = vld [vmem:[#allocation2 + $0x40] sm:$0xff]
        %v1400 = vld [vmem:[#allocation2 + $0x48] sm:$0xff]
        %v1401 = vld [vmem:[#allocation2 + $0x50] sm:$0xff]
        %v1402 = vld [vmem:[#allocation2 + $0x58] sm:$0xff]
        %v1403 = vld [vmem:[#allocation2 + $0x60] sm:$0xff]
        %v1404 = vld [vmem:[#allocation2 + $0x68] sm:$0xff]
        %v1405 = vld [vmem:[#allocation2 + $0x70] sm:$0xff]
        %v1406 = vld [vmem:[#allocation2 + $0x78] sm:$0xff]
        %v1407 = vld [vmem:[#allocation2 + $0x80] sm:$0xff]
        %v1408 = vld [vmem:[#allocation2 + $0x88] sm:$0xff]
        %v1409 = vld [vmem:[#allocation2 + $0x90] sm:$0xff]
        %v1410 = vld [vmem:[#allocation2 + $0x98] sm:$0xff]
        %v1411 = vld [vmem:[#allocation2 + $0xa0] sm:$0xff]
        %v1412 = vld [vmem:[#allocation2 + $0xa8] sm:$0xff]
        %v1413 = vld [vmem:[#allocation2 + $0xb0] sm:$0xff]
        %v1414 = vld [vmem:[#allocation2 + $0xb8] sm:$0xff]
        %v1415 = vld [vmem:[#allocation2 + $0xc0] sm:$0xff]
        %v1416 = vld [vmem:[#allocation2 + $0xc8] sm:$0xff]
        %v1417 = vld [vmem:[#allocation2 + $0xd0] sm:$0xff]
        %v1418 = vld [vmem:[#allocation2 + $0xd8] sm:$0xff]
        %v1419 = vld [vmem:[#allocation2 + $0xe0] sm:$0xff]
        %v1420 = vld [vmem:[#allocation2 + $0xe8] sm:$0xff]
        %v1421 = vld [vmem:[#allocation2 + $0xf0] sm:$0xff]
        %v1422 = vld [vmem:[#allocation2 + $0xf8] sm:$0xff]
        %v1423 = vpack.c.bf16 %v1392, %v1391
        %v1424 = vpack.c.bf16 %v1394, %v1393
        %v1425 = vpack.c.bf16 %v1396, %v1395
        %v1426 = vpack.c.bf16 %v1398, %v1397
        %v1427 = vpack.c.bf16 %v1400, %v1399
        %v1428 = vpack.c.bf16 %v1402, %v1401
        %v1429 = vpack.c.bf16 %v1404, %v1403
        %v1430 = vpack.c.bf16 %v1406, %v1405
        %v1431 = vpack.c.bf16 %v1408, %v1407
        %v1432 = vpack.c.bf16 %v1410, %v1409
        %v1433 = vpack.c.bf16 %v1412, %v1411
        %v1434 = vpack.c.bf16 %v1414, %v1413
        %v1435 = vpack.c.bf16 %v1416, %v1415
        %v1436 = vpack.c.bf16 %v1418, %v1417
        %v1437 = vpack.c.bf16 %v1420, %v1419
        %v1438 = vpack.c.bf16 %v1422, %v1421
        %v1455 = vunpack.c.l.b16 %v1423
        %v1456 = vunpack.c.h.b16 %v1423
        %v1457 = vunpack.c.l.b16 %v1424
        %v1458 = vunpack.c.h.b16 %v1424
        %v1459 = vunpack.c.l.b16 %v1425
        %v1460 = vunpack.c.h.b16 %v1425
        %v1461 = vunpack.c.l.b16 %v1426
        %v1462 = vunpack.c.h.b16 %v1426
        %v1463 = vunpack.c.l.b16 %v1427
        %v1464 = vunpack.c.h.b16 %v1427
        %v1465 = vunpack.c.l.b16 %v1428
        %v1466 = vunpack.c.h.b16 %v1428
        %v1467 = vunpack.c.l.b16 %v1429
        %v1468 = vunpack.c.h.b16 %v1429
        %v1469 = vunpack.c.l.b16 %v1430
        %v1470 = vunpack.c.h.b16 %v1430
        %v1471 = vunpack.c.l.b16 %v1431
        %v1472 = vunpack.c.h.b16 %v1431
        %v1473 = vunpack.c.l.b16 %v1432
        %v1474 = vunpack.c.h.b16 %v1432
        %v1475 = vunpack.c.l.b16 %v1433
        %v1476 = vunpack.c.h.b16 %v1433
        %v1477 = vunpack.c.l.b16 %v1434
        %v1478 = vunpack.c.h.b16 %v1434
        %v1479 = vunpack.c.l.b16 %v1435
        %v1480 = vunpack.c.h.b16 %v1435
        %v1481 = vunpack.c.l.b16 %v1436
        %v1482 = vunpack.c.h.b16 %v1436
        %v1483 = vunpack.c.l.b16 %v1437
        %v1484 = vunpack.c.h.b16 %v1437
        %v1485 = vunpack.c.l.b16 %v1438
        %v1486 = vunpack.c.h.b16 %v1438
        %v1487 = vpack.c.b16 %v1455, %v1455
        %v1488 = vpack.c.b16 %v1456, %v1456
        %v1489 = vpack.c.b16 %v1457, %v1457
        %v1490 = vpack.c.b16 %v1458, %v1458
        %v1491 = vpack.c.b16 %v1459, %v1459
        %v1492 = vpack.c.b16 %v1460, %v1460
        %v1493 = vpack.c.b16 %v1461, %v1461
        %v1494 = vpack.c.b16 %v1462, %v1462
        %v1495 = vpack.c.b16 %v1463, %v1463
        %v1496 = vpack.c.b16 %v1464, %v1464
        %v1497 = vpack.c.b16 %v1465, %v1465
        %v1498 = vpack.c.b16 %v1466, %v1466
        %v1499 = vpack.c.b16 %v1467, %v1467
        %v1500 = vpack.c.b16 %v1468, %v1468
        %v1501 = vpack.c.b16 %v1469, %v1469
        %v1502 = vpack.c.b16 %v1470, %v1470
        %v1503 = vpack.c.b16 %v1471, %v1471
        %v1504 = vpack.c.b16 %v1472, %v1472
        %v1505 = vpack.c.b16 %v1473, %v1473
        %v1506 = vpack.c.b16 %v1474, %v1474
        %v1507 = vpack.c.b16 %v1475, %v1475
        %v1508 = vpack.c.b16 %v1476, %v1476
        %v1509 = vpack.c.b16 %v1477, %v1477
        %v1510 = vpack.c.b16 %v1478, %v1478
        %v1511 = vpack.c.b16 %v1479, %v1479
        %v1512 = vpack.c.b16 %v1480, %v1480
        %v1513 = vpack.c.b16 %v1481, %v1481
        %v1514 = vpack.c.b16 %v1482, %v1482
        %v1515 = vpack.c.b16 %v1483, %v1483
        %v1516 = vpack.c.b16 %v1484, %v1484
        %v1517 = vpack.c.b16 %v1485, %v1485
        %v1518 = vpack.c.b16 %v1486, %v1486
        %1551 = vst [vmem:[%s283] sm:$0xf] %v1487
        %1552 = vst [vmem:[%s283 + $0x4] sm:$0xf] %v1488
        %1553 = vst [vmem:[%s283 + $0x8] sm:$0xf] %v1489
        %1554 = vst [vmem:[%s283 + $0xc] sm:$0xf] %v1490
        %1555 = vst [vmem:[%s283 + $0x10] sm:$0xf] %v1491
        %1556 = vst [vmem:[%s283 + $0x14] sm:$0xf] %v1492
        %1557 = vst [vmem:[%s283 + $0x18] sm:$0xf] %v1493
        %1558 = vst [vmem:[%s283 + $0x1c] sm:$0xf] %v1494
        %1559 = vst [vmem:[%s283 + $0x20] sm:$0xf] %v1495
        %1560 = vst [vmem:[%s283 + $0x24] sm:$0xf] %v1496
        %1561 = vst [vmem:[%s283 + $0x28] sm:$0xf] %v1497
        %1562 = vst [vmem:[%s283 + $0x2c] sm:$0xf] %v1498
        %1563 = vst [vmem:[%s283 + $0x30] sm:$0xf] %v1499
        %1564 = vst [vmem:[%s283 + $0x34] sm:$0xf] %v1500
        %1565 = vst [vmem:[%s283 + $0x38] sm:$0xf] %v1501
        %1566 = vst [vmem:[%s283 + $0x3c] sm:$0xf] %v1502
        %1567 = vst [vmem:[%s283 + $0x40] sm:$0xf] %v1503
        %1568 = vst [vmem:[%s283 + $0x44] sm:$0xf] %v1504
        %1569 = vst [vmem:[%s283 + $0x48] sm:$0xf] %v1505
        %1570 = vst [vmem:[%s283 + $0x4c] sm:$0xf] %v1506
        %1571 = vst [vmem:[%s283 + $0x50] sm:$0xf] %v1507
        %1572 = vst [vmem:[%s283 + $0x54] sm:$0xf] %v1508
        %1573 = vst [vmem:[%s283 + $0x58] sm:$0xf] %v1509
        %1574 = vst [vmem:[%s283 + $0x5c] sm:$0xf] %v1510
        %1575 = vst [vmem:[%s283 + $0x60] sm:$0xf] %v1511
        %1576 = vst [vmem:[%s283 + $0x64] sm:$0xf] %v1512
        %1577 = vst [vmem:[%s283 + $0x68] sm:$0xf] %v1513
        %1578 = vst [vmem:[%s283 + $0x6c] sm:$0xf] %v1514
        %1579 = vst [vmem:[%s283 + $0x70] sm:$0xf] %v1515
        %1580 = vst [vmem:[%s283 + $0x74] sm:$0xf] %v1516
        %1581 = vst [vmem:[%s283 + $0x78] sm:$0xf] %v1517
        %1582 = vst [vmem:[%s283 + $0x7c] sm:$0xf] %v1518
        %v1583 = vadd.f32 %v1391, %v1392
        %v1584 = vadd.f32 %v1583, %v1393
        %v1585 = vadd.f32 %v1584, %v1394
        %v1586 = vadd.f32 %v1585, %v1395
        %v1587 = vadd.f32 %v1586, %v1396
        %v1588 = vadd.f32 %v1587, %v1397
        %v1589 = vadd.f32 %v1588, %v1398
        %v1590 = vadd.f32 %v1589, %v1399
        %v1591 = vadd.f32 %v1590, %v1400
        %v1592 = vadd.f32 %v1591, %v1401
        %v1593 = vadd.f32 %v1592, %v1402
        %v1594 = vadd.f32 %v1593, %v1403
        %v1595 = vadd.f32 %v1594, %v1404
        %v1596 = vadd.f32 %v1595, %v1405
        %v1597 = vadd.f32 %v1596, %v1406
        %v1598 = vadd.f32 %v1597, %v1407
        %v1599 = vadd.f32 %v1598, %v1408
        %v1600 = vadd.f32 %v1599, %v1409
        %v1601 = vadd.f32 %v1600, %v1410
        %v1602 = vadd.f32 %v1601, %v1411
        %v1603 = vadd.f32 %v1602, %v1412
        %v1604 = vadd.f32 %v1603, %v1413
        %v1605 = vadd.f32 %v1604, %v1414
        %v1606 = vadd.f32 %v1605, %v1415
        %v1607 = vadd.f32 %v1606, %v1416
        %v1608 = vadd.f32 %v1607, %v1417
        %v1609 = vadd.f32 %v1608, %v1418
        %v1610 = vadd.f32 %v1609, %v1419
        %v1611 = vadd.f32 %v1610, %v1420
        %v1612 = vadd.f32 %v1611, %v1421
        %v1613 = vadd.f32 %v1612, %v1422
        %v1614 = vrot.slane %v1613, 4
        %v1615 = vadd.f32 %v1613, %v1614
        %v1616 = vrot.slane %v1615, 2
        %v1617 = vadd.f32 %v1615, %v1616
        %v1618 = vrot.slane %v1617, 1
        %v1619 = vadd.f32 %v1617, %v1618
        %v1620 = vmul.f32 %v1391, %v1391
        %v1621 = vmul.f32 %v1392, %v1392
        %v1622 = vmul.f32 %v1393, %v1393
        %v1623 = vmul.f32 %v1394, %v1394
        %v1624 = vmul.f32 %v1395, %v1395
        %v1625 = vmul.f32 %v1396, %v1396
        %v1626 = vmul.f32 %v1397, %v1397
        %v1627 = vmul.f32 %v1398, %v1398
        %v1628 = vmul.f32 %v1399, %v1399
        %v1629 = vmul.f32 %v1400, %v1400
        %v1630 = vmul.f32 %v1401, %v1401
        %v1631 = vmul.f32 %v1402, %v1402
        %v1632 = vmul.f32 %v1403, %v1403
        %v1633 = vmul.f32 %v1404, %v1404
        %v1634 = vmul.f32 %v1405, %v1405
        %v1635 = vmul.f32 %v1406, %v1406
        %v1636 = vmul.f32 %v1407, %v1407
        %v1637 = vmul.f32 %v1408, %v1408
        %v1638 = vmul.f32 %v1409, %v1409
        %v1639 = vmul.f32 %v1410, %v1410
        %v1640 = vmul.f32 %v1411, %v1411
        %v1641 = vmul.f32 %v1412, %v1412
        %v1642 = vmul.f32 %v1413, %v1413
        %v1643 = vmul.f32 %v1414, %v1414
        %v1644 = vmul.f32 %v1415, %v1415
        %v1645 = vmul.f32 %v1416, %v1416
        %v1646 = vmul.f32 %v1417, %v1417
        %v1647 = vmul.f32 %v1418, %v1418
        %v1648 = vmul.f32 %v1419, %v1419
        %v1649 = vmul.f32 %v1420, %v1420
        %v1650 = vmul.f32 %v1421, %v1421
        %v1651 = vmul.f32 %v1422, %v1422
        %v1652 = vadd.f32 %v1620, %v1621
        %v1653 = vadd.f32 %v1652, %v1622
        %v1654 = vadd.f32 %v1653, %v1623
        %v1655 = vadd.f32 %v1654, %v1624
        %v1656 = vadd.f32 %v1655, %v1625
        %v1657 = vadd.f32 %v1656, %v1626
        %v1658 = vadd.f32 %v1657, %v1627
        %v1659 = vadd.f32 %v1658, %v1628
        %v1660 = vadd.f32 %v1659, %v1629
        %v1661 = vadd.f32 %v1660, %v1630
        %v1662 = vadd.f32 %v1661, %v1631
        %v1663 = vadd.f32 %v1662, %v1632
        %v1664 = vadd.f32 %v1663, %v1633
        %v1665 = vadd.f32 %v1664, %v1634
        %v1666 = vadd.f32 %v1665, %v1635
        %v1667 = vadd.f32 %v1666, %v1636
        %v1668 = vadd.f32 %v1667, %v1637
        %v1669 = vadd.f32 %v1668, %v1638
        %v1670 = vadd.f32 %v1669, %v1639
        %v1671 = vadd.f32 %v1670, %v1640
        %v1672 = vadd.f32 %v1671, %v1641
        %v1673 = vadd.f32 %v1672, %v1642
        %v1674 = vadd.f32 %v1673, %v1643
        %v1675 = vadd.f32 %v1674, %v1644
        %v1676 = vadd.f32 %v1675, %v1645
        %v1677 = vadd.f32 %v1676, %v1646
        %v1678 = vadd.f32 %v1677, %v1647
        %v1679 = vadd.f32 %v1678, %v1648
        %v1680 = vadd.f32 %v1679, %v1649
        %v1681 = vadd.f32 %v1680, %v1650
        %v1682 = vadd.f32 %v1681, %v1651
        %v1683 = vrot.slane %v1682, 4
        %v1684 = vadd.f32 %v1682, %v1683
        %v1685 = vrot.slane %v1684, 2
        %v1686 = vadd.f32 %v1684, %v1685
        %v1687 = vrot.slane %v1686, 1
        %v1688 = vadd.f32 %v1686, %v1687
        %vm1689 = vcmask 1040384
        %v1690 = vsel %vm1689, %v1619, %v1688
        %vm1691 = vcmask 1041408
        %v1692 = vsel %vm1691, %v1690, 0.0
        %1693 = vst [vmem:[%s292] sm:$0xff] %v1692
      $region36: #{topdown_generator_forward.15} parent=27 // pred_fallthru
        _
      %s1694 = smul.u32 32, %s21
      %p1695 = scmp.lt.s32.totalorder %s20, 3
      %s1696 = scalar_select %p1695, %s20, 3
      %p1697 = scmp.lt.s32.totalorder %s1694, 63
      %s1698 = scalar_select %p1697, %s1694, 63
      %s1699 = smul.addr %s1696, 64
      %s1700 = sadd.s32 %s1698, %s1699
      %s1701 = smul.addr %s1700, 4
      %s1702 = scalar_lea.vmem %s2, %s1701
      %p1703 = scmp.lt.s32.totalorder %s20, 3
      %s1704 = scalar_select %p1703, %s20, 3
      %p1705 = scmp.lt.s32.totalorder %s21, 1
      %s1706 = scalar_select %p1705, %s21, 1
      %s1707 = smul.addr %s1704, 2
      %s1708 = sadd.s32 %s1706, %s1707
      %s1709 = smul.addr %s1708, 8
      %s1710 = scalar_lea.vmem %s3, %s1709
      // Predicated region
      $region37: #{topdown_generator_forward.15} parent=27 // pred_check
        %p1711 = pneg %p112
      $region38: #{topdown_generator_forward.15} parent=27 // pred_check_branch
        %1713 = sbr.rel (%p1711) target = $region40
      $region39: #{topdown_generator_forward.15} parent=27 // pred_region
        %s1714 = smul.u32 32, %s21
      $region40: #{topdown_generator_forward.15} parent=27 // pred_fallthru
        _
      // Predicated region
      $region41: #{topdown_generator_forward.15} parent=27 // pred_check
        %p1715 = pneg %p140
      $region42: #{topdown_generator_forward.15} parent=27 // pred_check_branch
        %1717 = sbr.rel (%p1715) target = $region44
      $region43: #{topdown_generator_forward.15} parent=27 // pred_region
        _
      $region44: #{topdown_generator_forward.15} parent=27 // pred_fallthru
        _
    $region28: #{topdown_generator_forward.15} parent=5 // pred_fallthru
      _
    %p1718 = scmp.le.s32.totalorder 2, %s10
    // Predicated region
    $region45: #{topdown_generator_forward.15} parent=5 // pred_check
      %p1719 = pneg %p1718
    $region46: #{topdown_generator_forward.15} parent=5 // pred_check_branch
      %1721 = sbr.rel (%p1719) target = $region48
    $region47: #{topdown_generator_forward.15} parent=5 // pred_region
      %s1722 = ssub.s32 %s10, 2
      // Predicated region
      $region49: #{topdown_generator_forward.15} parent=47 // pred_check
        %p1723 = pneg %p118
      $region50: #{topdown_generator_forward.15} parent=47 // pred_check_branch
        %1725 = sbr.rel (%p1723) target = $region52
      $region51: #{topdown_generator_forward.15} parent=47 // pred_region
        %s1726 = smul.u32 32, %s24
        %p1727 = scmp.lt.s32.totalorder %s23, 3
        %s1728 = scalar_select %p1727, %s23, 3
        %p1729 = scmp.lt.s32.totalorder %s1726, 63
        %s1730 = scalar_select %p1729, %s1726, 63
        %s1731 = smul.addr %s1728, 64
        %s1732 = sadd.s32 %s1730, %s1731
        %s1733 = smul.addr %s1732, 4
        %s1734 = scalar_lea.vmem %s2, %s1733
      $region52: #{topdown_generator_forward.15} parent=47 // pred_fallthru
        _
      // Predicated region
      $region53: #{topdown_generator_forward.15} parent=47 // pred_check
        %p1735 = pneg %p146
      $region54: #{topdown_generator_forward.15} parent=47 // pred_check_branch
        %1737 = sbr.rel (%p1735) target = $region56
      $region55: #{topdown_generator_forward.15} parent=47 // pred_region
        %p1738 = scmp.lt.s32.totalorder %s23, 3
        %s1739 = scalar_select %p1738, %s23, 3
        %p1740 = scmp.lt.s32.totalorder %s24, 1
        %s1741 = scalar_select %p1740, %s24, 1
        %s1742 = smul.addr %s1739, 2
        %s1743 = sadd.s32 %s1741, %s1742
        %s1744 = smul.addr %s1743, 8
        %s1745 = scalar_lea.vmem %s3, %s1744
      $region56: #{topdown_generator_forward.15} parent=47 // pred_fallthru
        _
    $region48: #{topdown_generator_forward.15} parent=5 // pred_fallthru
      _
  $region6: #{topdown_generator_forward.15} parent=0 // loop_footer
    %s14 = sadd.s32 1, %s10
  $region7: #{topdown_generator_forward.15} parent=0 // loop_footer_branch
    %9 = sbr.rel target = $region3
  $region8: #{topdown_generator_forward.15} parent=0 // loop_exit
    _

// kernel: topdown_generator_forward.16
$region0: #{topdown_generator_forward.16}
  #allocation0 [shape = 'u32[]', space=smem, size = 0x4, offset = 0x4, fixed_abs, tag = 'smem constant byte address 0x4 - core index']
  #allocation1 [shape = 'u32[144,128]{1,0:T(1,128)}', space=vmem, size = 0x12000, scoped, tag = 'internal scratch']
  %s0 = inlined_call_operand.vmem [shape: bf16[2048,128], index: 0, kind: input, shape index: {}]
  %s1 = inlined_call_operand.vmem [shape: f32[1,128], index: 1, kind: input, shape index: {}]
  %s2 = inlined_call_operand.vmem [shape: f32[1,128], index: 2, kind: input, shape index: {}]
  %s3 = inlined_call_operand.vmem [shape: bf16[2048,128], index: 3, kind: output, shape index: {}]
  %s4 = sld [smem:[#allocation0]]
  $region45: #{topdown_generator_forward.16} parent=0
    _
  %s6 = ssub.s32 1, %s4
  %s7 = scalar_select 0, %s6, %s4
  loop: start=0, step=1, limit=4
  $region2: #{topdown_generator_forward.16} parent=0 // loop_pre_header
    _
  $region3: #{topdown_generator_forward.16} parent=0 // loop_header
    %s9 = sphi 0, %s13
    %p10 = scmp.ge.s32.totalorder %s9, 4
    %s19 = sphi 0, %s21
    %s22 = sphi 0, %s19
    %s23 = sphi 0, %s22
    %s39 = sphi 0, %s23
    %s43 = sphi 0, %s43
    %s45 = sphi 0, %s43
    %s46 = sphi 0, %s45
    %s60 = sphi 0, %s46
    %s64 = sphi 0, %s64
    %s66 = sphi 0, %s64
    %s67 = sphi 0, %s66
    %s81 = sphi 0, %s67
    %s87 = sphi 0, %s89
    %s90 = sphi 0, %s87
    %s91 = sphi 0, %s90
    %s107 = sphi 0, %s91
  $region4: #{topdown_generator_forward.16} parent=0 // loop_header_branch
    %12 = sbr.rel (%p10) target = $region8
  $region5: #{topdown_generator_forward.16} parent=0 // loop_body
    %s14 = ssub.s32 %s9, 1
    %s15 = ssub.s32 %s9, 2
    %s16 = sadd.s32 %s9, 1
    %s17 = ssub.s32 %s9, %s16
    %p18 = scmp.eq.s32.totalorder %s17, 0
    %s20 = sadd.s32 %s19, 1
    %s21 = scalar_select %p18, %s19, %s20
    %p24 = pneg %p18
    %p25 = scmp.eq.s32.totalorder %s9, 1
    %p26 = por %p24, %p25
    %p27 = scmp.ne.s32.totalorder %s19, %s22
    %p28 = scmp.eq.s32.totalorder %s9, 0
    %p29 = por %p27, %p28
    %p30 = scmp.ne.s32.totalorder %s19, %s22
    %p31 = scmp.eq.s32.totalorder %s14, 1
    %p32 = por %p30, %p31
    %p33 = scmp.ne.s32.totalorder %s22, %s23
    %p34 = scmp.eq.s32.totalorder %s14, 0
    %p35 = por %p33, %p34
    %p36 = scmp.ne.s32.totalorder %s22, %s23
    %p37 = scmp.eq.s32.totalorder %s15, 1
    %p38 = por %p36, %p37
    %p40 = scmp.ne.s32.totalorder %s23, %s39
    %p41 = scmp.eq.s32.totalorder %s15, 0
    %p42 = por %p40, %p41
    %s44 = sadd.s32 %s43, 1
    %p47 = scmp.eq.s32.totalorder %s9, 1
    %p48 = scmp.ne.s32.totalorder %s43, %s45
    %p49 = scmp.eq.s32.totalorder %s9, 0
    %p50 = por %p48, %p49
    %p51 = scmp.ne.s32.totalorder %s43, %s45
    %p52 = scmp.eq.s32.totalorder %s14, 1
    %p53 = por %p51, %p52
    %p54 = scmp.ne.s32.totalorder %s45, %s46
    %p55 = scmp.eq.s32.totalorder %s14, 0
    %p56 = por %p54, %p55
    %p57 = scmp.ne.s32.totalorder %s45, %s46
    %p58 = scmp.eq.s32.totalorder %s15, 1
    %p59 = por %p57, %p58
    %p61 = scmp.ne.s32.totalorder %s46, %s60
    %p62 = scmp.eq.s32.totalorder %s15, 0
    %p63 = por %p61, %p62
    %s65 = sadd.s32 %s64, 1
    %p68 = scmp.eq.s32.totalorder %s9, 1
    %p69 = scmp.ne.s32.totalorder %s64, %s66
    %p70 = scmp.eq.s32.totalorder %s9, 0
    %p71 = por %p69, %p70
    %p72 = scmp.ne.s32.totalorder %s64, %s66
    %p73 = scmp.eq.s32.totalorder %s14, 1
    %p74 = por %p72, %p73
    %p75 = scmp.ne.s32.totalorder %s66, %s67
    %p76 = scmp.eq.s32.totalorder %s14, 0
    %p77 = por %p75, %p76
    %p78 = scmp.ne.s32.totalorder %s66, %s67
    %p79 = scmp.eq.s32.totalorder %s15, 1
    %p80 = por %p78, %p79
    %p82 = scmp.ne.s32.totalorder %s67, %s81
    %p83 = scmp.eq.s32.totalorder %s15, 0
    %p84 = por %p82, %p83
    %s85 = ssub.s32 %s9, %s16
    %p86 = scmp.eq.s32.totalorder %s85, 0
    %s88 = sadd.s32 %s87, 1
    %s89 = scalar_select %p86, %s87, %s88
    %p92 = pneg %p86
    %p93 = scmp.eq.s32.totalorder %s9, 1
    %p94 = por %p92, %p93
    %p95 = scmp.ne.s32.totalorder %s87, %s90
    %p96 = scmp.eq.s32.totalorder %s9, 0
    %p97 = por %p95, %p96
    %p98 = scmp.ne.s32.totalorder %s87, %s90
    %p99 = scmp.eq.s32.totalorder %s14, 1
    %p100 = por %p98, %p99
    %p101 = scmp.ne.s32.totalorder %s90, %s91
    %p102 = scmp.eq.s32.totalorder %s14, 0
    %p103 = por %p101, %p102
    %p104 = scmp.ne.s32.totalorder %s90, %s91
    %p105 = scmp.eq.s32.totalorder %s15, 1
    %p106 = por %p104, %p105
    %p108 = scmp.ne.s32.totalorder %s91, %s107
    %p109 = scmp.eq.s32.totalorder %s15, 0
    %p110 = por %p108, %p109
    %p111 = scmp.le.s32.totalorder 1, %s9
    %p112 = scmp.lt.s32.totalorder %s9, 3
    %p113 = pnand %p111, %p112
    %p114 = pneg %p113
    // Predicated region
    $region9: #{topdown_generator_forward.16} parent=5 // pred_check
      _
    $region10: #{topdown_generator_forward.16} parent=5 // pred_check_branch
      %116 = sbr.rel (%p113) target = $region12
    $region11: #{topdown_generator_forward.16} parent=5 // pred_region
      %s117 = ssub.s32 %s9, 1
      // Predicated region
      $region13: #{topdown_generator_forward.16} parent=11 // pred_check
        %p118 = pneg %p56
      $region14: #{topdown_generator_forward.16} parent=11 // pred_check_branch
        %120 = sbr.rel (%p118) target = $region16
      $region15: #{topdown_generator_forward.16} parent=11 // pred_region
        _
      $region16: #{topdown_generator_forward.16} parent=11 // pred_fallthru
        _
      // Predicated region
      $region17: #{topdown_generator_forward.16} parent=11 // pred_check
        %p121 = pneg %p77
      $region18: #{topdown_generator_forward.16} parent=11 // pred_check_branch
        %123 = sbr.rel (%p121) target = $region20
      $region19: #{topdown_generator_forward.16} parent=11 // pred_region
        _
      $region20: #{topdown_generator_forward.16} parent=11 // pred_fallthru
        _
    $region12: #{topdown_generator_forward.16} parent=5 // pred_fallthru
      _
    %p124 = scmp.lt.s32.totalorder %s9, 2
    // Predicated region
    $region21: #{topdown_generator_forward.16} parent=5 // pred_check
      %p125 = pneg %p124
    $region22: #{topdown_generator_forward.16} parent=5 // pred_check_branch
      %127 = sbr.rel (%p125) target = $region24
    $region23: #{topdown_generator_forward.16} parent=5 // pred_region
      // Predicated region
      $region25: #{topdown_generator_forward.16} parent=23 // pred_check
        %p128 = pneg %p29
      $region26: #{topdown_generator_forward.16} parent=23 // pred_check_branch
        %130 = sbr.rel (%p128) target = $region28
      $region27: #{topdown_generator_forward.16} parent=23 // pred_region
        %s131 = smul.u32 128, %s9
        %p132 = scmp.lt.s32.totalorder %s131, 255
        %s133 = scalar_select %p132, %s131, 255
        %s134 = smul.addr %s133, 4
        %s135 = scalar_lea.vmem %s0, %s134
        %s136 = smul.u32 128, %s9
      $region28: #{topdown_generator_forward.16} parent=23 // pred_fallthru
        _
    $region24: #{topdown_generator_forward.16} parent=5 // pred_fallthru
      _
    %p137 = scmp.le.s32.totalorder 1, %s9
    %p138 = scmp.lt.s32.totalorder %s9, 3
    %p139 = pnand %p137, %p138
    %p140 = pneg %p139
    // Predicated region
    $region29: #{topdown_generator_forward.16} parent=5 // pred_check
      _
    $region30: #{topdown_generator_forward.16} parent=5 // pred_check_branch
      %142 = sbr.rel (%p139) target = $region32
    $region31: #{topdown_generator_forward.16} parent=5 // pred_region
      %s143 = ssub.s32 %s9, 1
      %s144 = smul.u32 128, %s14
      %p145 = scmp.lt.s32.totalorder %s144, 255
      %s146 = scalar_select %p145, %s144, 255
      %s147 = smul.addr %s146, 4
      %s148 = scalar_lea.vmem %s0, %s147
      %p149 = pneg %p35
      %p150 = pneg %p32
      %p151 = pneg %p56
      %p152 = pneg %p53
      %p153 = pneg %p77
      %p154 = pneg %p74
      %p155 = pneg %p103
      %p156 = pneg %p100
      %s157 = smul.u32 128, %s14
      %p158 = scmp.lt.s32.totalorder %s157, 255
      %s159 = scalar_select %p158, %s157, 255
      %s160 = smul.addr %s159, 4
      %s161 = scalar_lea.vmem %s3, %s160
      %s162 = smul.u32 128, %s14
      %p163 = scmp.lt.s32.totalorder %s162, 255
      %s164 = scalar_select %p163, %s162, 255
      %s165 = smul.addr %s164, 4
      %s166 = scalar_lea.vmem %s0, %s165
      %s167 = smul.u32 128, %s14
      %s168 = smul.u32 128, %s14
      %p169 = scmp.lt.s32.totalorder %s168, 255
      %s170 = scalar_select %p169, %s168, 255
      %s171 = smul.addr %s170, 4
      %s172 = scalar_lea.vmem %s3, %s171
      %s173 = smul.u32 128, %s14
      %v174 = vld [vmem:[%s166] sm:$0xf]
      %v175 = vld [vmem:[%s166 + $0x4] sm:$0xf]
      %v176 = vld [vmem:[%s166 + $0x8] sm:$0xf]
      %v177 = vld [vmem:[%s166 + $0xc] sm:$0xf]
      %v178 = vld [vmem:[%s166 + $0x10] sm:$0xf]
      %v179 = vld [vmem:[%s166 + $0x14] sm:$0xf]
      %v180 = vld [vmem:[%s166 + $0x18] sm:$0xf]
      %v181 = vld [vmem:[%s166 + $0x1c] sm:$0xf]
      %v182 = vld [vmem:[%s166 + $0x20] sm:$0xf]
      %v183 = vld [vmem:[%s166 + $0x24] sm:$0xf]
      %v184 = vld [vmem:[%s166 + $0x28] sm:$0xf]
      %v185 = vld [vmem:[%s166 + $0x2c] sm:$0xf]
      %v186 = vld [vmem:[%s166 + $0x30] sm:$0xf]
      %v187 = vld [vmem:[%s166 + $0x34] sm:$0xf]
      %v188 = vld [vmem:[%s166 + $0x38] sm:$0xf]
      %v189 = vld [vmem:[%s166 + $0x3c] sm:$0xf]
      %v190 = vld [vmem:[%s166 + $0x40] sm:$0xf]
      %v191 = vld [vmem:[%s166 + $0x44] sm:$0xf]
      %v192 = vld [vmem:[%s166 + $0x48] sm:$0xf]
      %v193 = vld [vmem:[%s166 + $0x4c] sm:$0xf]
      %v194 = vld [vmem:[%s166 + $0x50] sm:$0xf]
      %v195 = vld [vmem:[%s166 + $0x54] sm:$0xf]
      %v196 = vld [vmem:[%s166 + $0x58] sm:$0xf]
      %v197 = vld [vmem:[%s166 + $0x5c] sm:$0xf]
      %v198 = vld [vmem:[%s166 + $0x60] sm:$0xf]
      %v199 = vld [vmem:[%s166 + $0x64] sm:$0xf]
      %v200 = vld [vmem:[%s166 + $0x68] sm:$0xf]
      %v201 = vld [vmem:[%s166 + $0x6c] sm:$0xf]
      %v202 = vld [vmem:[%s166 + $0x70] sm:$0xf]
      %v203 = vld [vmem:[%s166 + $0x74] sm:$0xf]
      %v204 = vld [vmem:[%s166 + $0x78] sm:$0xf]
      %v205 = vld [vmem:[%s166 + $0x7c] sm:$0xf]
      %v206 = vld [vmem:[%s166 + $0x80] sm:$0xf]
      %v207 = vld [vmem:[%s166 + $0x84] sm:$0xf]
      %v208 = vld [vmem:[%s166 + $0x88] sm:$0xf]
      %v209 = vld [vmem:[%s166 + $0x8c] sm:$0xf]
      %v210 = vld [vmem:[%s166 + $0x90] sm:$0xf]
      %v211 = vld [vmem:[%s166 + $0x94] sm:$0xf]
      %v212 = vld [vmem:[%s166 + $0x98] sm:$0xf]
      %v213 = vld [vmem:[%s166 + $0x9c] sm:$0xf]
      %v214 = vld [vmem:[%s166 + $0xa0] sm:$0xf]
      %v215 = vld [vmem:[%s166 + $0xa4] sm:$0xf]
      %v216 = vld [vmem:[%s166 + $0xa8] sm:$0xf]
      %v217 = vld [vmem:[%s166 + $0xac] sm:$0xf]
      %v218 = vld [vmem:[%s166 + $0xb0] sm:$0xf]
      %v219 = vld [vmem:[%s166 + $0xb4] sm:$0xf]
      %v220 = vld [vmem:[%s166 + $0xb8] sm:$0xf]
      %v221 = vld [vmem:[%s166 + $0xbc] sm:$0xf]
      %v222 = vld [vmem:[%s166 + $0xc0] sm:$0xf]
      %v223 = vld [vmem:[%s166 + $0xc4] sm:$0xf]
      %v224 = vld [vmem:[%s166 + $0xc8] sm:$0xf]
      %v225 = vld [vmem:[%s166 + $0xcc] sm:$0xf]
      %v226 = vld [vmem:[%s166 + $0xd0] sm:$0xf]
      %v227 = vld [vmem:[%s166 + $0xd4] sm:$0xf]
      %v228 = vld [vmem:[%s166 + $0xd8] sm:$0xf]
      %v229 = vld [vmem:[%s166 + $0xdc] sm:$0xf]
      %v230 = vld [vmem:[%s166 + $0xe0] sm:$0xf]
      %v231 = vld [vmem:[%s166 + $0xe4] sm:$0xf]
      %v232 = vld [vmem:[%s166 + $0xe8] sm:$0xf]
      %v233 = vld [vmem:[%s166 + $0xec] sm:$0xf]
      %v234 = vld [vmem:[%s166 + $0xf0] sm:$0xf]
      %v235 = vld [vmem:[%s166 + $0xf4] sm:$0xf]
      %v236 = vld [vmem:[%s166 + $0xf8] sm:$0xf]
      %v237 = vld [vmem:[%s166 + $0xfc] sm:$0xf]
      %v238 = vld [vmem:[%s166 + $0x100] sm:$0xf]
      %v239 = vld [vmem:[%s166 + $0x104] sm:$0xf]
      %v240 = vld [vmem:[%s166 + $0x108] sm:$0xf]
      %v241 = vld [vmem:[%s166 + $0x10c] sm:$0xf]
      %v242 = vld [vmem:[%s166 + $0x110] sm:$0xf]
      %v243 = vld [vmem:[%s166 + $0x114] sm:$0xf]
      %v244 = vld [vmem:[%s166 + $0x118] sm:$0xf]
      %v245 = vld [vmem:[%s166 + $0x11c] sm:$0xf]
      %v246 = vld [vmem:[%s166 + $0x120] sm:$0xf]
      %v247 = vld [vmem:[%s166 + $0x124] sm:$0xf]
      %v248 = vld [vmem:[%s166 + $0x128] sm:$0xf]
      %v249 = vld [vmem:[%s166 + $0x12c] sm:$0xf]
      %v250 = vld [vmem:[%s166 + $0x130] sm:$0xf]
      %v251 = vld [vmem:[%s166 + $0x134] sm:$0xf]
      %v252 = vld [vmem:[%s166 + $0x138] sm:$0xf]
      %v253 = vld [vmem:[%s166 + $0x13c] sm:$0xf]
      %v254 = vld [vmem:[%s166 + $0x140] sm:$0xf]
      %v255 = vld [vmem:[%s166 + $0x144] sm:$0xf]
      %v256 = vld [vmem:[%s166 + $0x148] sm:$0xf]
      %v257 = vld [vmem:[%s166 + $0x14c] sm:$0xf]
      %v258 = vld [vmem:[%s166 + $0x150] sm:$0xf]
      %v259 = vld [vmem:[%s166 + $0x154] sm:$0xf]
      %v260 = vld [vmem:[%s166 + $0x158] sm:$0xf]
      %v261 = vld [vmem:[%s166 + $0x15c] sm:$0xf]
      %v262 = vld [vmem:[%s166 + $0x160] sm:$0xf]
      %v263 = vld [vmem:[%s166 + $0x164] sm:$0xf]
      %v264 = vld [vmem:[%s166 + $0x168] sm:$0xf]
      %v265 = vld [vmem:[%s166 + $0x16c] sm:$0xf]
      %v266 = vld [vmem:[%s166 + $0x170] sm:$0xf]
      %v267 = vld [vmem:[%s166 + $0x174] sm:$0xf]
      %v268 = vld [vmem:[%s166 + $0x178] sm:$0xf]
      %v269 = vld [vmem:[%s166 + $0x17c] sm:$0xf]
      %v270 = vld [vmem:[%s166 + $0x180] sm:$0xf]
      %v271 = vld [vmem:[%s166 + $0x184] sm:$0xf]
      %v272 = vld [vmem:[%s166 + $0x188] sm:$0xf]
      %v273 = vld [vmem:[%s166 + $0x18c] sm:$0xf]
      %v274 = vld [vmem:[%s166 + $0x190] sm:$0xf]
      %v275 = vld [vmem:[%s166 + $0x194] sm:$0xf]
      %v276 = vld [vmem:[%s166 + $0x198] sm:$0xf]
      %v277 = vld [vmem:[%s166 + $0x19c] sm:$0xf]
      %v278 = vld [vmem:[%s166 + $0x1a0] sm:$0xf]
      %v279 = vld [vmem:[%s166 + $0x1a4] sm:$0xf]
      %v280 = vld [vmem:[%s166 + $0x1a8] sm:$0xf]
      %v281 = vld [vmem:[%s166 + $0x1ac] sm:$0xf]
      %v282 = vld [vmem:[%s166 + $0x1b0] sm:$0xf]
      %v283 = vld [vmem:[%s166 + $0x1b4] sm:$0xf]
      %v284 = vld [vmem:[%s166 + $0x1b8] sm:$0xf]
      %v285 = vld [vmem:[%s166 + $0x1bc] sm:$0xf]
      %v286 = vld [vmem:[%s166 + $0x1c0] sm:$0xf]
      %v287 = vld [vmem:[%s166 + $0x1c4] sm:$0xf]
      %v288 = vld [vmem:[%s166 + $0x1c8] sm:$0xf]
      %v289 = vld [vmem:[%s166 + $0x1cc] sm:$0xf]
      %v290 = vld [vmem:[%s166 + $0x1d0] sm:$0xf]
      %v291 = vld [vmem:[%s166 + $0x1d4] sm:$0xf]
      %v292 = vld [vmem:[%s166 + $0x1d8] sm:$0xf]
      %v293 = vld [vmem:[%s166 + $0x1dc] sm:$0xf]
      %v294 = vld [vmem:[%s166 + $0x1e0] sm:$0xf]
      %v295 = vld [vmem:[%s166 + $0x1e4] sm:$0xf]
      %v296 = vld [vmem:[%s166 + $0x1e8] sm:$0xf]
      %v297 = vld [vmem:[%s166 + $0x1ec] sm:$0xf]
      %v298 = vld [vmem:[%s166 + $0x1f0] sm:$0xf]
      %v299 = vld [vmem:[%s166 + $0x1f4] sm:$0xf]
      %v300 = vld [vmem:[%s166 + $0x1f8] sm:$0xf]
      %v301 = vld [vmem:[%s166 + $0x1fc] sm:$0xf]
      %v302 = vunpack.c.l.bf16 %v174
      %v303 = vunpack.c.l.bf16 %v175
      %v304 = vunpack.c.l.bf16 %v176
      %v305 = vunpack.c.l.bf16 %v177
      %v306 = vunpack.c.l.bf16 %v178
      %v307 = vunpack.c.l.bf16 %v179
      %v308 = vunpack.c.l.bf16 %v180
      %v309 = vunpack.c.l.bf16 %v181
      %v310 = vunpack.c.l.bf16 %v182
      %v311 = vunpack.c.l.bf16 %v183
      %v312 = vunpack.c.l.bf16 %v184
      %v313 = vunpack.c.l.bf16 %v185
      %v314 = vunpack.c.l.bf16 %v186
      %v315 = vunpack.c.l.bf16 %v187
      %v316 = vunpack.c.l.bf16 %v188
      %v317 = vunpack.c.l.bf16 %v189
      %v318 = vunpack.c.l.bf16 %v190
      %v319 = vunpack.c.l.bf16 %v191
      %v320 = vunpack.c.l.bf16 %v192
      %v321 = vunpack.c.l.bf16 %v193
      %v322 = vunpack.c.l.bf16 %v194
      %v323 = vunpack.c.l.bf16 %v195
      %v324 = vunpack.c.l.bf16 %v196
      %v325 = vunpack.c.l.bf16 %v197
      %v326 = vunpack.c.l.bf16 %v198
      %v327 = vunpack.c.l.bf16 %v199
      %v328 = vunpack.c.l.bf16 %v200
      %v329 = vunpack.c.l.bf16 %v201
      %v330 = vunpack.c.l.bf16 %v202
      %v331 = vunpack.c.l.bf16 %v203
      %v332 = vunpack.c.l.bf16 %v204
      %v333 = vunpack.c.l.bf16 %v205
      %v334 = vunpack.c.l.bf16 %v206
      %v335 = vunpack.c.l.bf16 %v207
      %v336 = vunpack.c.l.bf16 %v208
      %v337 = vunpack.c.l.bf16 %v209
      %v338 = vunpack.c.l.bf16 %v210
      %v339 = vunpack.c.l.bf16 %v211
      %v340 = vunpack.c.l.bf16 %v212
      %v341 = vunpack.c.l.bf16 %v213
      %v342 = vunpack.c.l.bf16 %v214
      %v343 = vunpack.c.l.bf16 %v215
      %v344 = vunpack.c.l.bf16 %v216
      %v345 = vunpack.c.l.bf16 %v217
      %v346 = vunpack.c.l.bf16 %v218
      %v347 = vunpack.c.l.bf16 %v219
      %v348 = vunpack.c.l.bf16 %v220
      %v349 = vunpack.c.l.bf16 %v221
      %v350 = vunpack.c.l.bf16 %v222
      %v351 = vunpack.c.l.bf16 %v223
      %v352 = vunpack.c.l.bf16 %v224
      %v353 = vunpack.c.l.bf16 %v225
      %v354 = vunpack.c.l.bf16 %v226
      %v355 = vunpack.c.l.bf16 %v227
      %v356 = vunpack.c.l.bf16 %v228
      %v357 = vunpack.c.l.bf16 %v229
      %v358 = vunpack.c.l.bf16 %v230
      %v359 = vunpack.c.l.bf16 %v231
      %v360 = vunpack.c.l.bf16 %v232
      %v361 = vunpack.c.l.bf16 %v233
      %v362 = vunpack.c.l.bf16 %v234
      %v363 = vunpack.c.l.bf16 %v235
      %v364 = vunpack.c.l.bf16 %v236
      %v365 = vunpack.c.l.bf16 %v237
      %v366 = vunpack.c.l.bf16 %v238
      %v367 = vunpack.c.l.bf16 %v239
      %v368 = vunpack.c.l.bf16 %v240
      %v369 = vunpack.c.l.bf16 %v241
      %v370 = vunpack.c.l.bf16 %v242
      %v371 = vunpack.c.l.bf16 %v243
      %v372 = vunpack.c.l.bf16 %v244
      %v373 = vunpack.c.l.bf16 %v245
      %v374 = vunpack.c.l.bf16 %v246
      %v375 = vunpack.c.l.bf16 %v247
      %v376 = vunpack.c.l.bf16 %v248
      %v377 = vunpack.c.l.bf16 %v249
      %v378 = vunpack.c.l.bf16 %v250
      %v379 = vunpack.c.l.bf16 %v251
      %v380 = vunpack.c.l.bf16 %v252
      %v381 = vunpack.c.l.bf16 %v253
      %v382 = vunpack.c.l.bf16 %v254
      %v383 = vunpack.c.l.bf16 %v255
      %v384 = vunpack.c.l.bf16 %v256
      %v385 = vunpack.c.l.bf16 %v257
      %v386 = vunpack.c.l.bf16 %v258
      %v387 = vunpack.c.l.bf16 %v259
      %v388 = vunpack.c.l.bf16 %v260
      %v389 = vunpack.c.l.bf16 %v261
      %v390 = vunpack.c.l.bf16 %v262
      %v391 = vunpack.c.l.bf16 %v263
      %v392 = vunpack.c.l.bf16 %v264
      %v393 = vunpack.c.l.bf16 %v265
      %v394 = vunpack.c.l.bf16 %v266
      %v395 = vunpack.c.l.bf16 %v267
      %v396 = vunpack.c.l.bf16 %v268
      %v397 = vunpack.c.l.bf16 %v269
      %v398 = vunpack.c.l.bf16 %v270
      %v399 = vunpack.c.l.bf16 %v271
      %v400 = vunpack.c.l.bf16 %v272
      %v401 = vunpack.c.l.bf16 %v273
      %v402 = vunpack.c.l.bf16 %v274
      %v403 = vunpack.c.l.bf16 %v275
      %v404 = vunpack.c.l.bf16 %v276
      %v405 = vunpack.c.l.bf16 %v277
      %v406 = vunpack.c.l.bf16 %v278
      %v407 = vunpack.c.l.bf16 %v279
      %v408 = vunpack.c.l.bf16 %v280
      %v409 = vunpack.c.l.bf16 %v281
      %v410 = vunpack.c.l.bf16 %v282
      %v411 = vunpack.c.l.bf16 %v283
      %v412 = vunpack.c.l.bf16 %v284
      %v413 = vunpack.c.l.bf16 %v285
      %v414 = vunpack.c.l.bf16 %v286
      %v415 = vunpack.c.l.bf16 %v287
      %v416 = vunpack.c.l.bf16 %v288
      %v417 = vunpack.c.l.bf16 %v289
      %v418 = vunpack.c.l.bf16 %v290
      %v419 = vunpack.c.l.bf16 %v291
      %v420 = vunpack.c.l.bf16 %v292
      %v421 = vunpack.c.l.bf16 %v293
      %v422 = vunpack.c.l.bf16 %v294
      %v423 = vunpack.c.l.bf16 %v295
      %v424 = vunpack.c.l.bf16 %v296
      %v425 = vunpack.c.l.bf16 %v297
      %v426 = vunpack.c.l.bf16 %v298
      %v427 = vunpack.c.l.bf16 %v299
      %v428 = vunpack.c.l.bf16 %v300
      %v429 = vunpack.c.l.bf16 %v301
      %v430 = vld [vmem:[%s1] sm:$0x1]
      %v432 = vlaneseq
      %v433 = vshrl.u32 %v432, 7
      %v434 = vsub.s32 0, %v433
      %v435 = vrot.slane %v430, %v434
      %v437 = vmul.f32 %v302, %v435
      %v438 = vmul.f32 %v303, %v435
      %v439 = vmul.f32 %v304, %v435
      %v440 = vmul.f32 %v305, %v435
      %v441 = vmul.f32 %v306, %v435
      %v442 = vmul.f32 %v307, %v435
      %v443 = vmul.f32 %v308, %v435
      %v444 = vmul.f32 %v309, %v435
      %v445 = vmul.f32 %v310, %v435
      %v446 = vmul.f32 %v311, %v435
      %v447 = vmul.f32 %v312, %v435
      %v448 = vmul.f32 %v313, %v435
      %v449 = vmul.f32 %v314, %v435
      %v450 = vmul.f32 %v315, %v435
      %v451 = vmul.f32 %v316, %v435
      %v452 = vmul.f32 %v317, %v435
      %v453 = vmul.f32 %v318, %v435
      %v454 = vmul.f32 %v319, %v435
      %v455 = vmul.f32 %v320, %v435
      %v456 = vmul.f32 %v321, %v435
      %v457 = vmul.f32 %v322, %v435
      %v458 = vmul.f32 %v323, %v435
      %v459 = vmul.f32 %v324, %v435
      %v460 = vmul.f32 %v325, %v435
      %v461 = vmul.f32 %v326, %v435
      %v462 = vmul.f32 %v327, %v435
      %v463 = vmul.f32 %v328, %v435
      %v464 = vmul.f32 %v329, %v435
      %v465 = vmul.f32 %v330, %v435
      %v466 = vmul.f32 %v331, %v435
      %v467 = vmul.f32 %v332, %v435
      %v468 = vmul.f32 %v333, %v435
      %v469 = vmul.f32 %v334, %v435
      %v470 = vmul.f32 %v335, %v435
      %v471 = vmul.f32 %v336, %v435
      %v472 = vmul.f32 %v337, %v435
      %v473 = vmul.f32 %v338, %v435
      %v474 = vmul.f32 %v339, %v435
      %v475 = vmul.f32 %v340, %v435
      %v476 = vmul.f32 %v341, %v435
      %v477 = vmul.f32 %v342, %v435
      %v478 = vmul.f32 %v343, %v435
      %v479 = vmul.f32 %v344, %v435
      %v480 = vmul.f32 %v345, %v435
      %v481 = vmul.f32 %v346, %v435
      %v482 = vmul.f32 %v347, %v435
      %v483 = vmul.f32 %v348, %v435
      %v484 = vmul.f32 %v349, %v435
      %v485 = vmul.f32 %v350, %v435
      %v486 = vmul.f32 %v351, %v435
      %v487 = vmul.f32 %v352, %v435
      %v488 = vmul.f32 %v353, %v435
      %v489 = vmul.f32 %v354, %v435
      %v490 = vmul.f32 %v355, %v435
      %v491 = vmul.f32 %v356, %v435
      %v492 = vmul.f32 %v357, %v435
      %v493 = vmul.f32 %v358, %v435
      %v494 = vmul.f32 %v359, %v435
      %v495 = vmul.f32 %v360, %v435
      %v496 = vmul.f32 %v361, %v435
      %v497 = vmul.f32 %v362, %v435
      %v498 = vmul.f32 %v363, %v435
      %v499 = vmul.f32 %v364, %v435
      %v500 = vmul.f32 %v365, %v435
      %v501 = vmul.f32 %v366, %v435
      %v502 = vmul.f32 %v367, %v435
      %v503 = vmul.f32 %v368, %v435
      %v504 = vmul.f32 %v369, %v435
      %v505 = vmul.f32 %v370, %v435
      %v506 = vmul.f32 %v371, %v435
      %v507 = vmul.f32 %v372, %v435
      %v508 = vmul.f32 %v373, %v435
      %v509 = vmul.f32 %v374, %v435
      %v510 = vmul.f32 %v375, %v435
      %v511 = vmul.f32 %v376, %v435
      %v512 = vmul.f32 %v377, %v435
      %v513 = vmul.f32 %v378, %v435
      %v514 = vmul.f32 %v379, %v435
      %v515 = vmul.f32 %v380, %v435
      %v516 = vmul.f32 %v381, %v435
      %v517 = vmul.f32 %v382, %v435
      %v518 = vmul.f32 %v383, %v435
      %v519 = vmul.f32 %v384, %v435
      %v520 = vmul.f32 %v385, %v435
      %v521 = vmul.f32 %v386, %v435
      %v522 = vmul.f32 %v387, %v435
      %v523 = vmul.f32 %v388, %v435
      %v524 = vmul.f32 %v389, %v435
      %v525 = vmul.f32 %v390, %v435
      %v526 = vmul.f32 %v391, %v435
      %v527 = vmul.f32 %v392, %v435
      %v528 = vmul.f32 %v393, %v435
      %v529 = vmul.f32 %v394, %v435
      %v530 = vmul.f32 %v395, %v435
      %v531 = vmul.f32 %v396, %v435
      %v532 = vmul.f32 %v397, %v435
      %v533 = vmul.f32 %v398, %v435
      %v534 = vmul.f32 %v399, %v435
      %v535 = vmul.f32 %v400, %v435
      %v536 = vmul.f32 %v401, %v435
      %v537 = vmul.f32 %v402, %v435
      %v538 = vmul.f32 %v403, %v435
      %v539 = vmul.f32 %v404, %v435
      %v540 = vmul.f32 %v405, %v435
      %v541 = vmul.f32 %v406, %v435
      %v542 = vmul.f32 %v407, %v435
      %v543 = vmul.f32 %v408, %v435
      %v544 = vmul.f32 %v409, %v435
      %v545 = vmul.f32 %v410, %v435
      %v546 = vmul.f32 %v411, %v435
      %v547 = vmul.f32 %v412, %v435
      %v548 = vmul.f32 %v413, %v435
      %v549 = vmul.f32 %v414, %v435
      %v550 = vmul.f32 %v415, %v435
      %v551 = vmul.f32 %v416, %v435
      %v552 = vmul.f32 %v417, %v435
      %v553 = vmul.f32 %v418, %v435
      %v554 = vmul.f32 %v419, %v435
      %v555 = vmul.f32 %v420, %v435
      %v556 = vmul.f32 %v421, %v435
      %v557 = vmul.f32 %v422, %v435
      %v558 = vmul.f32 %v423, %v435
      %v559 = vmul.f32 %v424, %v435
      %v560 = vmul.f32 %v425, %v435
      %v561 = vmul.f32 %v426, %v435
      %v562 = vmul.f32 %v427, %v435
      %v563 = vmul.f32 %v428, %v435
      %v564 = vmul.f32 %v429, %v435
      %v565 = vld [vmem:[%s2] sm:$0x1]
      %v567 = vlaneseq
      %v568 = vshrl.u32 %v567, 7
      %v569 = vsub.s32 0, %v568
      %v570 = vrot.slane %v565, %v569
      %v572 = vadd.f32 %v437, %v570
      %v573 = vadd.f32 %v438, %v570
      %v574 = vadd.f32 %v439, %v570
      %v575 = vadd.f32 %v440, %v570
      %v576 = vadd.f32 %v441, %v570
      %v577 = vadd.f32 %v442, %v570
      %v578 = vadd.f32 %v443, %v570
      %v579 = vadd.f32 %v444, %v570
      %v580 = vadd.f32 %v445, %v570
      %v581 = vadd.f32 %v446, %v570
      %v582 = vadd.f32 %v447, %v570
      %v583 = vadd.f32 %v448, %v570
      %v584 = vadd.f32 %v449, %v570
      %v585 = vadd.f32 %v450, %v570
      %v586 = vadd.f32 %v451, %v570
      %v587 = vadd.f32 %v452, %v570
      %v588 = vadd.f32 %v453, %v570
      %v589 = vadd.f32 %v454, %v570
      %v590 = vadd.f32 %v455, %v570
      %v591 = vadd.f32 %v456, %v570
      %v592 = vadd.f32 %v457, %v570
      %v593 = vadd.f32 %v458, %v570
      %v594 = vadd.f32 %v459, %v570
      %v595 = vadd.f32 %v460, %v570
      %v596 = vadd.f32 %v461, %v570
      %v597 = vadd.f32 %v462, %v570
      %v598 = vadd.f32 %v463, %v570
      %v599 = vadd.f32 %v464, %v570
      %v600 = vadd.f32 %v465, %v570
      %v601 = vadd.f32 %v466, %v570
      %v602 = vadd.f32 %v467, %v570
      %v603 = vadd.f32 %v468, %v570
      %v604 = vadd.f32 %v469, %v570
      %v605 = vadd.f32 %v470, %v570
      %v606 = vadd.f32 %v471, %v570
      %v607 = vadd.f32 %v472, %v570
      %v608 = vadd.f32 %v473, %v570
      %v609 = vadd.f32 %v474, %v570
      %v610 = vadd.f32 %v475, %v570
      %v611 = vadd.f32 %v476, %v570
      %v612 = vadd.f32 %v477, %v570
      %v613 = vadd.f32 %v478, %v570
      %v614 = vadd.f32 %v479, %v570
      %v615 = vadd.f32 %v480, %v570
      %v616 = vadd.f32 %v481, %v570
      %v617 = vadd.f32 %v482, %v570
      %v618 = vadd.f32 %v483, %v570
      %v619 = vadd.f32 %v484, %v570
      %v620 = vadd.f32 %v485, %v570
      %v621 = vadd.f32 %v486, %v570
      %v622 = vadd.f32 %v487, %v570
      %v623 = vadd.f32 %v488, %v570
      %v624 = vadd.f32 %v489, %v570
      %v625 = vadd.f32 %v490, %v570
      %v626 = vadd.f32 %v491, %v570
      %v627 = vadd.f32 %v492, %v570
      %v628 = vadd.f32 %v493, %v570
      %v629 = vadd.f32 %v494, %v570
      %v630 = vadd.f32 %v495, %v570
      %v631 = vadd.f32 %v496, %v570
      %v632 = vadd.f32 %v497, %v570
      %v633 = vadd.f32 %v498, %v570
      %v634 = vadd.f32 %v499, %v570
      %v635 = vadd.f32 %v500, %v570
      %v636 = vadd.f32 %v501, %v570
      %v637 = vadd.f32 %v502, %v570
      %v638 = vadd.f32 %v503, %v570
      %v639 = vadd.f32 %v504, %v570
      %v640 = vadd.f32 %v505, %v570
      %v641 = vadd.f32 %v506, %v570
      %v642 = vadd.f32 %v507, %v570
      %v643 = vadd.f32 %v508, %v570
      %v644 = vadd.f32 %v509, %v570
      %v645 = vadd.f32 %v510, %v570
      %v646 = vadd.f32 %v511, %v570
      %v647 = vadd.f32 %v512, %v570
      %v648 = vadd.f32 %v513, %v570
      %v649 = vadd.f32 %v514, %v570
      %v650 = vadd.f32 %v515, %v570
      %v651 = vadd.f32 %v516, %v570
      %v652 = vadd.f32 %v517, %v570
      %v653 = vadd.f32 %v518, %v570
      %v654 = vadd.f32 %v519, %v570
      %v655 = vadd.f32 %v520, %v570
      %v656 = vadd.f32 %v521, %v570
      %v657 = vadd.f32 %v522, %v570
      %v658 = vadd.f32 %v523, %v570
      %v659 = vadd.f32 %v524, %v570
      %v660 = vadd.f32 %v525, %v570
      %v661 = vadd.f32 %v526, %v570
      %v662 = vadd.f32 %v527, %v570
      %v663 = vadd.f32 %v528, %v570
      %v664 = vadd.f32 %v529, %v570
      %v665 = vadd.f32 %v530, %v570
      %v666 = vadd.f32 %v531, %v570
      %v667 = vadd.f32 %v532, %v570
      %v668 = vadd.f32 %v533, %v570
      %v669 = vadd.f32 %v534, %v570
      %v670 = vadd.f32 %v535, %v570
      %v671 = vadd.f32 %v536, %v570
      %v672 = vadd.f32 %v537, %v570
      %v673 = vadd.f32 %v538, %v570
      %v674 = vadd.f32 %v539, %v570
      %v675 = vadd.f32 %v540, %v570
      %v676 = vadd.f32 %v541, %v570
      %v677 = vadd.f32 %v542, %v570
      %v678 = vadd.f32 %v543, %v570
      %v679 = vadd.f32 %v544, %v570
      %v680 = vadd.f32 %v545, %v570
      %v681 = vadd.f32 %v546, %v570
      %v682 = vadd.f32 %v547, %v570
      %v683 = vadd.f32 %v548, %v570
      %v684 = vadd.f32 %v549, %v570
      %v685 = vadd.f32 %v550, %v570
      %v686 = vadd.f32 %v551, %v570
      %v687 = vadd.f32 %v552, %v570
      %v688 = vadd.f32 %v553, %v570
      %v689 = vadd.f32 %v554, %v570
      %v690 = vadd.f32 %v555, %v570
      %v691 = vadd.f32 %v556, %v570
      %v692 = vadd.f32 %v557, %v570
      %v693 = vadd.f32 %v558, %v570
      %v694 = vadd.f32 %v559, %v570
      %v695 = vadd.f32 %v560, %v570
      %v696 = vadd.f32 %v561, %v570
      %v697 = vadd.f32 %v562, %v570
      %v698 = vadd.f32 %v563, %v570
      %v699 = vadd.f32 %v564, %v570
      %v700 = vmax.f32 %v572, 0.0
      %v701 = vmax.f32 %v573, 0.0
      %v702 = vmax.f32 %v574, 0.0
      %v703 = vmax.f32 %v575, 0.0
      %v704 = vmax.f32 %v576, 0.0
      %v705 = vmax.f32 %v577, 0.0
      %v706 = vmax.f32 %v578, 0.0
      %v707 = vmax.f32 %v579, 0.0
      %v708 = vmax.f32 %v580, 0.0
      %v709 = vmax.f32 %v581, 0.0
      %v710 = vmax.f32 %v582, 0.0
      %v711 = vmax.f32 %v583, 0.0
      %v712 = vmax.f32 %v584, 0.0
      %v713 = vmax.f32 %v585, 0.0
      %v714 = vmax.f32 %v586, 0.0
      %v715 = vmax.f32 %v587, 0.0
      %v716 = vmax.f32 %v588, 0.0
      %v717 = vmax.f32 %v589, 0.0
      %v718 = vmax.f32 %v590, 0.0
      %v719 = vmax.f32 %v591, 0.0
      %v720 = vmax.f32 %v592, 0.0
      %v721 = vmax.f32 %v593, 0.0
      %v722 = vmax.f32 %v594, 0.0
      %v723 = vmax.f32 %v595, 0.0
      %v724 = vmax.f32 %v596, 0.0
      %v725 = vmax.f32 %v597, 0.0
      %v726 = vmax.f32 %v598, 0.0
      %v727 = vmax.f32 %v599, 0.0
      %v728 = vmax.f32 %v600, 0.0
      %v729 = vmax.f32 %v601, 0.0
      %v730 = vmax.f32 %v602, 0.0
      %v731 = vmax.f32 %v603, 0.0
      %v732 = vmax.f32 %v604, 0.0
      %v733 = vmax.f32 %v605, 0.0
      %v734 = vmax.f32 %v606, 0.0
      %v735 = vmax.f32 %v607, 0.0
      %v736 = vmax.f32 %v608, 0.0
      %v737 = vmax.f32 %v609, 0.0
      %v738 = vmax.f32 %v610, 0.0
      %v739 = vmax.f32 %v611, 0.0
      %v740 = vmax.f32 %v612, 0.0
      %v741 = vmax.f32 %v613, 0.0
      %v742 = vmax.f32 %v614, 0.0
      %v743 = vmax.f32 %v615, 0.0
      %v744 = vmax.f32 %v616, 0.0
      %v745 = vmax.f32 %v617, 0.0
      %v746 = vmax.f32 %v618, 0.0
      %v747 = vmax.f32 %v619, 0.0
      %v748 = vmax.f32 %v620, 0.0
      %v749 = vmax.f32 %v621, 0.0
      %v750 = vmax.f32 %v622, 0.0
      %v751 = vmax.f32 %v623, 0.0
      %v752 = vmax.f32 %v624, 0.0
      %v753 = vmax.f32 %v625, 0.0
      %v754 = vmax.f32 %v626, 0.0
      %v755 = vmax.f32 %v627, 0.0
      %v756 = vmax.f32 %v628, 0.0
      %v757 = vmax.f32 %v629, 0.0
      %v758 = vmax.f32 %v630, 0.0
      %v759 = vmax.f32 %v631, 0.0
      %v760 = vmax.f32 %v632, 0.0
      %v761 = vmax.f32 %v633, 0.0
      %v762 = vmax.f32 %v634, 0.0
      %v763 = vmax.f32 %v635, 0.0
      %v764 = vmax.f32 %v636, 0.0
      %v765 = vmax.f32 %v637, 0.0
      %v766 = vmax.f32 %v638, 0.0
      %v767 = vmax.f32 %v639, 0.0
      %v768 = vmax.f32 %v640, 0.0
      %v769 = vmax.f32 %v641, 0.0
      %v770 = vmax.f32 %v642, 0.0
      %v771 = vmax.f32 %v643, 0.0
      %v772 = vmax.f32 %v644, 0.0
      %v773 = vmax.f32 %v645, 0.0
      %v774 = vmax.f32 %v646, 0.0
      %v775 = vmax.f32 %v647, 0.0
      %v776 = vmax.f32 %v648, 0.0
      %v777 = vmax.f32 %v649, 0.0
      %v778 = vmax.f32 %v650, 0.0
      %v779 = vmax.f32 %v651, 0.0
      %v780 = vmax.f32 %v652, 0.0
      %v781 = vmax.f32 %v653, 0.0
      %v782 = vmax.f32 %v654, 0.0
      %v783 = vmax.f32 %v655, 0.0
      %v784 = vmax.f32 %v656, 0.0
      %v785 = vmax.f32 %v657, 0.0
      %v786 = vmax.f32 %v658, 0.0
      %v787 = vmax.f32 %v659, 0.0
      %v788 = vmax.f32 %v660, 0.0
      %v789 = vmax.f32 %v661, 0.0
      %v790 = vmax.f32 %v662, 0.0
      %v791 = vmax.f32 %v663, 0.0
      %v792 = vmax.f32 %v664, 0.0
      %v793 = vmax.f32 %v665, 0.0
      %v794 = vmax.f32 %v666, 0.0
      %v795 = vmax.f32 %v667, 0.0
      %v796 = vmax.f32 %v668, 0.0
      %v797 = vmax.f32 %v669, 0.0
      %v798 = vmax.f32 %v670, 0.0
      %v799 = vmax.f32 %v671, 0.0
      %v800 = vmax.f32 %v672, 0.0
      %v801 = vmax.f32 %v673, 0.0
      %v802 = vmax.f32 %v674, 0.0
      %v803 = vmax.f32 %v675, 0.0
      %v804 = vmax.f32 %v676, 0.0
      %v805 = vmax.f32 %v677, 0.0
      %v806 = vmax.f32 %v678, 0.0
      %v807 = vmax.f32 %v679, 0.0
      %v808 = vmax.f32 %v680, 0.0
      %v809 = vmax.f32 %v681, 0.0
      %v810 = vmax.f32 %v682, 0.0
      %v811 = vmax.f32 %v683, 0.0
      %v812 = vmax.f32 %v684, 0.0
      %v813 = vmax.f32 %v685, 0.0
      %v814 = vmax.f32 %v686, 0.0
      %v815 = vmax.f32 %v687, 0.0
      %v816 = vmax.f32 %v688, 0.0
      %v817 = vmax.f32 %v689, 0.0
      %v818 = vmax.f32 %v690, 0.0
      %v819 = vmax.f32 %v691, 0.0
      %v820 = vmax.f32 %v692, 0.0
      %v821 = vmax.f32 %v693, 0.0
      %v822 = vmax.f32 %v694, 0.0
      %v823 = vmax.f32 %v695, 0.0
      %v824 = vmax.f32 %v696, 0.0
      %v825 = vmax.f32 %v697, 0.0
      %v826 = vmax.f32 %v698, 0.0
      %v827 = vmax.f32 %v699, 0.0
      %v828 = vpack.c.bf16 %v701, %v700
      %v829 = vpack.c.bf16 %v703, %v702
      %v830 = vpack.c.bf16 %v705, %v704
      %v831 = vpack.c.bf16 %v707, %v706
      %v832 = vpack.c.bf16 %v709, %v708
      %v833 = vpack.c.bf16 %v711, %v710
      %v834 = vpack.c.bf16 %v713, %v712
      %v835 = vpack.c.bf16 %v715, %v714
      %v836 = vpack.c.bf16 %v717, %v716
      %v837 = vpack.c.bf16 %v719, %v718
      %v838 = vpack.c.bf16 %v721, %v720
      %v839 = vpack.c.bf16 %v723, %v722
      %v840 = vpack.c.bf16 %v725, %v724
      %v841 = vpack.c.bf16 %v727, %v726
      %v842 = vpack.c.bf16 %v729, %v728
      %v843 = vpack.c.bf16 %v731, %v730
      %v844 = vpack.c.bf16 %v733, %v732
      %v845 = vpack.c.bf16 %v735, %v734
      %v846 = vpack.c.bf16 %v737, %v736
      %v847 = vpack.c.bf16 %v739, %v738
      %v848 = vpack.c.bf16 %v741, %v740
      %v849 = vpack.c.bf16 %v743, %v742
      %v850 = vpack.c.bf16 %v745, %v744
      %v851 = vpack.c.bf16 %v747, %v746
      %v852 = vpack.c.bf16 %v749, %v748
      %v853 = vpack.c.bf16 %v751, %v750
      %v854 = vpack.c.bf16 %v753, %v752
      %v855 = vpack.c.bf16 %v755, %v754
      %v856 = vpack.c.bf16 %v757, %v756
      %v857 = vpack.c.bf16 %v759, %v758
      %v858 = vpack.c.bf16 %v761, %v760
      %v859 = vpack.c.bf16 %v763, %v762
      %v860 = vpack.c.bf16 %v765, %v764
      %v861 = vpack.c.bf16 %v767, %v766
      %v862 = vpack.c.bf16 %v769, %v768
      %v863 = vpack.c.bf16 %v771, %v770
      %v864 = vpack.c.bf16 %v773, %v772
      %v865 = vpack.c.bf16 %v775, %v774
      %v866 = vpack.c.bf16 %v777, %v776
      %v867 = vpack.c.bf16 %v779, %v778
      %v868 = vpack.c.bf16 %v781, %v780
      %v869 = vpack.c.bf16 %v783, %v782
      %v870 = vpack.c.bf16 %v785, %v784
      %v871 = vpack.c.bf16 %v787, %v786
      %v872 = vpack.c.bf16 %v789, %v788
      %v873 = vpack.c.bf16 %v791, %v790
      %v874 = vpack.c.bf16 %v793, %v792
      %v875 = vpack.c.bf16 %v795, %v794
      %v876 = vpack.c.bf16 %v797, %v796
      %v877 = vpack.c.bf16 %v799, %v798
      %v878 = vpack.c.bf16 %v801, %v800
      %v879 = vpack.c.bf16 %v803, %v802
      %v880 = vpack.c.bf16 %v805, %v804
      %v881 = vpack.c.bf16 %v807, %v806
      %v882 = vpack.c.bf16 %v809, %v808
      %v883 = vpack.c.bf16 %v811, %v810
      %v884 = vpack.c.bf16 %v813, %v812
      %v885 = vpack.c.bf16 %v815, %v814
      %v886 = vpack.c.bf16 %v817, %v816
      %v887 = vpack.c.bf16 %v819, %v818
      %v888 = vpack.c.bf16 %v821, %v820
      %v889 = vpack.c.bf16 %v823, %v822
      %v890 = vpack.c.bf16 %v825, %v824
      %v891 = vpack.c.bf16 %v827, %v826
      %v956 = vunpack.c.l.b16 %v828
      %v957 = vunpack.c.h.b16 %v828
      %v958 = vunpack.c.l.b16 %v829
      %v959 = vunpack.c.h.b16 %v829
      %v960 = vunpack.c.l.b16 %v830
      %v961 = vunpack.c.h.b16 %v830
      %v962 = vunpack.c.l.b16 %v831
      %v963 = vunpack.c.h.b16 %v831
      %v964 = vunpack.c.l.b16 %v832
      %v965 = vunpack.c.h.b16 %v832
      %v966 = vunpack.c.l.b16 %v833
      %v967 = vunpack.c.h.b16 %v833
      %v968 = vunpack.c.l.b16 %v834
      %v969 = vunpack.c.h.b16 %v834
      %v970 = vunpack.c.l.b16 %v835
      %v971 = vunpack.c.h.b16 %v835
      %v972 = vunpack.c.l.b16 %v836
      %v973 = vunpack.c.h.b16 %v836
      %v974 = vunpack.c.l.b16 %v837
      %v975 = vunpack.c.h.b16 %v837
      %v976 = vunpack.c.l.b16 %v838
      %v977 = vunpack.c.h.b16 %v838
      %v978 = vunpack.c.l.b16 %v839
      %v979 = vunpack.c.h.b16 %v839
      %v980 = vunpack.c.l.b16 %v840
      %v981 = vunpack.c.h.b16 %v840
      %v982 = vunpack.c.l.b16 %v841
      %v983 = vunpack.c.h.b16 %v841
      %v984 = vunpack.c.l.b16 %v842
      %v985 = vunpack.c.h.b16 %v842
      %v986 = vunpack.c.l.b16 %v843
      %v987 = vunpack.c.h.b16 %v843
      %v988 = vunpack.c.l.b16 %v844
      %v989 = vunpack.c.h.b16 %v844
      %v990 = vunpack.c.l.b16 %v845
      %v991 = vunpack.c.h.b16 %v845
      %v992 = vunpack.c.l.b16 %v846
      %v993 = vunpack.c.h.b16 %v846
      %v994 = vunpack.c.l.b16 %v847
      %v995 = vunpack.c.h.b16 %v847
      %v996 = vunpack.c.l.b16 %v848
      %v997 = vunpack.c.h.b16 %v848
      %v998 = vunpack.c.l.b16 %v849
      %v999 = vunpack.c.h.b16 %v849
      %v1000 = vunpack.c.l.b16 %v850
      %v1001 = vunpack.c.h.b16 %v850
      %v1002 = vunpack.c.l.b16 %v851
      %v1003 = vunpack.c.h.b16 %v851
      %v1004 = vunpack.c.l.b16 %v852
      %v1005 = vunpack.c.h.b16 %v852
      %v1006 = vunpack.c.l.b16 %v853
      %v1007 = vunpack.c.h.b16 %v853
      %v1008 = vunpack.c.l.b16 %v854
      %v1009 = vunpack.c.h.b16 %v854
      %v1010 = vunpack.c.l.b16 %v855
      %v1011 = vunpack.c.h.b16 %v855
      %v1012 = vunpack.c.l.b16 %v856
      %v1013 = vunpack.c.h.b16 %v856
      %v1014 = vunpack.c.l.b16 %v857
      %v1015 = vunpack.c.h.b16 %v857
      %v1016 = vunpack.c.l.b16 %v858
      %v1017 = vunpack.c.h.b16 %v858
      %v1018 = vunpack.c.l.b16 %v859
      %v1019 = vunpack.c.h.b16 %v859
      %v1020 = vunpack.c.l.b16 %v860
      %v1021 = vunpack.c.h.b16 %v860
      %v1022 = vunpack.c.l.b16 %v861
      %v1023 = vunpack.c.h.b16 %v861
      %v1024 = vunpack.c.l.b16 %v862
      %v1025 = vunpack.c.h.b16 %v862
      %v1026 = vunpack.c.l.b16 %v863
      %v1027 = vunpack.c.h.b16 %v863
      %v1028 = vunpack.c.l.b16 %v864
      %v1029 = vunpack.c.h.b16 %v864
      %v1030 = vunpack.c.l.b16 %v865
      %v1031 = vunpack.c.h.b16 %v865
      %v1032 = vunpack.c.l.b16 %v866
      %v1033 = vunpack.c.h.b16 %v866
      %v1034 = vunpack.c.l.b16 %v867
      %v1035 = vunpack.c.h.b16 %v867
      %v1036 = vunpack.c.l.b16 %v868
      %v1037 = vunpack.c.h.b16 %v868
      %v1038 = vunpack.c.l.b16 %v869
      %v1039 = vunpack.c.h.b16 %v869
      %v1040 = vunpack.c.l.b16 %v870
      %v1041 = vunpack.c.h.b16 %v870
      %v1042 = vunpack.c.l.b16 %v871
      %v1043 = vunpack.c.h.b16 %v871
      %v1044 = vunpack.c.l.b16 %v872
      %v1045 = vunpack.c.h.b16 %v872
      %v1046 = vunpack.c.l.b16 %v873
      %v1047 = vunpack.c.h.b16 %v873
      %v1048 = vunpack.c.l.b16 %v874
      %v1049 = vunpack.c.h.b16 %v874
      %v1050 = vunpack.c.l.b16 %v875
      %v1051 = vunpack.c.h.b16 %v875
      %v1052 = vunpack.c.l.b16 %v876
      %v1053 = vunpack.c.h.b16 %v876
      %v1054 = vunpack.c.l.b16 %v877
      %v1055 = vunpack.c.h.b16 %v877
      %v1056 = vunpack.c.l.b16 %v878
      %v1057 = vunpack.c.h.b16 %v878
      %v1058 = vunpack.c.l.b16 %v879
      %v1059 = vunpack.c.h.b16 %v879
      %v1060 = vunpack.c.l.b16 %v880
      %v1061 = vunpack.c.h.b16 %v880
      %v1062 = vunpack.c.l.b16 %v881
      %v1063 = vunpack.c.h.b16 %v881
      %v1064 = vunpack.c.l.b16 %v882
      %v1065 = vunpack.c.h.b16 %v882
      %v1066 = vunpack.c.l.b16 %v883
      %v1067 = vunpack.c.h.b16 %v883
      %v1068 = vunpack.c.l.b16 %v884
      %v1069 = vunpack.c.h.b16 %v884
      %v1070 = vunpack.c.l.b16 %v885
      %v1071 = vunpack.c.h.b16 %v885
      %v1072 = vunpack.c.l.b16 %v886
      %v1073 = vunpack.c.h.b16 %v886
      %v1074 = vunpack.c.l.b16 %v887
      %v1075 = vunpack.c.h.b16 %v887
      %v1076 = vunpack.c.l.b16 %v888
      %v1077 = vunpack.c.h.b16 %v888
      %v1078 = vunpack.c.l.b16 %v889
      %v1079 = vunpack.c.h.b16 %v889
      %v1080 = vunpack.c.l.b16 %v890
      %v1081 = vunpack.c.h.b16 %v890
      %v1082 = vunpack.c.l.b16 %v891
      %v1083 = vunpack.c.h.b16 %v891
      %v1084 = vpack.c.b16 %v956, %v956
      %v1085 = vpack.c.b16 %v957, %v957
      %v1086 = vpack.c.b16 %v958, %v958
      %v1087 = vpack.c.b16 %v959, %v959
      %v1088 = vpack.c.b16 %v960, %v960
      %v1089 = vpack.c.b16 %v961, %v961
      %v1090 = vpack.c.b16 %v962, %v962
      %v1091 = vpack.c.b16 %v963, %v963
      %v1092 = vpack.c.b16 %v964, %v964
      %v1093 = vpack.c.b16 %v965, %v965
      %v1094 = vpack.c.b16 %v966, %v966
      %v1095 = vpack.c.b16 %v967, %v967
      %v1096 = vpack.c.b16 %v968, %v968
      %v1097 = vpack.c.b16 %v969, %v969
      %v1098 = vpack.c.b16 %v970, %v970
      %v1099 = vpack.c.b16 %v971, %v971
      %v1100 = vpack.c.b16 %v972, %v972
      %v1101 = vpack.c.b16 %v973, %v973
      %v1102 = vpack.c.b16 %v974, %v974
      %v1103 = vpack.c.b16 %v975, %v975
      %v1104 = vpack.c.b16 %v976, %v976
      %v1105 = vpack.c.b16 %v977, %v977
      %v1106 = vpack.c.b16 %v978, %v978
      %v1107 = vpack.c.b16 %v979, %v979
      %v1108 = vpack.c.b16 %v980, %v980
      %v1109 = vpack.c.b16 %v981, %v981
      %v1110 = vpack.c.b16 %v982, %v982
      %v1111 = vpack.c.b16 %v983, %v983
      %v1112 = vpack.c.b16 %v984, %v984
      %v1113 = vpack.c.b16 %v985, %v985
      %v1114 = vpack.c.b16 %v986, %v986
      %v1115 = vpack.c.b16 %v987, %v987
      %v1116 = vpack.c.b16 %v988, %v988
      %v1117 = vpack.c.b16 %v989, %v989
      %v1118 = vpack.c.b16 %v990, %v990
      %v1119 = vpack.c.b16 %v991, %v991
      %v1120 = vpack.c.b16 %v992, %v992
      %v1121 = vpack.c.b16 %v993, %v993
      %v1122 = vpack.c.b16 %v994, %v994
      %v1123 = vpack.c.b16 %v995, %v995
      %v1124 = vpack.c.b16 %v996, %v996
      %v1125 = vpack.c.b16 %v997, %v997
      %v1126 = vpack.c.b16 %v998, %v998
      %v1127 = vpack.c.b16 %v999, %v999
      %v1128 = vpack.c.b16 %v1000, %v1000
      %v1129 = vpack.c.b16 %v1001, %v1001
      %v1130 = vpack.c.b16 %v1002, %v1002
      %v1131 = vpack.c.b16 %v1003, %v1003
      %v1132 = vpack.c.b16 %v1004, %v1004
      %v1133 = vpack.c.b16 %v1005, %v1005
      %v1134 = vpack.c.b16 %v1006, %v1006
      %v1135 = vpack.c.b16 %v1007, %v1007
      %v1136 = vpack.c.b16 %v1008, %v1008
      %v1137 = vpack.c.b16 %v1009, %v1009
      %v1138 = vpack.c.b16 %v1010, %v1010
      %v1139 = vpack.c.b16 %v1011, %v1011
      %v1140 = vpack.c.b16 %v1012, %v1012
      %v1141 = vpack.c.b16 %v1013, %v1013
      %v1142 = vpack.c.b16 %v1014, %v1014
      %v1143 = vpack.c.b16 %v1015, %v1015
      %v1144 = vpack.c.b16 %v1016, %v1016
      %v1145 = vpack.c.b16 %v1017, %v1017
      %v1146 = vpack.c.b16 %v1018, %v1018
      %v1147 = vpack.c.b16 %v1019, %v1019
      %v1148 = vpack.c.b16 %v1020, %v1020
      %v1149 = vpack.c.b16 %v1021, %v1021
      %v1150 = vpack.c.b16 %v1022, %v1022
      %v1151 = vpack.c.b16 %v1023, %v1023
      %v1152 = vpack.c.b16 %v1024, %v1024
      %v1153 = vpack.c.b16 %v1025, %v1025
      %v1154 = vpack.c.b16 %v1026, %v1026
      %v1155 = vpack.c.b16 %v1027, %v1027
      %v1156 = vpack.c.b16 %v1028, %v1028
      %v1157 = vpack.c.b16 %v1029, %v1029
      %v1158 = vpack.c.b16 %v1030, %v1030
      %v1159 = vpack.c.b16 %v1031, %v1031
      %v1160 = vpack.c.b16 %v1032, %v1032
      %v1161 = vpack.c.b16 %v1033, %v1033
      %v1162 = vpack.c.b16 %v1034, %v1034
      %v1163 = vpack.c.b16 %v1035, %v1035
      %v1164 = vpack.c.b16 %v1036, %v1036
      %v1165 = vpack.c.b16 %v1037, %v1037
      %v1166 = vpack.c.b16 %v1038, %v1038
      %v1167 = vpack.c.b16 %v1039, %v1039
      %v1168 = vpack.c.b16 %v1040, %v1040
      %v1169 = vpack.c.b16 %v1041, %v1041
      %v1170 = vpack.c.b16 %v1042, %v1042
      %v1171 = vpack.c.b16 %v1043, %v1043
      %v1172 = vpack.c.b16 %v1044, %v1044
      %v1173 = vpack.c.b16 %v1045, %v1045
      %v1174 = vpack.c.b16 %v1046, %v1046
      %v1175 = vpack.c.b16 %v1047, %v1047
      %v1176 = vpack.c.b16 %v1048, %v1048
      %v1177 = vpack.c.b16 %v1049, %v1049
      %v1178 = vpack.c.b16 %v1050, %v1050
      %v1179 = vpack.c.b16 %v1051, %v1051
      %v1180 = vpack.c.b16 %v1052, %v1052
      %v1181 = vpack.c.b16 %v1053, %v1053
      %v1182 = vpack.c.b16 %v1054, %v1054
      %v1183 = vpack.c.b16 %v1055, %v1055
      %v1184 = vpack.c.b16 %v1056, %v1056
      %v1185 = vpack.c.b16 %v1057, %v1057
      %v1186 = vpack.c.b16 %v1058, %v1058
      %v1187 = vpack.c.b16 %v1059, %v1059
      %v1188 = vpack.c.b16 %v1060, %v1060
      %v1189 = vpack.c.b16 %v1061, %v1061
      %v1190 = vpack.c.b16 %v1062, %v1062
      %v1191 = vpack.c.b16 %v1063, %v1063
      %v1192 = vpack.c.b16 %v1064, %v1064
      %v1193 = vpack.c.b16 %v1065, %v1065
      %v1194 = vpack.c.b16 %v1066, %v1066
      %v1195 = vpack.c.b16 %v1067, %v1067
      %v1196 = vpack.c.b16 %v1068, %v1068
      %v1197 = vpack.c.b16 %v1069, %v1069
      %v1198 = vpack.c.b16 %v1070, %v1070
      %v1199 = vpack.c.b16 %v1071, %v1071
      %v1200 = vpack.c.b16 %v1072, %v1072
      %v1201 = vpack.c.b16 %v1073, %v1073
      %v1202 = vpack.c.b16 %v1074, %v1074
      %v1203 = vpack.c.b16 %v1075, %v1075
      %v1204 = vpack.c.b16 %v1076, %v1076
      %v1205 = vpack.c.b16 %v1077, %v1077
      %v1206 = vpack.c.b16 %v1078, %v1078
      %v1207 = vpack.c.b16 %v1079, %v1079
      %v1208 = vpack.c.b16 %v1080, %v1080
      %v1209 = vpack.c.b16 %v1081, %v1081
      %v1210 = vpack.c.b16 %v1082, %v1082
      %v1211 = vpack.c.b16 %v1083, %v1083
      %1340 = vst [vmem:[%s172] sm:$0xf] %v1084
      %1341 = vst [vmem:[%s172 + $0x4] sm:$0xf] %v1085
      %1342 = vst [vmem:[%s172 + $0x8] sm:$0xf] %v1086
      %1343 = vst [vmem:[%s172 + $0xc] sm:$0xf] %v1087
      %1344 = vst [vmem:[%s172 + $0x10] sm:$0xf] %v1088
      %1345 = vst [vmem:[%s172 + $0x14] sm:$0xf] %v1089
      %1346 = vst [vmem:[%s172 + $0x18] sm:$0xf] %v1090
      %1347 = vst [vmem:[%s172 + $0x1c] sm:$0xf] %v1091
      %1348 = vst [vmem:[%s172 + $0x20] sm:$0xf] %v1092
      %1349 = vst [vmem:[%s172 + $0x24] sm:$0xf] %v1093
      %1350 = vst [vmem:[%s172 + $0x28] sm:$0xf] %v1094
      %1351 = vst [vmem:[%s172 + $0x2c] sm:$0xf] %v1095
      %1352 = vst [vmem:[%s172 + $0x30] sm:$0xf] %v1096
      %1353 = vst [vmem:[%s172 + $0x34] sm:$0xf] %v1097
      %1354 = vst [vmem:[%s172 + $0x38] sm:$0xf] %v1098
      %1355 = vst [vmem:[%s172 + $0x3c] sm:$0xf] %v1099
      %1356 = vst [vmem:[%s172 + $0x40] sm:$0xf] %v1100
      %1357 = vst [vmem:[%s172 + $0x44] sm:$0xf] %v1101
      %1358 = vst [vmem:[%s172 + $0x48] sm:$0xf] %v1102
      %1359 = vst [vmem:[%s172 + $0x4c] sm:$0xf] %v1103
      %1360 = vst [vmem:[%s172 + $0x50] sm:$0xf] %v1104
      %1361 = vst [vmem:[%s172 + $0x54] sm:$0xf] %v1105
      %1362 = vst [vmem:[%s172 + $0x58] sm:$0xf] %v1106
      %1363 = vst [vmem:[%s172 + $0x5c] sm:$0xf] %v1107
      %1364 = vst [vmem:[%s172 + $0x60] sm:$0xf] %v1108
      %1365 = vst [vmem:[%s172 + $0x64] sm:$0xf] %v1109
      %1366 = vst [vmem:[%s172 + $0x68] sm:$0xf] %v1110
      %1367 = vst [vmem:[%s172 + $0x6c] sm:$0xf] %v1111
      %1368 = vst [vmem:[%s172 + $0x70] sm:$0xf] %v1112
      %1369 = vst [vmem:[%s172 + $0x74] sm:$0xf] %v1113
      %1370 = vst [vmem:[%s172 + $0x78] sm:$0xf] %v1114
      %1371 = vst [vmem:[%s172 + $0x7c] sm:$0xf] %v1115
      %1372 = vst [vmem:[%s172 + $0x80] sm:$0xf] %v1116
      %1373 = vst [vmem:[%s172 + $0x84] sm:$0xf] %v1117
      %1374 = vst [vmem:[%s172 + $0x88] sm:$0xf] %v1118
      %1375 = vst [vmem:[%s172 + $0x8c] sm:$0xf] %v1119
      %1376 = vst [vmem:[%s172 + $0x90] sm:$0xf] %v1120
      %1377 = vst [vmem:[%s172 + $0x94] sm:$0xf] %v1121
      %1378 = vst [vmem:[%s172 + $0x98] sm:$0xf] %v1122
      %1379 = vst [vmem:[%s172 + $0x9c] sm:$0xf] %v1123
      %1380 = vst [vmem:[%s172 + $0xa0] sm:$0xf] %v1124
      %1381 = vst [vmem:[%s172 + $0xa4] sm:$0xf] %v1125
      %1382 = vst [vmem:[%s172 + $0xa8] sm:$0xf] %v1126
      %1383 = vst [vmem:[%s172 + $0xac] sm:$0xf] %v1127
      %1384 = vst [vmem:[%s172 + $0xb0] sm:$0xf] %v1128
      %1385 = vst [vmem:[%s172 + $0xb4] sm:$0xf] %v1129
      %1386 = vst [vmem:[%s172 + $0xb8] sm:$0xf] %v1130
      %1387 = vst [vmem:[%s172 + $0xbc] sm:$0xf] %v1131
      %1388 = vst [vmem:[%s172 + $0xc0] sm:$0xf] %v1132
      %1389 = vst [vmem:[%s172 + $0xc4] sm:$0xf] %v1133
      %1390 = vst [vmem:[%s172 + $0xc8] sm:$0xf] %v1134
      %1391 = vst [vmem:[%s172 + $0xcc] sm:$0xf] %v1135
      %1392 = vst [vmem:[%s172 + $0xd0] sm:$0xf] %v1136
      %1393 = vst [vmem:[%s172 + $0xd4] sm:$0xf] %v1137
      %1394 = vst [vmem:[%s172 + $0xd8] sm:$0xf] %v1138
      %1395 = vst [vmem:[%s172 + $0xdc] sm:$0xf] %v1139
      %1396 = vst [vmem:[%s172 + $0xe0] sm:$0xf] %v1140
      %1397 = vst [vmem:[%s172 + $0xe4] sm:$0xf] %v1141
      %1398 = vst [vmem:[%s172 + $0xe8] sm:$0xf] %v1142
      %1399 = vst [vmem:[%s172 + $0xec] sm:$0xf] %v1143
      %1400 = vst [vmem:[%s172 + $0xf0] sm:$0xf] %v1144
      %1401 = vst [vmem:[%s172 + $0xf4] sm:$0xf] %v1145
      %1402 = vst [vmem:[%s172 + $0xf8] sm:$0xf] %v1146
      %1403 = vst [vmem:[%s172 + $0xfc] sm:$0xf] %v1147
      %1404 = vst [vmem:[%s172 + $0x100] sm:$0xf] %v1148
      %1405 = vst [vmem:[%s172 + $0x104] sm:$0xf] %v1149
      %1406 = vst [vmem:[%s172 + $0x108] sm:$0xf] %v1150
      %1407 = vst [vmem:[%s172 + $0x10c] sm:$0xf] %v1151
      %1408 = vst [vmem:[%s172 + $0x110] sm:$0xf] %v1152
      %1409 = vst [vmem:[%s172 + $0x114] sm:$0xf] %v1153
      %1410 = vst [vmem:[%s172 + $0x118] sm:$0xf] %v1154
      %1411 = vst [vmem:[%s172 + $0x11c] sm:$0xf] %v1155
      %1412 = vst [vmem:[%s172 + $0x120] sm:$0xf] %v1156
      %1413 = vst [vmem:[%s172 + $0x124] sm:$0xf] %v1157
      %1414 = vst [vmem:[%s172 + $0x128] sm:$0xf] %v1158
      %1415 = vst [vmem:[%s172 + $0x12c] sm:$0xf] %v1159
      %1416 = vst [vmem:[%s172 + $0x130] sm:$0xf] %v1160
      %1417 = vst [vmem:[%s172 + $0x134] sm:$0xf] %v1161
      %1418 = vst [vmem:[%s172 + $0x138] sm:$0xf] %v1162
      %1419 = vst [vmem:[%s172 + $0x13c] sm:$0xf] %v1163
      %1420 = vst [vmem:[%s172 + $0x140] sm:$0xf] %v1164
      %1421 = vst [vmem:[%s172 + $0x144] sm:$0xf] %v1165
      %1422 = vst [vmem:[%s172 + $0x148] sm:$0xf] %v1166
      %1423 = vst [vmem:[%s172 + $0x14c] sm:$0xf] %v1167
      %1424 = vst [vmem:[%s172 + $0x150] sm:$0xf] %v1168
      %1425 = vst [vmem:[%s172 + $0x154] sm:$0xf] %v1169
      %1426 = vst [vmem:[%s172 + $0x158] sm:$0xf] %v1170
      %1427 = vst [vmem:[%s172 + $0x15c] sm:$0xf] %v1171
      %1428 = vst [vmem:[%s172 + $0x160] sm:$0xf] %v1172
      %1429 = vst [vmem:[%s172 + $0x164] sm:$0xf] %v1173
      %1430 = vst [vmem:[%s172 + $0x168] sm:$0xf] %v1174
      %1431 = vst [vmem:[%s172 + $0x16c] sm:$0xf] %v1175
      %1432 = vst [vmem:[%s172 + $0x170] sm:$0xf] %v1176
      %1433 = vst [vmem:[%s172 + $0x174] sm:$0xf] %v1177
      %1434 = vst [vmem:[%s172 + $0x178] sm:$0xf] %v1178
      %1435 = vst [vmem:[%s172 + $0x17c] sm:$0xf] %v1179
      %1436 = vst [vmem:[%s172 + $0x180] sm:$0xf] %v1180
      %1437 = vst [vmem:[%s172 + $0x184] sm:$0xf] %v1181
      %1438 = vst [vmem:[%s172 + $0x188] sm:$0xf] %v1182
      %1439 = vst [vmem:[%s172 + $0x18c] sm:$0xf] %v1183
      %1440 = vst [vmem:[%s172 + $0x190] sm:$0xf] %v1184
      %1441 = vst [vmem:[%s172 + $0x194] sm:$0xf] %v1185
      %1442 = vst [vmem:[%s172 + $0x198] sm:$0xf] %v1186
      %1443 = vst [vmem:[%s172 + $0x19c] sm:$0xf] %v1187
      %1444 = vst [vmem:[%s172 + $0x1a0] sm:$0xf] %v1188
      %1445 = vst [vmem:[%s172 + $0x1a4] sm:$0xf] %v1189
      %1446 = vst [vmem:[%s172 + $0x1a8] sm:$0xf] %v1190
      %1447 = vst [vmem:[%s172 + $0x1ac] sm:$0xf] %v1191
      %1448 = vst [vmem:[%s172 + $0x1b0] sm:$0xf] %v1192
      %1449 = vst [vmem:[%s172 + $0x1b4] sm:$0xf] %v1193
      %1450 = vst [vmem:[%s172 + $0x1b8] sm:$0xf] %v1194
      %1451 = vst [vmem:[%s172 + $0x1bc] sm:$0xf] %v1195
      %1452 = vst [vmem:[%s172 + $0x1c0] sm:$0xf] %v1196
      %1453 = vst [vmem:[%s172 + $0x1c4] sm:$0xf] %v1197
      %1454 = vst [vmem:[%s172 + $0x1c8] sm:$0xf] %v1198
      %1455 = vst [vmem:[%s172 + $0x1cc] sm:$0xf] %v1199
      %1456 = vst [vmem:[%s172 + $0x1d0] sm:$0xf] %v1200
      %1457 = vst [vmem:[%s172 + $0x1d4] sm:$0xf] %v1201
      %1458 = vst [vmem:[%s172 + $0x1d8] sm:$0xf] %v1202
      %1459 = vst [vmem:[%s172 + $0x1dc] sm:$0xf] %v1203
      %1460 = vst [vmem:[%s172 + $0x1e0] sm:$0xf] %v1204
      %1461 = vst [vmem:[%s172 + $0x1e4] sm:$0xf] %v1205
      %1462 = vst [vmem:[%s172 + $0x1e8] sm:$0xf] %v1206
      %1463 = vst [vmem:[%s172 + $0x1ec] sm:$0xf] %v1207
      %1464 = vst [vmem:[%s172 + $0x1f0] sm:$0xf] %v1208
      %1465 = vst [vmem:[%s172 + $0x1f4] sm:$0xf] %v1209
      %1466 = vst [vmem:[%s172 + $0x1f8] sm:$0xf] %v1210
      %1467 = vst [vmem:[%s172 + $0x1fc] sm:$0xf] %v1211
      %s1468 = smul.u32 128, %s14
      %p1469 = scmp.lt.s32.totalorder %s1468, 255
      %s1470 = scalar_select %p1469, %s1468, 255
      %s1471 = smul.addr %s1470, 4
      %s1472 = scalar_lea.vmem %s3, %s1471
      // Predicated region
      $region33: #{topdown_generator_forward.16} parent=31 // pred_check
        %p1473 = pneg %p100
      $region34: #{topdown_generator_forward.16} parent=31 // pred_check_branch
        %1475 = sbr.rel (%p1473) target = $region36
      $region35: #{topdown_generator_forward.16} parent=31 // pred_region
        %s1476 = smul.u32 128, %s14
      $region36: #{topdown_generator_forward.16} parent=31 // pred_fallthru
        _
    $region32: #{topdown_generator_forward.16} parent=5 // pred_fallthru
      _
    %p1477 = scmp.le.s32.totalorder 2, %s9
    // Predicated region
    $region37: #{topdown_generator_forward.16} parent=5 // pred_check
      %p1478 = pneg %p1477
    $region38: #{topdown_generator_forward.16} parent=5 // pred_check_branch
      %1480 = sbr.rel (%p1478) target = $region40
    $region39: #{topdown_generator_forward.16} parent=5 // pred_region
      %s1481 = ssub.s32 %s9, 2
      // Predicated region
      $region41: #{topdown_generator_forward.16} parent=39 // pred_check
        %p1482 = pneg %p106
      $region42: #{topdown_generator_forward.16} parent=39 // pred_check_branch
        %1484 = sbr.rel (%p1482) target = $region44
      $region43: #{topdown_generator_forward.16} parent=39 // pred_region
        %s1485 = smul.u32 128, %s15
        %p1486 = scmp.lt.s32.totalorder %s1485, 255
        %s1487 = scalar_select %p1486, %s1485, 255
        %s1488 = smul.addr %s1487, 4
        %s1489 = scalar_lea.vmem %s3, %s1488
      $region44: #{topdown_generator_forward.16} parent=39 // pred_fallthru
        _
    $region40: #{topdown_generator_forward.16} parent=5 // pred_fallthru
      _
  $region6: #{topdown_generator_forward.16} parent=0 // loop_footer
    %s13 = sadd.s32 1, %s9
  $region7: #{topdown_generator_forward.16} parent=0 // loop_footer_branch
    %8 = sbr.rel target = $region3
  $region8: #{topdown_generator_forward.16} parent=0 // loop_exit
    _

// kernel: topdown_generator_forward.17
$region0: #{topdown_generator_forward.17}
  #allocation0 [shape = 'u32[]', space=smem, size = 0x4, offset = 0x4, fixed_abs, tag = 'smem constant byte address 0x4 - core index']
  #allocation1 [shape = 'u32[144,128]{1,0:T(1,128)}', space=vmem, size = 0x12000, scoped, tag = 'internal scratch']
  #allocation2 [shape = 'f32[256,128]{1,0:T(8,128)}', space=vmem, size = 0x20000, scoped, tag = 'scratch operand']
  %s0 = inlined_call_operand.vmem [shape: bf16[4,2048,512], index: 0, kind: input, shape index: {}]
  %s1 = inlined_call_operand.vmem [shape: bf16[4,512,128], index: 1, kind: input, shape index: {}]
  %s2 = inlined_call_operand.vmem [shape: f32[1,128], index: 2, kind: input, shape index: {}]
  %s3 = inlined_call_operand.vmem [shape: f32[4,2048,128], index: 3, kind: output, shape index: {}]
  %s4 = sld [smem:[#allocation0]]
  $region53: #{topdown_generator_forward.17} parent=0
    _
  %s6 = ssub.s32 1, %s4
  %s7 = scalar_select 0, %s6, %s4
  loop: start=0, step=1, limit=34
  $region2: #{topdown_generator_forward.17} parent=0 // loop_pre_header
    _
  $region3: #{topdown_generator_forward.17} parent=0 // loop_header
    %s9 = sphi 0, %s13
    %p10 = scmp.ge.s32.totalorder %s9, 34
    %s16 = sphi 0, %s35
    %s17 = sphi 0, %s31
    %s18 = sphi 0, %s27
    %s19 = sphi 0, %s16
    %s20 = sphi 0, %s17
    %s21 = sphi 0, %s18
    %s22 = sphi 0, %s19
    %s23 = sphi 0, %s20
    %s24 = sphi 0, %s21
    %s42 = sphi 0, %s44
    %s45 = sphi 0, %s42
    %s46 = sphi 0, %s45
    %s62 = sphi 0, %s46
    %s70 = sphi 0, %s72
    %s73 = sphi 0, %s70
    %s74 = sphi 0, %s73
    %s90 = sphi 0, %s74
    %s94 = sphi 0, %s94
    %s96 = sphi 0, %s94
    %s97 = sphi 0, %s96
    %s111 = sphi 0, %s97
    %s119 = sphi 0, %s121
    %s122 = sphi 0, %s119
    %s123 = sphi 0, %s122
    %s139 = sphi 0, %s123
  $region4: #{topdown_generator_forward.17} parent=0 // loop_header_branch
    %12 = sbr.rel (%p10) target = $region8
  $region5: #{topdown_generator_forward.17} parent=0 // loop_body
    %s14 = ssub.s32 %s9, 1
    %s15 = ssub.s32 %s9, 2
    %s25 = sadd.s32 1, %s18
    %p26 = scmp.ge.s32.totalorder %s25, 1
    %s27 = scalar_select %p26, 0, %s25
    %s28 = sadd.s32 1, %s17
    %s29 = scalar_select %p26, %s28, %s17
    %p30 = scmp.ge.s32.totalorder %s29, 8
    %s31 = scalar_select %p30, 0, %s29
    %s32 = sadd.s32 1, %s16
    %s33 = scalar_select %p30, %s32, %s16
    %p34 = scmp.ge.s32.totalorder %s33, 4
    %s35 = scalar_select %p34, 0, %s33
    %s36 = ssub.s32 %s16, %s35
    %s37 = ssub.s32 %s17, %s31
    %s38 = sor.u32 %s36, %s37
    %s39 = ssub.s32 %s18, %s27
    %s40 = sor.u32 %s38, %s39
    %p41 = scmp.eq.s32.totalorder %s40, 0
    %s43 = sadd.s32 %s42, 1
    %s44 = scalar_select %p41, %s42, %s43
    %p47 = pneg %p41
    %p48 = scmp.eq.s32.totalorder %s9, 31
    %p49 = por %p47, %p48
    %p50 = scmp.ne.s32.totalorder %s42, %s45
    %p51 = scmp.eq.s32.totalorder %s9, 0
    %p52 = por %p50, %p51
    %p53 = scmp.ne.s32.totalorder %s42, %s45
    %p54 = scmp.eq.s32.totalorder %s14, 31
    %p55 = por %p53, %p54
    %p56 = scmp.ne.s32.totalorder %s45, %s46
    %p57 = scmp.eq.s32.totalorder %s14, 0
    %p58 = por %p56, %p57
    %p59 = scmp.ne.s32.totalorder %s45, %s46
    %p60 = scmp.eq.s32.totalorder %s15, 31
    %p61 = por %p59, %p60
    %p63 = scmp.ne.s32.totalorder %s46, %s62
    %p64 = scmp.eq.s32.totalorder %s15, 0
    %p65 = por %p63, %p64
    %s66 = ssub.s32 %s16, %s35
    %s67 = ssub.s32 %s18, %s27
    %s68 = sor.u32 %s66, %s67
    %p69 = scmp.eq.s32.totalorder %s68, 0
    %s71 = sadd.s32 %s70, 1
    %s72 = scalar_select %p69, %s70, %s71
    %p75 = pneg %p69
    %p76 = scmp.eq.s32.totalorder %s9, 31
    %p77 = por %p75, %p76
    %p78 = scmp.ne.s32.totalorder %s70, %s73
    %p79 = scmp.eq.s32.totalorder %s9, 0
    %p80 = por %p78, %p79
    %p81 = scmp.ne.s32.totalorder %s70, %s73
    %p82 = scmp.eq.s32.totalorder %s14, 31
    %p83 = por %p81, %p82
    %p84 = scmp.ne.s32.totalorder %s73, %s74
    %p85 = scmp.eq.s32.totalorder %s14, 0
    %p86 = por %p84, %p85
    %p87 = scmp.ne.s32.totalorder %s73, %s74
    %p88 = scmp.eq.s32.totalorder %s15, 31
    %p89 = por %p87, %p88
    %p91 = scmp.ne.s32.totalorder %s74, %s90
    %p92 = scmp.eq.s32.totalorder %s15, 0
    %p93 = por %p91, %p92
    %s95 = sadd.s32 %s94, 1
    %p98 = scmp.eq.s32.totalorder %s9, 31
    %p99 = scmp.ne.s32.totalorder %s94, %s96
    %p100 = scmp.eq.s32.totalorder %s9, 0
    %p101 = por %p99, %p100
    %p102 = scmp.ne.s32.totalorder %s94, %s96
    %p103 = scmp.eq.s32.totalorder %s14, 31
    %p104 = por %p102, %p103
    %p105 = scmp.ne.s32.totalorder %s96, %s97
    %p106 = scmp.eq.s32.totalorder %s14, 0
    %p107 = por %p105, %p106
    %p108 = scmp.ne.s32.totalorder %s96, %s97
    %p109 = scmp.eq.s32.totalorder %s15, 31
    %p110 = por %p108, %p109
    %p112 = scmp.ne.s32.totalorder %s97, %s111
    %p113 = scmp.eq.s32.totalorder %s15, 0
    %p114 = por %p112, %p113
    %s115 = ssub.s32 %s16, %s35
    %s116 = ssub.s32 %s17, %s31
    %s117 = sor.u32 %s115, %s116
    %p118 = scmp.eq.s32.totalorder %s117, 0
    %s120 = sadd.s32 %s119, 1
    %s121 = scalar_select %p118, %s119, %s120
    %p124 = pneg %p118
    %p125 = scmp.eq.s32.totalorder %s9, 31
    %p126 = por %p124, %p125
    %p127 = scmp.ne.s32.totalorder %s119, %s122
    %p128 = scmp.eq.s32.totalorder %s9, 0
    %p129 = por %p127, %p128
    %p130 = scmp.ne.s32.totalorder %s119, %s122
    %p131 = scmp.eq.s32.totalorder %s14, 31
    %p132 = por %p130, %p131
    %p133 = scmp.ne.s32.totalorder %s122, %s123
    %p134 = scmp.eq.s32.totalorder %s14, 0
    %p135 = por %p133, %p134
    %p136 = scmp.ne.s32.totalorder %s122, %s123
    %p137 = scmp.eq.s32.totalorder %s15, 31
    %p138 = por %p136, %p137
    %p140 = scmp.ne.s32.totalorder %s123, %s139
    %p141 = scmp.eq.s32.totalorder %s15, 0
    %p142 = por %p140, %p141
    %p143 = scmp.le.s32.totalorder 1, %s9
    %p144 = scmp.lt.s32.totalorder %s9, 33
    %p145 = pnand %p143, %p144
    %p146 = pneg %p145
    // Predicated region
    $region9: #{topdown_generator_forward.17} parent=5 // pred_check
      _
    $region10: #{topdown_generator_forward.17} parent=5 // pred_check_branch
      %148 = sbr.rel (%p145) target = $region12
    $region11: #{topdown_generator_forward.17} parent=5 // pred_region
      %s149 = ssub.s32 %s9, 1
      // Predicated region
      $region13: #{topdown_generator_forward.17} parent=11 // pred_check
        %p150 = pneg %p107
      $region14: #{topdown_generator_forward.17} parent=11 // pred_check_branch
        %152 = sbr.rel (%p150) target = $region16
      $region15: #{topdown_generator_forward.17} parent=11 // pred_region
        _
      $region16: #{topdown_generator_forward.17} parent=11 // pred_fallthru
        _
    $region12: #{topdown_generator_forward.17} parent=5 // pred_fallthru
      _
    %p153 = scmp.lt.s32.totalorder %s9, 32
    // Predicated region
    $region17: #{topdown_generator_forward.17} parent=5 // pred_check
      %p154 = pneg %p153
    $region18: #{topdown_generator_forward.17} parent=5 // pred_check_branch
      %156 = sbr.rel (%p154) target = $region20
    $region19: #{topdown_generator_forward.17} parent=5 // pred_region
      // Predicated region
      $region21: #{topdown_generator_forward.17} parent=19 // pred_check
        %p157 = pneg %p52
      $region22: #{topdown_generator_forward.17} parent=19 // pred_check_branch
        %159 = sbr.rel (%p157) target = $region24
      $region23: #{topdown_generator_forward.17} parent=19 // pred_region
        %s160 = smul.u32 32, %s17
        %s161 = smul.u32 4, %s18
        %p162 = scmp.lt.s32.totalorder %s16, 3
        %s163 = scalar_select %p162, %s16, 3
        %p164 = scmp.lt.s32.totalorder %s160, 255
        %s165 = scalar_select %p164, %s160, 255
        %p166 = scmp.lt.s32.totalorder %s161, 3
        %s167 = scalar_select %p166, %s161, 3
        %s168 = smul.addr %s165, 4
        %s169 = sadd.s32 %s167, %s168
        %s170 = smul.addr %s163, 1024
        %s171 = sadd.s32 %s169, %s170
        %s172 = smul.addr %s171, 4
        %s173 = scalar_lea.vmem %s0, %s172
        %s174 = smul.u32 32, %s17
        %s175 = smul.u32 4, %s18
      $region24: #{topdown_generator_forward.17} parent=19 // pred_fallthru
        _
      // Predicated region
      $region25: #{topdown_generator_forward.17} parent=19 // pred_check
        %p176 = pneg %p80
      $region26: #{topdown_generator_forward.17} parent=19 // pred_check_branch
        %178 = sbr.rel (%p176) target = $region28
      $region27: #{topdown_generator_forward.17} parent=19 // pred_region
        %s179 = smul.u32 64, %s18
        %p180 = scmp.lt.s32.totalorder %s16, 3
        %s181 = scalar_select %p180, %s16, 3
        %p182 = scmp.lt.s32.totalorder %s179, 63
        %s183 = scalar_select %p182, %s179, 63
        %s184 = smul.addr %s181, 64
        %s185 = sadd.s32 %s183, %s184
        %s186 = smul.addr %s185, 4
        %s187 = scalar_lea.vmem %s1, %s186
        %s188 = smul.u32 64, %s18
      $region28: #{topdown_generator_forward.17} parent=19 // pred_fallthru
        _
    $region20: #{topdown_generator_forward.17} parent=5 // pred_fallthru
      _
    %p189 = scmp.le.s32.totalorder 1, %s9
    %p190 = scmp.lt.s32.totalorder %s9, 33
    %p191 = pnand %p189, %p190
    %p192 = pneg %p191
    // Predicated region
    $region29: #{topdown_generator_forward.17} parent=5 // pred_check
      _
    $region30: #{topdown_generator_forward.17} parent=5 // pred_check_branch
      %194 = sbr.rel (%p191) target = $region32
    $region31: #{topdown_generator_forward.17} parent=5 // pred_region
      %s195 = ssub.s32 %s9, 1
      %s196 = smul.u32 32, %s20
      %s197 = smul.u32 4, %s21
      %p198 = scmp.lt.s32.totalorder %s19, 3
      %s199 = scalar_select %p198, %s19, 3
      %p200 = scmp.lt.s32.totalorder %s196, 255
      %s201 = scalar_select %p200, %s196, 255
      %p202 = scmp.lt.s32.totalorder %s197, 3
      %s203 = scalar_select %p202, %s197, 3
      %s204 = smul.addr %s201, 4
      %s205 = sadd.s32 %s203, %s204
      %s206 = smul.addr %s199, 1024
      %s207 = sadd.s32 %s205, %s206
      %s208 = smul.addr %s207, 4
      %s209 = scalar_lea.vmem %s0, %s208
      %p210 = pneg %p58
      %p211 = pneg %p55
      %s212 = smul.u32 64, %s21
      %p213 = scmp.lt.s32.totalorder %s19, 3
      %s214 = scalar_select %p213, %s19, 3
      %p215 = scmp.lt.s32.totalorder %s212, 63
      %s216 = scalar_select %p215, %s212, 63
      %s217 = smul.addr %s214, 64
      %s218 = sadd.s32 %s216, %s217
      %s219 = smul.addr %s218, 4
      %s220 = scalar_lea.vmem %s1, %s219
      %p221 = pneg %p86
      %p222 = pneg %p83
      %p223 = pneg %p107
      %p224 = pneg %p104
      %p225 = pneg %p135
      %p226 = pneg %p132
      %s227 = smul.u32 32, %s20
      %p228 = scmp.lt.s32.totalorder %s19, 3
      %s229 = scalar_select %p228, %s19, 3
      %p230 = scmp.lt.s32.totalorder %s227, 255
      %s231 = scalar_select %p230, %s227, 255
      %s232 = smul.addr %s229, 256
      %s233 = sadd.s32 %s231, %s232
      %s234 = smul.addr %s233, 8
      %s235 = scalar_lea.vmem %s3, %s234
      %s236 = smul.u32 32, %s20
      %s237 = smul.u32 4, %s21
      %p238 = scmp.lt.s32.totalorder %s19, 3
      %s239 = scalar_select %p238, %s19, 3
      %p240 = scmp.lt.s32.totalorder %s236, 255
      %s241 = scalar_select %p240, %s236, 255
      %p242 = scmp.lt.s32.totalorder %s237, 3
      %s243 = scalar_select %p242, %s237, 3
      %s244 = smul.addr %s241, 4
      %s245 = sadd.s32 %s243, %s244
      %s246 = smul.addr %s239, 1024
      %s247 = sadd.s32 %s245, %s246
      %s248 = smul.addr %s247, 4
      %s249 = scalar_lea.vmem %s0, %s248
      %s250 = smul.u32 32, %s20
      %s251 = smul.u32 4, %s21
      %s252 = smul.u32 64, %s21
      %p253 = scmp.lt.s32.totalorder %s19, 3
      %s254 = scalar_select %p253, %s19, 3
      %p255 = scmp.lt.s32.totalorder %s252, 63
      %s256 = scalar_select %p255, %s252, 63
      %s257 = smul.addr %s254, 64
      %s258 = sadd.s32 %s256, %s257
      %s259 = smul.addr %s258, 4
      %s260 = scalar_lea.vmem %s1, %s259
      %s261 = smul.u32 64, %s21
      %s262 = smul.u32 32, %s20
      %p263 = scmp.lt.s32.totalorder %s19, 3
      %s264 = scalar_select %p263, %s19, 3
      %p265 = scmp.lt.s32.totalorder %s262, 255
      %s266 = scalar_select %p265, %s262, 255
      %s267 = smul.addr %s264, 256
      %s268 = sadd.s32 %s266, %s267
      %s269 = smul.addr %s268, 8
      %s270 = scalar_lea.vmem %s3, %s269
      %s271 = smul.u32 32, %s20
      %p273 = scmp.eq.s32.totalorder %s21, 0
      // Predicated region
      $region33: #{topdown_generator_forward.17} parent=31 // pred_check
        %p274 = pneg %p273
      $region34: #{topdown_generator_forward.17} parent=31 // pred_check_branch
        %276 = sbr.rel (%p274) target = $region36
      $region35: #{topdown_generator_forward.17} parent=31 // pred_region
        %277 = vst [vmem:[#allocation2] sm:$0xff] 0.0
        %278 = vst [vmem:[#allocation2 + $0x8] sm:$0xff] 0.0
        %279 = vst [vmem:[#allocation2 + $0x10] sm:$0xff] 0.0
        %280 = vst [vmem:[#allocation2 + $0x18] sm:$0xff] 0.0
        %281 = vst [vmem:[#allocation2 + $0x20] sm:$0xff] 0.0
        %282 = vst [vmem:[#allocation2 + $0x28] sm:$0xff] 0.0
        %283 = vst [vmem:[#allocation2 + $0x30] sm:$0xff] 0.0
        %284 = vst [vmem:[#allocation2 + $0x38] sm:$0xff] 0.0
        %285 = vst [vmem:[#allocation2 + $0x40] sm:$0xff] 0.0
        %286 = vst [vmem:[#allocation2 + $0x48] sm:$0xff] 0.0
        %287 = vst [vmem:[#allocation2 + $0x50] sm:$0xff] 0.0
        %288 = vst [vmem:[#allocation2 + $0x58] sm:$0xff] 0.0
        %289 = vst [vmem:[#allocation2 + $0x60] sm:$0xff] 0.0
        %290 = vst [vmem:[#allocation2 + $0x68] sm:$0xff] 0.0
        %291 = vst [vmem:[#allocation2 + $0x70] sm:$0xff] 0.0
        %292 = vst [vmem:[#allocation2 + $0x78] sm:$0xff] 0.0
        %293 = vst [vmem:[#allocation2 + $0x80] sm:$0xff] 0.0
        %294 = vst [vmem:[#allocation2 + $0x88] sm:$0xff] 0.0
        %295 = vst [vmem:[#allocation2 + $0x90] sm:$0xff] 0.0
        %296 = vst [vmem:[#allocation2 + $0x98] sm:$0xff] 0.0
        %297 = vst [vmem:[#allocation2 + $0xa0] sm:$0xff] 0.0
        %298 = vst [vmem:[#allocation2 + $0xa8] sm:$0xff] 0.0
        %299 = vst [vmem:[#allocation2 + $0xb0] sm:$0xff] 0.0
        %300 = vst [vmem:[#allocation2 + $0xb8] sm:$0xff] 0.0
        %301 = vst [vmem:[#allocation2 + $0xc0] sm:$0xff] 0.0
        %302 = vst [vmem:[#allocation2 + $0xc8] sm:$0xff] 0.0
        %303 = vst [vmem:[#allocation2 + $0xd0] sm:$0xff] 0.0
        %304 = vst [vmem:[#allocation2 + $0xd8] sm:$0xff] 0.0
        %305 = vst [vmem:[#allocation2 + $0xe0] sm:$0xff] 0.0
        %306 = vst [vmem:[#allocation2 + $0xe8] sm:$0xff] 0.0
        %307 = vst [vmem:[#allocation2 + $0xf0] sm:$0xff] 0.0
        %308 = vst [vmem:[#allocation2 + $0xf8] sm:$0xff] 0.0
      $region36: #{topdown_generator_forward.17} parent=31 // pred_fallthru
        _
      %v309 = vld [vmem:[#allocation2] sm:$0xff]
      %v310 = vld [vmem:[#allocation2 + $0x8] sm:$0xff]
      %v311 = vld [vmem:[#allocation2 + $0x10] sm:$0xff]
      %v312 = vld [vmem:[#allocation2 + $0x18] sm:$0xff]
      %v313 = vld [vmem:[#allocation2 + $0x20] sm:$0xff]
      %v314 = vld [vmem:[#allocation2 + $0x28] sm:$0xff]
      %v315 = vld [vmem:[#allocation2 + $0x30] sm:$0xff]
      %v316 = vld [vmem:[#allocation2 + $0x38] sm:$0xff]
      %v317 = vld [vmem:[#allocation2 + $0x40] sm:$0xff]
      %v318 = vld [vmem:[#allocation2 + $0x48] sm:$0xff]
      %v319 = vld [vmem:[#allocation2 + $0x50] sm:$0xff]
      %v320 = vld [vmem:[#allocation2 + $0x58] sm:$0xff]
      %v321 = vld [vmem:[#allocation2 + $0x60] sm:$0xff]
      %v322 = vld [vmem:[#allocation2 + $0x68] sm:$0xff]
      %v323 = vld [vmem:[#allocation2 + $0x70] sm:$0xff]
      %v324 = vld [vmem:[#allocation2 + $0x78] sm:$0xff]
      %v325 = vld [vmem:[#allocation2 + $0x80] sm:$0xff]
      %v326 = vld [vmem:[#allocation2 + $0x88] sm:$0xff]
      %v327 = vld [vmem:[#allocation2 + $0x90] sm:$0xff]
      %v328 = vld [vmem:[#allocation2 + $0x98] sm:$0xff]
      %v329 = vld [vmem:[#allocation2 + $0xa0] sm:$0xff]
      %v330 = vld [vmem:[#allocation2 + $0xa8] sm:$0xff]
      %v331 = vld [vmem:[#allocation2 + $0xb0] sm:$0xff]
      %v332 = vld [vmem:[#allocation2 + $0xb8] sm:$0xff]
      %v333 = vld [vmem:[#allocation2 + $0xc0] sm:$0xff]
      %v334 = vld [vmem:[#allocation2 + $0xc8] sm:$0xff]
      %v335 = vld [vmem:[#allocation2 + $0xd0] sm:$0xff]
      %v336 = vld [vmem:[#allocation2 + $0xd8] sm:$0xff]
      %v337 = vld [vmem:[#allocation2 + $0xe0] sm:$0xff]
      %v338 = vld [vmem:[#allocation2 + $0xe8] sm:$0xff]
      %v339 = vld [vmem:[#allocation2 + $0xf0] sm:$0xff]
      %v340 = vld [vmem:[#allocation2 + $0xf8] sm:$0xff]
      %v341 = vld [vmem:[%s249] sm:$0xff]
      %v342 = vld [vmem:[%s249 + $0x8] sm:$0xff]
      %v343 = vld [vmem:[%s249 + $0x10] sm:$0xff]
      %v344 = vld [vmem:[%s249 + $0x18] sm:$0xff]
      %v345 = vld [vmem:[%s249 + $0x20] sm:$0xff]
      %v346 = vld [vmem:[%s249 + $0x28] sm:$0xff]
      %v347 = vld [vmem:[%s249 + $0x30] sm:$0xff]
      %v348 = vld [vmem:[%s249 + $0x38] sm:$0xff]
      %v349 = vld [vmem:[%s249 + $0x40] sm:$0xff]
      %v350 = vld [vmem:[%s249 + $0x48] sm:$0xff]
      %v351 = vld [vmem:[%s249 + $0x50] sm:$0xff]
      %v352 = vld [vmem:[%s249 + $0x58] sm:$0xff]
      %v353 = vld [vmem:[%s249 + $0x60] sm:$0xff]
      %v354 = vld [vmem:[%s249 + $0x68] sm:$0xff]
      %v355 = vld [vmem:[%s249 + $0x70] sm:$0xff]
      %v356 = vld [vmem:[%s249 + $0x78] sm:$0xff]
      %v357 = vld [vmem:[%s249 + $0x80] sm:$0xff]
      %v358 = vld [vmem:[%s249 + $0x88] sm:$0xff]
      %v359 = vld [vmem:[%s249 + $0x90] sm:$0xff]
      %v360 = vld [vmem:[%s249 + $0x98] sm:$0xff]
      %v361 = vld [vmem:[%s249 + $0xa0] sm:$0xff]
      %v362 = vld [vmem:[%s249 + $0xa8] sm:$0xff]
      %v363 = vld [vmem:[%s249 + $0xb0] sm:$0xff]
      %v364 = vld [vmem:[%s249 + $0xb8] sm:$0xff]
      %v365 = vld [vmem:[%s249 + $0xc0] sm:$0xff]
      %v366 = vld [vmem:[%s249 + $0xc8] sm:$0xff]
      %v367 = vld [vmem:[%s249 + $0xd0] sm:$0xff]
      %v368 = vld [vmem:[%s249 + $0xd8] sm:$0xff]
      %v369 = vld [vmem:[%s249 + $0xe0] sm:$0xff]
      %v370 = vld [vmem:[%s249 + $0xe8] sm:$0xff]
      %v371 = vld [vmem:[%s249 + $0xf0] sm:$0xff]
      %v372 = vld [vmem:[%s249 + $0xf8] sm:$0xff]
      %v373 = vld [vmem:[%s249 + $0x100] sm:$0xff]
      %v374 = vld [vmem:[%s249 + $0x108] sm:$0xff]
      %v375 = vld [vmem:[%s249 + $0x110] sm:$0xff]
      %v376 = vld [vmem:[%s249 + $0x118] sm:$0xff]
      %v377 = vld [vmem:[%s249 + $0x120] sm:$0xff]
      %v378 = vld [vmem:[%s249 + $0x128] sm:$0xff]
      %v379 = vld [vmem:[%s249 + $0x130] sm:$0xff]
      %v380 = vld [vmem:[%s249 + $0x138] sm:$0xff]
      %v381 = vld [vmem:[%s249 + $0x140] sm:$0xff]
      %v382 = vld [vmem:[%s249 + $0x148] sm:$0xff]
      %v383 = vld [vmem:[%s249 + $0x150] sm:$0xff]
      %v384 = vld [vmem:[%s249 + $0x158] sm:$0xff]
      %v385 = vld [vmem:[%s249 + $0x160] sm:$0xff]
      %v386 = vld [vmem:[%s249 + $0x168] sm:$0xff]
      %v387 = vld [vmem:[%s249 + $0x170] sm:$0xff]
      %v388 = vld [vmem:[%s249 + $0x178] sm:$0xff]
      %v389 = vld [vmem:[%s249 + $0x180] sm:$0xff]
      %v390 = vld [vmem:[%s249 + $0x188] sm:$0xff]
      %v391 = vld [vmem:[%s249 + $0x190] sm:$0xff]
      %v392 = vld [vmem:[%s249 + $0x198] sm:$0xff]
      %v393 = vld [vmem:[%s249 + $0x1a0] sm:$0xff]
      %v394 = vld [vmem:[%s249 + $0x1a8] sm:$0xff]
      %v395 = vld [vmem:[%s249 + $0x1b0] sm:$0xff]
      %v396 = vld [vmem:[%s249 + $0x1b8] sm:$0xff]
      %v397 = vld [vmem:[%s249 + $0x1c0] sm:$0xff]
      %v398 = vld [vmem:[%s249 + $0x1c8] sm:$0xff]
      %v399 = vld [vmem:[%s249 + $0x1d0] sm:$0xff]
      %v400 = vld [vmem:[%s249 + $0x1d8] sm:$0xff]
      %v401 = vld [vmem:[%s249 + $0x1e0] sm:$0xff]
      %v402 = vld [vmem:[%s249 + $0x1e8] sm:$0xff]
      %v403 = vld [vmem:[%s249 + $0x1f0] sm:$0xff]
      %v404 = vld [vmem:[%s249 + $0x1f8] sm:$0xff]
      %v405 = vld [vmem:[%s260] sm:$0xf]
      %v406 = vld [vmem:[%s260 + $0x4] sm:$0xf]
      %v407 = vld [vmem:[%s260 + $0x8] sm:$0xf]
      %v408 = vld [vmem:[%s260 + $0xc] sm:$0xf]
      %v409 = vld [vmem:[%s260 + $0x10] sm:$0xf]
      %v410 = vld [vmem:[%s260 + $0x14] sm:$0xf]
      %v411 = vld [vmem:[%s260 + $0x18] sm:$0xf]
      %v412 = vld [vmem:[%s260 + $0x1c] sm:$0xf]
      %v413 = vld [vmem:[%s260 + $0x20] sm:$0xf]
      %v414 = vld [vmem:[%s260 + $0x24] sm:$0xf]
      %v415 = vld [vmem:[%s260 + $0x28] sm:$0xf]
      %v416 = vld [vmem:[%s260 + $0x2c] sm:$0xf]
      %v417 = vld [vmem:[%s260 + $0x30] sm:$0xf]
      %v418 = vld [vmem:[%s260 + $0x34] sm:$0xf]
      %v419 = vld [vmem:[%s260 + $0x38] sm:$0xf]
      %v420 = vld [vmem:[%s260 + $0x3c] sm:$0xf]
      %v421 = vld [vmem:[%s260 + $0x40] sm:$0xf]
      %v422 = vld [vmem:[%s260 + $0x44] sm:$0xf]
      %v423 = vld [vmem:[%s260 + $0x48] sm:$0xf]
      %v424 = vld [vmem:[%s260 + $0x4c] sm:$0xf]
      %v425 = vld [vmem:[%s260 + $0x50] sm:$0xf]
      %v426 = vld [vmem:[%s260 + $0x54] sm:$0xf]
      %v427 = vld [vmem:[%s260 + $0x58] sm:$0xf]
      %v428 = vld [vmem:[%s260 + $0x5c] sm:$0xf]
      %v429 = vld [vmem:[%s260 + $0x60] sm:$0xf]
      %v430 = vld [vmem:[%s260 + $0x64] sm:$0xf]
      %v431 = vld [vmem:[%s260 + $0x68] sm:$0xf]
      %v432 = vld [vmem:[%s260 + $0x6c] sm:$0xf]
      %v433 = vld [vmem:[%s260 + $0x70] sm:$0xf]
      %v434 = vld [vmem:[%s260 + $0x74] sm:$0xf]
      %v435 = vld [vmem:[%s260 + $0x78] sm:$0xf]
      %v436 = vld [vmem:[%s260 + $0x7c] sm:$0xf]
      %v437 = vld [vmem:[%s260 + $0x80] sm:$0xf]
      %v438 = vld [vmem:[%s260 + $0x84] sm:$0xf]
      %v439 = vld [vmem:[%s260 + $0x88] sm:$0xf]
      %v440 = vld [vmem:[%s260 + $0x8c] sm:$0xf]
      %v441 = vld [vmem:[%s260 + $0x90] sm:$0xf]
      %v442 = vld [vmem:[%s260 + $0x94] sm:$0xf]
      %v443 = vld [vmem:[%s260 + $0x98] sm:$0xf]
      %v444 = vld [vmem:[%s260 + $0x9c] sm:$0xf]
      %v445 = vld [vmem:[%s260 + $0xa0] sm:$0xf]
      %v446 = vld [vmem:[%s260 + $0xa4] sm:$0xf]
      %v447 = vld [vmem:[%s260 + $0xa8] sm:$0xf]
      %v448 = vld [vmem:[%s260 + $0xac] sm:$0xf]
      %v449 = vld [vmem:[%s260 + $0xb0] sm:$0xf]
      %v450 = vld [vmem:[%s260 + $0xb4] sm:$0xf]
      %v451 = vld [vmem:[%s260 + $0xb8] sm:$0xf]
      %v452 = vld [vmem:[%s260 + $0xbc] sm:$0xf]
      %v453 = vld [vmem:[%s260 + $0xc0] sm:$0xf]
      %v454 = vld [vmem:[%s260 + $0xc4] sm:$0xf]
      %v455 = vld [vmem:[%s260 + $0xc8] sm:$0xf]
      %v456 = vld [vmem:[%s260 + $0xcc] sm:$0xf]
      %v457 = vld [vmem:[%s260 + $0xd0] sm:$0xf]
      %v458 = vld [vmem:[%s260 + $0xd4] sm:$0xf]
      %v459 = vld [vmem:[%s260 + $0xd8] sm:$0xf]
      %v460 = vld [vmem:[%s260 + $0xdc] sm:$0xf]
      %v461 = vld [vmem:[%s260 + $0xe0] sm:$0xf]
      %v462 = vld [vmem:[%s260 + $0xe4] sm:$0xf]
      %v463 = vld [vmem:[%s260 + $0xe8] sm:$0xf]
      %v464 = vld [vmem:[%s260 + $0xec] sm:$0xf]
      %v465 = vld [vmem:[%s260 + $0xf0] sm:$0xf]
      %v466 = vld [vmem:[%s260 + $0xf4] sm:$0xf]
      %v467 = vld [vmem:[%s260 + $0xf8] sm:$0xf]
      %v468 = vld [vmem:[%s260 + $0xfc] sm:$0xf]
      %v533 = vunpack.c.l.b16 %v341
      %v534 = vunpack.c.h.b16 %v341
      %v535 = vunpack.c.l.b16 %v342
      %v536 = vunpack.c.h.b16 %v342
      %v537 = vunpack.c.l.b16 %v343
      %v538 = vunpack.c.h.b16 %v343
      %v539 = vunpack.c.l.b16 %v344
      %v540 = vunpack.c.h.b16 %v344
      %v541 = vunpack.c.l.b16 %v345
      %v542 = vunpack.c.h.b16 %v345
      %v543 = vunpack.c.l.b16 %v346
      %v544 = vunpack.c.h.b16 %v346
      %v545 = vunpack.c.l.b16 %v347
      %v546 = vunpack.c.h.b16 %v347
      %v547 = vunpack.c.l.b16 %v348
      %v548 = vunpack.c.h.b16 %v348
      %v549 = vunpack.c.l.b16 %v349
      %v550 = vunpack.c.h.b16 %v349
      %v551 = vunpack.c.l.b16 %v350
      %v552 = vunpack.c.h.b16 %v350
      %v553 = vunpack.c.l.b16 %v351
      %v554 = vunpack.c.h.b16 %v351
      %v555 = vunpack.c.l.b16 %v352
      %v556 = vunpack.c.h.b16 %v352
      %v557 = vunpack.c.l.b16 %v353
      %v558 = vunpack.c.h.b16 %v353
      %v559 = vunpack.c.l.b16 %v354
      %v560 = vunpack.c.h.b16 %v354
      %v561 = vunpack.c.l.b16 %v355
      %v562 = vunpack.c.h.b16 %v355
      %v563 = vunpack.c.l.b16 %v356
      %v564 = vunpack.c.h.b16 %v356
      %v565 = vunpack.c.l.b16 %v357
      %v566 = vunpack.c.h.b16 %v357
      %v567 = vunpack.c.l.b16 %v358
      %v568 = vunpack.c.h.b16 %v358
      %v569 = vunpack.c.l.b16 %v359
      %v570 = vunpack.c.h.b16 %v359
      %v571 = vunpack.c.l.b16 %v360
      %v572 = vunpack.c.h.b16 %v360
      %v573 = vunpack.c.l.b16 %v361
      %v574 = vunpack.c.h.b16 %v361
      %v575 = vunpack.c.l.b16 %v362
      %v576 = vunpack.c.h.b16 %v362
      %v577 = vunpack.c.l.b16 %v363
      %v578 = vunpack.c.h.b16 %v363
      %v579 = vunpack.c.l.b16 %v364
      %v580 = vunpack.c.h.b16 %v364
      %v581 = vunpack.c.l.b16 %v365
      %v582 = vunpack.c.h.b16 %v365
      %v583 = vunpack.c.l.b16 %v366
      %v584 = vunpack.c.h.b16 %v366
      %v585 = vunpack.c.l.b16 %v367
      %v586 = vunpack.c.h.b16 %v367
      %v587 = vunpack.c.l.b16 %v368
      %v588 = vunpack.c.h.b16 %v368
      %v589 = vunpack.c.l.b16 %v369
      %v590 = vunpack.c.h.b16 %v369
      %v591 = vunpack.c.l.b16 %v370
      %v592 = vunpack.c.h.b16 %v370
      %v593 = vunpack.c.l.b16 %v371
      %v594 = vunpack.c.h.b16 %v371
      %v595 = vunpack.c.l.b16 %v372
      %v596 = vunpack.c.h.b16 %v372
      %v597 = vunpack.c.l.b16 %v373
      %v598 = vunpack.c.h.b16 %v373
      %v599 = vunpack.c.l.b16 %v374
      %v600 = vunpack.c.h.b16 %v374
      %v601 = vunpack.c.l.b16 %v375
      %v602 = vunpack.c.h.b16 %v375
      %v603 = vunpack.c.l.b16 %v376
      %v604 = vunpack.c.h.b16 %v376
      %v605 = vunpack.c.l.b16 %v377
      %v606 = vunpack.c.h.b16 %v377
      %v607 = vunpack.c.l.b16 %v378
      %v608 = vunpack.c.h.b16 %v378
      %v609 = vunpack.c.l.b16 %v379
      %v610 = vunpack.c.h.b16 %v379
      %v611 = vunpack.c.l.b16 %v380
      %v612 = vunpack.c.h.b16 %v380
      %v613 = vunpack.c.l.b16 %v381
      %v614 = vunpack.c.h.b16 %v381
      %v615 = vunpack.c.l.b16 %v382
      %v616 = vunpack.c.h.b16 %v382
      %v617 = vunpack.c.l.b16 %v383
      %v618 = vunpack.c.h.b16 %v383
      %v619 = vunpack.c.l.b16 %v384
      %v620 = vunpack.c.h.b16 %v384
      %v621 = vunpack.c.l.b16 %v385
      %v622 = vunpack.c.h.b16 %v385
      %v623 = vunpack.c.l.b16 %v386
      %v624 = vunpack.c.h.b16 %v386
      %v625 = vunpack.c.l.b16 %v387
      %v626 = vunpack.c.h.b16 %v387
      %v627 = vunpack.c.l.b16 %v388
      %v628 = vunpack.c.h.b16 %v388
      %v629 = vunpack.c.l.b16 %v389
      %v630 = vunpack.c.h.b16 %v389
      %v631 = vunpack.c.l.b16 %v390
      %v632 = vunpack.c.h.b16 %v390
      %v633 = vunpack.c.l.b16 %v391
      %v634 = vunpack.c.h.b16 %v391
      %v635 = vunpack.c.l.b16 %v392
      %v636 = vunpack.c.h.b16 %v392
      %v637 = vunpack.c.l.b16 %v393
      %v638 = vunpack.c.h.b16 %v393
      %v639 = vunpack.c.l.b16 %v394
      %v640 = vunpack.c.h.b16 %v394
      %v641 = vunpack.c.l.b16 %v395
      %v642 = vunpack.c.h.b16 %v395
      %v643 = vunpack.c.l.b16 %v396
      %v644 = vunpack.c.h.b16 %v396
      %v645 = vunpack.c.l.b16 %v397
      %v646 = vunpack.c.h.b16 %v397
      %v647 = vunpack.c.l.b16 %v398
      %v648 = vunpack.c.h.b16 %v398
      %v649 = vunpack.c.l.b16 %v399
      %v650 = vunpack.c.h.b16 %v399
      %v651 = vunpack.c.l.b16 %v400
      %v652 = vunpack.c.h.b16 %v400
      %v653 = vunpack.c.l.b16 %v401
      %v654 = vunpack.c.h.b16 %v401
      %v655 = vunpack.c.l.b16 %v402
      %v656 = vunpack.c.h.b16 %v402
      %v657 = vunpack.c.l.b16 %v403
      %v658 = vunpack.c.h.b16 %v403
      %v659 = vunpack.c.l.b16 %v404
      %v660 = vunpack.c.h.b16 %v404
      %v661 = vpack.c.b16 %v537, %v533
      %v662 = vpack.c.b16 %v538, %v534
      %v663 = vpack.c.b16 %v539, %v535
      %v664 = vpack.c.b16 %v540, %v536
      %v665 = vpack.c.b16 %v545, %v541
      %v666 = vpack.c.b16 %v546, %v542
      %v667 = vpack.c.b16 %v547, %v543
      %v668 = vpack.c.b16 %v548, %v544
      %v669 = vpack.c.b16 %v553, %v549
      %v670 = vpack.c.b16 %v554, %v550
      %v671 = vpack.c.b16 %v555, %v551
      %v672 = vpack.c.b16 %v556, %v552
      %v673 = vpack.c.b16 %v561, %v557
      %v674 = vpack.c.b16 %v562, %v558
      %v675 = vpack.c.b16 %v563, %v559
      %v676 = vpack.c.b16 %v564, %v560
      %v677 = vpack.c.b16 %v569, %v565
      %v678 = vpack.c.b16 %v570, %v566
      %v679 = vpack.c.b16 %v571, %v567
      %v680 = vpack.c.b16 %v572, %v568
      %v681 = vpack.c.b16 %v577, %v573
      %v682 = vpack.c.b16 %v578, %v574
      %v683 = vpack.c.b16 %v579, %v575
      %v684 = vpack.c.b16 %v580, %v576
      %v685 = vpack.c.b16 %v585, %v581
      %v686 = vpack.c.b16 %v586, %v582
      %v687 = vpack.c.b16 %v587, %v583
      %v688 = vpack.c.b16 %v588, %v584
      %v689 = vpack.c.b16 %v593, %v589
      %v690 = vpack.c.b16 %v594, %v590
      %v691 = vpack.c.b16 %v595, %v591
      %v692 = vpack.c.b16 %v596, %v592
      %v693 = vpack.c.b16 %v601, %v597
      %v694 = vpack.c.b16 %v602, %v598
      %v695 = vpack.c.b16 %v603, %v599
      %v696 = vpack.c.b16 %v604, %v600
      %v697 = vpack.c.b16 %v609, %v605
      %v698 = vpack.c.b16 %v610, %v606
      %v699 = vpack.c.b16 %v611, %v607
      %v700 = vpack.c.b16 %v612, %v608
      %v701 = vpack.c.b16 %v617, %v613
      %v702 = vpack.c.b16 %v618, %v614
      %v703 = vpack.c.b16 %v619, %v615
      %v704 = vpack.c.b16 %v620, %v616
      %v705 = vpack.c.b16 %v625, %v621
      %v706 = vpack.c.b16 %v626, %v622
      %v707 = vpack.c.b16 %v627, %v623
      %v708 = vpack.c.b16 %v628, %v624
      %v709 = vpack.c.b16 %v633, %v629
      %v710 = vpack.c.b16 %v634, %v630
      %v711 = vpack.c.b16 %v635, %v631
      %v712 = vpack.c.b16 %v636, %v632
      %v713 = vpack.c.b16 %v641, %v637
      %v714 = vpack.c.b16 %v642, %v638
      %v715 = vpack.c.b16 %v643, %v639
      %v716 = vpack.c.b16 %v644, %v640
      %v717 = vpack.c.b16 %v649, %v645
      %v718 = vpack.c.b16 %v650, %v646
      %v719 = vpack.c.b16 %v651, %v647
      %v720 = vpack.c.b16 %v652, %v648
      %v721 = vpack.c.b16 %v657, %v653
      %v722 = vpack.c.b16 %v658, %v654
      %v723 = vpack.c.b16 %v659, %v655
      %v724 = vpack.c.b16 %v660, %v656
      %v853 = vunpack.c.l.b16 %v405
      %v854 = vunpack.c.l.b16 %v406
      %v855 = vunpack.c.l.b16 %v407
      %v856 = vunpack.c.l.b16 %v408
      %v857 = vunpack.c.l.b16 %v409
      %v858 = vunpack.c.l.b16 %v410
      %v859 = vunpack.c.l.b16 %v411
      %v860 = vunpack.c.l.b16 %v412
      %v861 = vunpack.c.l.b16 %v413
      %v862 = vunpack.c.l.b16 %v414
      %v863 = vunpack.c.l.b16 %v415
      %v864 = vunpack.c.l.b16 %v416
      %v865 = vunpack.c.l.b16 %v417
      %v866 = vunpack.c.l.b16 %v418
      %v867 = vunpack.c.l.b16 %v419
      %v868 = vunpack.c.l.b16 %v420
      %v869 = vunpack.c.l.b16 %v421
      %v870 = vunpack.c.l.b16 %v422
      %v871 = vunpack.c.l.b16 %v423
      %v872 = vunpack.c.l.b16 %v424
      %v873 = vunpack.c.l.b16 %v425
      %v874 = vunpack.c.l.b16 %v426
      %v875 = vunpack.c.l.b16 %v427
      %v876 = vunpack.c.l.b16 %v428
      %v877 = vunpack.c.l.b16 %v429
      %v878 = vunpack.c.l.b16 %v430
      %v879 = vunpack.c.l.b16 %v431
      %v880 = vunpack.c.l.b16 %v432
      %v881 = vunpack.c.l.b16 %v433
      %v882 = vunpack.c.l.b16 %v434
      %v883 = vunpack.c.l.b16 %v435
      %v884 = vunpack.c.l.b16 %v436
      %v885 = vunpack.c.l.b16 %v437
      %v886 = vunpack.c.l.b16 %v438
      %v887 = vunpack.c.l.b16 %v439
      %v888 = vunpack.c.l.b16 %v440
      %v889 = vunpack.c.l.b16 %v441
      %v890 = vunpack.c.l.b16 %v442
      %v891 = vunpack.c.l.b16 %v443
      %v892 = vunpack.c.l.b16 %v444
      %v893 = vunpack.c.l.b16 %v445
      %v894 = vunpack.c.l.b16 %v446
      %v895 = vunpack.c.l.b16 %v447
      %v896 = vunpack.c.l.b16 %v448
      %v897 = vunpack.c.l.b16 %v449
      %v898 = vunpack.c.l.b16 %v450
      %v899 = vunpack.c.l.b16 %v451
      %v900 = vunpack.c.l.b16 %v452
      %v901 = vunpack.c.l.b16 %v453
      %v902 = vunpack.c.l.b16 %v454
      %v903 = vunpack.c.l.b16 %v455
      %v904 = vunpack.c.l.b16 %v456
      %v905 = vunpack.c.l.b16 %v457
      %v906 = vunpack.c.l.b16 %v458
      %v907 = vunpack.c.l.b16 %v459
      %v908 = vunpack.c.l.b16 %v460
      %v909 = vunpack.c.l.b16 %v461
      %v910 = vunpack.c.l.b16 %v462
      %v911 = vunpack.c.l.b16 %v463
      %v912 = vunpack.c.l.b16 %v464
      %v913 = vunpack.c.l.b16 %v465
      %v914 = vunpack.c.l.b16 %v466
      %v915 = vunpack.c.l.b16 %v467
      %v916 = vunpack.c.l.b16 %v468
      %v917 = vpack.c.b16 %v854, %v853
      %v918 = vpack.c.b16 %v856, %v855
      %v919 = vpack.c.b16 %v858, %v857
      %v920 = vpack.c.b16 %v860, %v859
      %v921 = vpack.c.b16 %v862, %v861
      %v922 = vpack.c.b16 %v864, %v863
      %v923 = vpack.c.b16 %v866, %v865
      %v924 = vpack.c.b16 %v868, %v867
      %v925 = vpack.c.b16 %v870, %v869
      %v926 = vpack.c.b16 %v872, %v871
      %v927 = vpack.c.b16 %v874, %v873
      %v928 = vpack.c.b16 %v876, %v875
      %v929 = vpack.c.b16 %v878, %v877
      %v930 = vpack.c.b16 %v880, %v879
      %v931 = vpack.c.b16 %v882, %v881
      %v932 = vpack.c.b16 %v884, %v883
      %v933 = vpack.c.b16 %v886, %v885
      %v934 = vpack.c.b16 %v888, %v887
      %v935 = vpack.c.b16 %v890, %v889
      %v936 = vpack.c.b16 %v892, %v891
      %v937 = vpack.c.b16 %v894, %v893
      %v938 = vpack.c.b16 %v896, %v895
      %v939 = vpack.c.b16 %v898, %v897
      %v940 = vpack.c.b16 %v900, %v899
      %v941 = vpack.c.b16 %v902, %v901
      %v942 = vpack.c.b16 %v904, %v903
      %v943 = vpack.c.b16 %v906, %v905
      %v944 = vpack.c.b16 %v908, %v907
      %v945 = vpack.c.b16 %v910, %v909
      %v946 = vpack.c.b16 %v912, %v911
      %v947 = vpack.c.b16 %v914, %v913
      %v948 = vpack.c.b16 %v916, %v915
      %981 = vmatprep.subr.bf16.mxu0 0
      %982 = vmatpush1.bf16.msra.mxu0 %v924
      %983 = vmatprep.subr.bf16.mxu0 0
      %984 = vmatpush1.bf16.msra.mxu0 %v923
      %985 = vmatprep.subr.bf16.mxu0 0
      %986 = vmatpush1.bf16.msra.mxu0 %v922
      %987 = vmatprep.subr.bf16.mxu0 0
      %988 = vmatpush1.bf16.msra.mxu0 %v921
      %989 = vmatprep.subr.bf16.mxu0 0
      %990 = vmatpush1.bf16.msra.mxu0 %v920
      %991 = vmatprep.subr.bf16.mxu0 0
      %992 = vmatpush1.bf16.msra.mxu0 %v919
      %993 = vmatprep.subr.bf16.mxu0 0
      %994 = vmatpush1.bf16.msra.mxu0 %v918
      %995 = vmatprep.subr.bf16.mxu0 0
      %996 = vmatpush1.bf16.msra.mxu0 %v917
      %997 = vmatprep.subr.bf16.mxu0 0
      %998 = vmatpush2.bf16.msra.mxu0 %v932
      %999 = vmatprep.subr.bf16.mxu0 0
      %1000 = vmatpush2.bf16.msra.mxu0 %v931
      %1001 = vmatprep.subr.bf16.mxu0 0
      %1002 = vmatpush2.bf16.msra.mxu0 %v930
      %1003 = vmatprep.subr.bf16.mxu0 0
      %1004 = vmatpush2.bf16.msra.mxu0 %v929
      %1005 = vmatprep.subr.bf16.mxu0 0
      %1006 = vmatpush2.bf16.msra.mxu0 %v928
      %1007 = vmatprep.subr.bf16.mxu0 0
      %1008 = vmatpush2.bf16.msra.mxu0 %v927
      %1009 = vmatprep.subr.bf16.mxu0 0
      %1010 = vmatpush2.bf16.msra.mxu0 %v926
      %1011 = vmatprep.subr.bf16.mxu0 0
      %1012 = vmatpush2.bf16.msra.mxu0 %v925
      %1013 = vmatprep.mubr.bf16.mxu0 %v662
      %1014 = vmatmul.mubr.bf16.gmra.mxu0 %v661
      %v1015 = vpop.f32.mrf.mxu0
      %v1016 = vadd.f32 0.0, %v1015
      %v1017 = vpop.f32.mrf.mxu0
      %v1018 = vpop.f32.mrf.mxu0
      %v1019 = vadd.f32 0.0, %v1018
      %v1020 = vpop.f32.mrf.mxu0
      %1021 = vmatprep.mubr.bf16.mxu0 %v666
      %1022 = vmatmul.mubr.bf16.gmra.mxu0 %v665
      %v1023 = vpop.f32.mrf.mxu0
      %v1024 = vadd.f32 0.0, %v1023
      %v1025 = vpop.f32.mrf.mxu0
      %v1026 = vpop.f32.mrf.mxu0
      %v1027 = vadd.f32 0.0, %v1026
      %v1028 = vpop.f32.mrf.mxu0
      %1029 = vmatprep.mubr.bf16.mxu0 %v670
      %1030 = vmatmul.mubr.bf16.gmra.mxu0 %v669
      %v1031 = vpop.f32.mrf.mxu0
      %v1032 = vadd.f32 0.0, %v1031
      %v1033 = vpop.f32.mrf.mxu0
      %v1034 = vpop.f32.mrf.mxu0
      %v1035 = vadd.f32 0.0, %v1034
      %v1036 = vpop.f32.mrf.mxu0
      %1037 = vmatprep.mubr.bf16.mxu0 %v674
      %1038 = vmatmul.mubr.bf16.gmra.mxu0 %v673
      %v1039 = vpop.f32.mrf.mxu0
      %v1040 = vadd.f32 0.0, %v1039
      %v1041 = vpop.f32.mrf.mxu0
      %v1042 = vpop.f32.mrf.mxu0
      %v1043 = vadd.f32 0.0, %v1042
      %v1044 = vpop.f32.mrf.mxu0
      %1045 = vmatprep.mubr.bf16.mxu0 %v678
      %1046 = vmatmul.mubr.bf16.gmra.mxu0 %v677
      %v1047 = vpop.f32.mrf.mxu0
      %v1048 = vadd.f32 0.0, %v1047
      %v1049 = vpop.f32.mrf.mxu0
      %v1050 = vpop.f32.mrf.mxu0
      %v1051 = vadd.f32 0.0, %v1050
      %v1052 = vpop.f32.mrf.mxu0
      %1053 = vmatprep.mubr.bf16.mxu0 %v682
      %1054 = vmatmul.mubr.bf16.gmra.mxu0 %v681
      %v1055 = vpop.f32.mrf.mxu0
      %v1056 = vadd.f32 0.0, %v1055
      %v1057 = vpop.f32.mrf.mxu0
      %v1058 = vpop.f32.mrf.mxu0
      %v1059 = vadd.f32 0.0, %v1058
      %v1060 = vpop.f32.mrf.mxu0
      %1061 = vmatprep.mubr.bf16.mxu0 %v686
      %1062 = vmatmul.mubr.bf16.gmra.mxu0 %v685
      %v1063 = vpop.f32.mrf.mxu0
      %v1064 = vadd.f32 0.0, %v1063
      %v1065 = vpop.f32.mrf.mxu0
      %v1066 = vpop.f32.mrf.mxu0
      %v1067 = vadd.f32 0.0, %v1066
      %v1068 = vpop.f32.mrf.mxu0
      %1069 = vmatprep.mubr.bf16.mxu0 %v690
      %1070 = vmatmul.mubr.bf16.gmra.mxu0 %v689
      %v1071 = vpop.f32.mrf.mxu0
      %v1072 = vadd.f32 0.0, %v1071
      %v1073 = vpop.f32.mrf.mxu0
      %v1074 = vpop.f32.mrf.mxu0
      %v1075 = vadd.f32 0.0, %v1074
      %v1076 = vpop.f32.mrf.mxu0
      %1077 = vmatprep.mubr.bf16.mxu0 %v694
      %1078 = vmatmul.mubr.bf16.gmra.mxu0 %v693
      %v1079 = vpop.f32.mrf.mxu0
      %v1080 = vadd.f32 0.0, %v1079
      %v1081 = vpop.f32.mrf.mxu0
      %v1082 = vpop.f32.mrf.mxu0
      %v1083 = vadd.f32 0.0, %v1082
      %v1084 = vpop.f32.mrf.mxu0
      %1085 = vmatprep.mubr.bf16.mxu0 %v698
      %1086 = vmatmul.mubr.bf16.gmra.mxu0 %v697
      %v1087 = vpop.f32.mrf.mxu0
      %v1088 = vadd.f32 0.0, %v1087
      %v1089 = vpop.f32.mrf.mxu0
      %v1090 = vpop.f32.mrf.mxu0
      %v1091 = vadd.f32 0.0, %v1090
      %v1092 = vpop.f32.mrf.mxu0
      %1093 = vmatprep.mubr.bf16.mxu0 %v702
      %1094 = vmatmul.mubr.bf16.gmra.mxu0 %v701
      %v1095 = vpop.f32.mrf.mxu0
      %v1096 = vadd.f32 0.0, %v1095
      %v1097 = vpop.f32.mrf.mxu0
      %v1098 = vpop.f32.mrf.mxu0
      %v1099 = vadd.f32 0.0, %v1098
      %v1100 = vpop.f32.mrf.mxu0
      %1101 = vmatprep.mubr.bf16.mxu0 %v706
      %1102 = vmatmul.mubr.bf16.gmra.mxu0 %v705
      %v1103 = vpop.f32.mrf.mxu0
      %v1104 = vadd.f32 0.0, %v1103
      %v1105 = vpop.f32.mrf.mxu0
      %v1106 = vpop.f32.mrf.mxu0
      %v1107 = vadd.f32 0.0, %v1106
      %v1108 = vpop.f32.mrf.mxu0
      %1109 = vmatprep.mubr.bf16.mxu0 %v710
      %1110 = vmatmul.mubr.bf16.gmra.mxu0 %v709
      %v1111 = vpop.f32.mrf.mxu0
      %v1112 = vadd.f32 0.0, %v1111
      %v1113 = vpop.f32.mrf.mxu0
      %v1114 = vpop.f32.mrf.mxu0
      %v1115 = vadd.f32 0.0, %v1114
      %v1116 = vpop.f32.mrf.mxu0
      %1117 = vmatprep.mubr.bf16.mxu0 %v714
      %1118 = vmatmul.mubr.bf16.gmra.mxu0 %v713
      %v1119 = vpop.f32.mrf.mxu0
      %v1120 = vadd.f32 0.0, %v1119
      %v1121 = vpop.f32.mrf.mxu0
      %v1122 = vpop.f32.mrf.mxu0
      %v1123 = vadd.f32 0.0, %v1122
      %v1124 = vpop.f32.mrf.mxu0
      %1125 = vmatprep.mubr.bf16.mxu0 %v718
      %1126 = vmatmul.mubr.bf16.gmra.mxu0 %v717
      %v1127 = vpop.f32.mrf.mxu0
      %v1128 = vadd.f32 0.0, %v1127
      %v1129 = vpop.f32.mrf.mxu0
      %v1130 = vpop.f32.mrf.mxu0
      %v1131 = vadd.f32 0.0, %v1130
      %v1132 = vpop.f32.mrf.mxu0
      %1133 = vmatprep.mubr.bf16.mxu0 %v722
      %1134 = vmatmul.mubr.bf16.gmra.mxu0 %v721
      %v1135 = vpop.f32.mrf.mxu0
      %v1136 = vadd.f32 0.0, %v1135
      %v1137 = vpop.f32.mrf.mxu0
      %v1138 = vpop.f32.mrf.mxu0
      %v1139 = vadd.f32 0.0, %v1138
      %v1140 = vpop.f32.mrf.mxu0
      %1141 = vdwg.mxu0
      %1142 = vmatprep.subr.bf16.mxu0 0
      %1143 = vmatpush1.bf16.msra.mxu0 %v940
      %1144 = vmatprep.subr.bf16.mxu0 0
      %1145 = vmatpush1.bf16.msra.mxu0 %v939
      %1146 = vmatprep.subr.bf16.mxu0 0
      %1147 = vmatpush1.bf16.msra.mxu0 %v938
      %1148 = vmatprep.subr.bf16.mxu0 0
      %1149 = vmatpush1.bf16.msra.mxu0 %v937
      %1150 = vmatprep.subr.bf16.mxu0 0
      %1151 = vmatpush1.bf16.msra.mxu0 %v936
      %1152 = vmatprep.subr.bf16.mxu0 0
      %1153 = vmatpush1.bf16.msra.mxu0 %v935
      %1154 = vmatprep.subr.bf16.mxu0 0
      %1155 = vmatpush1.bf16.msra.mxu0 %v934
      %1156 = vmatprep.subr.bf16.mxu0 0
      %1157 = vmatpush1.bf16.msra.mxu0 %v933
      %1158 = vmatprep.subr.bf16.mxu0 0
      %1159 = vmatpush2.bf16.msra.mxu0 %v948
      %1160 = vmatprep.subr.bf16.mxu0 0
      %1161 = vmatpush2.bf16.msra.mxu0 %v947
      %1162 = vmatprep.subr.bf16.mxu0 0
      %1163 = vmatpush2.bf16.msra.mxu0 %v946
      %1164 = vmatprep.subr.bf16.mxu0 0
      %1165 = vmatpush2.bf16.msra.mxu0 %v945
      %1166 = vmatprep.subr.bf16.mxu0 0
      %1167 = vmatpush2.bf16.msra.mxu0 %v944
      %1168 = vmatprep.subr.bf16.mxu0 0
      %1169 = vmatpush2.bf16.msra.mxu0 %v943
      %1170 = vmatprep.subr.bf16.mxu0 0
      %1171 = vmatpush2.bf16.msra.mxu0 %v942
      %1172 = vmatprep.subr.bf16.mxu0 0
      %1173 = vmatpush2.bf16.msra.mxu0 %v941
      %1174 = vmatprep.mubr.bf16.mxu0 %v664
      %1175 = vmatmul.mubr.bf16.gmra.mxu0 %v663
      %v1176 = vpop.f32.mrf.mxu0
      %v1177 = vadd.f32 %v1016, %v1176
      %v1178 = vpop.f32.mrf.mxu0
      %v1179 = vpop.f32.mrf.mxu0
      %v1180 = vadd.f32 %v1019, %v1179
      %v1181 = vpop.f32.mrf.mxu0
      %1182 = vmatprep.mubr.bf16.mxu0 %v668
      %1183 = vmatmul.mubr.bf16.gmra.mxu0 %v667
      %v1184 = vpop.f32.mrf.mxu0
      %v1185 = vadd.f32 %v1024, %v1184
      %v1186 = vpop.f32.mrf.mxu0
      %v1187 = vpop.f32.mrf.mxu0
      %v1188 = vadd.f32 %v1027, %v1187
      %v1189 = vpop.f32.mrf.mxu0
      %1190 = vmatprep.mubr.bf16.mxu0 %v672
      %1191 = vmatmul.mubr.bf16.gmra.mxu0 %v671
      %v1192 = vpop.f32.mrf.mxu0
      %v1193 = vadd.f32 %v1032, %v1192
      %v1194 = vpop.f32.mrf.mxu0
      %v1195 = vpop.f32.mrf.mxu0
      %v1196 = vadd.f32 %v1035, %v1195
      %v1197 = vpop.f32.mrf.mxu0
      %1198 = vmatprep.mubr.bf16.mxu0 %v676
      %1199 = vmatmul.mubr.bf16.gmra.mxu0 %v675
      %v1200 = vpop.f32.mrf.mxu0
      %v1201 = vadd.f32 %v1040, %v1200
      %v1202 = vpop.f32.mrf.mxu0
      %v1203 = vpop.f32.mrf.mxu0
      %v1204 = vadd.f32 %v1043, %v1203
      %v1205 = vpop.f32.mrf.mxu0
      %1206 = vmatprep.mubr.bf16.mxu0 %v680
      %1207 = vmatmul.mubr.bf16.gmra.mxu0 %v679
      %v1208 = vpop.f32.mrf.mxu0
      %v1209 = vadd.f32 %v1048, %v1208
      %v1210 = vpop.f32.mrf.mxu0
      %v1211 = vpop.f32.mrf.mxu0
      %v1212 = vadd.f32 %v1051, %v1211
      %v1213 = vpop.f32.mrf.mxu0
      %1214 = vmatprep.mubr.bf16.mxu0 %v684
      %1215 = vmatmul.mubr.bf16.gmra.mxu0 %v683
      %v1216 = vpop.f32.mrf.mxu0
      %v1217 = vadd.f32 %v1056, %v1216
      %v1218 = vpop.f32.mrf.mxu0
      %v1219 = vpop.f32.mrf.mxu0
      %v1220 = vadd.f32 %v1059, %v1219
      %v1221 = vpop.f32.mrf.mxu0
      %1222 = vmatprep.mubr.bf16.mxu0 %v688
      %1223 = vmatmul.mubr.bf16.gmra.mxu0 %v687
      %v1224 = vpop.f32.mrf.mxu0
      %v1225 = vadd.f32 %v1064, %v1224
      %v1226 = vpop.f32.mrf.mxu0
      %v1227 = vpop.f32.mrf.mxu0
      %v1228 = vadd.f32 %v1067, %v1227
      %v1229 = vpop.f32.mrf.mxu0
      %1230 = vmatprep.mubr.bf16.mxu0 %v692
      %1231 = vmatmul.mubr.bf16.gmra.mxu0 %v691
      %v1232 = vpop.f32.mrf.mxu0
      %v1233 = vadd.f32 %v1072, %v1232
      %v1234 = vpop.f32.mrf.mxu0
      %v1235 = vpop.f32.mrf.mxu0
      %v1236 = vadd.f32 %v1075, %v1235
      %v1237 = vpop.f32.mrf.mxu0
      %1238 = vmatprep.mubr.bf16.mxu0 %v696
      %1239 = vmatmul.mubr.bf16.gmra.mxu0 %v695
      %v1240 = vpop.f32.mrf.mxu0
      %v1241 = vadd.f32 %v1080, %v1240
      %v1242 = vpop.f32.mrf.mxu0
      %v1243 = vpop.f32.mrf.mxu0
      %v1244 = vadd.f32 %v1083, %v1243
      %v1245 = vpop.f32.mrf.mxu0
      %1246 = vmatprep.mubr.bf16.mxu0 %v700
      %1247 = vmatmul.mubr.bf16.gmra.mxu0 %v699
      %v1248 = vpop.f32.mrf.mxu0
      %v1249 = vadd.f32 %v1088, %v1248
      %v1250 = vpop.f32.mrf.mxu0
      %v1251 = vpop.f32.mrf.mxu0
      %v1252 = vadd.f32 %v1091, %v1251
      %v1253 = vpop.f32.mrf.mxu0
      %1254 = vmatprep.mubr.bf16.mxu0 %v704
      %1255 = vmatmul.mubr.bf16.gmra.mxu0 %v703
      %v1256 = vpop.f32.mrf.mxu0
      %v1257 = vadd.f32 %v1096, %v1256
      %v1258 = vpop.f32.mrf.mxu0
      %v1259 = vpop.f32.mrf.mxu0
      %v1260 = vadd.f32 %v1099, %v1259
      %v1261 = vpop.f32.mrf.mxu0
      %1262 = vmatprep.mubr.bf16.mxu0 %v708
      %1263 = vmatmul.mubr.bf16.gmra.mxu0 %v707
      %v1264 = vpop.f32.mrf.mxu0
      %v1265 = vadd.f32 %v1104, %v1264
      %v1266 = vpop.f32.mrf.mxu0
      %v1267 = vpop.f32.mrf.mxu0
      %v1268 = vadd.f32 %v1107, %v1267
      %v1269 = vpop.f32.mrf.mxu0
      %1270 = vmatprep.mubr.bf16.mxu0 %v712
      %1271 = vmatmul.mubr.bf16.gmra.mxu0 %v711
      %v1272 = vpop.f32.mrf.mxu0
      %v1273 = vadd.f32 %v1112, %v1272
      %v1274 = vpop.f32.mrf.mxu0
      %v1275 = vpop.f32.mrf.mxu0
      %v1276 = vadd.f32 %v1115, %v1275
      %v1277 = vpop.f32.mrf.mxu0
      %1278 = vmatprep.mubr.bf16.mxu0 %v716
      %1279 = vmatmul.mubr.bf16.gmra.mxu0 %v715
      %v1280 = vpop.f32.mrf.mxu0
      %v1281 = vadd.f32 %v1120, %v1280
      %v1282 = vpop.f32.mrf.mxu0
      %v1283 = vpop.f32.mrf.mxu0
      %v1284 = vadd.f32 %v1123, %v1283
      %v1285 = vpop.f32.mrf.mxu0
      %1286 = vmatprep.mubr.bf16.mxu0 %v720
      %1287 = vmatmul.mubr.bf16.gmra.mxu0 %v719
      %v1288 = vpop.f32.mrf.mxu0
      %v1289 = vadd.f32 %v1128, %v1288
      %v1290 = vpop.f32.mrf.mxu0
      %v1291 = vpop.f32.mrf.mxu0
      %v1292 = vadd.f32 %v1131, %v1291
      %v1293 = vpop.f32.mrf.mxu0
      %1294 = vmatprep.mubr.bf16.mxu0 %v724
      %1295 = vmatmul.mubr.bf16.gmra.mxu0 %v723
      %v1296 = vpop.f32.mrf.mxu0
      %v1297 = vadd.f32 %v1136, %v1296
      %v1298 = vpop.f32.mrf.mxu0
      %v1299 = vpop.f32.mrf.mxu0
      %v1300 = vadd.f32 %v1139, %v1299
      %v1301 = vpop.f32.mrf.mxu0
      %1302 = vdwg.mxu0
      %v1303 = vadd.f32 %v309, %v1177
      %v1304 = vadd.f32 %v310, %v1180
      %v1305 = vadd.f32 %v311, %v1185
      %v1306 = vadd.f32 %v312, %v1188
      %v1307 = vadd.f32 %v313, %v1193
      %v1308 = vadd.f32 %v314, %v1196
      %v1309 = vadd.f32 %v315, %v1201
      %v1310 = vadd.f32 %v316, %v1204
      %v1311 = vadd.f32 %v317, %v1209
      %v1312 = vadd.f32 %v318, %v1212
      %v1313 = vadd.f32 %v319, %v1217
      %v1314 = vadd.f32 %v320, %v1220
      %v1315 = vadd.f32 %v321, %v1225
      %v1316 = vadd.f32 %v322, %v1228
      %v1317 = vadd.f32 %v323, %v1233
      %v1318 = vadd.f32 %v324, %v1236
      %v1319 = vadd.f32 %v325, %v1241
      %v1320 = vadd.f32 %v326, %v1244
      %v1321 = vadd.f32 %v327, %v1249
      %v1322 = vadd.f32 %v328, %v1252
      %v1323 = vadd.f32 %v329, %v1257
      %v1324 = vadd.f32 %v330, %v1260
      %v1325 = vadd.f32 %v331, %v1265
      %v1326 = vadd.f32 %v332, %v1268
      %v1327 = vadd.f32 %v333, %v1273
      %v1328 = vadd.f32 %v334, %v1276
      %v1329 = vadd.f32 %v335, %v1281
      %v1330 = vadd.f32 %v336, %v1284
      %v1331 = vadd.f32 %v337, %v1289
      %v1332 = vadd.f32 %v338, %v1292
      %v1333 = vadd.f32 %v339, %v1297
      %v1334 = vadd.f32 %v340, %v1300
      %1335 = vst [vmem:[#allocation2] sm:$0xff] %v1303
      %1336 = vst [vmem:[#allocation2 + $0x8] sm:$0xff] %v1304
      %1337 = vst [vmem:[#allocation2 + $0x10] sm:$0xff] %v1305
      %1338 = vst [vmem:[#allocation2 + $0x18] sm:$0xff] %v1306
      %1339 = vst [vmem:[#allocation2 + $0x20] sm:$0xff] %v1307
      %1340 = vst [vmem:[#allocation2 + $0x28] sm:$0xff] %v1308
      %1341 = vst [vmem:[#allocation2 + $0x30] sm:$0xff] %v1309
      %1342 = vst [vmem:[#allocation2 + $0x38] sm:$0xff] %v1310
      %1343 = vst [vmem:[#allocation2 + $0x40] sm:$0xff] %v1311
      %1344 = vst [vmem:[#allocation2 + $0x48] sm:$0xff] %v1312
      %1345 = vst [vmem:[#allocation2 + $0x50] sm:$0xff] %v1313
      %1346 = vst [vmem:[#allocation2 + $0x58] sm:$0xff] %v1314
      %1347 = vst [vmem:[#allocation2 + $0x60] sm:$0xff] %v1315
      %1348 = vst [vmem:[#allocation2 + $0x68] sm:$0xff] %v1316
      %1349 = vst [vmem:[#allocation2 + $0x70] sm:$0xff] %v1317
      %1350 = vst [vmem:[#allocation2 + $0x78] sm:$0xff] %v1318
      %1351 = vst [vmem:[#allocation2 + $0x80] sm:$0xff] %v1319
      %1352 = vst [vmem:[#allocation2 + $0x88] sm:$0xff] %v1320
      %1353 = vst [vmem:[#allocation2 + $0x90] sm:$0xff] %v1321
      %1354 = vst [vmem:[#allocation2 + $0x98] sm:$0xff] %v1322
      %1355 = vst [vmem:[#allocation2 + $0xa0] sm:$0xff] %v1323
      %1356 = vst [vmem:[#allocation2 + $0xa8] sm:$0xff] %v1324
      %1357 = vst [vmem:[#allocation2 + $0xb0] sm:$0xff] %v1325
      %1358 = vst [vmem:[#allocation2 + $0xb8] sm:$0xff] %v1326
      %1359 = vst [vmem:[#allocation2 + $0xc0] sm:$0xff] %v1327
      %1360 = vst [vmem:[#allocation2 + $0xc8] sm:$0xff] %v1328
      %1361 = vst [vmem:[#allocation2 + $0xd0] sm:$0xff] %v1329
      %1362 = vst [vmem:[#allocation2 + $0xd8] sm:$0xff] %v1330
      %1363 = vst [vmem:[#allocation2 + $0xe0] sm:$0xff] %v1331
      %1364 = vst [vmem:[#allocation2 + $0xe8] sm:$0xff] %v1332
      %1365 = vst [vmem:[#allocation2 + $0xf0] sm:$0xff] %v1333
      %1366 = vst [vmem:[#allocation2 + $0xf8] sm:$0xff] %v1334
      // Predicated region
      $region37: #{topdown_generator_forward.17} parent=31 // pred_check
        %p1367 = pneg %p273
      $region38: #{topdown_generator_forward.17} parent=31 // pred_check_branch
        %1369 = sbr.rel (%p1367) target = $region40
      $region39: #{topdown_generator_forward.17} parent=31 // pred_region
        %v1370 = vld [vmem:[#allocation2] sm:$0xff]
        %v1371 = vld [vmem:[#allocation2 + $0x8] sm:$0xff]
        %v1372 = vld [vmem:[#allocation2 + $0x10] sm:$0xff]
        %v1373 = vld [vmem:[#allocation2 + $0x18] sm:$0xff]
        %v1374 = vld [vmem:[#allocation2 + $0x20] sm:$0xff]
        %v1375 = vld [vmem:[#allocation2 + $0x28] sm:$0xff]
        %v1376 = vld [vmem:[#allocation2 + $0x30] sm:$0xff]
        %v1377 = vld [vmem:[#allocation2 + $0x38] sm:$0xff]
        %v1378 = vld [vmem:[#allocation2 + $0x40] sm:$0xff]
        %v1379 = vld [vmem:[#allocation2 + $0x48] sm:$0xff]
        %v1380 = vld [vmem:[#allocation2 + $0x50] sm:$0xff]
        %v1381 = vld [vmem:[#allocation2 + $0x58] sm:$0xff]
        %v1382 = vld [vmem:[#allocation2 + $0x60] sm:$0xff]
        %v1383 = vld [vmem:[#allocation2 + $0x68] sm:$0xff]
        %v1384 = vld [vmem:[#allocation2 + $0x70] sm:$0xff]
        %v1385 = vld [vmem:[#allocation2 + $0x78] sm:$0xff]
        %v1386 = vld [vmem:[#allocation2 + $0x80] sm:$0xff]
        %v1387 = vld [vmem:[#allocation2 + $0x88] sm:$0xff]
        %v1388 = vld [vmem:[#allocation2 + $0x90] sm:$0xff]
        %v1389 = vld [vmem:[#allocation2 + $0x98] sm:$0xff]
        %v1390 = vld [vmem:[#allocation2 + $0xa0] sm:$0xff]
        %v1391 = vld [vmem:[#allocation2 + $0xa8] sm:$0xff]
        %v1392 = vld [vmem:[#allocation2 + $0xb0] sm:$0xff]
        %v1393 = vld [vmem:[#allocation2 + $0xb8] sm:$0xff]
        %v1394 = vld [vmem:[#allocation2 + $0xc0] sm:$0xff]
        %v1395 = vld [vmem:[#allocation2 + $0xc8] sm:$0xff]
        %v1396 = vld [vmem:[#allocation2 + $0xd0] sm:$0xff]
        %v1397 = vld [vmem:[#allocation2 + $0xd8] sm:$0xff]
        %v1398 = vld [vmem:[#allocation2 + $0xe0] sm:$0xff]
        %v1399 = vld [vmem:[#allocation2 + $0xe8] sm:$0xff]
        %v1400 = vld [vmem:[#allocation2 + $0xf0] sm:$0xff]
        %v1401 = vld [vmem:[#allocation2 + $0xf8] sm:$0xff]
        %v1402 = vld [vmem:[%s2] sm:$0x1]
        %v1404 = vlaneseq
        %v1405 = vshrl.u32 %v1404, 7
        %v1406 = vsub.s32 0, %v1405
        %v1407 = vrot.slane %v1402, %v1406
        %v1409 = vadd.f32 %v1370, %v1407
        %v1410 = vadd.f32 %v1371, %v1407
        %v1411 = vadd.f32 %v1372, %v1407
        %v1412 = vadd.f32 %v1373, %v1407
        %v1413 = vadd.f32 %v1374, %v1407
        %v1414 = vadd.f32 %v1375, %v1407
        %v1415 = vadd.f32 %v1376, %v1407
        %v1416 = vadd.f32 %v1377, %v1407
        %v1417 = vadd.f32 %v1378, %v1407
        %v1418 = vadd.f32 %v1379, %v1407
        %v1419 = vadd.f32 %v1380, %v1407
        %v1420 = vadd.f32 %v1381, %v1407
        %v1421 = vadd.f32 %v1382, %v1407
        %v1422 = vadd.f32 %v1383, %v1407
        %v1423 = vadd.f32 %v1384, %v1407
        %v1424 = vadd.f32 %v1385, %v1407
        %v1425 = vadd.f32 %v1386, %v1407
        %v1426 = vadd.f32 %v1387, %v1407
        %v1427 = vadd.f32 %v1388, %v1407
        %v1428 = vadd.f32 %v1389, %v1407
        %v1429 = vadd.f32 %v1390, %v1407
        %v1430 = vadd.f32 %v1391, %v1407
        %v1431 = vadd.f32 %v1392, %v1407
        %v1432 = vadd.f32 %v1393, %v1407
        %v1433 = vadd.f32 %v1394, %v1407
        %v1434 = vadd.f32 %v1395, %v1407
        %v1435 = vadd.f32 %v1396, %v1407
        %v1436 = vadd.f32 %v1397, %v1407
        %v1437 = vadd.f32 %v1398, %v1407
        %v1438 = vadd.f32 %v1399, %v1407
        %v1439 = vadd.f32 %v1400, %v1407
        %v1440 = vadd.f32 %v1401, %v1407
        %v1441 = vtanh.pop %v1409
        %v1442 = vtanh.pop %v1410
        %v1443 = vtanh.pop %v1411
        %v1444 = vtanh.pop %v1412
        %v1445 = vtanh.pop %v1413
        %v1446 = vtanh.pop %v1414
        %v1447 = vtanh.pop %v1415
        %v1448 = vtanh.pop %v1416
        %v1449 = vtanh.pop %v1417
        %v1450 = vtanh.pop %v1418
        %v1451 = vtanh.pop %v1419
        %v1452 = vtanh.pop %v1420
        %v1453 = vtanh.pop %v1421
        %v1454 = vtanh.pop %v1422
        %v1455 = vtanh.pop %v1423
        %v1456 = vtanh.pop %v1424
        %v1457 = vtanh.pop %v1425
        %v1458 = vtanh.pop %v1426
        %v1459 = vtanh.pop %v1427
        %v1460 = vtanh.pop %v1428
        %v1461 = vtanh.pop %v1429
        %v1462 = vtanh.pop %v1430
        %v1463 = vtanh.pop %v1431
        %v1464 = vtanh.pop %v1432
        %v1465 = vtanh.pop %v1433
        %v1466 = vtanh.pop %v1434
        %v1467 = vtanh.pop %v1435
        %v1468 = vtanh.pop %v1436
        %v1469 = vtanh.pop %v1437
        %v1470 = vtanh.pop %v1438
        %v1471 = vtanh.pop %v1439
        %v1472 = vtanh.pop %v1440
        %1473 = vst [vmem:[%s270] sm:$0xff] %v1441
        %1474 = vst [vmem:[%s270 + $0x8] sm:$0xff] %v1442
        %1475 = vst [vmem:[%s270 + $0x10] sm:$0xff] %v1443
        %1476 = vst [vmem:[%s270 + $0x18] sm:$0xff] %v1444
        %1477 = vst [vmem:[%s270 + $0x20] sm:$0xff] %v1445
        %1478 = vst [vmem:[%s270 + $0x28] sm:$0xff] %v1446
        %1479 = vst [vmem:[%s270 + $0x30] sm:$0xff] %v1447
        %1480 = vst [vmem:[%s270 + $0x38] sm:$0xff] %v1448
        %1481 = vst [vmem:[%s270 + $0x40] sm:$0xff] %v1449
        %1482 = vst [vmem:[%s270 + $0x48] sm:$0xff] %v1450
        %1483 = vst [vmem:[%s270 + $0x50] sm:$0xff] %v1451
        %1484 = vst [vmem:[%s270 + $0x58] sm:$0xff] %v1452
        %1485 = vst [vmem:[%s270 + $0x60] sm:$0xff] %v1453
        %1486 = vst [vmem:[%s270 + $0x68] sm:$0xff] %v1454
        %1487 = vst [vmem:[%s270 + $0x70] sm:$0xff] %v1455
        %1488 = vst [vmem:[%s270 + $0x78] sm:$0xff] %v1456
        %1489 = vst [vmem:[%s270 + $0x80] sm:$0xff] %v1457
        %1490 = vst [vmem:[%s270 + $0x88] sm:$0xff] %v1458
        %1491 = vst [vmem:[%s270 + $0x90] sm:$0xff] %v1459
        %1492 = vst [vmem:[%s270 + $0x98] sm:$0xff] %v1460
        %1493 = vst [vmem:[%s270 + $0xa0] sm:$0xff] %v1461
        %1494 = vst [vmem:[%s270 + $0xa8] sm:$0xff] %v1462
        %1495 = vst [vmem:[%s270 + $0xb0] sm:$0xff] %v1463
        %1496 = vst [vmem:[%s270 + $0xb8] sm:$0xff] %v1464
        %1497 = vst [vmem:[%s270 + $0xc0] sm:$0xff] %v1465
        %1498 = vst [vmem:[%s270 + $0xc8] sm:$0xff] %v1466
        %1499 = vst [vmem:[%s270 + $0xd0] sm:$0xff] %v1467
        %1500 = vst [vmem:[%s270 + $0xd8] sm:$0xff] %v1468
        %1501 = vst [vmem:[%s270 + $0xe0] sm:$0xff] %v1469
        %1502 = vst [vmem:[%s270 + $0xe8] sm:$0xff] %v1470
        %1503 = vst [vmem:[%s270 + $0xf0] sm:$0xff] %v1471
        %1504 = vst [vmem:[%s270 + $0xf8] sm:$0xff] %v1472
      $region40: #{topdown_generator_forward.17} parent=31 // pred_fallthru
        _
      %s1505 = smul.u32 32, %s20
      %p1506 = scmp.lt.s32.totalorder %s19, 3
      %s1507 = scalar_select %p1506, %s19, 3
      %p1508 = scmp.lt.s32.totalorder %s1505, 255
      %s1509 = scalar_select %p1508, %s1505, 255
      %s1510 = smul.addr %s1507, 256
      %s1511 = sadd.s32 %s1509, %s1510
      %s1512 = smul.addr %s1511, 8
      %s1513 = scalar_lea.vmem %s3, %s1512
      // Predicated region
      $region41: #{topdown_generator_forward.17} parent=31 // pred_check
        %p1514 = pneg %p132
      $region42: #{topdown_generator_forward.17} parent=31 // pred_check_branch
        %1516 = sbr.rel (%p1514) target = $region44
      $region43: #{topdown_generator_forward.17} parent=31 // pred_region
        %s1517 = smul.u32 32, %s20
      $region44: #{topdown_generator_forward.17} parent=31 // pred_fallthru
        _
    $region32: #{topdown_generator_forward.17} parent=5 // pred_fallthru
      _
    %p1518 = scmp.le.s32.totalorder 2, %s9
    // Predicated region
    $region45: #{topdown_generator_forward.17} parent=5 // pred_check
      %p1519 = pneg %p1518
    $region46: #{topdown_generator_forward.17} parent=5 // pred_check_branch
      %1521 = sbr.rel (%p1519) target = $region48
    $region47: #{topdown_generator_forward.17} parent=5 // pred_region
      %s1522 = ssub.s32 %s9, 2
      // Predicated region
      $region49: #{topdown_generator_forward.17} parent=47 // pred_check
        %p1523 = pneg %p138
      $region50: #{topdown_generator_forward.17} parent=47 // pred_check_branch
        %1525 = sbr.rel (%p1523) target = $region52
      $region51: #{topdown_generator_forward.17} parent=47 // pred_region
        %s1526 = smul.u32 32, %s23
        %p1527 = scmp.lt.s32.totalorder %s22, 3
        %s1528 = scalar_select %p1527, %s22, 3
        %p1529 = scmp.lt.s32.totalorder %s1526, 255
        %s1530 = scalar_select %p1529, %s1526, 255
        %s1531 = smul.addr %s1528, 256
        %s1532 = sadd.s32 %s1530, %s1531
        %s1533 = smul.addr %s1532, 8
        %s1534 = scalar_lea.vmem %s3, %s1533
      $region52: #{topdown_generator_forward.17} parent=47 // pred_fallthru
        _
    $region48: #{topdown_generator_forward.17} parent=5 // pred_fallthru
      _
  $region6: #{topdown_generator_forward.17} parent=0 // loop_footer
    %s13 = sadd.s32 1, %s9
  $region7: #{topdown_generator_forward.17} parent=0 // loop_footer_branch
    %8 = sbr.rel target = $region3
  $region8: #{topdown_generator_forward.17} parent=0 // loop_exit
    _

</llo_original>
